<compile_context>
chip_gen: v6e
topology: v6e:2x2x1
jax: 0.10.0
libtpu: 0.0.40
codegen_flags: <defaults>
</compile_context>

<pallas_src>
import jax
import jax.numpy as jnp
from jax.experimental import pallas as pl
from jax.experimental.pallas import tpu as pltpu

# ---------------- static configuration ----------------
B = 2
C_IN = 4
C_OUT = 32
C_MID = C_OUT // 2
H = W = 16
N = H * W                 # 256 spatial positions
NUM_HEADS = 4
HEAD_DIM = C_OUT // NUM_HEADS
CROP_SIZE = 0             # Crop(0) == identity
EPS = 1e-5
TQ = 128                  # q-row tile: only one (TQ, N) score block live at a time


def _ln_cm(h, g, b):
    """Channel-wise LayerNorm in channel-major layout (normalize over axis 0 per position)."""
    mu = jnp.mean(h, axis=0, keepdims=True)
    var = jnp.mean((h - mu) ** 2, axis=0, keepdims=True)
    return (h - mu) * jax.lax.rsqrt(var + EPS) * g + b


# ---------------- Pallas kernel ----------------
def transformer_block_kernel(
    x_ref,     # (1, C_IN, N)     f32   channel-major input block (lane-dense)
    wqv_ref,   # (C_IN, 2*C_OUT)  bf16  [Wq * 1/sqrt(D) | Wv]
    bqv_ref,   # (1, 2*C_OUT)     f32   [bq * 1/sqrt(D) | bv]
    wkT_ref,   # (C_OUT, C_IN)    bf16  Wk^T  (k bias dropped: cancels under softmax)
    woT_ref,   # (C_OUT, C_OUT)   bf16  Wo^T
    wsT_ref,   # (C_OUT, C_IN)    bf16  Ws^T  (shortcut 1x1 conv)
    w1T_ref,   # (C_MID, C_OUT)   bf16  W1^T  (mlp conv1)
    w2T_ref,   # (C_OUT, C_MID)   bf16  W2^T  (mlp conv2)
    vp_ref,    # (C_OUT, 12)      f32   packed per-channel gains/biases (zero-padded rows)
    o_ref,     # (1, C_OUT, N)    f32   channel-major output block (lane-dense store)
):
    f32, bf16 = jnp.float32, jnp.bfloat16

    vp = vp_ref[...]                                            # (32, 12)
    ln1_g, ln1_b = vp[:C_IN, 0:1], vp[:C_IN, 1:2]
    bo = vp[:, 2:3]
    ln2_g, ln2_b = vp[:, 3:4], vp[:, 4:5]
    bs = vp[:, 5:6]
    b1 = vp[:C_MID, 6:7]
    ln3_g, ln3_b = vp[:C_MID, 7:8], vp[:C_MID, 8:9]
    b2 = vp[:, 9:10]
    ln4_g, ln4_b = vp[:, 10:11], vp[:, 11:12]

    x_cm = x_ref[0]                                             # (C_IN, N) f32, channel-major
    x_cm_b = x_cm.astype(bf16)

    # ---- attention prologue: channel-wise LayerNorm + ReLU, channel-major (dense vregs)
    h_cm = jnp.maximum(_ln_cm(x_cm, ln1_g, ln1_b), 0.0)         # (C_IN, N) f32
    h_cm_b = h_cm.astype(bf16)
    h_rm_b = jnp.transpose(h_cm).astype(bf16)                   # (N, C_IN) bf16

    # ---- projections hoisted out of the tile/head loops (computed once per batch)
    # K^T for all heads in one matmul, already transposed for the score matmul.
    kT = jnp.dot(wkT_ref[...], h_cm_b,
                 preferred_element_type=f32).astype(bf16)       # (C_OUT, N)
    # Q (scale folded into weights/bias) and V fused into one wide matmul.
    qv = jnp.dot(h_rm_b, wqv_ref[...],
                 preferred_element_type=f32) + bqv_ref[...]     # (N, 2*C_OUT) f32
    q_all = qv[:, :C_OUT].astype(bf16)                          # (N, C_OUT)
    v_all = qv[:, C_OUT:].astype(bf16)                          # (N, C_OUT)

    kT_h = [kT[hd * HEAD_DIM:(hd + 1) * HEAD_DIM, :] for hd in range(NUM_HEADS)]   # (D, N)
    v_h = [v_all[:, hd * HEAD_DIM:(hd + 1) * HEAD_DIM] for hd in range(NUM_HEADS)]  # (N, D)

    woT = woT_ref[...]
    wsT = wsT_ref[...]
    w1T = w1T_ref[...]
    w2T = w2T_ref[...]

    # ---- q-row tiles: the whole per-position epilogue is fused per tile
    for qt in range(N // TQ):
        r0 = qt * TQ
        q_tile = q_all[r0:r0 + TQ]                              # (TQ, C_OUT) sublane slice

        # heads strictly sequential: softmax consumed immediately, bounded live set
        o_parts = []
        for hd in range(NUM_HEADS):
            q_hd = q_tile[:, hd * HEAD_DIM:(hd + 1) * HEAD_DIM]        # (TQ, D)
            s = jnp.dot(q_hd, kT_h[hd], preferred_element_type=f32)    # (TQ, N) f32
            s = s - jnp.max(s, axis=-1, keepdims=True)
            p = jnp.exp(s.astype(bf16))                                # bf16 probs (EUP)
            l = jnp.sum(p, axis=-1, keepdims=True, dtype=f32)          # (TQ, 1) f32
            oh = jnp.dot(p, v_h[hd], preferred_element_type=f32)       # (TQ, D) f32
            # normalization deferred to the tiny per-head output (EUP approx reciprocal)
            o_parts.append(oh * pl.reciprocal(l, approx=True))
        o_all = jnp.concatenate(o_parts, axis=-1)               # (TQ, C_OUT) f32

        # single transpose per tile -> channel-major epilogue (TQ=128 lanes, dense)
        o_cm = jnp.transpose(o_all).astype(bf16)                # (C_OUT, TQ)
        att = jnp.dot(woT, o_cm, preferred_element_type=f32) + bo
        att = jnp.maximum(_ln_cm(att, ln2_g, ln2_b), 0.0)
        # Dropout(value_dropout_rate): identity at inference time.

        # shortcut branch: 1x1 conv on the raw input (in_channels != out_channels); Crop(0)==id
        sc = jnp.dot(wsT, x_cm_b[:, r0:r0 + TQ], preferred_element_type=f32) + bs
        out = att + sc                                          # (C_OUT, TQ) f32

        # mlp: 1x1 conv -> Norm -> ReLU -> 1x1 conv -> Norm, then residual add
        m = jnp.dot(w1T, out.astype(bf16), preferred_element_type=f32) + b1
        m = jnp.maximum(_ln_cm(m, ln3_g, ln3_b), 0.0)
        m = jnp.dot(w2T, m.astype(bf16), preferred_element_type=f32) + b2
        m = _ln_cm(m, ln4_g, ln4_b)

        # lane-dense store of a (C_OUT, 128) slab into the channel-major output block
        o_ref[0, :, pl.ds(r0, TQ)] = m + out


# ---------------- host-side parameter packing ----------------
def pack_params(p):
    f32, bf16 = jnp.float32, jnp.bfloat16
    scale = 1.0 / (HEAD_DIM ** 0.5)

    # fold 1/sqrt(head_dim) into the q weights/bias; fuse Q and V into one wide slab
    wqv = jnp.concatenate([p["wq"] * scale, p["wv"]], axis=1).astype(bf16)  # (C_IN, 64)
    bqv = jnp.concatenate([p["bq"] * scale, p["bv"]], axis=1).astype(f32)   # (1, 64)
    # K weights transposed so the kernel gets K^T directly; bk dropped (softmax-invariant)
    wkT = jnp.transpose(p["wk"]).astype(bf16)                   # (C_OUT, C_IN)
    # epilogue weights transposed for the channel-major (C_out, C_in) @ (C_in, TQ) form
    woT = jnp.transpose(p["wo"]).astype(bf16)                   # (C_OUT, C_OUT)
    wsT = jnp.transpose(p["ws"]).astype(bf16)                   # (C_OUT, C_IN)
    w1T = jnp.transpose(p["w1"]).astype(bf16)                   # (C_MID, C_OUT)
    w2T = jnp.transpose(p["w2"]).astype(bf16)                   # (C_OUT, C_MID)

    def col(v, width):
        c = jnp.zeros((C_OUT,), f32).at[:width].set(v.reshape(width).astype(f32))
        return c[:, None]

    vp = jnp.concatenate([
        col(p["ln1_g"], C_IN), col(p["ln1_b"], C_IN),
        col(p["bo"], C_OUT), col(p["ln2_g"], C_OUT), col(p["ln2_b"], C_OUT),
        col(p["bs"], C_OUT),
        col(p["b1"], C_MID), col(p["ln3_g"], C_MID), col(p["ln3_b"], C_MID),
        col(p["b2"], C_OUT), col(p["ln4_g"], C_OUT), col(p["ln4_b"], C_OUT),
    ], axis=1)                                                  # (C_OUT, 12)

    return (wqv, bqv, wkT, woT, wsT, w1T, w2T, vp)


# ---------------- wrapper ----------------
def transformer_block(x_nchw, params):
    Bb, Cin, Hh, Ww = x_nchw.shape
    n = Hh * Ww
    # NCHW -> (B, C, H*W): a pure reshape (no transpose); positions land on the 128-lane
    # axis, so input/output DMAs and the per-tile stores are lane-dense.
    x = x_nchw.reshape(Bb, Cin, n)

    packed = pack_params(params)

    def full_spec(a):
        nd = a.ndim
        return pl.BlockSpec(a.shape, lambda b, _nd=nd: (0,) * _nd)

    in_specs = [pl.BlockSpec((1, Cin, n), lambda b: (b, 0, 0))]
    in_specs += [full_spec(a) for a in packed]

    out = pl.pallas_call(
        transformer_block_kernel,
        out_shape=jax.ShapeDtypeStruct((Bb, C_OUT, n), jnp.float32),
        grid_spec=pltpu.PrefetchScalarGridSpec(
            num_scalar_prefetch=0,
            grid=(Bb,),   # B==2: one batch per TensorCore on v7x; serial 2-step on v5e/v6e
            in_specs=in_specs,
            out_specs=pl.BlockSpec((1, C_OUT, n), lambda b: (b, 0, 0)),
        ),
        compiler_params=pltpu.CompilerParams(dimension_semantics=("parallel",)),
    )(x, *packed)

    # Crop(crop_size=0) == identity; (B, C_OUT, H*W) is already NCHW-flat.
    return out.reshape(Bb, C_OUT, Hh, Ww)


# ---------------- pure-JAX reference (for correctness check) ----------------
def reference_forward(x_nchw, p):
    x = jnp.transpose(x_nchw, (0, 2, 3, 1)).reshape(B, N, C_IN)

    def ln(h, g, b):
        mu = h.mean(-1, keepdims=True)
        var = ((h - mu) ** 2).mean(-1, keepdims=True)
        return (h - mu) / jnp.sqrt(var + EPS) * g + b

    h = jnp.maximum(ln(x, p["ln1_g"], p["ln1_b"]), 0.0)
    q = h @ p["wq"] + p["bq"]
    k = h @ p["wk"] + p["bk"]     # kernel drops bk: mathematically identical under softmax
    v = h @ p["wv"] + p["bv"]
    qh = q.reshape(B, N, NUM_HEADS, HEAD_DIM)
    kh = k.reshape(B, N, NUM_HEADS, HEAD_DIM)
    vh = v.reshape(B, N, NUM_HEADS, HEAD_DIM)
    s = jnp.einsum("bnhd,bmhd->bhnm", qh, kh) / (HEAD_DIM ** 0.5)
    pr = jax.nn.softmax(s, axis=-1)
    att = jnp.einsum("bhnm,bmhd->bnhd", pr, vh).reshape(B, N, C_OUT)
    att = att @ p["wo"] + p["bo"]
    att = jnp.maximum(ln(att, p["ln2_g"], p["ln2_b"]), 0.0)

    sc = x @ p["ws"] + p["bs"]
    out = att + sc

    m = out @ p["w1"] + p["b1"]
    m = jnp.maximum(ln(m, p["ln3_g"], p["ln3_b"]), 0.0)
    m = m @ p["w2"] + p["b2"]
    m = ln(m, p["ln4_g"], p["ln4_b"])
    out = m + out
    return jnp.transpose(out.reshape(B, H, W, C_OUT), (0, 3, 1, 2))


# ---------------- deterministic parameter init ----------------
def init_params(key):
    ks = jax.random.split(key, 20)
    s = 0.1
    f32 = jnp.float32

    def nrm(k, shape, scale=s):
        return scale * jax.random.normal(k, shape, f32)

    p = {
        "ln1_g": 1.0 + nrm(ks[0], (1, C_IN)),  "ln1_b": nrm(ks[1], (1, C_IN)),
        "wq": nrm(ks[2], (C_IN, C_OUT)),       "bq": nrm(ks[3], (1, C_OUT)),
        "wk": nrm(ks[4], (C_IN, C_OUT)),       "bk": nrm(ks[5], (1, C_OUT)),
        "wv": nrm(ks[6], (C_IN, C_OUT)),       "bv": nrm(ks[7], (1, C_OUT)),
        "wo": nrm(ks[8], (C_OUT, C_OUT)),      "bo": nrm(ks[9], (1, C_OUT)),
        "ln2_g": 1.0 + nrm(ks[10], (1, C_OUT)), "ln2_b": nrm(ks[11], (1, C_OUT)),
        "ws": nrm(ks[12], (C_IN, C_OUT)),      "bs": nrm(ks[13], (1, C_OUT)),
        "w1": nrm(ks[14], (C_OUT, C_MID)),     "b1": nrm(ks[15], (1, C_MID)),
        "ln3_g": 1.0 + nrm(ks[16], (1, C_MID)), "ln3_b": jnp.zeros((1, C_MID), f32),
        "w2": nrm(ks[17], (C_MID, C_OUT)),     "b2": nrm(ks[18], (1, C_OUT)),
        "ln4_g": 1.0 + nrm(ks[19], (1, C_OUT)), "ln4_b": jnp.zeros((1, C_OUT), f32),
    }
    return p


if __name__ == "__main__":
    key = jax.random.PRNGKey(0)
    k_x, k_p = jax.random.split(key)
    x = jax.random.normal(k_x, (B, C_IN, H, W), jnp.float32)   # NCHW, as in PyTorch
    params = init_params(k_p)

    out = transformer_block(x, params)
    out = jax.block_until_ready(out)
    assert out.shape == (B, C_OUT, H - 2 * CROP_SIZE, W - 2 * CROP_SIZE), out.shape

    ref = jax.block_until_ready(reference_forward(x, params))
    max_err = float(jnp.max(jnp.abs(out - ref)))
    assert max_err < 1e-1, f"max abs error vs reference too large: {max_err}"

    print("KERNEL_OK")
</pallas_src>

<mosaic_0001>
module attributes {stable_mosaic.version = 11 : i64} {
  func.func @transformer_block_kernel(%arg0: i32, %arg1: memref<1x4x256xf32, #tpu.memory_space<vmem>>, %arg2: memref<4x64xbf16, #tpu.memory_space<vmem>>, %arg3: memref<1x64xf32, #tpu.memory_space<vmem>>, %arg4: memref<32x4xbf16, #tpu.memory_space<vmem>>, %arg5: memref<32x32xbf16, #tpu.memory_space<vmem>>, %arg6: memref<32x4xbf16, #tpu.memory_space<vmem>>, %arg7: memref<16x32xbf16, #tpu.memory_space<vmem>>, %arg8: memref<32x16xbf16, #tpu.memory_space<vmem>>, %arg9: memref<32x12xf32, #tpu.memory_space<vmem>>, %arg10: memref<1x32x256xf32, #tpu.memory_space<vmem>>) attributes {dimension_semantics = [#tpu.dimension_semantics<parallel>], iteration_bounds = array<i64: 2>, scalar_prefetch = 0 : i64, scratch_operands = 0 : i64, tpu.core_type = #tpu.core_type<tc>, window_params = [{transform_indices = @transform_0, window_bounds = array<i64: 1, 4, 256>}, {pipeline_mode = #tpu.pipeline_mode<synchronous>, transform_indices = @transform_1, window_bounds = array<i64: 4, 64>}, {pipeline_mode = #tpu.pipeline_mode<synchronous>, transform_indices = @transform_2, window_bounds = array<i64: 1, 64>}, {pipeline_mode = #tpu.pipeline_mode<synchronous>, transform_indices = @transform_3, window_bounds = array<i64: 32, 4>}, {pipeline_mode = #tpu.pipeline_mode<synchronous>, transform_indices = @transform_4, window_bounds = array<i64: 32, 32>}, {pipeline_mode = #tpu.pipeline_mode<synchronous>, transform_indices = @transform_5, window_bounds = array<i64: 32, 4>}, {pipeline_mode = #tpu.pipeline_mode<synchronous>, transform_indices = @transform_6, window_bounds = array<i64: 16, 32>}, {pipeline_mode = #tpu.pipeline_mode<synchronous>, transform_indices = @transform_7, window_bounds = array<i64: 32, 16>}, {pipeline_mode = #tpu.pipeline_mode<synchronous>, transform_indices = @transform_8, window_bounds = array<i64: 32, 12>}, {transform_indices = @transform_9, window_bounds = array<i64: 1, 32, 256>}]} {
    %c0 = arith.constant 0 : index
    %c0_0 = arith.constant 0 : index
    %0 = vector.load %arg9[%c0, %c0_0] : memref<32x12xf32, #tpu.memory_space<vmem>>, vector<32x12xf32>
    %1 = vector.extract_strided_slice %0 {offsets = [0, 0], sizes = [4, 1], strides = [1, 1]} : vector<32x12xf32> to vector<4x1xf32>
    %2 = vector.extract_strided_slice %0 {offsets = [0, 1], sizes = [4, 1], strides = [1, 1]} : vector<32x12xf32> to vector<4x1xf32>
    %3 = vector.extract_strided_slice %0 {offsets = [0, 2], sizes = [32, 1], strides = [1, 1]} : vector<32x12xf32> to vector<32x1xf32>
    %4 = vector.extract_strided_slice %0 {offsets = [0, 3], sizes = [32, 1], strides = [1, 1]} : vector<32x12xf32> to vector<32x1xf32>
    %5 = vector.extract_strided_slice %0 {offsets = [0, 4], sizes = [32, 1], strides = [1, 1]} : vector<32x12xf32> to vector<32x1xf32>
    %6 = vector.extract_strided_slice %0 {offsets = [0, 5], sizes = [32, 1], strides = [1, 1]} : vector<32x12xf32> to vector<32x1xf32>
    %7 = vector.extract_strided_slice %0 {offsets = [0, 6], sizes = [16, 1], strides = [1, 1]} : vector<32x12xf32> to vector<16x1xf32>
    %8 = vector.extract_strided_slice %0 {offsets = [0, 7], sizes = [16, 1], strides = [1, 1]} : vector<32x12xf32> to vector<16x1xf32>
    %9 = vector.extract_strided_slice %0 {offsets = [0, 8], sizes = [16, 1], strides = [1, 1]} : vector<32x12xf32> to vector<16x1xf32>
    %10 = vector.extract_strided_slice %0 {offsets = [0, 9], sizes = [32, 1], strides = [1, 1]} : vector<32x12xf32> to vector<32x1xf32>
    %11 = vector.extract_strided_slice %0 {offsets = [0, 10], sizes = [32, 1], strides = [1, 1]} : vector<32x12xf32> to vector<32x1xf32>
    %12 = vector.extract_strided_slice %0 {offsets = [0, 11], sizes = [32, 1], strides = [1, 1]} : vector<32x12xf32> to vector<32x1xf32>
    %c0_1 = arith.constant 0 : index
    %c0_2 = arith.constant 0 : index
    %c0_3 = arith.constant 0 : index
    %13 = vector.load %arg1[%c0_1, %c0_2, %c0_3] : memref<1x4x256xf32, #tpu.memory_space<vmem>>, vector<1x4x256xf32>
    %14 = vector.shape_cast %13 : vector<1x4x256xf32> to vector<4x256xf32>
    %15 = arith.truncf %14 : vector<4x256xf32> to vector<4x256xbf16>
    %cst = arith.constant dense<0.000000e+00> : vector<256xf32>
    %16 = vector.multi_reduction <add>, %14, %cst [0] : vector<4x256xf32> to vector<256xf32>
    %17 = vector.shape_cast %16 : vector<256xf32> to vector<1x256xf32>
    %cst_4 = arith.constant 4.000000e+00 : f32
    %18 = vector.broadcast %cst_4 : f32 to vector<1x256xf32>
    %19 = arith.divf %17, %18 : vector<1x256xf32>
    %20 = vector.broadcast %19 : vector<1x256xf32> to vector<4x256xf32>
    %21 = arith.subf %14, %20 : vector<4x256xf32>
    %22 = arith.mulf %21, %21 : vector<4x256xf32>
    %cst_5 = arith.constant dense<0.000000e+00> : vector<256xf32>
    %23 = vector.multi_reduction <add>, %22, %cst_5 [0] : vector<4x256xf32> to vector<256xf32>
    %24 = vector.shape_cast %23 : vector<256xf32> to vector<1x256xf32>
    %cst_6 = arith.constant 4.000000e+00 : f32
    %25 = vector.broadcast %cst_6 : f32 to vector<1x256xf32>
    %26 = arith.divf %24, %25 : vector<1x256xf32>
    %27 = vector.broadcast %19 : vector<1x256xf32> to vector<4x256xf32>
    %28 = arith.subf %14, %27 : vector<4x256xf32>
    %cst_7 = arith.constant 9.99999974E-6 : f32
    %29 = vector.broadcast %cst_7 : f32 to vector<1x256xf32>
    %30 = arith.addf %26, %29 : vector<1x256xf32>
    %31 = math.rsqrt %30 : vector<1x256xf32>
    %32 = vector.broadcast %31 : vector<1x256xf32> to vector<4x256xf32>
    %33 = arith.mulf %28, %32 : vector<4x256xf32>
    %34 = vector.broadcast %1 : vector<4x1xf32> to vector<4x256xf32>
    %35 = arith.mulf %33, %34 : vector<4x256xf32>
    %36 = vector.broadcast %2 : vector<4x1xf32> to vector<4x256xf32>
    %37 = arith.addf %35, %36 : vector<4x256xf32>
    %cst_8 = arith.constant 0.000000e+00 : f32
    %38 = vector.broadcast %cst_8 : f32 to vector<4x256xf32>
    %39 = arith.maximumf %37, %38 : vector<4x256xf32>
    %40 = arith.truncf %39 : vector<4x256xf32> to vector<4x256xbf16>
    %41 = tpu.transpose %39, [1, 0] : vector<4x256xf32> -> vector<256x4xf32>
    %42 = arith.truncf %41 : vector<256x4xf32> to vector<256x4xbf16>
    %c0_9 = arith.constant 0 : index
    %c0_10 = arith.constant 0 : index
    %43 = vector.load %arg4[%c0_9, %c0_10] : memref<32x4xbf16, #tpu.memory_space<vmem>>, vector<32x4xbf16>
    %cst_11 = arith.constant dense<0.000000e+00> : vector<32x256xf32>
    %44 = tpu.matmul %43, %40, %cst_11 {dimension_numbers = #tpu.dot_dimension_numbers<[1], [0], [0], [1], [0, 0, 1, 1], [], []>} : vector<32x4xbf16>, vector<4x256xbf16>, vector<32x256xf32> -> vector<32x256xf32>
    %45 = arith.truncf %44 : vector<32x256xf32> to vector<32x256xbf16>
    %c0_12 = arith.constant 0 : index
    %c0_13 = arith.constant 0 : index
    %46 = vector.load %arg2[%c0_12, %c0_13] : memref<4x64xbf16, #tpu.memory_space<vmem>>, vector<4x64xbf16>
    %cst_14 = arith.constant dense<0.000000e+00> : vector<256x64xf32>
    %47 = tpu.matmul %42, %46, %cst_14 {dimension_numbers = #tpu.dot_dimension_numbers<[1], [0], [0], [1], [0, 0, 1, 1], [], []>} : vector<256x4xbf16>, vector<4x64xbf16>, vector<256x64xf32> -> vector<256x64xf32>
    %c0_15 = arith.constant 0 : index
    %c0_16 = arith.constant 0 : index
    %48 = vector.load %arg3[%c0_15, %c0_16] : memref<1x64xf32, #tpu.memory_space<vmem>>, vector<1x64xf32>
    %49 = vector.broadcast %48 : vector<1x64xf32> to vector<256x64xf32>
    %50 = arith.addf %47, %49 : vector<256x64xf32>
    %51 = vector.extract_strided_slice %50 {offsets = [0, 0], sizes = [256, 32], strides = [1, 1]} : vector<256x64xf32> to vector<256x32xf32>
    %52 = arith.truncf %51 : vector<256x32xf32> to vector<256x32xbf16>
    %53 = vector.extract_strided_slice %50 {offsets = [0, 32], sizes = [256, 32], strides = [1, 1]} : vector<256x64xf32> to vector<256x32xf32>
    %54 = arith.truncf %53 : vector<256x32xf32> to vector<256x32xbf16>
    %55 = vector.extract_strided_slice %45 {offsets = [0, 0], sizes = [8, 256], strides = [1, 1]} : vector<32x256xbf16> to vector<8x256xbf16>
    %56 = vector.extract_strided_slice %45 {offsets = [8, 0], sizes = [8, 256], strides = [1, 1]} : vector<32x256xbf16> to vector<8x256xbf16>
    %57 = vector.extract_strided_slice %45 {offsets = [16, 0], sizes = [8, 256], strides = [1, 1]} : vector<32x256xbf16> to vector<8x256xbf16>
    %58 = vector.extract_strided_slice %45 {offsets = [24, 0], sizes = [8, 256], strides = [1, 1]} : vector<32x256xbf16> to vector<8x256xbf16>
    %59 = vector.extract_strided_slice %54 {offsets = [0, 0], sizes = [256, 8], strides = [1, 1]} : vector<256x32xbf16> to vector<256x8xbf16>
    %60 = vector.extract_strided_slice %54 {offsets = [0, 8], sizes = [256, 8], strides = [1, 1]} : vector<256x32xbf16> to vector<256x8xbf16>
    %61 = vector.extract_strided_slice %54 {offsets = [0, 16], sizes = [256, 8], strides = [1, 1]} : vector<256x32xbf16> to vector<256x8xbf16>
    %62 = vector.extract_strided_slice %54 {offsets = [0, 24], sizes = [256, 8], strides = [1, 1]} : vector<256x32xbf16> to vector<256x8xbf16>
    %c0_17 = arith.constant 0 : index
    %c0_18 = arith.constant 0 : index
    %63 = vector.load %arg5[%c0_17, %c0_18] : memref<32x32xbf16, #tpu.memory_space<vmem>>, vector<32x32xbf16>
    %c0_19 = arith.constant 0 : index
    %c0_20 = arith.constant 0 : index
    %64 = vector.load %arg6[%c0_19, %c0_20] : memref<32x4xbf16, #tpu.memory_space<vmem>>, vector<32x4xbf16>
    %c0_21 = arith.constant 0 : index
    %c0_22 = arith.constant 0 : index
    %65 = vector.load %arg7[%c0_21, %c0_22] : memref<16x32xbf16, #tpu.memory_space<vmem>>, vector<16x32xbf16>
    %c0_23 = arith.constant 0 : index
    %c0_24 = arith.constant 0 : index
    %66 = vector.load %arg8[%c0_23, %c0_24] : memref<32x16xbf16, #tpu.memory_space<vmem>>, vector<32x16xbf16>
    %67 = vector.extract_strided_slice %52 {offsets = [0, 0], sizes = [128, 32], strides = [1, 1]} : vector<256x32xbf16> to vector<128x32xbf16>
    %68 = vector.extract_strided_slice %67 {offsets = [0, 0], sizes = [128, 8], strides = [1, 1]} : vector<128x32xbf16> to vector<128x8xbf16>
    %cst_25 = arith.constant dense<0.000000e+00> : vector<128x256xf32>
    %69 = tpu.matmul %68, %55, %cst_25 {dimension_numbers = #tpu.dot_dimension_numbers<[1], [0], [0], [1], [0, 0, 1, 1], [], []>} : vector<128x8xbf16>, vector<8x256xbf16>, vector<128x256xf32> -> vector<128x256xf32>
    %cst_26 = arith.constant dense<0xFF800000> : vector<128xf32>
    %70 = vector.multi_reduction <maximumf>, %69, %cst_26 [1] : vector<128x256xf32> to vector<128xf32>
    %71 = vector.shape_cast %70 : vector<128xf32> to vector<128x1xf32>
    %72 = vector.broadcast %71 : vector<128x1xf32> to vector<128x256xf32>
    %73 = arith.subf %69, %72 : vector<128x256xf32>
    %74 = arith.truncf %73 : vector<128x256xf32> to vector<128x256xbf16>
    %75 = math.exp %74 : vector<128x256xbf16>
    %76 = arith.extf %75 : vector<128x256xbf16> to vector<128x256xf32>
    %cst_27 = arith.constant dense<0.000000e+00> : vector<128xf32>
    %77 = vector.multi_reduction <add>, %76, %cst_27 [1] : vector<128x256xf32> to vector<128xf32>
    %78 = vector.shape_cast %77 : vector<128xf32> to vector<128x1xf32>
    %cst_28 = arith.constant dense<0.000000e+00> : vector<128x8xf32>
    %79 = tpu.matmul %75, %59, %cst_28 {dimension_numbers = #tpu.dot_dimension_numbers<[1], [0], [0], [1], [0, 0, 1, 1], [], []>} : vector<128x256xbf16>, vector<256x8xbf16>, vector<128x8xf32> -> vector<128x8xf32>
    %80 = tpu.reciprocal %78 {approx = true} : vector<128x1xf32> -> vector<128x1xf32>
    %81 = vector.broadcast %80 : vector<128x1xf32> to vector<128x8xf32>
    %82 = arith.mulf %79, %81 : vector<128x8xf32>
    %83 = vector.extract_strided_slice %67 {offsets = [0, 8], sizes = [128, 8], strides = [1, 1]} : vector<128x32xbf16> to vector<128x8xbf16>
    %cst_29 = arith.constant dense<0.000000e+00> : vector<128x256xf32>
    %84 = tpu.matmul %83, %56, %cst_29 {dimension_numbers = #tpu.dot_dimension_numbers<[1], [0], [0], [1], [0, 0, 1, 1], [], []>} : vector<128x8xbf16>, vector<8x256xbf16>, vector<128x256xf32> -> vector<128x256xf32>
    %cst_30 = arith.constant dense<0xFF800000> : vector<128xf32>
    %85 = vector.multi_reduction <maximumf>, %84, %cst_30 [1] : vector<128x256xf32> to vector<128xf32>
    %86 = vector.shape_cast %85 : vector<128xf32> to vector<128x1xf32>
    %87 = vector.broadcast %86 : vector<128x1xf32> to vector<128x256xf32>
    %88 = arith.subf %84, %87 : vector<128x256xf32>
    %89 = arith.truncf %88 : vector<128x256xf32> to vector<128x256xbf16>
    %90 = math.exp %89 : vector<128x256xbf16>
    %91 = arith.extf %90 : vector<128x256xbf16> to vector<128x256xf32>
    %cst_31 = arith.constant dense<0.000000e+00> : vector<128xf32>
    %92 = vector.multi_reduction <add>, %91, %cst_31 [1] : vector<128x256xf32> to vector<128xf32>
    %93 = vector.shape_cast %92 : vector<128xf32> to vector<128x1xf32>
    %cst_32 = arith.constant dense<0.000000e+00> : vector<128x8xf32>
    %94 = tpu.matmul %90, %60, %cst_32 {dimension_numbers = #tpu.dot_dimension_numbers<[1], [0], [0], [1], [0, 0, 1, 1], [], []>} : vector<128x256xbf16>, vector<256x8xbf16>, vector<128x8xf32> -> vector<128x8xf32>
    %95 = tpu.reciprocal %93 {approx = true} : vector<128x1xf32> -> vector<128x1xf32>
    %96 = vector.broadcast %95 : vector<128x1xf32> to vector<128x8xf32>
    %97 = arith.mulf %94, %96 : vector<128x8xf32>
    %98 = vector.extract_strided_slice %67 {offsets = [0, 16], sizes = [128, 8], strides = [1, 1]} : vector<128x32xbf16> to vector<128x8xbf16>
    %cst_33 = arith.constant dense<0.000000e+00> : vector<128x256xf32>
    %99 = tpu.matmul %98, %57, %cst_33 {dimension_numbers = #tpu.dot_dimension_numbers<[1], [0], [0], [1], [0, 0, 1, 1], [], []>} : vector<128x8xbf16>, vector<8x256xbf16>, vector<128x256xf32> -> vector<128x256xf32>
    %cst_34 = arith.constant dense<0xFF800000> : vector<128xf32>
    %100 = vector.multi_reduction <maximumf>, %99, %cst_34 [1] : vector<128x256xf32> to vector<128xf32>
    %101 = vector.shape_cast %100 : vector<128xf32> to vector<128x1xf32>
    %102 = vector.broadcast %101 : vector<128x1xf32> to vector<128x256xf32>
    %103 = arith.subf %99, %102 : vector<128x256xf32>
    %104 = arith.truncf %103 : vector<128x256xf32> to vector<128x256xbf16>
    %105 = math.exp %104 : vector<128x256xbf16>
    %106 = arith.extf %105 : vector<128x256xbf16> to vector<128x256xf32>
    %cst_35 = arith.constant dense<0.000000e+00> : vector<128xf32>
    %107 = vector.multi_reduction <add>, %106, %cst_35 [1] : vector<128x256xf32> to vector<128xf32>
    %108 = vector.shape_cast %107 : vector<128xf32> to vector<128x1xf32>
    %cst_36 = arith.constant dense<0.000000e+00> : vector<128x8xf32>
    %109 = tpu.matmul %105, %61, %cst_36 {dimension_numbers = #tpu.dot_dimension_numbers<[1], [0], [0], [1], [0, 0, 1, 1], [], []>} : vector<128x256xbf16>, vector<256x8xbf16>, vector<128x8xf32> -> vector<128x8xf32>
    %110 = tpu.reciprocal %108 {approx = true} : vector<128x1xf32> -> vector<128x1xf32>
    %111 = vector.broadcast %110 : vector<128x1xf32> to vector<128x8xf32>
    %112 = arith.mulf %109, %111 : vector<128x8xf32>
    %113 = vector.extract_strided_slice %67 {offsets = [0, 24], sizes = [128, 8], strides = [1, 1]} : vector<128x32xbf16> to vector<128x8xbf16>
    %cst_37 = arith.constant dense<0.000000e+00> : vector<128x256xf32>
    %114 = tpu.matmul %113, %58, %cst_37 {dimension_numbers = #tpu.dot_dimension_numbers<[1], [0], [0], [1], [0, 0, 1, 1], [], []>} : vector<128x8xbf16>, vector<8x256xbf16>, vector<128x256xf32> -> vector<128x256xf32>
    %cst_38 = arith.constant dense<0xFF800000> : vector<128xf32>
    %115 = vector.multi_reduction <maximumf>, %114, %cst_38 [1] : vector<128x256xf32> to vector<128xf32>
    %116 = vector.shape_cast %115 : vector<128xf32> to vector<128x1xf32>
    %117 = vector.broadcast %116 : vector<128x1xf32> to vector<128x256xf32>
    %118 = arith.subf %114, %117 : vector<128x256xf32>
    %119 = arith.truncf %118 : vector<128x256xf32> to vector<128x256xbf16>
    %120 = math.exp %119 : vector<128x256xbf16>
    %121 = arith.extf %120 : vector<128x256xbf16> to vector<128x256xf32>
    %cst_39 = arith.constant dense<0.000000e+00> : vector<128xf32>
    %122 = vector.multi_reduction <add>, %121, %cst_39 [1] : vector<128x256xf32> to vector<128xf32>
    %123 = vector.shape_cast %122 : vector<128xf32> to vector<128x1xf32>
    %cst_40 = arith.constant dense<0.000000e+00> : vector<128x8xf32>
    %124 = tpu.matmul %120, %62, %cst_40 {dimension_numbers = #tpu.dot_dimension_numbers<[1], [0], [0], [1], [0, 0, 1, 1], [], []>} : vector<128x256xbf16>, vector<256x8xbf16>, vector<128x8xf32> -> vector<128x8xf32>
    %125 = tpu.reciprocal %123 {approx = true} : vector<128x1xf32> -> vector<128x1xf32>
    %126 = vector.broadcast %125 : vector<128x1xf32> to vector<128x8xf32>
    %127 = arith.mulf %124, %126 : vector<128x8xf32>
    %128 = tpu.concatenate %82, %97, %112, %127 in 1 : vector<128x8xf32>, vector<128x8xf32>, vector<128x8xf32>, vector<128x8xf32> -> vector<128x32xf32>
    %129 = tpu.transpose %128, [1, 0] : vector<128x32xf32> -> vector<32x128xf32>
    %130 = arith.truncf %129 : vector<32x128xf32> to vector<32x128xbf16>
    %cst_41 = arith.constant dense<0.000000e+00> : vector<32x128xf32>
    %131 = tpu.matmul %63, %130, %cst_41 {dimension_numbers = #tpu.dot_dimension_numbers<[1], [0], [0], [1], [0, 0, 1, 1], [], []>} : vector<32x32xbf16>, vector<32x128xbf16>, vector<32x128xf32> -> vector<32x128xf32>
    %132 = vector.broadcast %3 : vector<32x1xf32> to vector<32x128xf32>
    %133 = arith.addf %131, %132 : vector<32x128xf32>
    %cst_42 = arith.constant dense<0.000000e+00> : vector<128xf32>
    %134 = vector.multi_reduction <add>, %133, %cst_42 [0] : vector<32x128xf32> to vector<128xf32>
    %135 = vector.shape_cast %134 : vector<128xf32> to vector<1x128xf32>
    %cst_43 = arith.constant 3.200000e+01 : f32
    %136 = vector.broadcast %cst_43 : f32 to vector<1x128xf32>
    %137 = arith.divf %135, %136 : vector<1x128xf32>
    %138 = vector.broadcast %137 : vector<1x128xf32> to vector<32x128xf32>
    %139 = arith.subf %133, %138 : vector<32x128xf32>
    %140 = arith.mulf %139, %139 : vector<32x128xf32>
    %cst_44 = arith.constant dense<0.000000e+00> : vector<128xf32>
    %141 = vector.multi_reduction <add>, %140, %cst_44 [0] : vector<32x128xf32> to vector<128xf32>
    %142 = vector.shape_cast %141 : vector<128xf32> to vector<1x128xf32>
    %cst_45 = arith.constant 3.200000e+01 : f32
    %143 = vector.broadcast %cst_45 : f32 to vector<1x128xf32>
    %144 = arith.divf %142, %143 : vector<1x128xf32>
    %145 = vector.broadcast %137 : vector<1x128xf32> to vector<32x128xf32>
    %146 = arith.subf %133, %145 : vector<32x128xf32>
    %cst_46 = arith.constant 9.99999974E-6 : f32
    %147 = vector.broadcast %cst_46 : f32 to vector<1x128xf32>
    %148 = arith.addf %144, %147 : vector<1x128xf32>
    %149 = math.rsqrt %148 : vector<1x128xf32>
    %150 = vector.broadcast %149 : vector<1x128xf32> to vector<32x128xf32>
    %151 = arith.mulf %146, %150 : vector<32x128xf32>
    %152 = vector.broadcast %4 : vector<32x1xf32> to vector<32x128xf32>
    %153 = arith.mulf %151, %152 : vector<32x128xf32>
    %154 = vector.broadcast %5 : vector<32x1xf32> to vector<32x128xf32>
    %155 = arith.addf %153, %154 : vector<32x128xf32>
    %cst_47 = arith.constant 0.000000e+00 : f32
    %156 = vector.broadcast %cst_47 : f32 to vector<32x128xf32>
    %157 = arith.maximumf %155, %156 : vector<32x128xf32>
    %158 = vector.extract_strided_slice %15 {offsets = [0, 0], sizes = [4, 128], strides = [1, 1]} : vector<4x256xbf16> to vector<4x128xbf16>
    %cst_48 = arith.constant dense<0.000000e+00> : vector<32x128xf32>
    %159 = tpu.matmul %64, %158, %cst_48 {dimension_numbers = #tpu.dot_dimension_numbers<[1], [0], [0], [1], [0, 0, 1, 1], [], []>} : vector<32x4xbf16>, vector<4x128xbf16>, vector<32x128xf32> -> vector<32x128xf32>
    %160 = vector.broadcast %6 : vector<32x1xf32> to vector<32x128xf32>
    %161 = arith.addf %159, %160 : vector<32x128xf32>
    %162 = arith.addf %157, %161 : vector<32x128xf32>
    %163 = arith.truncf %162 : vector<32x128xf32> to vector<32x128xbf16>
    %cst_49 = arith.constant dense<0.000000e+00> : vector<16x128xf32>
    %164 = tpu.matmul %65, %163, %cst_49 {dimension_numbers = #tpu.dot_dimension_numbers<[1], [0], [0], [1], [0, 0, 1, 1], [], []>} : vector<16x32xbf16>, vector<32x128xbf16>, vector<16x128xf32> -> vector<16x128xf32>
    %165 = vector.broadcast %7 : vector<16x1xf32> to vector<16x128xf32>
    %166 = arith.addf %164, %165 : vector<16x128xf32>
    %cst_50 = arith.constant dense<0.000000e+00> : vector<128xf32>
    %167 = vector.multi_reduction <add>, %166, %cst_50 [0] : vector<16x128xf32> to vector<128xf32>
    %168 = vector.shape_cast %167 : vector<128xf32> to vector<1x128xf32>
    %cst_51 = arith.constant 1.600000e+01 : f32
    %169 = vector.broadcast %cst_51 : f32 to vector<1x128xf32>
    %170 = arith.divf %168, %169 : vector<1x128xf32>
    %171 = vector.broadcast %170 : vector<1x128xf32> to vector<16x128xf32>
    %172 = arith.subf %166, %171 : vector<16x128xf32>
    %173 = arith.mulf %172, %172 : vector<16x128xf32>
    %cst_52 = arith.constant dense<0.000000e+00> : vector<128xf32>
    %174 = vector.multi_reduction <add>, %173, %cst_52 [0] : vector<16x128xf32> to vector<128xf32>
    %175 = vector.shape_cast %174 : vector<128xf32> to vector<1x128xf32>
    %cst_53 = arith.constant 1.600000e+01 : f32
    %176 = vector.broadcast %cst_53 : f32 to vector<1x128xf32>
    %177 = arith.divf %175, %176 : vector<1x128xf32>
    %178 = vector.broadcast %170 : vector<1x128xf32> to vector<16x128xf32>
    %179 = arith.subf %166, %178 : vector<16x128xf32>
    %cst_54 = arith.constant 9.99999974E-6 : f32
    %180 = vector.broadcast %cst_54 : f32 to vector<1x128xf32>
    %181 = arith.addf %177, %180 : vector<1x128xf32>
    %182 = math.rsqrt %181 : vector<1x128xf32>
    %183 = vector.broadcast %182 : vector<1x128xf32> to vector<16x128xf32>
    %184 = arith.mulf %179, %183 : vector<16x128xf32>
    %185 = vector.broadcast %8 : vector<16x1xf32> to vector<16x128xf32>
    %186 = arith.mulf %184, %185 : vector<16x128xf32>
    %187 = vector.broadcast %9 : vector<16x1xf32> to vector<16x128xf32>
    %188 = arith.addf %186, %187 : vector<16x128xf32>
    %cst_55 = arith.constant 0.000000e+00 : f32
    %189 = vector.broadcast %cst_55 : f32 to vector<16x128xf32>
    %190 = arith.maximumf %188, %189 : vector<16x128xf32>
    %191 = arith.truncf %190 : vector<16x128xf32> to vector<16x128xbf16>
    %cst_56 = arith.constant dense<0.000000e+00> : vector<32x128xf32>
    %192 = tpu.matmul %66, %191, %cst_56 {dimension_numbers = #tpu.dot_dimension_numbers<[1], [0], [0], [1], [0, 0, 1, 1], [], []>} : vector<32x16xbf16>, vector<16x128xbf16>, vector<32x128xf32> -> vector<32x128xf32>
    %193 = vector.broadcast %10 : vector<32x1xf32> to vector<32x128xf32>
    %194 = arith.addf %192, %193 : vector<32x128xf32>
    %cst_57 = arith.constant dense<0.000000e+00> : vector<128xf32>
    %195 = vector.multi_reduction <add>, %194, %cst_57 [0] : vector<32x128xf32> to vector<128xf32>
    %196 = vector.shape_cast %195 : vector<128xf32> to vector<1x128xf32>
    %cst_58 = arith.constant 3.200000e+01 : f32
    %197 = vector.broadcast %cst_58 : f32 to vector<1x128xf32>
    %198 = arith.divf %196, %197 : vector<1x128xf32>
    %199 = vector.broadcast %198 : vector<1x128xf32> to vector<32x128xf32>
    %200 = arith.subf %194, %199 : vector<32x128xf32>
    %201 = arith.mulf %200, %200 : vector<32x128xf32>
    %cst_59 = arith.constant dense<0.000000e+00> : vector<128xf32>
    %202 = vector.multi_reduction <add>, %201, %cst_59 [0] : vector<32x128xf32> to vector<128xf32>
    %203 = vector.shape_cast %202 : vector<128xf32> to vector<1x128xf32>
    %cst_60 = arith.constant 3.200000e+01 : f32
    %204 = vector.broadcast %cst_60 : f32 to vector<1x128xf32>
    %205 = arith.divf %203, %204 : vector<1x128xf32>
    %206 = vector.broadcast %198 : vector<1x128xf32> to vector<32x128xf32>
    %207 = arith.subf %194, %206 : vector<32x128xf32>
    %cst_61 = arith.constant 9.99999974E-6 : f32
    %208 = vector.broadcast %cst_61 : f32 to vector<1x128xf32>
    %209 = arith.addf %205, %208 : vector<1x128xf32>
    %210 = math.rsqrt %209 : vector<1x128xf32>
    %211 = vector.broadcast %210 : vector<1x128xf32> to vector<32x128xf32>
    %212 = arith.mulf %207, %211 : vector<32x128xf32>
    %213 = vector.broadcast %11 : vector<32x1xf32> to vector<32x128xf32>
    %214 = arith.mulf %212, %213 : vector<32x128xf32>
    %215 = vector.broadcast %12 : vector<32x1xf32> to vector<32x128xf32>
    %216 = arith.addf %214, %215 : vector<32x128xf32>
    %217 = arith.addf %216, %162 : vector<32x128xf32>
    %c0_62 = arith.constant 0 : index
    %c0_63 = arith.constant 0 : index
    %c0_64 = arith.constant 0 : index
    %218 = vector.load %arg10[%c0_62, %c0_63, %c0_64] : memref<1x32x256xf32, #tpu.memory_space<vmem>>, vector<1x32x128xf32>
    %219 = vector.shape_cast %218 : vector<1x32x128xf32> to vector<32x128xf32>
    %220 = vector.shape_cast %217 : vector<32x128xf32> to vector<1x32x128xf32>
    tpu.vector_store %arg10[%c0_62, %c0_63, %c0_64], %220 {strides = array<i32>} : memref<1x32x256xf32, #tpu.memory_space<vmem>>, vector<1x32x128xf32>,
    %221 = vector.extract_strided_slice %52 {offsets = [128, 0], sizes = [128, 32], strides = [1, 1]} : vector<256x32xbf16> to vector<128x32xbf16>
    %222 = vector.extract_strided_slice %221 {offsets = [0, 0], sizes = [128, 8], strides = [1, 1]} : vector<128x32xbf16> to vector<128x8xbf16>
    %cst_65 = arith.constant dense<0.000000e+00> : vector<128x256xf32>
    %223 = tpu.matmul %222, %55, %cst_65 {dimension_numbers = #tpu.dot_dimension_numbers<[1], [0], [0], [1], [0, 0, 1, 1], [], []>} : vector<128x8xbf16>, vector<8x256xbf16>, vector<128x256xf32> -> vector<128x256xf32>
    %cst_66 = arith.constant dense<0xFF800000> : vector<128xf32>
    %224 = vector.multi_reduction <maximumf>, %223, %cst_66 [1] : vector<128x256xf32> to vector<128xf32>
    %225 = vector.shape_cast %224 : vector<128xf32> to vector<128x1xf32>
    %226 = vector.broadcast %225 : vector<128x1xf32> to vector<128x256xf32>
    %227 = arith.subf %223, %226 : vector<128x256xf32>
    %228 = arith.truncf %227 : vector<128x256xf32> to vector<128x256xbf16>
    %229 = math.exp %228 : vector<128x256xbf16>
    %230 = arith.extf %229 : vector<128x256xbf16> to vector<128x256xf32>
    %cst_67 = arith.constant dense<0.000000e+00> : vector<128xf32>
    %231 = vector.multi_reduction <add>, %230, %cst_67 [1] : vector<128x256xf32> to vector<128xf32>
    %232 = vector.shape_cast %231 : vector<128xf32> to vector<128x1xf32>
    %cst_68 = arith.constant dense<0.000000e+00> : vector<128x8xf32>
    %233 = tpu.matmul %229, %59, %cst_68 {dimension_numbers = #tpu.dot_dimension_numbers<[1], [0], [0], [1], [0, 0, 1, 1], [], []>} : vector<128x256xbf16>, vector<256x8xbf16>, vector<128x8xf32> -> vector<128x8xf32>
    %234 = tpu.reciprocal %232 {approx = true} : vector<128x1xf32> -> vector<128x1xf32>
    %235 = vector.broadcast %234 : vector<128x1xf32> to vector<128x8xf32>
    %236 = arith.mulf %233, %235 : vector<128x8xf32>
    %237 = vector.extract_strided_slice %221 {offsets = [0, 8], sizes = [128, 8], strides = [1, 1]} : vector<128x32xbf16> to vector<128x8xbf16>
    %cst_69 = arith.constant dense<0.000000e+00> : vector<128x256xf32>
    %238 = tpu.matmul %237, %56, %cst_69 {dimension_numbers = #tpu.dot_dimension_numbers<[1], [0], [0], [1], [0, 0, 1, 1], [], []>} : vector<128x8xbf16>, vector<8x256xbf16>, vector<128x256xf32> -> vector<128x256xf32>
    %cst_70 = arith.constant dense<0xFF800000> : vector<128xf32>
    %239 = vector.multi_reduction <maximumf>, %238, %cst_70 [1] : vector<128x256xf32> to vector<128xf32>
    %240 = vector.shape_cast %239 : vector<128xf32> to vector<128x1xf32>
    %241 = vector.broadcast %240 : vector<128x1xf32> to vector<128x256xf32>
    %242 = arith.subf %238, %241 : vector<128x256xf32>
    %243 = arith.truncf %242 : vector<128x256xf32> to vector<128x256xbf16>
    %244 = math.exp %243 : vector<128x256xbf16>
    %245 = arith.extf %244 : vector<128x256xbf16> to vector<128x256xf32>
    %cst_71 = arith.constant dense<0.000000e+00> : vector<128xf32>
    %246 = vector.multi_reduction <add>, %245, %cst_71 [1] : vector<128x256xf32> to vector<128xf32>
    %247 = vector.shape_cast %246 : vector<128xf32> to vector<128x1xf32>
    %cst_72 = arith.constant dense<0.000000e+00> : vector<128x8xf32>
    %248 = tpu.matmul %244, %60, %cst_72 {dimension_numbers = #tpu.dot_dimension_numbers<[1], [0], [0], [1], [0, 0, 1, 1], [], []>} : vector<128x256xbf16>, vector<256x8xbf16>, vector<128x8xf32> -> vector<128x8xf32>
    %249 = tpu.reciprocal %247 {approx = true} : vector<128x1xf32> -> vector<128x1xf32>
    %250 = vector.broadcast %249 : vector<128x1xf32> to vector<128x8xf32>
    %251 = arith.mulf %248, %250 : vector<128x8xf32>
    %252 = vector.extract_strided_slice %221 {offsets = [0, 16], sizes = [128, 8], strides = [1, 1]} : vector<128x32xbf16> to vector<128x8xbf16>
    %cst_73 = arith.constant dense<0.000000e+00> : vector<128x256xf32>
    %253 = tpu.matmul %252, %57, %cst_73 {dimension_numbers = #tpu.dot_dimension_numbers<[1], [0], [0], [1], [0, 0, 1, 1], [], []>} : vector<128x8xbf16>, vector<8x256xbf16>, vector<128x256xf32> -> vector<128x256xf32>
    %cst_74 = arith.constant dense<0xFF800000> : vector<128xf32>
    %254 = vector.multi_reduction <maximumf>, %253, %cst_74 [1] : vector<128x256xf32> to vector<128xf32>
    %255 = vector.shape_cast %254 : vector<128xf32> to vector<128x1xf32>
    %256 = vector.broadcast %255 : vector<128x1xf32> to vector<128x256xf32>
    %257 = arith.subf %253, %256 : vector<128x256xf32>
    %258 = arith.truncf %257 : vector<128x256xf32> to vector<128x256xbf16>
    %259 = math.exp %258 : vector<128x256xbf16>
    %260 = arith.extf %259 : vector<128x256xbf16> to vector<128x256xf32>
    %cst_75 = arith.constant dense<0.000000e+00> : vector<128xf32>
    %261 = vector.multi_reduction <add>, %260, %cst_75 [1] : vector<128x256xf32> to vector<128xf32>
    %262 = vector.shape_cast %261 : vector<128xf32> to vector<128x1xf32>
    %cst_76 = arith.constant dense<0.000000e+00> : vector<128x8xf32>
    %263 = tpu.matmul %259, %61, %cst_76 {dimension_numbers = #tpu.dot_dimension_numbers<[1], [0], [0], [1], [0, 0, 1, 1], [], []>} : vector<128x256xbf16>, vector<256x8xbf16>, vector<128x8xf32> -> vector<128x8xf32>
    %264 = tpu.reciprocal %262 {approx = true} : vector<128x1xf32> -> vector<128x1xf32>
    %265 = vector.broadcast %264 : vector<128x1xf32> to vector<128x8xf32>
    %266 = arith.mulf %263, %265 : vector<128x8xf32>
    %267 = vector.extract_strided_slice %221 {offsets = [0, 24], sizes = [128, 8], strides = [1, 1]} : vector<128x32xbf16> to vector<128x8xbf16>
    %cst_77 = arith.constant dense<0.000000e+00> : vector<128x256xf32>
    %268 = tpu.matmul %267, %58, %cst_77 {dimension_numbers = #tpu.dot_dimension_numbers<[1], [0], [0], [1], [0, 0, 1, 1], [], []>} : vector<128x8xbf16>, vector<8x256xbf16>, vector<128x256xf32> -> vector<128x256xf32>
    %cst_78 = arith.constant dense<0xFF800000> : vector<128xf32>
    %269 = vector.multi_reduction <maximumf>, %268, %cst_78 [1] : vector<128x256xf32> to vector<128xf32>
    %270 = vector.shape_cast %269 : vector<128xf32> to vector<128x1xf32>
    %271 = vector.broadcast %270 : vector<128x1xf32> to vector<128x256xf32>
    %272 = arith.subf %268, %271 : vector<128x256xf32>
    %273 = arith.truncf %272 : vector<128x256xf32> to vector<128x256xbf16>
    %274 = math.exp %273 : vector<128x256xbf16>
    %275 = arith.extf %274 : vector<128x256xbf16> to vector<128x256xf32>
    %cst_79 = arith.constant dense<0.000000e+00> : vector<128xf32>
    %276 = vector.multi_reduction <add>, %275, %cst_79 [1] : vector<128x256xf32> to vector<128xf32>
    %277 = vector.shape_cast %276 : vector<128xf32> to vector<128x1xf32>
    %cst_80 = arith.constant dense<0.000000e+00> : vector<128x8xf32>
    %278 = tpu.matmul %274, %62, %cst_80 {dimension_numbers = #tpu.dot_dimension_numbers<[1], [0], [0], [1], [0, 0, 1, 1], [], []>} : vector<128x256xbf16>, vector<256x8xbf16>, vector<128x8xf32> -> vector<128x8xf32>
    %279 = tpu.reciprocal %277 {approx = true} : vector<128x1xf32> -> vector<128x1xf32>
    %280 = vector.broadcast %279 : vector<128x1xf32> to vector<128x8xf32>
    %281 = arith.mulf %278, %280 : vector<128x8xf32>
    %282 = tpu.concatenate %236, %251, %266, %281 in 1 : vector<128x8xf32>, vector<128x8xf32>, vector<128x8xf32>, vector<128x8xf32> -> vector<128x32xf32>
    %283 = tpu.transpose %282, [1, 0] : vector<128x32xf32> -> vector<32x128xf32>
    %284 = arith.truncf %283 : vector<32x128xf32> to vector<32x128xbf16>
    %cst_81 = arith.constant dense<0.000000e+00> : vector<32x128xf32>
    %285 = tpu.matmul %63, %284, %cst_81 {dimension_numbers = #tpu.dot_dimension_numbers<[1], [0], [0], [1], [0, 0, 1, 1], [], []>} : vector<32x32xbf16>, vector<32x128xbf16>, vector<32x128xf32> -> vector<32x128xf32>
    %286 = vector.broadcast %3 : vector<32x1xf32> to vector<32x128xf32>
    %287 = arith.addf %285, %286 : vector<32x128xf32>
    %cst_82 = arith.constant dense<0.000000e+00> : vector<128xf32>
    %288 = vector.multi_reduction <add>, %287, %cst_82 [0] : vector<32x128xf32> to vector<128xf32>
    %289 = vector.shape_cast %288 : vector<128xf32> to vector<1x128xf32>
    %cst_83 = arith.constant 3.200000e+01 : f32
    %290 = vector.broadcast %cst_83 : f32 to vector<1x128xf32>
    %291 = arith.divf %289, %290 : vector<1x128xf32>
    %292 = vector.broadcast %291 : vector<1x128xf32> to vector<32x128xf32>
    %293 = arith.subf %287, %292 : vector<32x128xf32>
    %294 = arith.mulf %293, %293 : vector<32x128xf32>
    %cst_84 = arith.constant dense<0.000000e+00> : vector<128xf32>
    %295 = vector.multi_reduction <add>, %294, %cst_84 [0] : vector<32x128xf32> to vector<128xf32>
    %296 = vector.shape_cast %295 : vector<128xf32> to vector<1x128xf32>
    %cst_85 = arith.constant 3.200000e+01 : f32
    %297 = vector.broadcast %cst_85 : f32 to vector<1x128xf32>
    %298 = arith.divf %296, %297 : vector<1x128xf32>
    %299 = vector.broadcast %291 : vector<1x128xf32> to vector<32x128xf32>
    %300 = arith.subf %287, %299 : vector<32x128xf32>
    %cst_86 = arith.constant 9.99999974E-6 : f32
    %301 = vector.broadcast %cst_86 : f32 to vector<1x128xf32>
    %302 = arith.addf %298, %301 : vector<1x128xf32>
    %303 = math.rsqrt %302 : vector<1x128xf32>
    %304 = vector.broadcast %303 : vector<1x128xf32> to vector<32x128xf32>
    %305 = arith.mulf %300, %304 : vector<32x128xf32>
    %306 = vector.broadcast %4 : vector<32x1xf32> to vector<32x128xf32>
    %307 = arith.mulf %305, %306 : vector<32x128xf32>
    %308 = vector.broadcast %5 : vector<32x1xf32> to vector<32x128xf32>
    %309 = arith.addf %307, %308 : vector<32x128xf32>
    %cst_87 = arith.constant 0.000000e+00 : f32
    %310 = vector.broadcast %cst_87 : f32 to vector<32x128xf32>
    %311 = arith.maximumf %309, %310 : vector<32x128xf32>
    %312 = vector.extract_strided_slice %15 {offsets = [0, 128], sizes = [4, 128], strides = [1, 1]} : vector<4x256xbf16> to vector<4x128xbf16>
    %cst_88 = arith.constant dense<0.000000e+00> : vector<32x128xf32>
    %313 = tpu.matmul %64, %312, %cst_88 {dimension_numbers = #tpu.dot_dimension_numbers<[1], [0], [0], [1], [0, 0, 1, 1], [], []>} : vector<32x4xbf16>, vector<4x128xbf16>, vector<32x128xf32> -> vector<32x128xf32>
    %314 = vector.broadcast %6 : vector<32x1xf32> to vector<32x128xf32>
    %315 = arith.addf %313, %314 : vector<32x128xf32>
    %316 = arith.addf %311, %315 : vector<32x128xf32>
    %317 = arith.truncf %316 : vector<32x128xf32> to vector<32x128xbf16>
    %cst_89 = arith.constant dense<0.000000e+00> : vector<16x128xf32>
    %318 = tpu.matmul %65, %317, %cst_89 {dimension_numbers = #tpu.dot_dimension_numbers<[1], [0], [0], [1], [0, 0, 1, 1], [], []>} : vector<16x32xbf16>, vector<32x128xbf16>, vector<16x128xf32> -> vector<16x128xf32>
    %319 = vector.broadcast %7 : vector<16x1xf32> to vector<16x128xf32>
    %320 = arith.addf %318, %319 : vector<16x128xf32>
    %cst_90 = arith.constant dense<0.000000e+00> : vector<128xf32>
    %321 = vector.multi_reduction <add>, %320, %cst_90 [0] : vector<16x128xf32> to vector<128xf32>
    %322 = vector.shape_cast %321 : vector<128xf32> to vector<1x128xf32>
    %cst_91 = arith.constant 1.600000e+01 : f32
    %323 = vector.broadcast %cst_91 : f32 to vector<1x128xf32>
    %324 = arith.divf %322, %323 : vector<1x128xf32>
    %325 = vector.broadcast %324 : vector<1x128xf32> to vector<16x128xf32>
    %326 = arith.subf %320, %325 : vector<16x128xf32>
    %327 = arith.mulf %326, %326 : vector<16x128xf32>
    %cst_92 = arith.constant dense<0.000000e+00> : vector<128xf32>
    %328 = vector.multi_reduction <add>, %327, %cst_92 [0] : vector<16x128xf32> to vector<128xf32>
    %329 = vector.shape_cast %328 : vector<128xf32> to vector<1x128xf32>
    %cst_93 = arith.constant 1.600000e+01 : f32
    %330 = vector.broadcast %cst_93 : f32 to vector<1x128xf32>
    %331 = arith.divf %329, %330 : vector<1x128xf32>
    %332 = vector.broadcast %324 : vector<1x128xf32> to vector<16x128xf32>
    %333 = arith.subf %320, %332 : vector<16x128xf32>
    %cst_94 = arith.constant 9.99999974E-6 : f32
    %334 = vector.broadcast %cst_94 : f32 to vector<1x128xf32>
    %335 = arith.addf %331, %334 : vector<1x128xf32>
    %336 = math.rsqrt %335 : vector<1x128xf32>
    %337 = vector.broadcast %336 : vector<1x128xf32> to vector<16x128xf32>
    %338 = arith.mulf %333, %337 : vector<16x128xf32>
    %339 = vector.broadcast %8 : vector<16x1xf32> to vector<16x128xf32>
    %340 = arith.mulf %338, %339 : vector<16x128xf32>
    %341 = vector.broadcast %9 : vector<16x1xf32> to vector<16x128xf32>
    %342 = arith.addf %340, %341 : vector<16x128xf32>
    %cst_95 = arith.constant 0.000000e+00 : f32
    %343 = vector.broadcast %cst_95 : f32 to vector<16x128xf32>
    %344 = arith.maximumf %342, %343 : vector<16x128xf32>
    %345 = arith.truncf %344 : vector<16x128xf32> to vector<16x128xbf16>
    %cst_96 = arith.constant dense<0.000000e+00> : vector<32x128xf32>
    %346 = tpu.matmul %66, %345, %cst_96 {dimension_numbers = #tpu.dot_dimension_numbers<[1], [0], [0], [1], [0, 0, 1, 1], [], []>} : vector<32x16xbf16>, vector<16x128xbf16>, vector<32x128xf32> -> vector<32x128xf32>
    %347 = vector.broadcast %10 : vector<32x1xf32> to vector<32x128xf32>
    %348 = arith.addf %346, %347 : vector<32x128xf32>
    %cst_97 = arith.constant dense<0.000000e+00> : vector<128xf32>
    %349 = vector.multi_reduction <add>, %348, %cst_97 [0] : vector<32x128xf32> to vector<128xf32>
    %350 = vector.shape_cast %349 : vector<128xf32> to vector<1x128xf32>
    %cst_98 = arith.constant 3.200000e+01 : f32
    %351 = vector.broadcast %cst_98 : f32 to vector<1x128xf32>
    %352 = arith.divf %350, %351 : vector<1x128xf32>
    %353 = vector.broadcast %352 : vector<1x128xf32> to vector<32x128xf32>
    %354 = arith.subf %348, %353 : vector<32x128xf32>
    %355 = arith.mulf %354, %354 : vector<32x128xf32>
    %cst_99 = arith.constant dense<0.000000e+00> : vector<128xf32>
    %356 = vector.multi_reduction <add>, %355, %cst_99 [0] : vector<32x128xf32> to vector<128xf32>
    %357 = vector.shape_cast %356 : vector<128xf32> to vector<1x128xf32>
    %cst_100 = arith.constant 3.200000e+01 : f32
    %358 = vector.broadcast %cst_100 : f32 to vector<1x128xf32>
    %359 = arith.divf %357, %358 : vector<1x128xf32>
    %360 = vector.broadcast %352 : vector<1x128xf32> to vector<32x128xf32>
    %361 = arith.subf %348, %360 : vector<32x128xf32>
    %cst_101 = arith.constant 9.99999974E-6 : f32
    %362 = vector.broadcast %cst_101 : f32 to vector<1x128xf32>
    %363 = arith.addf %359, %362 : vector<1x128xf32>
    %364 = math.rsqrt %363 : vector<1x128xf32>
    %365 = vector.broadcast %364 : vector<1x128xf32> to vector<32x128xf32>
    %366 = arith.mulf %361, %365 : vector<32x128xf32>
    %367 = vector.broadcast %11 : vector<32x1xf32> to vector<32x128xf32>
    %368 = arith.mulf %366, %367 : vector<32x128xf32>
    %369 = vector.broadcast %12 : vector<32x1xf32> to vector<32x128xf32>
    %370 = arith.addf %368, %369 : vector<32x128xf32>
    %371 = arith.addf %370, %316 : vector<32x128xf32>
    %c0_102 = arith.constant 0 : index
    %c0_103 = arith.constant 0 : index
    %c128 = arith.constant 128 : index
    %372 = vector.load %arg10[%c0_102, %c0_103, %c128] : memref<1x32x256xf32, #tpu.memory_space<vmem>>, vector<1x32x128xf32>
    %373 = vector.shape_cast %372 : vector<1x32x128xf32> to vector<32x128xf32>
    %374 = vector.shape_cast %371 : vector<32x128xf32> to vector<1x32x128xf32>
    tpu.vector_store %arg10[%c0_102, %c0_103, %c128], %374 {strides = array<i32>} : memref<1x32x256xf32, #tpu.memory_space<vmem>>, vector<1x32x128xf32>,
    return
  }
  func.func @transform_0(%arg0: i32) -> (i32, i32, i32) {
    %c0_i32 = arith.constant 0 : i32
    %c0_i32_0 = arith.constant 0 : i32
    %c0_i32_1 = arith.constant 0 : i32
    return %arg0, %c0_i32, %c0_i32_0 : i32, i32, i32
  }
  func.func @transform_1(%arg0: i32) -> (i32, i32) {
    %c0_i32 = arith.constant 0 : i32
    %c0_i32_0 = arith.constant 0 : i32
    %c0_i32_1 = arith.constant 0 : i32
    return %c0_i32, %c0_i32_0 : i32, i32
  }
  func.func @transform_2(%arg0: i32) -> (i32, i32) {
    %c0_i32 = arith.constant 0 : i32
    %c0_i32_0 = arith.constant 0 : i32
    %c0_i32_1 = arith.constant 0 : i32
    return %c0_i32, %c0_i32_0 : i32, i32
  }
  func.func @transform_3(%arg0: i32) -> (i32, i32) {
    %c0_i32 = arith.constant 0 : i32
    %c0_i32_0 = arith.constant 0 : i32
    %c0_i32_1 = arith.constant 0 : i32
    return %c0_i32, %c0_i32_0 : i32, i32
  }
  func.func @transform_4(%arg0: i32) -> (i32, i32) {
    %c0_i32 = arith.constant 0 : i32
    %c0_i32_0 = arith.constant 0 : i32
    %c0_i32_1 = arith.constant 0 : i32
    return %c0_i32, %c0_i32_0 : i32, i32
  }
  func.func @transform_5(%arg0: i32) -> (i32, i32) {
    %c0_i32 = arith.constant 0 : i32
    %c0_i32_0 = arith.constant 0 : i32
    %c0_i32_1 = arith.constant 0 : i32
    return %c0_i32, %c0_i32_0 : i32, i32
  }
  func.func @transform_6(%arg0: i32) -> (i32, i32) {
    %c0_i32 = arith.constant 0 : i32
    %c0_i32_0 = arith.constant 0 : i32
    %c0_i32_1 = arith.constant 0 : i32
    return %c0_i32, %c0_i32_0 : i32, i32
  }
  func.func @transform_7(%arg0: i32) -> (i32, i32) {
    %c0_i32 = arith.constant 0 : i32
    %c0_i32_0 = arith.constant 0 : i32
    %c0_i32_1 = arith.constant 0 : i32
    return %c0_i32, %c0_i32_0 : i32, i32
  }
  func.func @transform_8(%arg0: i32) -> (i32, i32) {
    %c0_i32 = arith.constant 0 : i32
    %c0_i32_0 = arith.constant 0 : i32
    %c0_i32_1 = arith.constant 0 : i32
    return %c0_i32, %c0_i32_0 : i32, i32
  }
  func.func @transform_9(%arg0: i32) -> (i32, i32, i32) {
    %c0_i32 = arith.constant 0 : i32
    %c0_i32_0 = arith.constant 0 : i32
    %c0_i32_1 = arith.constant 0 : i32
    return %arg0, %c0_i32, %c0_i32_0 : i32, i32, i32
  }
}

</mosaic_0001>

<llo_original>
// kernel: tpu_custom_call.1
$region0: #{tpu_custom_call.1}
  #allocation0 [shape = 'u32[]', space=smem, size = 0x4, offset = 0x4, fixed_abs, tag = 'smem constant byte address 0x4 - core index']
  #allocation1 [shape = 'u32[144,128]{1,0:T(1,128)}', space=vmem, size = 0x12000, scoped, tag = 'internal scratch']
  %s0 = inlined_call_operand.vmem [shape: f32[2,4,256], index: 0, kind: input, shape index: {}]
  %s1 = inlined_call_operand.vmem [shape: bf16[4,64], index: 1, kind: input, shape index: {}]
  %s2 = inlined_call_operand.vmem [shape: f32[1,64], index: 2, kind: input, shape index: {}]
  %s3 = inlined_call_operand.vmem [shape: bf16[32,4], index: 3, kind: input, shape index: {}]
  %s4 = inlined_call_operand.vmem [shape: bf16[32,32], index: 4, kind: input, shape index: {}]
  %s5 = inlined_call_operand.vmem [shape: bf16[32,4], index: 5, kind: input, shape index: {}]
  %s6 = inlined_call_operand.vmem [shape: bf16[16,32], index: 6, kind: input, shape index: {}]
  %s7 = inlined_call_operand.vmem [shape: bf16[32,16], index: 7, kind: input, shape index: {}]
  %s8 = inlined_call_operand.vmem [shape: f32[32,12], index: 8, kind: input, shape index: {}]
  %s9 = inlined_call_operand.hbm [shape: f32[2,32,256], index: 9, kind: output, shape index: {}]
  %s10 = sld [smem:[#allocation0]]
  $region69: #{tpu_custom_call.1} parent=0
    _
  %s12 = ssub.s32 1, %s10
  %s13 = scalar_select 0, %s12, %s10
  $region1: #{tpu_custom_call.1} parent=0
    #allocation2 [shape = 'u8[65536]{0}', space=vmem, size = 0x10000, scoped, tag = 'output window, operand 0']
    #allocation3 [shape = 's32[2]{0}', space=sflag, size = 0x8, scoped, tag = 'scoped memory for tpu_custom_call.1']
    %14 = vsyncpa [#allocation3], 0
    %s15 = scalar_lea.sflag [#allocation3], 1
    %16 = vsyncpa %s15, 0
    loop: start=0, step=1, limit=4
    $region2: #{tpu_custom_call.1} parent=1 // loop_pre_header
      _
    $region3: #{tpu_custom_call.1} parent=1 // loop_header
      %s18 = sphi 0, %s22
      %p19 = scmp.ge.s32.totalorder %s18, 4
      %s28 = sphi 0, %s30
      %s31 = sphi 0, %s28
      %s32 = sphi 0, %s31
      %s48 = sphi 0, %s32
      %s52 = sphi 0, %s52
      %s54 = sphi 0, %s52
      %s55 = sphi 0, %s54
      %s69 = sphi 0, %s55
      %s73 = sphi 0, %s73
      %s75 = sphi 0, %s73
      %s76 = sphi 0, %s75
      %s90 = sphi 0, %s76
      %s94 = sphi 0, %s94
      %s96 = sphi 0, %s94
      %s97 = sphi 0, %s96
      %s111 = sphi 0, %s97
      %s115 = sphi 0, %s115
      %s117 = sphi 0, %s115
      %s118 = sphi 0, %s117
      %s132 = sphi 0, %s118
      %s136 = sphi 0, %s136
      %s138 = sphi 0, %s136
      %s139 = sphi 0, %s138
      %s153 = sphi 0, %s139
      %s157 = sphi 0, %s157
      %s159 = sphi 0, %s157
      %s160 = sphi 0, %s159
      %s174 = sphi 0, %s160
      %s178 = sphi 0, %s178
      %s180 = sphi 0, %s178
      %s181 = sphi 0, %s180
      %s195 = sphi 0, %s181
      %s199 = sphi 0, %s199
      %s201 = sphi 0, %s199
      %s202 = sphi 0, %s201
      %s216 = sphi 0, %s202
      %s222 = sphi 0, %s224
      %s225 = sphi 0, %s222
      %s226 = sphi 0, %s225
      %s242 = sphi 0, %s226
    $region4: #{tpu_custom_call.1} parent=1 // loop_header_branch
      %21 = sbr.rel (%p19) target = $region8
    $region5: #{tpu_custom_call.1} parent=1 // loop_body
      %s23 = ssub.s32 %s18, 1
      %s24 = ssub.s32 %s18, 2
      %s25 = sadd.s32 %s18, 1
      %s26 = ssub.s32 %s18, %s25
      %p27 = scmp.eq.s32.totalorder %s26, 0
      %s29 = sadd.s32 %s28, 1
      %s30 = scalar_select %p27, %s28, %s29
      %p33 = pneg %p27
      %p34 = scmp.eq.s32.totalorder %s18, 1
      %p35 = por %p33, %p34
      %p36 = scmp.ne.s32.totalorder %s28, %s31
      %p37 = scmp.eq.s32.totalorder %s18, 0
      %p38 = por %p36, %p37
      %p39 = scmp.ne.s32.totalorder %s28, %s31
      %p40 = scmp.eq.s32.totalorder %s23, 1
      %p41 = por %p39, %p40
      %p42 = scmp.ne.s32.totalorder %s31, %s32
      %p43 = scmp.eq.s32.totalorder %s23, 0
      %p44 = por %p42, %p43
      %p45 = scmp.ne.s32.totalorder %s31, %s32
      %p46 = scmp.eq.s32.totalorder %s24, 1
      %p47 = por %p45, %p46
      %p49 = scmp.ne.s32.totalorder %s32, %s48
      %p50 = scmp.eq.s32.totalorder %s24, 0
      %p51 = por %p49, %p50
      %s53 = sadd.s32 %s52, 1
      %p56 = scmp.eq.s32.totalorder %s18, 1
      %p57 = scmp.ne.s32.totalorder %s52, %s54
      %p58 = scmp.eq.s32.totalorder %s18, 0
      %p59 = por %p57, %p58
      %p60 = scmp.ne.s32.totalorder %s52, %s54
      %p61 = scmp.eq.s32.totalorder %s23, 1
      %p62 = por %p60, %p61
      %p63 = scmp.ne.s32.totalorder %s54, %s55
      %p64 = scmp.eq.s32.totalorder %s23, 0
      %p65 = por %p63, %p64
      %p66 = scmp.ne.s32.totalorder %s54, %s55
      %p67 = scmp.eq.s32.totalorder %s24, 1
      %p68 = por %p66, %p67
      %p70 = scmp.ne.s32.totalorder %s55, %s69
      %p71 = scmp.eq.s32.totalorder %s24, 0
      %p72 = por %p70, %p71
      %s74 = sadd.s32 %s73, 1
      %p77 = scmp.eq.s32.totalorder %s18, 1
      %p78 = scmp.ne.s32.totalorder %s73, %s75
      %p79 = scmp.eq.s32.totalorder %s18, 0
      %p80 = por %p78, %p79
      %p81 = scmp.ne.s32.totalorder %s73, %s75
      %p82 = scmp.eq.s32.totalorder %s23, 1
      %p83 = por %p81, %p82
      %p84 = scmp.ne.s32.totalorder %s75, %s76
      %p85 = scmp.eq.s32.totalorder %s23, 0
      %p86 = por %p84, %p85
      %p87 = scmp.ne.s32.totalorder %s75, %s76
      %p88 = scmp.eq.s32.totalorder %s24, 1
      %p89 = por %p87, %p88
      %p91 = scmp.ne.s32.totalorder %s76, %s90
      %p92 = scmp.eq.s32.totalorder %s24, 0
      %p93 = por %p91, %p92
      %s95 = sadd.s32 %s94, 1
      %p98 = scmp.eq.s32.totalorder %s18, 1
      %p99 = scmp.ne.s32.totalorder %s94, %s96
      %p100 = scmp.eq.s32.totalorder %s18, 0
      %p101 = por %p99, %p100
      %p102 = scmp.ne.s32.totalorder %s94, %s96
      %p103 = scmp.eq.s32.totalorder %s23, 1
      %p104 = por %p102, %p103
      %p105 = scmp.ne.s32.totalorder %s96, %s97
      %p106 = scmp.eq.s32.totalorder %s23, 0
      %p107 = por %p105, %p106
      %p108 = scmp.ne.s32.totalorder %s96, %s97
      %p109 = scmp.eq.s32.totalorder %s24, 1
      %p110 = por %p108, %p109
      %p112 = scmp.ne.s32.totalorder %s97, %s111
      %p113 = scmp.eq.s32.totalorder %s24, 0
      %p114 = por %p112, %p113
      %s116 = sadd.s32 %s115, 1
      %p119 = scmp.eq.s32.totalorder %s18, 1
      %p120 = scmp.ne.s32.totalorder %s115, %s117
      %p121 = scmp.eq.s32.totalorder %s18, 0
      %p122 = por %p120, %p121
      %p123 = scmp.ne.s32.totalorder %s115, %s117
      %p124 = scmp.eq.s32.totalorder %s23, 1
      %p125 = por %p123, %p124
      %p126 = scmp.ne.s32.totalorder %s117, %s118
      %p127 = scmp.eq.s32.totalorder %s23, 0
      %p128 = por %p126, %p127
      %p129 = scmp.ne.s32.totalorder %s117, %s118
      %p130 = scmp.eq.s32.totalorder %s24, 1
      %p131 = por %p129, %p130
      %p133 = scmp.ne.s32.totalorder %s118, %s132
      %p134 = scmp.eq.s32.totalorder %s24, 0
      %p135 = por %p133, %p134
      %s137 = sadd.s32 %s136, 1
      %p140 = scmp.eq.s32.totalorder %s18, 1
      %p141 = scmp.ne.s32.totalorder %s136, %s138
      %p142 = scmp.eq.s32.totalorder %s18, 0
      %p143 = por %p141, %p142
      %p144 = scmp.ne.s32.totalorder %s136, %s138
      %p145 = scmp.eq.s32.totalorder %s23, 1
      %p146 = por %p144, %p145
      %p147 = scmp.ne.s32.totalorder %s138, %s139
      %p148 = scmp.eq.s32.totalorder %s23, 0
      %p149 = por %p147, %p148
      %p150 = scmp.ne.s32.totalorder %s138, %s139
      %p151 = scmp.eq.s32.totalorder %s24, 1
      %p152 = por %p150, %p151
      %p154 = scmp.ne.s32.totalorder %s139, %s153
      %p155 = scmp.eq.s32.totalorder %s24, 0
      %p156 = por %p154, %p155
      %s158 = sadd.s32 %s157, 1
      %p161 = scmp.eq.s32.totalorder %s18, 1
      %p162 = scmp.ne.s32.totalorder %s157, %s159
      %p163 = scmp.eq.s32.totalorder %s18, 0
      %p164 = por %p162, %p163
      %p165 = scmp.ne.s32.totalorder %s157, %s159
      %p166 = scmp.eq.s32.totalorder %s23, 1
      %p167 = por %p165, %p166
      %p168 = scmp.ne.s32.totalorder %s159, %s160
      %p169 = scmp.eq.s32.totalorder %s23, 0
      %p170 = por %p168, %p169
      %p171 = scmp.ne.s32.totalorder %s159, %s160
      %p172 = scmp.eq.s32.totalorder %s24, 1
      %p173 = por %p171, %p172
      %p175 = scmp.ne.s32.totalorder %s160, %s174
      %p176 = scmp.eq.s32.totalorder %s24, 0
      %p177 = por %p175, %p176
      %s179 = sadd.s32 %s178, 1
      %p182 = scmp.eq.s32.totalorder %s18, 1
      %p183 = scmp.ne.s32.totalorder %s178, %s180
      %p184 = scmp.eq.s32.totalorder %s18, 0
      %p185 = por %p183, %p184
      %p186 = scmp.ne.s32.totalorder %s178, %s180
      %p187 = scmp.eq.s32.totalorder %s23, 1
      %p188 = por %p186, %p187
      %p189 = scmp.ne.s32.totalorder %s180, %s181
      %p190 = scmp.eq.s32.totalorder %s23, 0
      %p191 = por %p189, %p190
      %p192 = scmp.ne.s32.totalorder %s180, %s181
      %p193 = scmp.eq.s32.totalorder %s24, 1
      %p194 = por %p192, %p193
      %p196 = scmp.ne.s32.totalorder %s181, %s195
      %p197 = scmp.eq.s32.totalorder %s24, 0
      %p198 = por %p196, %p197
      %s200 = sadd.s32 %s199, 1
      %p203 = scmp.eq.s32.totalorder %s18, 1
      %p204 = scmp.ne.s32.totalorder %s199, %s201
      %p205 = scmp.eq.s32.totalorder %s18, 0
      %p206 = por %p204, %p205
      %p207 = scmp.ne.s32.totalorder %s199, %s201
      %p208 = scmp.eq.s32.totalorder %s23, 1
      %p209 = por %p207, %p208
      %p210 = scmp.ne.s32.totalorder %s201, %s202
      %p211 = scmp.eq.s32.totalorder %s23, 0
      %p212 = por %p210, %p211
      %p213 = scmp.ne.s32.totalorder %s201, %s202
      %p214 = scmp.eq.s32.totalorder %s24, 1
      %p215 = por %p213, %p214
      %p217 = scmp.ne.s32.totalorder %s202, %s216
      %p218 = scmp.eq.s32.totalorder %s24, 0
      %p219 = por %p217, %p218
      %s220 = ssub.s32 %s18, %s25
      %p221 = scmp.eq.s32.totalorder %s220, 0
      %s223 = sadd.s32 %s222, 1
      %s224 = scalar_select %p221, %s222, %s223
      %p227 = pneg %p221
      %p228 = scmp.eq.s32.totalorder %s18, 1
      %p229 = por %p227, %p228
      %p230 = scmp.ne.s32.totalorder %s222, %s225
      %p231 = scmp.eq.s32.totalorder %s18, 0
      %p232 = por %p230, %p231
      %p233 = scmp.ne.s32.totalorder %s222, %s225
      %p234 = scmp.eq.s32.totalorder %s23, 1
      %p235 = por %p233, %p234
      %p236 = scmp.ne.s32.totalorder %s225, %s226
      %p237 = scmp.eq.s32.totalorder %s23, 0
      %p238 = por %p236, %p237
      %p239 = scmp.ne.s32.totalorder %s225, %s226
      %p240 = scmp.eq.s32.totalorder %s24, 1
      %p241 = por %p239, %p240
      %p243 = scmp.ne.s32.totalorder %s226, %s242
      %p244 = scmp.eq.s32.totalorder %s24, 0
      %p245 = por %p243, %p244
      %p246 = scmp.le.s32.totalorder 1, %s18
      %p247 = scmp.lt.s32.totalorder %s18, 3
      %p248 = pnand %p246, %p247
      %p249 = pneg %p248
      // Predicated region
      $region9: #{tpu_custom_call.1} parent=5 // pred_check
        _
      $region10: #{tpu_custom_call.1} parent=5 // pred_check_branch
        %251 = sbr.rel (%p248) target = $region12
      $region11: #{tpu_custom_call.1} parent=5 // pred_region
        %s252 = ssub.s32 %s18, 1
        // Predicated region
        $region13: #{tpu_custom_call.1} parent=11 // pred_check
          %p253 = pneg %p65
        $region14: #{tpu_custom_call.1} parent=11 // pred_check_branch
          %255 = sbr.rel (%p253) target = $region16
        $region15: #{tpu_custom_call.1} parent=11 // pred_region
          _
        $region16: #{tpu_custom_call.1} parent=11 // pred_fallthru
          _
        // Predicated region
        $region17: #{tpu_custom_call.1} parent=11 // pred_check
          %p256 = pneg %p86
        $region18: #{tpu_custom_call.1} parent=11 // pred_check_branch
          %258 = sbr.rel (%p256) target = $region20
        $region19: #{tpu_custom_call.1} parent=11 // pred_region
          _
        $region20: #{tpu_custom_call.1} parent=11 // pred_fallthru
          _
        // Predicated region
        $region21: #{tpu_custom_call.1} parent=11 // pred_check
          %p259 = pneg %p107
        $region22: #{tpu_custom_call.1} parent=11 // pred_check_branch
          %261 = sbr.rel (%p259) target = $region24
        $region23: #{tpu_custom_call.1} parent=11 // pred_region
          _
        $region24: #{tpu_custom_call.1} parent=11 // pred_fallthru
          _
        // Predicated region
        $region25: #{tpu_custom_call.1} parent=11 // pred_check
          %p262 = pneg %p128
        $region26: #{tpu_custom_call.1} parent=11 // pred_check_branch
          %264 = sbr.rel (%p262) target = $region28
        $region27: #{tpu_custom_call.1} parent=11 // pred_region
          _
        $region28: #{tpu_custom_call.1} parent=11 // pred_fallthru
          _
        // Predicated region
        $region29: #{tpu_custom_call.1} parent=11 // pred_check
          %p265 = pneg %p149
        $region30: #{tpu_custom_call.1} parent=11 // pred_check_branch
          %267 = sbr.rel (%p265) target = $region32
        $region31: #{tpu_custom_call.1} parent=11 // pred_region
          _
        $region32: #{tpu_custom_call.1} parent=11 // pred_fallthru
          _
        // Predicated region
        $region33: #{tpu_custom_call.1} parent=11 // pred_check
          %p268 = pneg %p170
        $region34: #{tpu_custom_call.1} parent=11 // pred_check_branch
          %270 = sbr.rel (%p268) target = $region36
        $region35: #{tpu_custom_call.1} parent=11 // pred_region
          _
        $region36: #{tpu_custom_call.1} parent=11 // pred_fallthru
          _
        // Predicated region
        $region37: #{tpu_custom_call.1} parent=11 // pred_check
          %p271 = pneg %p191
        $region38: #{tpu_custom_call.1} parent=11 // pred_check_branch
          %273 = sbr.rel (%p271) target = $region40
        $region39: #{tpu_custom_call.1} parent=11 // pred_region
          _
        $region40: #{tpu_custom_call.1} parent=11 // pred_fallthru
          _
        // Predicated region
        $region41: #{tpu_custom_call.1} parent=11 // pred_check
          %p274 = pneg %p212
        $region42: #{tpu_custom_call.1} parent=11 // pred_check_branch
          %276 = sbr.rel (%p274) target = $region44
        $region43: #{tpu_custom_call.1} parent=11 // pred_region
          _
        $region44: #{tpu_custom_call.1} parent=11 // pred_fallthru
          _
      $region12: #{tpu_custom_call.1} parent=5 // pred_fallthru
        _
      %p277 = scmp.lt.s32.totalorder %s18, 2
      // Predicated region
      $region45: #{tpu_custom_call.1} parent=5 // pred_check
        %p278 = pneg %p277
      $region46: #{tpu_custom_call.1} parent=5 // pred_check_branch
        %280 = sbr.rel (%p278) target = $region48
      $region47: #{tpu_custom_call.1} parent=5 // pred_region
        // Predicated region
        $region49: #{tpu_custom_call.1} parent=47 // pred_check
          %p281 = pneg %p38
        $region50: #{tpu_custom_call.1} parent=47 // pred_check_branch
          %283 = sbr.rel (%p281) target = $region52
        $region51: #{tpu_custom_call.1} parent=47 // pred_region
          %p284 = scmp.lt.s32.totalorder %s18, 1
          %s285 = scalar_select %p284, %s18, 1
          %s286 = smul.addr %s285, 2
          %s287 = smul.addr %s286, 4
          %s288 = scalar_lea.vmem %s0, %s287
        $region52: #{tpu_custom_call.1} parent=47 // pred_fallthru
          _
      $region48: #{tpu_custom_call.1} parent=5 // pred_fallthru
        _
      %p289 = scmp.le.s32.totalorder 1, %s18
      %p290 = scmp.lt.s32.totalorder %s18, 3
      %p291 = pnand %p289, %p290
      %p292 = pneg %p291
      // Predicated region
      $region53: #{tpu_custom_call.1} parent=5 // pred_check
        _
      $region54: #{tpu_custom_call.1} parent=5 // pred_check_branch
        %294 = sbr.rel (%p291) target = $region56
      $region55: #{tpu_custom_call.1} parent=5 // pred_region
        %s295 = ssub.s32 %s18, 1
        %p296 = scmp.lt.s32.totalorder %s23, 1
        %s297 = scalar_select %p296, %s23, 1
        %s298 = smul.addr %s297, 2
        %s299 = smul.addr %s298, 4
        %s300 = scalar_lea.vmem %s0, %s299
        %p301 = pneg %p44
        %p302 = pneg %p41
        %p303 = pneg %p65
        %p304 = pneg %p62
        %p305 = pneg %p86
        %p306 = pneg %p83
        %p307 = pneg %p107
        %p308 = pneg %p104
        %p309 = pneg %p128
        %p310 = pneg %p125
        %p311 = pneg %p149
        %p312 = pneg %p146
        %p313 = pneg %p170
        %p314 = pneg %p167
        %p315 = pneg %p191
        %p316 = pneg %p188
        %p317 = pneg %p212
        %p318 = pneg %p209
        %p319 = pneg %p238
        %p320 = pneg %p235
        %s321 = sand.u32 %s225, 1
        %s322 = scalar_lea.sflag [#allocation3], %s321
        %s323 = sand.u32 %s225, 1
        %s324 = smul.addr %s323, 64
        %s325 = scalar_lea.vmem [#allocation2], %s324
        %p326 = scmp.lt.s32.totalorder %s23, 1
        %s327 = scalar_select %p326, %s23, 1
        %s328 = smul.addr %s327, 2
        %s329 = smul.addr %s328, 4
        %s330 = scalar_lea.vmem %s0, %s329
        %v332 = vld [vmem:[%s8] sm:$0xff]
        %v333 = vld [vmem:[%s8 + $0x8] sm:$0xff]
        %v334 = vld [vmem:[%s8 + $0x10] sm:$0xff]
        %v335 = vld [vmem:[%s8 + $0x18] sm:$0xff]
        %v336 = vld [vmem:[%s330] sm:$0xff]
        %v338 = vcombine.high %v336, %v336
        %v340 = vpack.c.bf16 %v336, %v336
        %v341 = vpack.c.bf16 %v338, %v338
        %vm342 = vcmask 1043456
        %v343 = vsel %vm342, %v336, 0.0
        %v344 = vrot.slane %v343, 4
        %v345 = vadd.f32 %v343, %v344
        %v346 = vrot.slane %v345, 2
        %v347 = vadd.f32 %v345, %v346
        %v348 = vrot.slane %v347, 1
        %v349 = vadd.f32 %v347, %v348
        %v350 = vsel %vm342, %v338, 0.0
        %v351 = vrot.slane %v350, 4
        %v352 = vadd.f32 %v350, %v351
        %v353 = vrot.slane %v352, 2
        %v354 = vadd.f32 %v352, %v353
        %v355 = vrot.slane %v354, 1
        %v356 = vadd.f32 %v354, %v355
        %v357 = vrcp.pop 4.0
        %v358 = vmul.f32 %v349, %v357
        %v359 = vmul.f32 %v356, %v357
        %v362 = vcombine.low %v358, %v359
        %v364 = vsub.f32 %v336, %v362
        %v365 = vmul.f32 %v364, %v364
        %v367 = vcombine.high %v365, %v365
        %v369 = vsel %vm342, %v365, 0.0
        %v370 = vrot.slane %v369, 4
        %v371 = vadd.f32 %v369, %v370
        %v372 = vrot.slane %v371, 2
        %v373 = vadd.f32 %v371, %v372
        %v374 = vrot.slane %v373, 1
        %v375 = vadd.f32 %v373, %v374
        %v376 = vsel %vm342, %v367, 0.0
        %v377 = vrot.slane %v376, 4
        %v378 = vadd.f32 %v376, %v377
        %v379 = vrot.slane %v378, 2
        %v380 = vadd.f32 %v378, %v379
        %v381 = vrot.slane %v380, 1
        %v382 = vadd.f32 %v380, %v381
        %v383 = vmul.f32 %v375, %v357
        %v384 = vmul.f32 %v382, %v357
        %v385 = vadd.f32 %v383, 1e-05
        %v386 = vadd.f32 %v384, 1e-05
        %v387 = vrsqrt.pop %v385
        %v388 = vrsqrt.pop %v386
        %v391 = vcombine.low %v387, %v388
        %v393 = vmul.f32 %v364, %v391
        %395 = vset.pattern.permute.xlu0 0
        %396 = vperm.xlu0 %395, %v332
        %v397 = vpop.permute.xlu0 %396
        %v399 = vunpack.c.l.s4 839922192
        %v400 = vunpack.c.0.s8 %v399
        %v401 = vlaneseq
        %v402 = vshrl.u32 %v401, 7
        %v403 = vsub.s32 %v400, %v402
        %v404 = vrot.slane %v397, %v403
        %v406 = vmul.f32 %v393, %v404
        %407 = vset.pattern.permute.xlu0 1
        %408 = vperm.xlu0 %407, %v332
        %v409 = vpop.permute.xlu0 %408
        %v411 = vunpack.c.l.s4 839922192
        %v412 = vunpack.c.0.s8 %v411
        %v413 = vlaneseq
        %v414 = vshrl.u32 %v413, 7
        %v415 = vsub.s32 %v412, %v414
        %v416 = vrot.slane %v409, %v415
        %v418 = vadd.f32 %v406, %v416
        %v419 = vmax.f32 %v418, 0.0
        %v421 = vcombine.high %v419, %v419
        %v423 = vpack.c.bf16 %v419, %v419
        %v424 = vpack.c.bf16 %v421, %v421
        %425 = vxpose.xlu0.b32.start [1/16] %v419, 128
        %426 = vxpose.xlu0.b32.cont [2/16] 0.0, 128
        %427 = vxpose.xlu0.b32.cont [3/16] 0.0, 128
        %428 = vxpose.xlu0.b32.cont [4/16] 0.0, 128
        %429 = vxpose.xlu0.b32.cont [5/16] 0.0, 128
        %430 = vxpose.xlu0.b32.cont [6/16] 0.0, 128
        %431 = vxpose.xlu0.b32.cont [7/16] 0.0, 128
        %432 = vxpose.xlu0.b32.cont [8/16] 0.0, 128
        %433 = vxpose.xlu0.b32.cont [9/16] 0.0, 128
        %434 = vxpose.xlu0.b32.cont [10/16] 0.0, 128
        %435 = vxpose.xlu0.b32.cont [11/16] 0.0, 128
        %436 = vxpose.xlu0.b32.cont [12/16] 0.0, 128
        %437 = vxpose.xlu0.b32.cont [13/16] 0.0, 128
        %438 = vxpose.xlu0.b32.cont [14/16] 0.0, 128
        %439 = vxpose.xlu0.b32.cont [15/16] 0.0, 128
        %440 = vxpose.xlu0.b32.end [16/16] 0.0, 128
        %v441 = vpop.trf.xlu0
        %v442 = vpop.trf.xlu0
        %v443 = vpop.trf.xlu0
        %v444 = vpop.trf.xlu0
        %v445 = vpop.trf.xlu0
        %v446 = vpop.trf.xlu0
        %v447 = vpop.trf.xlu0
        %v448 = vpop.trf.xlu0
        %v449 = vpop.trf.xlu0
        %v450 = vpop.trf.xlu0
        %v451 = vpop.trf.xlu0
        %v452 = vpop.trf.xlu0
        %v453 = vpop.trf.xlu0
        %v454 = vpop.trf.xlu0
        %v455 = vpop.trf.xlu0
        %v456 = vpop.trf.xlu0
        %457 = vxpose.xlu0.b32.start [1/16] %v421, 128
        %458 = vxpose.xlu0.b32.cont [2/16] 0.0, 128
        %459 = vxpose.xlu0.b32.cont [3/16] 0.0, 128
        %460 = vxpose.xlu0.b32.cont [4/16] 0.0, 128
        %461 = vxpose.xlu0.b32.cont [5/16] 0.0, 128
        %462 = vxpose.xlu0.b32.cont [6/16] 0.0, 128
        %463 = vxpose.xlu0.b32.cont [7/16] 0.0, 128
        %464 = vxpose.xlu0.b32.cont [8/16] 0.0, 128
        %465 = vxpose.xlu0.b32.cont [9/16] 0.0, 128
        %466 = vxpose.xlu0.b32.cont [10/16] 0.0, 128
        %467 = vxpose.xlu0.b32.cont [11/16] 0.0, 128
        %468 = vxpose.xlu0.b32.cont [12/16] 0.0, 128
        %469 = vxpose.xlu0.b32.cont [13/16] 0.0, 128
        %470 = vxpose.xlu0.b32.cont [14/16] 0.0, 128
        %471 = vxpose.xlu0.b32.cont [15/16] 0.0, 128
        %472 = vxpose.xlu0.b32.end [16/16] 0.0, 128
        %v473 = vpop.trf.xlu0
        %v474 = vpop.trf.xlu0
        %v475 = vpop.trf.xlu0
        %v476 = vpop.trf.xlu0
        %v477 = vpop.trf.xlu0
        %v478 = vpop.trf.xlu0
        %v479 = vpop.trf.xlu0
        %v480 = vpop.trf.xlu0
        %v481 = vpop.trf.xlu0
        %v482 = vpop.trf.xlu0
        %v483 = vpop.trf.xlu0
        %v484 = vpop.trf.xlu0
        %v485 = vpop.trf.xlu0
        %v486 = vpop.trf.xlu0
        %v487 = vpop.trf.xlu0
        %v488 = vpop.trf.xlu0
        %v489 = vpack.c.bf16 %v442, %v441
        %v490 = vpack.c.bf16 %v444, %v443
        %v491 = vpack.c.bf16 %v446, %v445
        %v492 = vpack.c.bf16 %v448, %v447
        %v493 = vpack.c.bf16 %v450, %v449
        %v494 = vpack.c.bf16 %v452, %v451
        %v495 = vpack.c.bf16 %v454, %v453
        %v496 = vpack.c.bf16 %v456, %v455
        %v497 = vpack.c.bf16 %v474, %v473
        %v498 = vpack.c.bf16 %v476, %v475
        %v499 = vpack.c.bf16 %v478, %v477
        %v500 = vpack.c.bf16 %v480, %v479
        %v501 = vpack.c.bf16 %v482, %v481
        %v502 = vpack.c.bf16 %v484, %v483
        %v503 = vpack.c.bf16 %v486, %v485
        %v504 = vpack.c.bf16 %v488, %v487
        %v505 = vld [vmem:[%s3] sm:$0xf]
        %v506 = vld [vmem:[%s3 + $0x4] sm:$0xf]
        %v507 = vld [vmem:[%s3 + $0x8] sm:$0xf]
        %v508 = vld [vmem:[%s3 + $0xc] sm:$0xf]
        %v513 = vunpack.c.l.b16 %v505
        %v514 = vunpack.c.l.b16 %v506
        %v515 = vunpack.c.l.b16 %v507
        %v516 = vunpack.c.l.b16 %v508
        %v517 = vpack.c.b16 %v514, %v513
        %v518 = vpack.c.b16 %v516, %v515
        %vm519 = vcmask 31744
        %v521 = vsel %vm519, %v517, 0
        %v524 = vsel %vm519, %v518, 0
        %vm526 = vcmask 1041408
        %v528 = vsel %vm526, %v423, 0
        %v531 = vsel %vm526, %v424, 0
        %533 = vmatprep.subr.bf16.mxu0 0
        %534 = vmatpush1.bf16.msra.mxu0 0
        %535 = vmatprep.subr.bf16.mxu0 0
        %536 = vmatpush1.bf16.msra.mxu0 0
        %537 = vmatprep.subr.bf16.mxu0 0
        %538 = vmatpush1.bf16.msra.mxu0 0
        %539 = vmatprep.subr.bf16.mxu0 0
        %540 = vmatpush1.bf16.msra.mxu0 0
        %541 = vmatprep.subr.bf16.mxu0 0
        %542 = vmatpush1.bf16.msra.mxu0 0
        %543 = vmatprep.subr.bf16.mxu0 0
        %544 = vmatpush1.bf16.msra.mxu0 0
        %545 = vmatprep.subr.bf16.mxu0 0
        %546 = vmatpush1.bf16.msra.mxu0 0
        %547 = vmatprep.subr.bf16.mxu0 %v531
        %548 = vmatpush1.bf16.msra.mxu0 %v528
        %549 = vmatprep.subr.bf16.mxu0 0
        %550 = vmatpush2.bf16.msra.mxu0 0
        %551 = vmatprep.subr.bf16.mxu0 0
        %552 = vmatpush2.bf16.msra.mxu0 0
        %553 = vmatprep.subr.bf16.mxu0 0
        %554 = vmatpush2.bf16.msra.mxu0 0
        %555 = vmatprep.subr.bf16.mxu0 0
        %556 = vmatpush2.bf16.msra.mxu0 0
        %557 = vmatprep.subr.bf16.mxu0 0
        %558 = vmatpush2.bf16.msra.mxu0 0
        %559 = vmatprep.subr.bf16.mxu0 0
        %560 = vmatpush2.bf16.msra.mxu0 0
        %561 = vmatprep.subr.bf16.mxu0 0
        %562 = vmatpush2.bf16.msra.mxu0 0
        %563 = vmatprep.subr.bf16.mxu0 0
        %564 = vmatpush2.bf16.msra.mxu0 0
        %565 = vmatprep.mubr.bf16.mxu0 0
        %566 = vmatmul.mubr.bf16.gmra.mxu0 %v521
        %v567 = vpop.f32.mrf.mxu0
        %v568 = vadd.f32 0.0, %v567
        %v569 = vpop.f32.mrf.mxu0
        %v570 = vadd.f32 0.0, %v569
        %v571 = vpop.f32.mrf.mxu0
        %v572 = vadd.f32 0.0, %v571
        %v573 = vpop.f32.mrf.mxu0
        %v574 = vadd.f32 0.0, %v573
        %575 = vmatprep.mubr.bf16.mxu0 0
        %576 = vmatmul.mubr.bf16.gmra.mxu0 %v524
        %v577 = vpop.f32.mrf.mxu0
        %v578 = vadd.f32 0.0, %v577
        %v579 = vpop.f32.mrf.mxu0
        %v580 = vadd.f32 0.0, %v579
        %v581 = vpop.f32.mrf.mxu0
        %v582 = vadd.f32 0.0, %v581
        %v583 = vpop.f32.mrf.mxu0
        %v584 = vadd.f32 0.0, %v583
        %585 = vdwg.mxu0
        %v586 = vpack.c.bf16 %v572, %v568
        %v587 = vpack.c.bf16 %v574, %v570
        %v588 = vpack.c.bf16 %v582, %v578
        %v589 = vpack.c.bf16 %v584, %v580
        %v590 = vld [vmem:[%s1] sm:$0x3]
        %v591 = vld [vmem:[%s2] sm:$0x1]
        %v593 = vlaneseq
        %v594 = vshrl.u32 %v593, 7
        %v595 = vsub.s32 0, %v594
        %v596 = vrot.slane %v591, %v595
        %v599 = vsel %vm519, %v489, 0
        %v602 = vsel %vm519, %v490, 0
        %v605 = vsel %vm519, %v491, 0
        %v608 = vsel %vm519, %v492, 0
        %v611 = vsel %vm519, %v493, 0
        %v614 = vsel %vm519, %v494, 0
        %v617 = vsel %vm519, %v495, 0
        %v620 = vsel %vm519, %v496, 0
        %v623 = vsel %vm519, %v497, 0
        %v626 = vsel %vm519, %v498, 0
        %v629 = vsel %vm519, %v499, 0
        %v632 = vsel %vm519, %v500, 0
        %v635 = vsel %vm519, %v501, 0
        %v638 = vsel %vm519, %v502, 0
        %v641 = vsel %vm519, %v503, 0
        %v644 = vsel %vm519, %v504, 0
        %v647 = vsel %vm526, %v590, 0
        %649 = vmatprep.subr.bf16.mxu0 0
        %650 = vmatpush1.bf16.msra.mxu0 0
        %651 = vmatprep.subr.bf16.mxu0 0
        %652 = vmatpush1.bf16.msra.mxu0 0
        %653 = vmatprep.subr.bf16.mxu0 0
        %654 = vmatpush1.bf16.msra.mxu0 0
        %655 = vmatprep.subr.bf16.mxu0 0
        %656 = vmatpush1.bf16.msra.mxu0 0
        %657 = vmatprep.subr.bf16.mxu0 0
        %658 = vmatpush1.bf16.msra.mxu0 0
        %659 = vmatprep.subr.bf16.mxu0 0
        %660 = vmatpush1.bf16.msra.mxu0 0
        %661 = vmatprep.subr.bf16.mxu0 0
        %662 = vmatpush1.bf16.msra.mxu0 0
        %663 = vmatprep.subr.bf16.mxu0 0
        %664 = vmatpush1.bf16.msra.mxu0 %v647
        %665 = vmatprep.subr.bf16.mxu0 0
        %666 = vmatpush2.bf16.msra.mxu0 0
        %667 = vmatprep.subr.bf16.mxu0 0
        %668 = vmatpush2.bf16.msra.mxu0 0
        %669 = vmatprep.subr.bf16.mxu0 0
        %670 = vmatpush2.bf16.msra.mxu0 0
        %671 = vmatprep.subr.bf16.mxu0 0
        %672 = vmatpush2.bf16.msra.mxu0 0
        %673 = vmatprep.subr.bf16.mxu0 0
        %674 = vmatpush2.bf16.msra.mxu0 0
        %675 = vmatprep.subr.bf16.mxu0 0
        %676 = vmatpush2.bf16.msra.mxu0 0
        %677 = vmatprep.subr.bf16.mxu0 0
        %678 = vmatpush2.bf16.msra.mxu0 0
        %679 = vmatprep.subr.bf16.mxu0 0
        %680 = vmatpush2.bf16.msra.mxu0 0
        %681 = vmatprep.mubr.bf16.mxu0 0
        %682 = vmatmul.mubr.bf16.gmra.mxu0 %v599
        %v683 = vpop.f32.mrf.mxu0
        %v684 = vadd.f32 %v596, %v683
        %v685 = vpop.f32.mrf.mxu0
        %v686 = vpop.f32.mrf.mxu0
        %v687 = vadd.f32 %v596, %v686
        %v688 = vpop.f32.mrf.mxu0
        %689 = vmatprep.mubr.bf16.mxu0 0
        %690 = vmatmul.mubr.bf16.gmra.mxu0 %v602
        %v691 = vpop.f32.mrf.mxu0
        %v692 = vadd.f32 %v596, %v691
        %v693 = vpop.f32.mrf.mxu0
        %v694 = vpop.f32.mrf.mxu0
        %v695 = vadd.f32 %v596, %v694
        %v696 = vpop.f32.mrf.mxu0
        %697 = vmatprep.mubr.bf16.mxu0 0
        %698 = vmatmul.mubr.bf16.gmra.mxu0 %v605
        %v699 = vpop.f32.mrf.mxu0
        %v700 = vadd.f32 %v596, %v699
        %v701 = vpop.f32.mrf.mxu0
        %v702 = vpop.f32.mrf.mxu0
        %v703 = vadd.f32 %v596, %v702
        %v704 = vpop.f32.mrf.mxu0
        %705 = vmatprep.mubr.bf16.mxu0 0
        %706 = vmatmul.mubr.bf16.gmra.mxu0 %v608
        %v707 = vpop.f32.mrf.mxu0
        %v708 = vadd.f32 %v596, %v707
        %v709 = vpop.f32.mrf.mxu0
        %v710 = vpop.f32.mrf.mxu0
        %v711 = vadd.f32 %v596, %v710
        %v712 = vpop.f32.mrf.mxu0
        %713 = vmatprep.mubr.bf16.mxu0 0
        %714 = vmatmul.mubr.bf16.gmra.mxu0 %v611
        %v715 = vpop.f32.mrf.mxu0
        %v716 = vadd.f32 %v596, %v715
        %v717 = vpop.f32.mrf.mxu0
        %v718 = vpop.f32.mrf.mxu0
        %v719 = vadd.f32 %v596, %v718
        %v720 = vpop.f32.mrf.mxu0
        %721 = vmatprep.mubr.bf16.mxu0 0
        %722 = vmatmul.mubr.bf16.gmra.mxu0 %v614
        %v723 = vpop.f32.mrf.mxu0
        %v724 = vadd.f32 %v596, %v723
        %v725 = vpop.f32.mrf.mxu0
        %v726 = vpop.f32.mrf.mxu0
        %v727 = vadd.f32 %v596, %v726
        %v728 = vpop.f32.mrf.mxu0
        %729 = vmatprep.mubr.bf16.mxu0 0
        %730 = vmatmul.mubr.bf16.gmra.mxu0 %v617
        %v731 = vpop.f32.mrf.mxu0
        %v732 = vadd.f32 %v596, %v731
        %v733 = vpop.f32.mrf.mxu0
        %v734 = vpop.f32.mrf.mxu0
        %v735 = vadd.f32 %v596, %v734
        %v736 = vpop.f32.mrf.mxu0
        %737 = vmatprep.mubr.bf16.mxu0 0
        %738 = vmatmul.mubr.bf16.gmra.mxu0 %v620
        %v739 = vpop.f32.mrf.mxu0
        %v740 = vadd.f32 %v596, %v739
        %v741 = vpop.f32.mrf.mxu0
        %v742 = vpop.f32.mrf.mxu0
        %v743 = vadd.f32 %v596, %v742
        %v744 = vpop.f32.mrf.mxu0
        %745 = vmatprep.mubr.bf16.mxu0 0
        %746 = vmatmul.mubr.bf16.gmra.mxu0 %v623
        %v747 = vpop.f32.mrf.mxu0
        %v748 = vadd.f32 %v596, %v747
        %v749 = vpop.f32.mrf.mxu0
        %v750 = vpop.f32.mrf.mxu0
        %v751 = vadd.f32 %v596, %v750
        %v752 = vpop.f32.mrf.mxu0
        %753 = vmatprep.mubr.bf16.mxu0 0
        %754 = vmatmul.mubr.bf16.gmra.mxu0 %v626
        %v755 = vpop.f32.mrf.mxu0
        %v756 = vadd.f32 %v596, %v755
        %v757 = vpop.f32.mrf.mxu0
        %v758 = vpop.f32.mrf.mxu0
        %v759 = vadd.f32 %v596, %v758
        %v760 = vpop.f32.mrf.mxu0
        %761 = vmatprep.mubr.bf16.mxu0 0
        %762 = vmatmul.mubr.bf16.gmra.mxu0 %v629
        %v763 = vpop.f32.mrf.mxu0
        %v764 = vadd.f32 %v596, %v763
        %v765 = vpop.f32.mrf.mxu0
        %v766 = vpop.f32.mrf.mxu0
        %v767 = vadd.f32 %v596, %v766
        %v768 = vpop.f32.mrf.mxu0
        %769 = vmatprep.mubr.bf16.mxu0 0
        %770 = vmatmul.mubr.bf16.gmra.mxu0 %v632
        %v771 = vpop.f32.mrf.mxu0
        %v772 = vadd.f32 %v596, %v771
        %v773 = vpop.f32.mrf.mxu0
        %v774 = vpop.f32.mrf.mxu0
        %v775 = vadd.f32 %v596, %v774
        %v776 = vpop.f32.mrf.mxu0
        %777 = vmatprep.mubr.bf16.mxu0 0
        %778 = vmatmul.mubr.bf16.gmra.mxu0 %v635
        %v779 = vpop.f32.mrf.mxu0
        %v780 = vadd.f32 %v596, %v779
        %v781 = vpop.f32.mrf.mxu0
        %v782 = vpop.f32.mrf.mxu0
        %v783 = vadd.f32 %v596, %v782
        %v784 = vpop.f32.mrf.mxu0
        %785 = vmatprep.mubr.bf16.mxu0 0
        %786 = vmatmul.mubr.bf16.gmra.mxu0 %v638
        %v787 = vpop.f32.mrf.mxu0
        %v788 = vadd.f32 %v596, %v787
        %v789 = vpop.f32.mrf.mxu0
        %v790 = vpop.f32.mrf.mxu0
        %v791 = vadd.f32 %v596, %v790
        %v792 = vpop.f32.mrf.mxu0
        %793 = vmatprep.mubr.bf16.mxu0 0
        %794 = vmatmul.mubr.bf16.gmra.mxu0 %v641
        %v795 = vpop.f32.mrf.mxu0
        %v796 = vadd.f32 %v596, %v795
        %v797 = vpop.f32.mrf.mxu0
        %v798 = vpop.f32.mrf.mxu0
        %v799 = vadd.f32 %v596, %v798
        %v800 = vpop.f32.mrf.mxu0
        %801 = vmatprep.mubr.bf16.mxu0 0
        %802 = vmatmul.mubr.bf16.gmra.mxu0 %v644
        %v803 = vpop.f32.mrf.mxu0
        %v804 = vadd.f32 %v596, %v803
        %v805 = vpop.f32.mrf.mxu0
        %v806 = vpop.f32.mrf.mxu0
        %v807 = vadd.f32 %v596, %v806
        %v808 = vpop.f32.mrf.mxu0
        %809 = vdwg.mxu0
        %v810 = vpack.c.bf16 %v687, %v684
        %v811 = vpack.c.bf16 %v695, %v692
        %v812 = vpack.c.bf16 %v703, %v700
        %v813 = vpack.c.bf16 %v711, %v708
        %v814 = vpack.c.bf16 %v719, %v716
        %v815 = vpack.c.bf16 %v727, %v724
        %v816 = vpack.c.bf16 %v735, %v732
        %v817 = vpack.c.bf16 %v743, %v740
        %v818 = vpack.c.bf16 %v751, %v748
        %v819 = vpack.c.bf16 %v759, %v756
        %v820 = vpack.c.bf16 %v767, %v764
        %v821 = vpack.c.bf16 %v775, %v772
        %v822 = vpack.c.bf16 %v783, %v780
        %v823 = vpack.c.bf16 %v791, %v788
        %v824 = vpack.c.bf16 %v799, %v796
        %v825 = vpack.c.bf16 %v807, %v804
        %v826 = vld [vmem:[%s4] sm:$0xf]
        %v827 = vld [vmem:[%s4 + $0x4] sm:$0xf]
        %v828 = vld [vmem:[%s4 + $0x8] sm:$0xf]
        %v829 = vld [vmem:[%s4 + $0xc] sm:$0xf]
        %v830 = vld [vmem:[%s5] sm:$0xf]
        %v831 = vld [vmem:[%s5 + $0x4] sm:$0xf]
        %v832 = vld [vmem:[%s5 + $0x8] sm:$0xf]
        %v833 = vld [vmem:[%s5 + $0xc] sm:$0xf]
        %v834 = vld [vmem:[%s6] sm:$0xf]
        %v835 = vld [vmem:[%s6 + $0x4] sm:$0xf]
        %v836 = vld [vmem:[%s7] sm:$0xf]
        %v837 = vld [vmem:[%s7 + $0x4] sm:$0xf]
        %v838 = vld [vmem:[%s7 + $0x8] sm:$0xf]
        %v839 = vld [vmem:[%s7 + $0xc] sm:$0xf]
        %vm840 = vcmask 64512
        %v842 = vsel %vm840, %v810, 0
        %v845 = vsel %vm840, %v811, 0
        %v848 = vsel %vm840, %v812, 0
        %v851 = vsel %vm840, %v813, 0
        %v854 = vsel %vm840, %v814, 0
        %v857 = vsel %vm840, %v815, 0
        %v860 = vsel %vm840, %v816, 0
        %v863 = vsel %vm840, %v817, 0
        %v866 = vsel %vm342, %v586, 0
        %v869 = vsel %vm342, %v587, 0
        %871 = vmatprep.subr.bf16.mxu0 0
        %872 = vmatpush1.bf16.msra.mxu0 0
        %873 = vmatprep.subr.bf16.mxu0 0
        %874 = vmatpush1.bf16.msra.mxu0 0
        %875 = vmatprep.subr.bf16.mxu0 0
        %876 = vmatpush1.bf16.msra.mxu0 0
        %877 = vmatprep.subr.bf16.mxu0 0
        %878 = vmatpush1.bf16.msra.mxu0 0
        %879 = vmatprep.subr.bf16.mxu0 0
        %880 = vmatpush1.bf16.msra.mxu0 0
        %881 = vmatprep.subr.bf16.mxu0 0
        %882 = vmatpush1.bf16.msra.mxu0 0
        %883 = vmatprep.subr.bf16.mxu0 0
        %884 = vmatpush1.bf16.msra.mxu0 0
        %885 = vmatprep.subr.bf16.mxu0 %v869
        %886 = vmatpush1.bf16.msra.mxu0 %v866
        %887 = vmatprep.subr.bf16.mxu0 0
        %888 = vmatpush2.bf16.msra.mxu0 0
        %889 = vmatprep.subr.bf16.mxu0 0
        %890 = vmatpush2.bf16.msra.mxu0 0
        %891 = vmatprep.subr.bf16.mxu0 0
        %892 = vmatpush2.bf16.msra.mxu0 0
        %893 = vmatprep.subr.bf16.mxu0 0
        %894 = vmatpush2.bf16.msra.mxu0 0
        %895 = vmatprep.subr.bf16.mxu0 0
        %896 = vmatpush2.bf16.msra.mxu0 0
        %897 = vmatprep.subr.bf16.mxu0 0
        %898 = vmatpush2.bf16.msra.mxu0 0
        %899 = vmatprep.subr.bf16.mxu0 0
        %900 = vmatpush2.bf16.msra.mxu0 0
        %901 = vmatprep.subr.bf16.mxu0 0
        %902 = vmatpush2.bf16.msra.mxu0 0
        %903 = vmatprep.mubr.bf16.mxu0 0
        %904 = vmatmul.mubr.bf16.gmra.mxu0 %v842
        %v905 = vpop.f32.mrf.mxu0
        %v906 = vadd.f32 0.0, %v905
        %v907 = vpop.f32.mrf.mxu0
        %v908 = vadd.f32 0.0, %v907
        %v909 = vpop.f32.mrf.mxu0
        %v910 = vadd.f32 0.0, %v909
        %v911 = vpop.f32.mrf.mxu0
        %v912 = vadd.f32 0.0, %v911
        %913 = vmatprep.mubr.bf16.mxu0 0
        %914 = vmatmul.mubr.bf16.gmra.mxu0 %v845
        %v915 = vpop.f32.mrf.mxu0
        %v916 = vadd.f32 0.0, %v915
        %v917 = vpop.f32.mrf.mxu0
        %v918 = vadd.f32 0.0, %v917
        %v919 = vpop.f32.mrf.mxu0
        %v920 = vadd.f32 0.0, %v919
        %v921 = vpop.f32.mrf.mxu0
        %v922 = vadd.f32 0.0, %v921
        %923 = vmatprep.mubr.bf16.mxu0 0
        %924 = vmatmul.mubr.bf16.gmra.mxu0 %v848
        %v925 = vpop.f32.mrf.mxu0
        %v926 = vadd.f32 0.0, %v925
        %v927 = vpop.f32.mrf.mxu0
        %v928 = vadd.f32 0.0, %v927
        %v929 = vpop.f32.mrf.mxu0
        %v930 = vadd.f32 0.0, %v929
        %v931 = vpop.f32.mrf.mxu0
        %v932 = vadd.f32 0.0, %v931
        %933 = vmatprep.mubr.bf16.mxu0 0
        %934 = vmatmul.mubr.bf16.gmra.mxu0 %v851
        %v935 = vpop.f32.mrf.mxu0
        %v936 = vadd.f32 0.0, %v935
        %v937 = vpop.f32.mrf.mxu0
        %v938 = vadd.f32 0.0, %v937
        %v939 = vpop.f32.mrf.mxu0
        %v940 = vadd.f32 0.0, %v939
        %v941 = vpop.f32.mrf.mxu0
        %v942 = vadd.f32 0.0, %v941
        %943 = vmatprep.mubr.bf16.mxu0 0
        %944 = vmatmul.mubr.bf16.gmra.mxu0 %v854
        %v945 = vpop.f32.mrf.mxu0
        %v946 = vadd.f32 0.0, %v945
        %v947 = vpop.f32.mrf.mxu0
        %v948 = vadd.f32 0.0, %v947
        %v949 = vpop.f32.mrf.mxu0
        %v950 = vadd.f32 0.0, %v949
        %v951 = vpop.f32.mrf.mxu0
        %v952 = vadd.f32 0.0, %v951
        %953 = vmatprep.mubr.bf16.mxu0 0
        %954 = vmatmul.mubr.bf16.gmra.mxu0 %v857
        %v955 = vpop.f32.mrf.mxu0
        %v956 = vadd.f32 0.0, %v955
        %v957 = vpop.f32.mrf.mxu0
        %v958 = vadd.f32 0.0, %v957
        %v959 = vpop.f32.mrf.mxu0
        %v960 = vadd.f32 0.0, %v959
        %v961 = vpop.f32.mrf.mxu0
        %v962 = vadd.f32 0.0, %v961
        %963 = vmatprep.mubr.bf16.mxu0 0
        %964 = vmatmul.mubr.bf16.gmra.mxu0 %v860
        %v965 = vpop.f32.mrf.mxu0
        %v966 = vadd.f32 0.0, %v965
        %v967 = vpop.f32.mrf.mxu0
        %v968 = vadd.f32 0.0, %v967
        %v969 = vpop.f32.mrf.mxu0
        %v970 = vadd.f32 0.0, %v969
        %v971 = vpop.f32.mrf.mxu0
        %v972 = vadd.f32 0.0, %v971
        %973 = vmatprep.mubr.bf16.mxu0 0
        %974 = vmatmul.mubr.bf16.gmra.mxu0 %v863
        %v975 = vpop.f32.mrf.mxu0
        %v976 = vadd.f32 0.0, %v975
        %v977 = vpop.f32.mrf.mxu0
        %v978 = vadd.f32 0.0, %v977
        %v979 = vpop.f32.mrf.mxu0
        %v980 = vadd.f32 0.0, %v979
        %v981 = vpop.f32.mrf.mxu0
        %v982 = vadd.f32 0.0, %v981
        %983 = vdwg.mxu0
        %v984 = vmax.f32 %v906, %v908
        %985 = vmax.xlane.f32.xlu0 %v984
        %v986 = vpop.xlane.xlu0 %985
        %v987 = vmax.f32 %v910, %v912
        %988 = vmax.xlane.f32.xlu0 %v987
        %v989 = vpop.xlane.xlu0 %988
        %v990 = vmax.f32 %v916, %v918
        %991 = vmax.xlane.f32.xlu0 %v990
        %v992 = vpop.xlane.xlu0 %991
        %v993 = vmax.f32 %v920, %v922
        %994 = vmax.xlane.f32.xlu0 %v993
        %v995 = vpop.xlane.xlu0 %994
        %v996 = vmax.f32 %v926, %v928
        %997 = vmax.xlane.f32.xlu0 %v996
        %v998 = vpop.xlane.xlu0 %997
        %v999 = vmax.f32 %v930, %v932
        %1000 = vmax.xlane.f32.xlu0 %v999
        %v1001 = vpop.xlane.xlu0 %1000
        %v1002 = vmax.f32 %v936, %v938
        %1003 = vmax.xlane.f32.xlu0 %v1002
        %v1004 = vpop.xlane.xlu0 %1003
        %v1005 = vmax.f32 %v940, %v942
        %1006 = vmax.xlane.f32.xlu0 %v1005
        %v1007 = vpop.xlane.xlu0 %1006
        %v1008 = vmax.f32 %v946, %v948
        %1009 = vmax.xlane.f32.xlu0 %v1008
        %v1010 = vpop.xlane.xlu0 %1009
        %v1011 = vmax.f32 %v950, %v952
        %1012 = vmax.xlane.f32.xlu0 %v1011
        %v1013 = vpop.xlane.xlu0 %1012
        %v1014 = vmax.f32 %v956, %v958
        %1015 = vmax.xlane.f32.xlu0 %v1014
        %v1016 = vpop.xlane.xlu0 %1015
        %v1017 = vmax.f32 %v960, %v962
        %1018 = vmax.xlane.f32.xlu0 %v1017
        %v1019 = vpop.xlane.xlu0 %1018
        %v1020 = vmax.f32 %v966, %v968
        %1021 = vmax.xlane.f32.xlu0 %v1020
        %v1022 = vpop.xlane.xlu0 %1021
        %v1023 = vmax.f32 %v970, %v972
        %1024 = vmax.xlane.f32.xlu0 %v1023
        %v1025 = vpop.xlane.xlu0 %1024
        %v1026 = vmax.f32 %v976, %v978
        %1027 = vmax.xlane.f32.xlu0 %v1026
        %v1028 = vpop.xlane.xlu0 %1027
        %v1029 = vmax.f32 %v980, %v982
        %1030 = vmax.xlane.f32.xlu0 %v1029
        %v1031 = vpop.xlane.xlu0 %1030
        %v1032 = vsub.f32 %v906, %v986
        %v1033 = vsub.f32 %v908, %v986
        %v1034 = vsub.f32 %v910, %v989
        %v1035 = vsub.f32 %v912, %v989
        %v1036 = vsub.f32 %v916, %v992
        %v1037 = vsub.f32 %v918, %v992
        %v1038 = vsub.f32 %v920, %v995
        %v1039 = vsub.f32 %v922, %v995
        %v1040 = vsub.f32 %v926, %v998
        %v1041 = vsub.f32 %v928, %v998
        %v1042 = vsub.f32 %v930, %v1001
        %v1043 = vsub.f32 %v932, %v1001
        %v1044 = vsub.f32 %v936, %v1004
        %v1045 = vsub.f32 %v938, %v1004
        %v1046 = vsub.f32 %v940, %v1007
        %v1047 = vsub.f32 %v942, %v1007
        %v1048 = vsub.f32 %v946, %v1010
        %v1049 = vsub.f32 %v948, %v1010
        %v1050 = vsub.f32 %v950, %v1013
        %v1051 = vsub.f32 %v952, %v1013
        %v1052 = vsub.f32 %v956, %v1016
        %v1053 = vsub.f32 %v958, %v1016
        %v1054 = vsub.f32 %v960, %v1019
        %v1055 = vsub.f32 %v962, %v1019
        %v1056 = vsub.f32 %v966, %v1022
        %v1057 = vsub.f32 %v968, %v1022
        %v1058 = vsub.f32 %v970, %v1025
        %v1059 = vsub.f32 %v972, %v1025
        %v1060 = vsub.f32 %v976, %v1028
        %v1061 = vsub.f32 %v978, %v1028
        %v1062 = vsub.f32 %v980, %v1031
        %v1063 = vsub.f32 %v982, %v1031
        %v1064 = vpack.c.bf16 %v1034, %v1032
        %v1065 = vpack.c.bf16 %v1035, %v1033
        %v1066 = vpack.c.bf16 %v1038, %v1036
        %v1067 = vpack.c.bf16 %v1039, %v1037
        %v1068 = vpack.c.bf16 %v1042, %v1040
        %v1069 = vpack.c.bf16 %v1043, %v1041
        %v1070 = vpack.c.bf16 %v1046, %v1044
        %v1071 = vpack.c.bf16 %v1047, %v1045
        %v1072 = vpack.c.bf16 %v1050, %v1048
        %v1073 = vpack.c.bf16 %v1051, %v1049
        %v1074 = vpack.c.bf16 %v1054, %v1052
        %v1075 = vpack.c.bf16 %v1055, %v1053
        %v1076 = vpack.c.bf16 %v1058, %v1056
        %v1077 = vpack.c.bf16 %v1059, %v1057
        %v1078 = vpack.c.bf16 %v1062, %v1060
        %v1079 = vpack.c.bf16 %v1063, %v1061
        %v1081 = vmul.bf16 %v1064, 1069105081
        %v1082 = vpow.bf16.pop %v1081
        %v1084 = vmul.bf16 %v1065, 1069105081
        %v1085 = vpow.bf16.pop %v1084
        %v1087 = vmul.bf16 %v1066, 1069105081
        %v1088 = vpow.bf16.pop %v1087
        %v1090 = vmul.bf16 %v1067, 1069105081
        %v1091 = vpow.bf16.pop %v1090
        %v1093 = vmul.bf16 %v1068, 1069105081
        %v1094 = vpow.bf16.pop %v1093
        %v1096 = vmul.bf16 %v1069, 1069105081
        %v1097 = vpow.bf16.pop %v1096
        %v1099 = vmul.bf16 %v1070, 1069105081
        %v1100 = vpow.bf16.pop %v1099
        %v1102 = vmul.bf16 %v1071, 1069105081
        %v1103 = vpow.bf16.pop %v1102
        %v1105 = vmul.bf16 %v1072, 1069105081
        %v1106 = vpow.bf16.pop %v1105
        %v1108 = vmul.bf16 %v1073, 1069105081
        %v1109 = vpow.bf16.pop %v1108
        %v1111 = vmul.bf16 %v1074, 1069105081
        %v1112 = vpow.bf16.pop %v1111
        %v1114 = vmul.bf16 %v1075, 1069105081
        %v1115 = vpow.bf16.pop %v1114
        %v1117 = vmul.bf16 %v1076, 1069105081
        %v1118 = vpow.bf16.pop %v1117
        %v1120 = vmul.bf16 %v1077, 1069105081
        %v1121 = vpow.bf16.pop %v1120
        %v1123 = vmul.bf16 %v1078, 1069105081
        %v1124 = vpow.bf16.pop %v1123
        %v1126 = vmul.bf16 %v1079, 1069105081
        %v1127 = vpow.bf16.pop %v1126
        %v1128 = vunpack.c.l.bf16 %v1082
        %v1129 = vunpack.c.l.bf16 %v1085
        %v1130 = vunpack.c.h.bf16 %v1082
        %v1131 = vunpack.c.h.bf16 %v1085
        %v1132 = vunpack.c.l.bf16 %v1088
        %v1133 = vunpack.c.l.bf16 %v1091
        %v1134 = vunpack.c.h.bf16 %v1088
        %v1135 = vunpack.c.h.bf16 %v1091
        %v1136 = vunpack.c.l.bf16 %v1094
        %v1137 = vunpack.c.l.bf16 %v1097
        %v1138 = vunpack.c.h.bf16 %v1094
        %v1139 = vunpack.c.h.bf16 %v1097
        %v1140 = vunpack.c.l.bf16 %v1100
        %v1141 = vunpack.c.l.bf16 %v1103
        %v1142 = vunpack.c.h.bf16 %v1100
        %v1143 = vunpack.c.h.bf16 %v1103
        %v1144 = vunpack.c.l.bf16 %v1106
        %v1145 = vunpack.c.l.bf16 %v1109
        %v1146 = vunpack.c.h.bf16 %v1106
        %v1147 = vunpack.c.h.bf16 %v1109
        %v1148 = vunpack.c.l.bf16 %v1112
        %v1149 = vunpack.c.l.bf16 %v1115
        %v1150 = vunpack.c.h.bf16 %v1112
        %v1151 = vunpack.c.h.bf16 %v1115
        %v1152 = vunpack.c.l.bf16 %v1118
        %v1153 = vunpack.c.l.bf16 %v1121
        %v1154 = vunpack.c.h.bf16 %v1118
        %v1155 = vunpack.c.h.bf16 %v1121
        %v1156 = vunpack.c.l.bf16 %v1124
        %v1157 = vunpack.c.l.bf16 %v1127
        %v1158 = vunpack.c.h.bf16 %v1124
        %v1159 = vunpack.c.h.bf16 %v1127
        %v1160 = vadd.f32 %v1128, %v1129
        %1161 = vadd.xlane.f32.xlu0 %v1160
        %v1162 = vpop.xlane.xlu0 %1161
        %v1163 = vadd.f32 %v1130, %v1131
        %1164 = vadd.xlane.f32.xlu0 %v1163
        %v1165 = vpop.xlane.xlu0 %1164
        %v1166 = vadd.f32 %v1132, %v1133
        %1167 = vadd.xlane.f32.xlu0 %v1166
        %v1168 = vpop.xlane.xlu0 %1167
        %v1169 = vadd.f32 %v1134, %v1135
        %1170 = vadd.xlane.f32.xlu0 %v1169
        %v1171 = vpop.xlane.xlu0 %1170
        %v1172 = vadd.f32 %v1136, %v1137
        %1173 = vadd.xlane.f32.xlu0 %v1172
        %v1174 = vpop.xlane.xlu0 %1173
        %v1175 = vadd.f32 %v1138, %v1139
        %1176 = vadd.xlane.f32.xlu0 %v1175
        %v1177 = vpop.xlane.xlu0 %1176
        %v1178 = vadd.f32 %v1140, %v1141
        %1179 = vadd.xlane.f32.xlu0 %v1178
        %v1180 = vpop.xlane.xlu0 %1179
        %v1181 = vadd.f32 %v1142, %v1143
        %1182 = vadd.xlane.f32.xlu0 %v1181
        %v1183 = vpop.xlane.xlu0 %1182
        %v1184 = vadd.f32 %v1144, %v1145
        %1185 = vadd.xlane.f32.xlu0 %v1184
        %v1186 = vpop.xlane.xlu0 %1185
        %v1187 = vadd.f32 %v1146, %v1147
        %1188 = vadd.xlane.f32.xlu0 %v1187
        %v1189 = vpop.xlane.xlu0 %1188
        %v1190 = vadd.f32 %v1148, %v1149
        %1191 = vadd.xlane.f32.xlu0 %v1190
        %v1192 = vpop.xlane.xlu0 %1191
        %v1193 = vadd.f32 %v1150, %v1151
        %1194 = vadd.xlane.f32.xlu0 %v1193
        %v1195 = vpop.xlane.xlu0 %1194
        %v1196 = vadd.f32 %v1152, %v1153
        %1197 = vadd.xlane.f32.xlu0 %v1196
        %v1198 = vpop.xlane.xlu0 %1197
        %v1199 = vadd.f32 %v1154, %v1155
        %1200 = vadd.xlane.f32.xlu0 %v1199
        %v1201 = vpop.xlane.xlu0 %1200
        %v1202 = vadd.f32 %v1156, %v1157
        %1203 = vadd.xlane.f32.xlu0 %v1202
        %v1204 = vpop.xlane.xlu0 %1203
        %v1205 = vadd.f32 %v1158, %v1159
        %1206 = vadd.xlane.f32.xlu0 %v1205
        %v1207 = vpop.xlane.xlu0 %1206
        %1224 = vrot.lane.b32.xlu0 %v810, 96
        %v1225 = vpop.permute.xlu0 %1224
        %1226 = vrot.lane.b32.xlu0 %v811, 96
        %v1227 = vpop.permute.xlu0 %1226
        %1228 = vrot.lane.b32.xlu0 %v812, 96
        %v1229 = vpop.permute.xlu0 %1228
        %1230 = vrot.lane.b32.xlu0 %v813, 96
        %v1231 = vpop.permute.xlu0 %1230
        %1232 = vrot.lane.b32.xlu0 %v814, 96
        %v1233 = vpop.permute.xlu0 %1232
        %1234 = vrot.lane.b32.xlu0 %v815, 96
        %v1235 = vpop.permute.xlu0 %1234
        %1236 = vrot.lane.b32.xlu0 %v816, 96
        %v1237 = vpop.permute.xlu0 %1236
        %1238 = vrot.lane.b32.xlu0 %v817, 96
        %v1239 = vpop.permute.xlu0 %1238
        %1240 = vrot.lane.b32.xlu0 %v818, 96
        %v1241 = vpop.permute.xlu0 %1240
        %1242 = vrot.lane.b32.xlu0 %v819, 96
        %v1243 = vpop.permute.xlu0 %1242
        %1244 = vrot.lane.b32.xlu0 %v820, 96
        %v1245 = vpop.permute.xlu0 %1244
        %1246 = vrot.lane.b32.xlu0 %v821, 96
        %v1247 = vpop.permute.xlu0 %1246
        %1248 = vrot.lane.b32.xlu0 %v822, 96
        %v1249 = vpop.permute.xlu0 %1248
        %1250 = vrot.lane.b32.xlu0 %v823, 96
        %v1251 = vpop.permute.xlu0 %1250
        %1252 = vrot.lane.b32.xlu0 %v824, 96
        %v1253 = vpop.permute.xlu0 %1252
        %1254 = vrot.lane.b32.xlu0 %v825, 96
        %v1255 = vpop.permute.xlu0 %1254
        %1272 = vmatprep.subr.bf16.mxu0 0
        %1273 = vmatpush1.bf16.msra.mxu0 %v1239
        %1274 = vmatprep.subr.bf16.mxu0 0
        %1275 = vmatpush1.bf16.msra.mxu0 %v1237
        %1276 = vmatprep.subr.bf16.mxu0 0
        %1277 = vmatpush1.bf16.msra.mxu0 %v1235
        %1278 = vmatprep.subr.bf16.mxu0 0
        %1279 = vmatpush1.bf16.msra.mxu0 %v1233
        %1280 = vmatprep.subr.bf16.mxu0 0
        %1281 = vmatpush1.bf16.msra.mxu0 %v1231
        %1282 = vmatprep.subr.bf16.mxu0 0
        %1283 = vmatpush1.bf16.msra.mxu0 %v1229
        %1284 = vmatprep.subr.bf16.mxu0 0
        %1285 = vmatpush1.bf16.msra.mxu0 %v1227
        %1286 = vmatprep.subr.bf16.mxu0 0
        %1287 = vmatpush1.bf16.msra.mxu0 %v1225
        %1288 = vmatprep.subr.bf16.mxu0 0
        %1289 = vmatpush2.bf16.msra.mxu0 %v1255
        %1290 = vmatprep.subr.bf16.mxu0 0
        %1291 = vmatpush2.bf16.msra.mxu0 %v1253
        %1292 = vmatprep.subr.bf16.mxu0 0
        %1293 = vmatpush2.bf16.msra.mxu0 %v1251
        %1294 = vmatprep.subr.bf16.mxu0 0
        %1295 = vmatpush2.bf16.msra.mxu0 %v1249
        %1296 = vmatprep.subr.bf16.mxu0 0
        %1297 = vmatpush2.bf16.msra.mxu0 %v1247
        %1298 = vmatprep.subr.bf16.mxu0 0
        %1299 = vmatpush2.bf16.msra.mxu0 %v1245
        %1300 = vmatprep.subr.bf16.mxu0 0
        %1301 = vmatpush2.bf16.msra.mxu0 %v1243
        %1302 = vmatprep.subr.bf16.mxu0 0
        %1303 = vmatpush2.bf16.msra.mxu0 %v1241
        %1304 = vmatprep.mubr.bf16.mxu0 %v1085
        %1305 = vmatmul.mubr.bf16.gmra.mxu0 %v1082
        %v1306 = vpop.f32.mrf.mxu0
        %v1307 = vadd.f32 0.0, %v1306
        %v1308 = vpop.f32.mrf.mxu0
        %v1309 = vpop.f32.mrf.mxu0
        %v1310 = vadd.f32 0.0, %v1309
        %v1311 = vpop.f32.mrf.mxu0
        %1312 = vmatprep.mubr.bf16.mxu0 %v1091
        %1313 = vmatmul.mubr.bf16.gmra.mxu0 %v1088
        %v1314 = vpop.f32.mrf.mxu0
        %v1315 = vadd.f32 0.0, %v1314
        %v1316 = vpop.f32.mrf.mxu0
        %v1317 = vpop.f32.mrf.mxu0
        %v1318 = vadd.f32 0.0, %v1317
        %v1319 = vpop.f32.mrf.mxu0
        %1320 = vmatprep.mubr.bf16.mxu0 %v1097
        %1321 = vmatmul.mubr.bf16.gmra.mxu0 %v1094
        %v1322 = vpop.f32.mrf.mxu0
        %v1323 = vadd.f32 0.0, %v1322
        %v1324 = vpop.f32.mrf.mxu0
        %v1325 = vpop.f32.mrf.mxu0
        %v1326 = vadd.f32 0.0, %v1325
        %v1327 = vpop.f32.mrf.mxu0
        %1328 = vmatprep.mubr.bf16.mxu0 %v1103
        %1329 = vmatmul.mubr.bf16.gmra.mxu0 %v1100
        %v1330 = vpop.f32.mrf.mxu0
        %v1331 = vadd.f32 0.0, %v1330
        %v1332 = vpop.f32.mrf.mxu0
        %v1333 = vpop.f32.mrf.mxu0
        %v1334 = vadd.f32 0.0, %v1333
        %v1335 = vpop.f32.mrf.mxu0
        %1336 = vmatprep.mubr.bf16.mxu0 %v1109
        %1337 = vmatmul.mubr.bf16.gmra.mxu0 %v1106
        %v1338 = vpop.f32.mrf.mxu0
        %v1339 = vadd.f32 0.0, %v1338
        %v1340 = vpop.f32.mrf.mxu0
        %v1341 = vpop.f32.mrf.mxu0
        %v1342 = vadd.f32 0.0, %v1341
        %v1343 = vpop.f32.mrf.mxu0
        %1344 = vmatprep.mubr.bf16.mxu0 %v1115
        %1345 = vmatmul.mubr.bf16.gmra.mxu0 %v1112
        %v1346 = vpop.f32.mrf.mxu0
        %v1347 = vadd.f32 0.0, %v1346
        %v1348 = vpop.f32.mrf.mxu0
        %v1349 = vpop.f32.mrf.mxu0
        %v1350 = vadd.f32 0.0, %v1349
        %v1351 = vpop.f32.mrf.mxu0
        %1352 = vmatprep.mubr.bf16.mxu0 %v1121
        %1353 = vmatmul.mubr.bf16.gmra.mxu0 %v1118
        %v1354 = vpop.f32.mrf.mxu0
        %v1355 = vadd.f32 0.0, %v1354
        %v1356 = vpop.f32.mrf.mxu0
        %v1357 = vpop.f32.mrf.mxu0
        %v1358 = vadd.f32 0.0, %v1357
        %v1359 = vpop.f32.mrf.mxu0
        %1360 = vmatprep.mubr.bf16.mxu0 %v1127
        %1361 = vmatmul.mubr.bf16.gmra.mxu0 %v1124
        %v1362 = vpop.f32.mrf.mxu0
        %v1363 = vadd.f32 0.0, %v1362
        %v1364 = vpop.f32.mrf.mxu0
        %v1365 = vpop.f32.mrf.mxu0
        %v1366 = vadd.f32 0.0, %v1365
        %v1367 = vpop.f32.mrf.mxu0
        %1368 = vdwg.mxu0
        %v1369 = vrcp.pop %v1162
        %v1370 = vrcp.pop %v1165
        %v1371 = vrcp.pop %v1168
        %v1372 = vrcp.pop %v1171
        %v1373 = vrcp.pop %v1174
        %v1374 = vrcp.pop %v1177
        %v1375 = vrcp.pop %v1180
        %v1376 = vrcp.pop %v1183
        %v1377 = vrcp.pop %v1186
        %v1378 = vrcp.pop %v1189
        %v1379 = vrcp.pop %v1192
        %v1380 = vrcp.pop %v1195
        %v1381 = vrcp.pop %v1198
        %v1382 = vrcp.pop %v1201
        %v1383 = vrcp.pop %v1204
        %v1384 = vrcp.pop %v1207
        %v1385 = vmul.f32 %v1307, %v1369
        %v1386 = vmul.f32 %v1310, %v1370
        %v1387 = vmul.f32 %v1315, %v1371
        %v1388 = vmul.f32 %v1318, %v1372
        %v1389 = vmul.f32 %v1323, %v1373
        %v1390 = vmul.f32 %v1326, %v1374
        %v1391 = vmul.f32 %v1331, %v1375
        %v1392 = vmul.f32 %v1334, %v1376
        %v1393 = vmul.f32 %v1339, %v1377
        %v1394 = vmul.f32 %v1342, %v1378
        %v1395 = vmul.f32 %v1347, %v1379
        %v1396 = vmul.f32 %v1350, %v1380
        %v1397 = vmul.f32 %v1355, %v1381
        %v1398 = vmul.f32 %v1358, %v1382
        %v1399 = vmul.f32 %v1363, %v1383
        %v1400 = vmul.f32 %v1366, %v1384
        %1401 = vrot.lane.b32.xlu0 %v810, 120
        %v1402 = vpop.permute.xlu0 %1401
        %1403 = vrot.lane.b32.xlu0 %v811, 120
        %v1404 = vpop.permute.xlu0 %1403
        %1405 = vrot.lane.b32.xlu0 %v812, 120
        %v1406 = vpop.permute.xlu0 %1405
        %1407 = vrot.lane.b32.xlu0 %v813, 120
        %v1408 = vpop.permute.xlu0 %1407
        %1409 = vrot.lane.b32.xlu0 %v814, 120
        %v1410 = vpop.permute.xlu0 %1409
        %1411 = vrot.lane.b32.xlu0 %v815, 120
        %v1412 = vpop.permute.xlu0 %1411
        %1413 = vrot.lane.b32.xlu0 %v816, 120
        %v1414 = vpop.permute.xlu0 %1413
        %1415 = vrot.lane.b32.xlu0 %v817, 120
        %v1416 = vpop.permute.xlu0 %1415
        %v1419 = vrot.slane %v586, 4
        %v1420 = vrot.slane %v587, 4
        %v1422 = vsel %vm840, %v1402, 0
        %v1425 = vsel %vm840, %v1404, 0
        %v1428 = vsel %vm840, %v1406, 0
        %v1431 = vsel %vm840, %v1408, 0
        %v1434 = vsel %vm840, %v1410, 0
        %v1437 = vsel %vm840, %v1412, 0
        %v1440 = vsel %vm840, %v1414, 0
        %v1443 = vsel %vm840, %v1416, 0
        %v1446 = vsel %vm342, %v1419, 0
        %v1449 = vsel %vm342, %v1420, 0
        %1451 = vmatprep.subr.bf16.mxu0 0
        %1452 = vmatpush1.bf16.msra.mxu0 0
        %1453 = vmatprep.subr.bf16.mxu0 0
        %1454 = vmatpush1.bf16.msra.mxu0 0
        %1455 = vmatprep.subr.bf16.mxu0 0
        %1456 = vmatpush1.bf16.msra.mxu0 0
        %1457 = vmatprep.subr.bf16.mxu0 0
        %1458 = vmatpush1.bf16.msra.mxu0 0
        %1459 = vmatprep.subr.bf16.mxu0 0
        %1460 = vmatpush1.bf16.msra.mxu0 0
        %1461 = vmatprep.subr.bf16.mxu0 0
        %1462 = vmatpush1.bf16.msra.mxu0 0
        %1463 = vmatprep.subr.bf16.mxu0 0
        %1464 = vmatpush1.bf16.msra.mxu0 0
        %1465 = vmatprep.subr.bf16.mxu0 %v1449
        %1466 = vmatpush1.bf16.msra.mxu0 %v1446
        %1467 = vmatprep.subr.bf16.mxu0 0
        %1468 = vmatpush2.bf16.msra.mxu0 0
        %1469 = vmatprep.subr.bf16.mxu0 0
        %1470 = vmatpush2.bf16.msra.mxu0 0
        %1471 = vmatprep.subr.bf16.mxu0 0
        %1472 = vmatpush2.bf16.msra.mxu0 0
        %1473 = vmatprep.subr.bf16.mxu0 0
        %1474 = vmatpush2.bf16.msra.mxu0 0
        %1475 = vmatprep.subr.bf16.mxu0 0
        %1476 = vmatpush2.bf16.msra.mxu0 0
        %1477 = vmatprep.subr.bf16.mxu0 0
        %1478 = vmatpush2.bf16.msra.mxu0 0
        %1479 = vmatprep.subr.bf16.mxu0 0
        %1480 = vmatpush2.bf16.msra.mxu0 0
        %1481 = vmatprep.subr.bf16.mxu0 0
        %1482 = vmatpush2.bf16.msra.mxu0 0
        %1483 = vmatprep.mubr.bf16.mxu0 0
        %1484 = vmatmul.mubr.bf16.gmra.mxu0 %v1422
        %v1485 = vpop.f32.mrf.mxu0
        %v1486 = vadd.f32 0.0, %v1485
        %v1487 = vpop.f32.mrf.mxu0
        %v1488 = vadd.f32 0.0, %v1487
        %v1489 = vpop.f32.mrf.mxu0
        %v1490 = vadd.f32 0.0, %v1489
        %v1491 = vpop.f32.mrf.mxu0
        %v1492 = vadd.f32 0.0, %v1491
        %1493 = vmatprep.mubr.bf16.mxu0 0
        %1494 = vmatmul.mubr.bf16.gmra.mxu0 %v1425
        %v1495 = vpop.f32.mrf.mxu0
        %v1496 = vadd.f32 0.0, %v1495
        %v1497 = vpop.f32.mrf.mxu0
        %v1498 = vadd.f32 0.0, %v1497
        %v1499 = vpop.f32.mrf.mxu0
        %v1500 = vadd.f32 0.0, %v1499
        %v1501 = vpop.f32.mrf.mxu0
        %v1502 = vadd.f32 0.0, %v1501
        %1503 = vmatprep.mubr.bf16.mxu0 0
        %1504 = vmatmul.mubr.bf16.gmra.mxu0 %v1428
        %v1505 = vpop.f32.mrf.mxu0
        %v1506 = vadd.f32 0.0, %v1505
        %v1507 = vpop.f32.mrf.mxu0
        %v1508 = vadd.f32 0.0, %v1507
        %v1509 = vpop.f32.mrf.mxu0
        %v1510 = vadd.f32 0.0, %v1509
        %v1511 = vpop.f32.mrf.mxu0
        %v1512 = vadd.f32 0.0, %v1511
        %1513 = vmatprep.mubr.bf16.mxu0 0
        %1514 = vmatmul.mubr.bf16.gmra.mxu0 %v1431
        %v1515 = vpop.f32.mrf.mxu0
        %v1516 = vadd.f32 0.0, %v1515
        %v1517 = vpop.f32.mrf.mxu0
        %v1518 = vadd.f32 0.0, %v1517
        %v1519 = vpop.f32.mrf.mxu0
        %v1520 = vadd.f32 0.0, %v1519
        %v1521 = vpop.f32.mrf.mxu0
        %v1522 = vadd.f32 0.0, %v1521
        %1523 = vmatprep.mubr.bf16.mxu0 0
        %1524 = vmatmul.mubr.bf16.gmra.mxu0 %v1434
        %v1525 = vpop.f32.mrf.mxu0
        %v1526 = vadd.f32 0.0, %v1525
        %v1527 = vpop.f32.mrf.mxu0
        %v1528 = vadd.f32 0.0, %v1527
        %v1529 = vpop.f32.mrf.mxu0
        %v1530 = vadd.f32 0.0, %v1529
        %v1531 = vpop.f32.mrf.mxu0
        %v1532 = vadd.f32 0.0, %v1531
        %1533 = vmatprep.mubr.bf16.mxu0 0
        %1534 = vmatmul.mubr.bf16.gmra.mxu0 %v1437
        %v1535 = vpop.f32.mrf.mxu0
        %v1536 = vadd.f32 0.0, %v1535
        %v1537 = vpop.f32.mrf.mxu0
        %v1538 = vadd.f32 0.0, %v1537
        %v1539 = vpop.f32.mrf.mxu0
        %v1540 = vadd.f32 0.0, %v1539
        %v1541 = vpop.f32.mrf.mxu0
        %v1542 = vadd.f32 0.0, %v1541
        %1543 = vmatprep.mubr.bf16.mxu0 0
        %1544 = vmatmul.mubr.bf16.gmra.mxu0 %v1440
        %v1545 = vpop.f32.mrf.mxu0
        %v1546 = vadd.f32 0.0, %v1545
        %v1547 = vpop.f32.mrf.mxu0
        %v1548 = vadd.f32 0.0, %v1547
        %v1549 = vpop.f32.mrf.mxu0
        %v1550 = vadd.f32 0.0, %v1549
        %v1551 = vpop.f32.mrf.mxu0
        %v1552 = vadd.f32 0.0, %v1551
        %1553 = vmatprep.mubr.bf16.mxu0 0
        %1554 = vmatmul.mubr.bf16.gmra.mxu0 %v1443
        %v1555 = vpop.f32.mrf.mxu0
        %v1556 = vadd.f32 0.0, %v1555
        %v1557 = vpop.f32.mrf.mxu0
        %v1558 = vadd.f32 0.0, %v1557
        %v1559 = vpop.f32.mrf.mxu0
        %v1560 = vadd.f32 0.0, %v1559
        %v1561 = vpop.f32.mrf.mxu0
        %v1562 = vadd.f32 0.0, %v1561
        %1563 = vdwg.mxu0
        %v1564 = vmax.f32 %v1486, %v1488
        %1565 = vmax.xlane.f32.xlu0 %v1564
        %v1566 = vpop.xlane.xlu0 %1565
        %v1567 = vmax.f32 %v1490, %v1492
        %1568 = vmax.xlane.f32.xlu0 %v1567
        %v1569 = vpop.xlane.xlu0 %1568
        %v1570 = vmax.f32 %v1496, %v1498
        %1571 = vmax.xlane.f32.xlu0 %v1570
        %v1572 = vpop.xlane.xlu0 %1571
        %v1573 = vmax.f32 %v1500, %v1502
        %1574 = vmax.xlane.f32.xlu0 %v1573
        %v1575 = vpop.xlane.xlu0 %1574
        %v1576 = vmax.f32 %v1506, %v1508
        %1577 = vmax.xlane.f32.xlu0 %v1576
        %v1578 = vpop.xlane.xlu0 %1577
        %v1579 = vmax.f32 %v1510, %v1512
        %1580 = vmax.xlane.f32.xlu0 %v1579
        %v1581 = vpop.xlane.xlu0 %1580
        %v1582 = vmax.f32 %v1516, %v1518
        %1583 = vmax.xlane.f32.xlu0 %v1582
        %v1584 = vpop.xlane.xlu0 %1583
        %v1585 = vmax.f32 %v1520, %v1522
        %1586 = vmax.xlane.f32.xlu0 %v1585
        %v1587 = vpop.xlane.xlu0 %1586
        %v1588 = vmax.f32 %v1526, %v1528
        %1589 = vmax.xlane.f32.xlu0 %v1588
        %v1590 = vpop.xlane.xlu0 %1589
        %v1591 = vmax.f32 %v1530, %v1532
        %1592 = vmax.xlane.f32.xlu0 %v1591
        %v1593 = vpop.xlane.xlu0 %1592
        %v1594 = vmax.f32 %v1536, %v1538
        %1595 = vmax.xlane.f32.xlu0 %v1594
        %v1596 = vpop.xlane.xlu0 %1595
        %v1597 = vmax.f32 %v1540, %v1542
        %1598 = vmax.xlane.f32.xlu0 %v1597
        %v1599 = vpop.xlane.xlu0 %1598
        %v1600 = vmax.f32 %v1546, %v1548
        %1601 = vmax.xlane.f32.xlu0 %v1600
        %v1602 = vpop.xlane.xlu0 %1601
        %v1603 = vmax.f32 %v1550, %v1552
        %1604 = vmax.xlane.f32.xlu0 %v1603
        %v1605 = vpop.xlane.xlu0 %1604
        %v1606 = vmax.f32 %v1556, %v1558
        %1607 = vmax.xlane.f32.xlu0 %v1606
        %v1608 = vpop.xlane.xlu0 %1607
        %v1609 = vmax.f32 %v1560, %v1562
        %1610 = vmax.xlane.f32.xlu0 %v1609
        %v1611 = vpop.xlane.xlu0 %1610
        %v1612 = vsub.f32 %v1486, %v1566
        %v1613 = vsub.f32 %v1488, %v1566
        %v1614 = vsub.f32 %v1490, %v1569
        %v1615 = vsub.f32 %v1492, %v1569
        %v1616 = vsub.f32 %v1496, %v1572
        %v1617 = vsub.f32 %v1498, %v1572
        %v1618 = vsub.f32 %v1500, %v1575
        %v1619 = vsub.f32 %v1502, %v1575
        %v1620 = vsub.f32 %v1506, %v1578
        %v1621 = vsub.f32 %v1508, %v1578
        %v1622 = vsub.f32 %v1510, %v1581
        %v1623 = vsub.f32 %v1512, %v1581
        %v1624 = vsub.f32 %v1516, %v1584
        %v1625 = vsub.f32 %v1518, %v1584
        %v1626 = vsub.f32 %v1520, %v1587
        %v1627 = vsub.f32 %v1522, %v1587
        %v1628 = vsub.f32 %v1526, %v1590
        %v1629 = vsub.f32 %v1528, %v1590
        %v1630 = vsub.f32 %v1530, %v1593
        %v1631 = vsub.f32 %v1532, %v1593
        %v1632 = vsub.f32 %v1536, %v1596
        %v1633 = vsub.f32 %v1538, %v1596
        %v1634 = vsub.f32 %v1540, %v1599
        %v1635 = vsub.f32 %v1542, %v1599
        %v1636 = vsub.f32 %v1546, %v1602
        %v1637 = vsub.f32 %v1548, %v1602
        %v1638 = vsub.f32 %v1550, %v1605
        %v1639 = vsub.f32 %v1552, %v1605
        %v1640 = vsub.f32 %v1556, %v1608
        %v1641 = vsub.f32 %v1558, %v1608
        %v1642 = vsub.f32 %v1560, %v1611
        %v1643 = vsub.f32 %v1562, %v1611
        %v1644 = vpack.c.bf16 %v1614, %v1612
        %v1645 = vpack.c.bf16 %v1615, %v1613
        %v1646 = vpack.c.bf16 %v1618, %v1616
        %v1647 = vpack.c.bf16 %v1619, %v1617
        %v1648 = vpack.c.bf16 %v1622, %v1620
        %v1649 = vpack.c.bf16 %v1623, %v1621
        %v1650 = vpack.c.bf16 %v1626, %v1624
        %v1651 = vpack.c.bf16 %v1627, %v1625
        %v1652 = vpack.c.bf16 %v1630, %v1628
        %v1653 = vpack.c.bf16 %v1631, %v1629
        %v1654 = vpack.c.bf16 %v1634, %v1632
        %v1655 = vpack.c.bf16 %v1635, %v1633
        %v1656 = vpack.c.bf16 %v1638, %v1636
        %v1657 = vpack.c.bf16 %v1639, %v1637
        %v1658 = vpack.c.bf16 %v1642, %v1640
        %v1659 = vpack.c.bf16 %v1643, %v1641
        %v1661 = vmul.bf16 %v1644, 1069105081
        %v1662 = vpow.bf16.pop %v1661
        %v1664 = vmul.bf16 %v1645, 1069105081
        %v1665 = vpow.bf16.pop %v1664
        %v1667 = vmul.bf16 %v1646, 1069105081
        %v1668 = vpow.bf16.pop %v1667
        %v1670 = vmul.bf16 %v1647, 1069105081
        %v1671 = vpow.bf16.pop %v1670
        %v1673 = vmul.bf16 %v1648, 1069105081
        %v1674 = vpow.bf16.pop %v1673
        %v1676 = vmul.bf16 %v1649, 1069105081
        %v1677 = vpow.bf16.pop %v1676
        %v1679 = vmul.bf16 %v1650, 1069105081
        %v1680 = vpow.bf16.pop %v1679
        %v1682 = vmul.bf16 %v1651, 1069105081
        %v1683 = vpow.bf16.pop %v1682
        %v1685 = vmul.bf16 %v1652, 1069105081
        %v1686 = vpow.bf16.pop %v1685
        %v1688 = vmul.bf16 %v1653, 1069105081
        %v1689 = vpow.bf16.pop %v1688
        %v1691 = vmul.bf16 %v1654, 1069105081
        %v1692 = vpow.bf16.pop %v1691
        %v1694 = vmul.bf16 %v1655, 1069105081
        %v1695 = vpow.bf16.pop %v1694
        %v1697 = vmul.bf16 %v1656, 1069105081
        %v1698 = vpow.bf16.pop %v1697
        %v1700 = vmul.bf16 %v1657, 1069105081
        %v1701 = vpow.bf16.pop %v1700
        %v1703 = vmul.bf16 %v1658, 1069105081
        %v1704 = vpow.bf16.pop %v1703
        %v1706 = vmul.bf16 %v1659, 1069105081
        %v1707 = vpow.bf16.pop %v1706
        %v1708 = vunpack.c.l.bf16 %v1662
        %v1709 = vunpack.c.l.bf16 %v1665
        %v1710 = vunpack.c.h.bf16 %v1662
        %v1711 = vunpack.c.h.bf16 %v1665
        %v1712 = vunpack.c.l.bf16 %v1668
        %v1713 = vunpack.c.l.bf16 %v1671
        %v1714 = vunpack.c.h.bf16 %v1668
        %v1715 = vunpack.c.h.bf16 %v1671
        %v1716 = vunpack.c.l.bf16 %v1674
        %v1717 = vunpack.c.l.bf16 %v1677
        %v1718 = vunpack.c.h.bf16 %v1674
        %v1719 = vunpack.c.h.bf16 %v1677
        %v1720 = vunpack.c.l.bf16 %v1680
        %v1721 = vunpack.c.l.bf16 %v1683
        %v1722 = vunpack.c.h.bf16 %v1680
        %v1723 = vunpack.c.h.bf16 %v1683
        %v1724 = vunpack.c.l.bf16 %v1686
        %v1725 = vunpack.c.l.bf16 %v1689
        %v1726 = vunpack.c.h.bf16 %v1686
        %v1727 = vunpack.c.h.bf16 %v1689
        %v1728 = vunpack.c.l.bf16 %v1692
        %v1729 = vunpack.c.l.bf16 %v1695
        %v1730 = vunpack.c.h.bf16 %v1692
        %v1731 = vunpack.c.h.bf16 %v1695
        %v1732 = vunpack.c.l.bf16 %v1698
        %v1733 = vunpack.c.l.bf16 %v1701
        %v1734 = vunpack.c.h.bf16 %v1698
        %v1735 = vunpack.c.h.bf16 %v1701
        %v1736 = vunpack.c.l.bf16 %v1704
        %v1737 = vunpack.c.l.bf16 %v1707
        %v1738 = vunpack.c.h.bf16 %v1704
        %v1739 = vunpack.c.h.bf16 %v1707
        %v1740 = vadd.f32 %v1708, %v1709
        %1741 = vadd.xlane.f32.xlu0 %v1740
        %v1742 = vpop.xlane.xlu0 %1741
        %v1743 = vadd.f32 %v1710, %v1711
        %1744 = vadd.xlane.f32.xlu0 %v1743
        %v1745 = vpop.xlane.xlu0 %1744
        %v1746 = vadd.f32 %v1712, %v1713
        %1747 = vadd.xlane.f32.xlu0 %v1746
        %v1748 = vpop.xlane.xlu0 %1747
        %v1749 = vadd.f32 %v1714, %v1715
        %1750 = vadd.xlane.f32.xlu0 %v1749
        %v1751 = vpop.xlane.xlu0 %1750
        %v1752 = vadd.f32 %v1716, %v1717
        %1753 = vadd.xlane.f32.xlu0 %v1752
        %v1754 = vpop.xlane.xlu0 %1753
        %v1755 = vadd.f32 %v1718, %v1719
        %1756 = vadd.xlane.f32.xlu0 %v1755
        %v1757 = vpop.xlane.xlu0 %1756
        %v1758 = vadd.f32 %v1720, %v1721
        %1759 = vadd.xlane.f32.xlu0 %v1758
        %v1760 = vpop.xlane.xlu0 %1759
        %v1761 = vadd.f32 %v1722, %v1723
        %1762 = vadd.xlane.f32.xlu0 %v1761
        %v1763 = vpop.xlane.xlu0 %1762
        %v1764 = vadd.f32 %v1724, %v1725
        %1765 = vadd.xlane.f32.xlu0 %v1764
        %v1766 = vpop.xlane.xlu0 %1765
        %v1767 = vadd.f32 %v1726, %v1727
        %1768 = vadd.xlane.f32.xlu0 %v1767
        %v1769 = vpop.xlane.xlu0 %1768
        %v1770 = vadd.f32 %v1728, %v1729
        %1771 = vadd.xlane.f32.xlu0 %v1770
        %v1772 = vpop.xlane.xlu0 %1771
        %v1773 = vadd.f32 %v1730, %v1731
        %1774 = vadd.xlane.f32.xlu0 %v1773
        %v1775 = vpop.xlane.xlu0 %1774
        %v1776 = vadd.f32 %v1732, %v1733
        %1777 = vadd.xlane.f32.xlu0 %v1776
        %v1778 = vpop.xlane.xlu0 %1777
        %v1779 = vadd.f32 %v1734, %v1735
        %1780 = vadd.xlane.f32.xlu0 %v1779
        %v1781 = vpop.xlane.xlu0 %1780
        %v1782 = vadd.f32 %v1736, %v1737
        %1783 = vadd.xlane.f32.xlu0 %v1782
        %v1784 = vpop.xlane.xlu0 %1783
        %v1785 = vadd.f32 %v1738, %v1739
        %1786 = vadd.xlane.f32.xlu0 %v1785
        %v1787 = vpop.xlane.xlu0 %1786
        %1788 = vrot.lane.b32.xlu0 %v810, 88
        %v1789 = vpop.permute.xlu0 %1788
        %1790 = vrot.lane.b32.xlu0 %v811, 88
        %v1791 = vpop.permute.xlu0 %1790
        %1792 = vrot.lane.b32.xlu0 %v812, 88
        %v1793 = vpop.permute.xlu0 %1792
        %1794 = vrot.lane.b32.xlu0 %v813, 88
        %v1795 = vpop.permute.xlu0 %1794
        %1796 = vrot.lane.b32.xlu0 %v814, 88
        %v1797 = vpop.permute.xlu0 %1796
        %1798 = vrot.lane.b32.xlu0 %v815, 88
        %v1799 = vpop.permute.xlu0 %1798
        %1800 = vrot.lane.b32.xlu0 %v816, 88
        %v1801 = vpop.permute.xlu0 %1800
        %1802 = vrot.lane.b32.xlu0 %v817, 88
        %v1803 = vpop.permute.xlu0 %1802
        %1804 = vrot.lane.b32.xlu0 %v818, 88
        %v1805 = vpop.permute.xlu0 %1804
        %1806 = vrot.lane.b32.xlu0 %v819, 88
        %v1807 = vpop.permute.xlu0 %1806
        %1808 = vrot.lane.b32.xlu0 %v820, 88
        %v1809 = vpop.permute.xlu0 %1808
        %1810 = vrot.lane.b32.xlu0 %v821, 88
        %v1811 = vpop.permute.xlu0 %1810
        %1812 = vrot.lane.b32.xlu0 %v822, 88
        %v1813 = vpop.permute.xlu0 %1812
        %1814 = vrot.lane.b32.xlu0 %v823, 88
        %v1815 = vpop.permute.xlu0 %1814
        %1816 = vrot.lane.b32.xlu0 %v824, 88
        %v1817 = vpop.permute.xlu0 %1816
        %1818 = vrot.lane.b32.xlu0 %v825, 88
        %v1819 = vpop.permute.xlu0 %1818
        %1836 = vmatprep.subr.bf16.mxu0 0
        %1837 = vmatpush1.bf16.msra.mxu0 %v1803
        %1838 = vmatprep.subr.bf16.mxu0 0
        %1839 = vmatpush1.bf16.msra.mxu0 %v1801
        %1840 = vmatprep.subr.bf16.mxu0 0
        %1841 = vmatpush1.bf16.msra.mxu0 %v1799
        %1842 = vmatprep.subr.bf16.mxu0 0
        %1843 = vmatpush1.bf16.msra.mxu0 %v1797
        %1844 = vmatprep.subr.bf16.mxu0 0
        %1845 = vmatpush1.bf16.msra.mxu0 %v1795
        %1846 = vmatprep.subr.bf16.mxu0 0
        %1847 = vmatpush1.bf16.msra.mxu0 %v1793
        %1848 = vmatprep.subr.bf16.mxu0 0
        %1849 = vmatpush1.bf16.msra.mxu0 %v1791
        %1850 = vmatprep.subr.bf16.mxu0 0
        %1851 = vmatpush1.bf16.msra.mxu0 %v1789
        %1852 = vmatprep.subr.bf16.mxu0 0
        %1853 = vmatpush2.bf16.msra.mxu0 %v1819
        %1854 = vmatprep.subr.bf16.mxu0 0
        %1855 = vmatpush2.bf16.msra.mxu0 %v1817
        %1856 = vmatprep.subr.bf16.mxu0 0
        %1857 = vmatpush2.bf16.msra.mxu0 %v1815
        %1858 = vmatprep.subr.bf16.mxu0 0
        %1859 = vmatpush2.bf16.msra.mxu0 %v1813
        %1860 = vmatprep.subr.bf16.mxu0 0
        %1861 = vmatpush2.bf16.msra.mxu0 %v1811
        %1862 = vmatprep.subr.bf16.mxu0 0
        %1863 = vmatpush2.bf16.msra.mxu0 %v1809
        %1864 = vmatprep.subr.bf16.mxu0 0
        %1865 = vmatpush2.bf16.msra.mxu0 %v1807
        %1866 = vmatprep.subr.bf16.mxu0 0
        %1867 = vmatpush2.bf16.msra.mxu0 %v1805
        %1868 = vmatprep.mubr.bf16.mxu0 %v1665
        %1869 = vmatmul.mubr.bf16.gmra.mxu0 %v1662
        %v1870 = vpop.f32.mrf.mxu0
        %v1871 = vadd.f32 0.0, %v1870
        %v1872 = vpop.f32.mrf.mxu0
        %v1873 = vpop.f32.mrf.mxu0
        %v1874 = vadd.f32 0.0, %v1873
        %v1875 = vpop.f32.mrf.mxu0
        %1876 = vmatprep.mubr.bf16.mxu0 %v1671
        %1877 = vmatmul.mubr.bf16.gmra.mxu0 %v1668
        %v1878 = vpop.f32.mrf.mxu0
        %v1879 = vadd.f32 0.0, %v1878
        %v1880 = vpop.f32.mrf.mxu0
        %v1881 = vpop.f32.mrf.mxu0
        %v1882 = vadd.f32 0.0, %v1881
        %v1883 = vpop.f32.mrf.mxu0
        %1884 = vmatprep.mubr.bf16.mxu0 %v1677
        %1885 = vmatmul.mubr.bf16.gmra.mxu0 %v1674
        %v1886 = vpop.f32.mrf.mxu0
        %v1887 = vadd.f32 0.0, %v1886
        %v1888 = vpop.f32.mrf.mxu0
        %v1889 = vpop.f32.mrf.mxu0
        %v1890 = vadd.f32 0.0, %v1889
        %v1891 = vpop.f32.mrf.mxu0
        %1892 = vmatprep.mubr.bf16.mxu0 %v1683
        %1893 = vmatmul.mubr.bf16.gmra.mxu0 %v1680
        %v1894 = vpop.f32.mrf.mxu0
        %v1895 = vadd.f32 0.0, %v1894
        %v1896 = vpop.f32.mrf.mxu0
        %v1897 = vpop.f32.mrf.mxu0
        %v1898 = vadd.f32 0.0, %v1897
        %v1899 = vpop.f32.mrf.mxu0
        %1900 = vmatprep.mubr.bf16.mxu0 %v1689
        %1901 = vmatmul.mubr.bf16.gmra.mxu0 %v1686
        %v1902 = vpop.f32.mrf.mxu0
        %v1903 = vadd.f32 0.0, %v1902
        %v1904 = vpop.f32.mrf.mxu0
        %v1905 = vpop.f32.mrf.mxu0
        %v1906 = vadd.f32 0.0, %v1905
        %v1907 = vpop.f32.mrf.mxu0
        %1908 = vmatprep.mubr.bf16.mxu0 %v1695
        %1909 = vmatmul.mubr.bf16.gmra.mxu0 %v1692
        %v1910 = vpop.f32.mrf.mxu0
        %v1911 = vadd.f32 0.0, %v1910
        %v1912 = vpop.f32.mrf.mxu0
        %v1913 = vpop.f32.mrf.mxu0
        %v1914 = vadd.f32 0.0, %v1913
        %v1915 = vpop.f32.mrf.mxu0
        %1916 = vmatprep.mubr.bf16.mxu0 %v1701
        %1917 = vmatmul.mubr.bf16.gmra.mxu0 %v1698
        %v1918 = vpop.f32.mrf.mxu0
        %v1919 = vadd.f32 0.0, %v1918
        %v1920 = vpop.f32.mrf.mxu0
        %v1921 = vpop.f32.mrf.mxu0
        %v1922 = vadd.f32 0.0, %v1921
        %v1923 = vpop.f32.mrf.mxu0
        %1924 = vmatprep.mubr.bf16.mxu0 %v1707
        %1925 = vmatmul.mubr.bf16.gmra.mxu0 %v1704
        %v1926 = vpop.f32.mrf.mxu0
        %v1927 = vadd.f32 0.0, %v1926
        %v1928 = vpop.f32.mrf.mxu0
        %v1929 = vpop.f32.mrf.mxu0
        %v1930 = vadd.f32 0.0, %v1929
        %v1931 = vpop.f32.mrf.mxu0
        %1932 = vdwg.mxu0
        %v1933 = vrcp.pop %v1742
        %v1934 = vrcp.pop %v1745
        %v1935 = vrcp.pop %v1748
        %v1936 = vrcp.pop %v1751
        %v1937 = vrcp.pop %v1754
        %v1938 = vrcp.pop %v1757
        %v1939 = vrcp.pop %v1760
        %v1940 = vrcp.pop %v1763
        %v1941 = vrcp.pop %v1766
        %v1942 = vrcp.pop %v1769
        %v1943 = vrcp.pop %v1772
        %v1944 = vrcp.pop %v1775
        %v1945 = vrcp.pop %v1778
        %v1946 = vrcp.pop %v1781
        %v1947 = vrcp.pop %v1784
        %v1948 = vrcp.pop %v1787
        %v1949 = vmul.f32 %v1871, %v1933
        %v1950 = vmul.f32 %v1874, %v1934
        %v1951 = vmul.f32 %v1879, %v1935
        %v1952 = vmul.f32 %v1882, %v1936
        %v1953 = vmul.f32 %v1887, %v1937
        %v1954 = vmul.f32 %v1890, %v1938
        %v1955 = vmul.f32 %v1895, %v1939
        %v1956 = vmul.f32 %v1898, %v1940
        %v1957 = vmul.f32 %v1903, %v1941
        %v1958 = vmul.f32 %v1906, %v1942
        %v1959 = vmul.f32 %v1911, %v1943
        %v1960 = vmul.f32 %v1914, %v1944
        %v1961 = vmul.f32 %v1919, %v1945
        %v1962 = vmul.f32 %v1922, %v1946
        %v1963 = vmul.f32 %v1927, %v1947
        %v1964 = vmul.f32 %v1930, %v1948
        %1965 = vrot.lane.b32.xlu0 %v810, 112
        %v1966 = vpop.permute.xlu0 %1965
        %1967 = vrot.lane.b32.xlu0 %v811, 112
        %v1968 = vpop.permute.xlu0 %1967
        %1969 = vrot.lane.b32.xlu0 %v812, 112
        %v1970 = vpop.permute.xlu0 %1969
        %1971 = vrot.lane.b32.xlu0 %v813, 112
        %v1972 = vpop.permute.xlu0 %1971
        %1973 = vrot.lane.b32.xlu0 %v814, 112
        %v1974 = vpop.permute.xlu0 %1973
        %1975 = vrot.lane.b32.xlu0 %v815, 112
        %v1976 = vpop.permute.xlu0 %1975
        %1977 = vrot.lane.b32.xlu0 %v816, 112
        %v1978 = vpop.permute.xlu0 %1977
        %1979 = vrot.lane.b32.xlu0 %v817, 112
        %v1980 = vpop.permute.xlu0 %1979
        %v1982 = vsel %vm840, %v1966, 0
        %v1985 = vsel %vm840, %v1968, 0
        %v1988 = vsel %vm840, %v1970, 0
        %v1991 = vsel %vm840, %v1972, 0
        %v1994 = vsel %vm840, %v1974, 0
        %v1997 = vsel %vm840, %v1976, 0
        %v2000 = vsel %vm840, %v1978, 0
        %v2003 = vsel %vm840, %v1980, 0
        %v2006 = vsel %vm342, %v588, 0
        %v2009 = vsel %vm342, %v589, 0
        %2011 = vmatprep.subr.bf16.mxu0 0
        %2012 = vmatpush1.bf16.msra.mxu0 0
        %2013 = vmatprep.subr.bf16.mxu0 0
        %2014 = vmatpush1.bf16.msra.mxu0 0
        %2015 = vmatprep.subr.bf16.mxu0 0
        %2016 = vmatpush1.bf16.msra.mxu0 0
        %2017 = vmatprep.subr.bf16.mxu0 0
        %2018 = vmatpush1.bf16.msra.mxu0 0
        %2019 = vmatprep.subr.bf16.mxu0 0
        %2020 = vmatpush1.bf16.msra.mxu0 0
        %2021 = vmatprep.subr.bf16.mxu0 0
        %2022 = vmatpush1.bf16.msra.mxu0 0
        %2023 = vmatprep.subr.bf16.mxu0 0
        %2024 = vmatpush1.bf16.msra.mxu0 0
        %2025 = vmatprep.subr.bf16.mxu0 %v2009
        %2026 = vmatpush1.bf16.msra.mxu0 %v2006
        %2027 = vmatprep.subr.bf16.mxu0 0
        %2028 = vmatpush2.bf16.msra.mxu0 0
        %2029 = vmatprep.subr.bf16.mxu0 0
        %2030 = vmatpush2.bf16.msra.mxu0 0
        %2031 = vmatprep.subr.bf16.mxu0 0
        %2032 = vmatpush2.bf16.msra.mxu0 0
        %2033 = vmatprep.subr.bf16.mxu0 0
        %2034 = vmatpush2.bf16.msra.mxu0 0
        %2035 = vmatprep.subr.bf16.mxu0 0
        %2036 = vmatpush2.bf16.msra.mxu0 0
        %2037 = vmatprep.subr.bf16.mxu0 0
        %2038 = vmatpush2.bf16.msra.mxu0 0
        %2039 = vmatprep.subr.bf16.mxu0 0
        %2040 = vmatpush2.bf16.msra.mxu0 0
        %2041 = vmatprep.subr.bf16.mxu0 0
        %2042 = vmatpush2.bf16.msra.mxu0 0
        %2043 = vmatprep.mubr.bf16.mxu0 0
        %2044 = vmatmul.mubr.bf16.gmra.mxu0 %v1982
        %v2045 = vpop.f32.mrf.mxu0
        %v2046 = vadd.f32 0.0, %v2045
        %v2047 = vpop.f32.mrf.mxu0
        %v2048 = vadd.f32 0.0, %v2047
        %v2049 = vpop.f32.mrf.mxu0
        %v2050 = vadd.f32 0.0, %v2049
        %v2051 = vpop.f32.mrf.mxu0
        %v2052 = vadd.f32 0.0, %v2051
        %2053 = vmatprep.mubr.bf16.mxu0 0
        %2054 = vmatmul.mubr.bf16.gmra.mxu0 %v1985
        %v2055 = vpop.f32.mrf.mxu0
        %v2056 = vadd.f32 0.0, %v2055
        %v2057 = vpop.f32.mrf.mxu0
        %v2058 = vadd.f32 0.0, %v2057
        %v2059 = vpop.f32.mrf.mxu0
        %v2060 = vadd.f32 0.0, %v2059
        %v2061 = vpop.f32.mrf.mxu0
        %v2062 = vadd.f32 0.0, %v2061
        %2063 = vmatprep.mubr.bf16.mxu0 0
        %2064 = vmatmul.mubr.bf16.gmra.mxu0 %v1988
        %v2065 = vpop.f32.mrf.mxu0
        %v2066 = vadd.f32 0.0, %v2065
        %v2067 = vpop.f32.mrf.mxu0
        %v2068 = vadd.f32 0.0, %v2067
        %v2069 = vpop.f32.mrf.mxu0
        %v2070 = vadd.f32 0.0, %v2069
        %v2071 = vpop.f32.mrf.mxu0
        %v2072 = vadd.f32 0.0, %v2071
        %2073 = vmatprep.mubr.bf16.mxu0 0
        %2074 = vmatmul.mubr.bf16.gmra.mxu0 %v1991
        %v2075 = vpop.f32.mrf.mxu0
        %v2076 = vadd.f32 0.0, %v2075
        %v2077 = vpop.f32.mrf.mxu0
        %v2078 = vadd.f32 0.0, %v2077
        %v2079 = vpop.f32.mrf.mxu0
        %v2080 = vadd.f32 0.0, %v2079
        %v2081 = vpop.f32.mrf.mxu0
        %v2082 = vadd.f32 0.0, %v2081
        %2083 = vmatprep.mubr.bf16.mxu0 0
        %2084 = vmatmul.mubr.bf16.gmra.mxu0 %v1994
        %v2085 = vpop.f32.mrf.mxu0
        %v2086 = vadd.f32 0.0, %v2085
        %v2087 = vpop.f32.mrf.mxu0
        %v2088 = vadd.f32 0.0, %v2087
        %v2089 = vpop.f32.mrf.mxu0
        %v2090 = vadd.f32 0.0, %v2089
        %v2091 = vpop.f32.mrf.mxu0
        %v2092 = vadd.f32 0.0, %v2091
        %2093 = vmatprep.mubr.bf16.mxu0 0
        %2094 = vmatmul.mubr.bf16.gmra.mxu0 %v1997
        %v2095 = vpop.f32.mrf.mxu0
        %v2096 = vadd.f32 0.0, %v2095
        %v2097 = vpop.f32.mrf.mxu0
        %v2098 = vadd.f32 0.0, %v2097
        %v2099 = vpop.f32.mrf.mxu0
        %v2100 = vadd.f32 0.0, %v2099
        %v2101 = vpop.f32.mrf.mxu0
        %v2102 = vadd.f32 0.0, %v2101
        %2103 = vmatprep.mubr.bf16.mxu0 0
        %2104 = vmatmul.mubr.bf16.gmra.mxu0 %v2000
        %v2105 = vpop.f32.mrf.mxu0
        %v2106 = vadd.f32 0.0, %v2105
        %v2107 = vpop.f32.mrf.mxu0
        %v2108 = vadd.f32 0.0, %v2107
        %v2109 = vpop.f32.mrf.mxu0
        %v2110 = vadd.f32 0.0, %v2109
        %v2111 = vpop.f32.mrf.mxu0
        %v2112 = vadd.f32 0.0, %v2111
        %2113 = vmatprep.mubr.bf16.mxu0 0
        %2114 = vmatmul.mubr.bf16.gmra.mxu0 %v2003
        %v2115 = vpop.f32.mrf.mxu0
        %v2116 = vadd.f32 0.0, %v2115
        %v2117 = vpop.f32.mrf.mxu0
        %v2118 = vadd.f32 0.0, %v2117
        %v2119 = vpop.f32.mrf.mxu0
        %v2120 = vadd.f32 0.0, %v2119
        %v2121 = vpop.f32.mrf.mxu0
        %v2122 = vadd.f32 0.0, %v2121
        %2123 = vdwg.mxu0
        %v2124 = vmax.f32 %v2046, %v2048
        %2125 = vmax.xlane.f32.xlu0 %v2124
        %v2126 = vpop.xlane.xlu0 %2125
        %v2127 = vmax.f32 %v2050, %v2052
        %2128 = vmax.xlane.f32.xlu0 %v2127
        %v2129 = vpop.xlane.xlu0 %2128
        %v2130 = vmax.f32 %v2056, %v2058
        %2131 = vmax.xlane.f32.xlu0 %v2130
        %v2132 = vpop.xlane.xlu0 %2131
        %v2133 = vmax.f32 %v2060, %v2062
        %2134 = vmax.xlane.f32.xlu0 %v2133
        %v2135 = vpop.xlane.xlu0 %2134
        %v2136 = vmax.f32 %v2066, %v2068
        %2137 = vmax.xlane.f32.xlu0 %v2136
        %v2138 = vpop.xlane.xlu0 %2137
        %v2139 = vmax.f32 %v2070, %v2072
        %2140 = vmax.xlane.f32.xlu0 %v2139
        %v2141 = vpop.xlane.xlu0 %2140
        %v2142 = vmax.f32 %v2076, %v2078
        %2143 = vmax.xlane.f32.xlu0 %v2142
        %v2144 = vpop.xlane.xlu0 %2143
        %v2145 = vmax.f32 %v2080, %v2082
        %2146 = vmax.xlane.f32.xlu0 %v2145
        %v2147 = vpop.xlane.xlu0 %2146
        %v2148 = vmax.f32 %v2086, %v2088
        %2149 = vmax.xlane.f32.xlu0 %v2148
        %v2150 = vpop.xlane.xlu0 %2149
        %v2151 = vmax.f32 %v2090, %v2092
        %2152 = vmax.xlane.f32.xlu0 %v2151
        %v2153 = vpop.xlane.xlu0 %2152
        %v2154 = vmax.f32 %v2096, %v2098
        %2155 = vmax.xlane.f32.xlu0 %v2154
        %v2156 = vpop.xlane.xlu0 %2155
        %v2157 = vmax.f32 %v2100, %v2102
        %2158 = vmax.xlane.f32.xlu0 %v2157
        %v2159 = vpop.xlane.xlu0 %2158
        %v2160 = vmax.f32 %v2106, %v2108
        %2161 = vmax.xlane.f32.xlu0 %v2160
        %v2162 = vpop.xlane.xlu0 %2161
        %v2163 = vmax.f32 %v2110, %v2112
        %2164 = vmax.xlane.f32.xlu0 %v2163
        %v2165 = vpop.xlane.xlu0 %2164
        %v2166 = vmax.f32 %v2116, %v2118
        %2167 = vmax.xlane.f32.xlu0 %v2166
        %v2168 = vpop.xlane.xlu0 %2167
        %v2169 = vmax.f32 %v2120, %v2122
        %2170 = vmax.xlane.f32.xlu0 %v2169
        %v2171 = vpop.xlane.xlu0 %2170
        %v2172 = vsub.f32 %v2046, %v2126
        %v2173 = vsub.f32 %v2048, %v2126
        %v2174 = vsub.f32 %v2050, %v2129
        %v2175 = vsub.f32 %v2052, %v2129
        %v2176 = vsub.f32 %v2056, %v2132
        %v2177 = vsub.f32 %v2058, %v2132
        %v2178 = vsub.f32 %v2060, %v2135
        %v2179 = vsub.f32 %v2062, %v2135
        %v2180 = vsub.f32 %v2066, %v2138
        %v2181 = vsub.f32 %v2068, %v2138
        %v2182 = vsub.f32 %v2070, %v2141
        %v2183 = vsub.f32 %v2072, %v2141
        %v2184 = vsub.f32 %v2076, %v2144
        %v2185 = vsub.f32 %v2078, %v2144
        %v2186 = vsub.f32 %v2080, %v2147
        %v2187 = vsub.f32 %v2082, %v2147
        %v2188 = vsub.f32 %v2086, %v2150
        %v2189 = vsub.f32 %v2088, %v2150
        %v2190 = vsub.f32 %v2090, %v2153
        %v2191 = vsub.f32 %v2092, %v2153
        %v2192 = vsub.f32 %v2096, %v2156
        %v2193 = vsub.f32 %v2098, %v2156
        %v2194 = vsub.f32 %v2100, %v2159
        %v2195 = vsub.f32 %v2102, %v2159
        %v2196 = vsub.f32 %v2106, %v2162
        %v2197 = vsub.f32 %v2108, %v2162
        %v2198 = vsub.f32 %v2110, %v2165
        %v2199 = vsub.f32 %v2112, %v2165
        %v2200 = vsub.f32 %v2116, %v2168
        %v2201 = vsub.f32 %v2118, %v2168
        %v2202 = vsub.f32 %v2120, %v2171
        %v2203 = vsub.f32 %v2122, %v2171
        %v2204 = vpack.c.bf16 %v2174, %v2172
        %v2205 = vpack.c.bf16 %v2175, %v2173
        %v2206 = vpack.c.bf16 %v2178, %v2176
        %v2207 = vpack.c.bf16 %v2179, %v2177
        %v2208 = vpack.c.bf16 %v2182, %v2180
        %v2209 = vpack.c.bf16 %v2183, %v2181
        %v2210 = vpack.c.bf16 %v2186, %v2184
        %v2211 = vpack.c.bf16 %v2187, %v2185
        %v2212 = vpack.c.bf16 %v2190, %v2188
        %v2213 = vpack.c.bf16 %v2191, %v2189
        %v2214 = vpack.c.bf16 %v2194, %v2192
        %v2215 = vpack.c.bf16 %v2195, %v2193
        %v2216 = vpack.c.bf16 %v2198, %v2196
        %v2217 = vpack.c.bf16 %v2199, %v2197
        %v2218 = vpack.c.bf16 %v2202, %v2200
        %v2219 = vpack.c.bf16 %v2203, %v2201
        %v2221 = vmul.bf16 %v2204, 1069105081
        %v2222 = vpow.bf16.pop %v2221
        %v2224 = vmul.bf16 %v2205, 1069105081
        %v2225 = vpow.bf16.pop %v2224
        %v2227 = vmul.bf16 %v2206, 1069105081
        %v2228 = vpow.bf16.pop %v2227
        %v2230 = vmul.bf16 %v2207, 1069105081
        %v2231 = vpow.bf16.pop %v2230
        %v2233 = vmul.bf16 %v2208, 1069105081
        %v2234 = vpow.bf16.pop %v2233
        %v2236 = vmul.bf16 %v2209, 1069105081
        %v2237 = vpow.bf16.pop %v2236
        %v2239 = vmul.bf16 %v2210, 1069105081
        %v2240 = vpow.bf16.pop %v2239
        %v2242 = vmul.bf16 %v2211, 1069105081
        %v2243 = vpow.bf16.pop %v2242
        %v2245 = vmul.bf16 %v2212, 1069105081
        %v2246 = vpow.bf16.pop %v2245
        %v2248 = vmul.bf16 %v2213, 1069105081
        %v2249 = vpow.bf16.pop %v2248
        %v2251 = vmul.bf16 %v2214, 1069105081
        %v2252 = vpow.bf16.pop %v2251
        %v2254 = vmul.bf16 %v2215, 1069105081
        %v2255 = vpow.bf16.pop %v2254
        %v2257 = vmul.bf16 %v2216, 1069105081
        %v2258 = vpow.bf16.pop %v2257
        %v2260 = vmul.bf16 %v2217, 1069105081
        %v2261 = vpow.bf16.pop %v2260
        %v2263 = vmul.bf16 %v2218, 1069105081
        %v2264 = vpow.bf16.pop %v2263
        %v2266 = vmul.bf16 %v2219, 1069105081
        %v2267 = vpow.bf16.pop %v2266
        %v2268 = vunpack.c.l.bf16 %v2222
        %v2269 = vunpack.c.l.bf16 %v2225
        %v2270 = vunpack.c.h.bf16 %v2222
        %v2271 = vunpack.c.h.bf16 %v2225
        %v2272 = vunpack.c.l.bf16 %v2228
        %v2273 = vunpack.c.l.bf16 %v2231
        %v2274 = vunpack.c.h.bf16 %v2228
        %v2275 = vunpack.c.h.bf16 %v2231
        %v2276 = vunpack.c.l.bf16 %v2234
        %v2277 = vunpack.c.l.bf16 %v2237
        %v2278 = vunpack.c.h.bf16 %v2234
        %v2279 = vunpack.c.h.bf16 %v2237
        %v2280 = vunpack.c.l.bf16 %v2240
        %v2281 = vunpack.c.l.bf16 %v2243
        %v2282 = vunpack.c.h.bf16 %v2240
        %v2283 = vunpack.c.h.bf16 %v2243
        %v2284 = vunpack.c.l.bf16 %v2246
        %v2285 = vunpack.c.l.bf16 %v2249
        %v2286 = vunpack.c.h.bf16 %v2246
        %v2287 = vunpack.c.h.bf16 %v2249
        %v2288 = vunpack.c.l.bf16 %v2252
        %v2289 = vunpack.c.l.bf16 %v2255
        %v2290 = vunpack.c.h.bf16 %v2252
        %v2291 = vunpack.c.h.bf16 %v2255
        %v2292 = vunpack.c.l.bf16 %v2258
        %v2293 = vunpack.c.l.bf16 %v2261
        %v2294 = vunpack.c.h.bf16 %v2258
        %v2295 = vunpack.c.h.bf16 %v2261
        %v2296 = vunpack.c.l.bf16 %v2264
        %v2297 = vunpack.c.l.bf16 %v2267
        %v2298 = vunpack.c.h.bf16 %v2264
        %v2299 = vunpack.c.h.bf16 %v2267
        %v2300 = vadd.f32 %v2268, %v2269
        %2301 = vadd.xlane.f32.xlu0 %v2300
        %v2302 = vpop.xlane.xlu0 %2301
        %v2303 = vadd.f32 %v2270, %v2271
        %2304 = vadd.xlane.f32.xlu0 %v2303
        %v2305 = vpop.xlane.xlu0 %2304
        %v2306 = vadd.f32 %v2272, %v2273
        %2307 = vadd.xlane.f32.xlu0 %v2306
        %v2308 = vpop.xlane.xlu0 %2307
        %v2309 = vadd.f32 %v2274, %v2275
        %2310 = vadd.xlane.f32.xlu0 %v2309
        %v2311 = vpop.xlane.xlu0 %2310
        %v2312 = vadd.f32 %v2276, %v2277
        %2313 = vadd.xlane.f32.xlu0 %v2312
        %v2314 = vpop.xlane.xlu0 %2313
        %v2315 = vadd.f32 %v2278, %v2279
        %2316 = vadd.xlane.f32.xlu0 %v2315
        %v2317 = vpop.xlane.xlu0 %2316
        %v2318 = vadd.f32 %v2280, %v2281
        %2319 = vadd.xlane.f32.xlu0 %v2318
        %v2320 = vpop.xlane.xlu0 %2319
        %v2321 = vadd.f32 %v2282, %v2283
        %2322 = vadd.xlane.f32.xlu0 %v2321
        %v2323 = vpop.xlane.xlu0 %2322
        %v2324 = vadd.f32 %v2284, %v2285
        %2325 = vadd.xlane.f32.xlu0 %v2324
        %v2326 = vpop.xlane.xlu0 %2325
        %v2327 = vadd.f32 %v2286, %v2287
        %2328 = vadd.xlane.f32.xlu0 %v2327
        %v2329 = vpop.xlane.xlu0 %2328
        %v2330 = vadd.f32 %v2288, %v2289
        %2331 = vadd.xlane.f32.xlu0 %v2330
        %v2332 = vpop.xlane.xlu0 %2331
        %v2333 = vadd.f32 %v2290, %v2291
        %2334 = vadd.xlane.f32.xlu0 %v2333
        %v2335 = vpop.xlane.xlu0 %2334
        %v2336 = vadd.f32 %v2292, %v2293
        %2337 = vadd.xlane.f32.xlu0 %v2336
        %v2338 = vpop.xlane.xlu0 %2337
        %v2339 = vadd.f32 %v2294, %v2295
        %2340 = vadd.xlane.f32.xlu0 %v2339
        %v2341 = vpop.xlane.xlu0 %2340
        %v2342 = vadd.f32 %v2296, %v2297
        %2343 = vadd.xlane.f32.xlu0 %v2342
        %v2344 = vpop.xlane.xlu0 %2343
        %v2345 = vadd.f32 %v2298, %v2299
        %2346 = vadd.xlane.f32.xlu0 %v2345
        %v2347 = vpop.xlane.xlu0 %2346
        %2348 = vrot.lane.b32.xlu0 %v810, 80
        %v2349 = vpop.permute.xlu0 %2348
        %2350 = vrot.lane.b32.xlu0 %v811, 80
        %v2351 = vpop.permute.xlu0 %2350
        %2352 = vrot.lane.b32.xlu0 %v812, 80
        %v2353 = vpop.permute.xlu0 %2352
        %2354 = vrot.lane.b32.xlu0 %v813, 80
        %v2355 = vpop.permute.xlu0 %2354
        %2356 = vrot.lane.b32.xlu0 %v814, 80
        %v2357 = vpop.permute.xlu0 %2356
        %2358 = vrot.lane.b32.xlu0 %v815, 80
        %v2359 = vpop.permute.xlu0 %2358
        %2360 = vrot.lane.b32.xlu0 %v816, 80
        %v2361 = vpop.permute.xlu0 %2360
        %2362 = vrot.lane.b32.xlu0 %v817, 80
        %v2363 = vpop.permute.xlu0 %2362
        %2364 = vrot.lane.b32.xlu0 %v818, 80
        %v2365 = vpop.permute.xlu0 %2364
        %2366 = vrot.lane.b32.xlu0 %v819, 80
        %v2367 = vpop.permute.xlu0 %2366
        %2368 = vrot.lane.b32.xlu0 %v820, 80
        %v2369 = vpop.permute.xlu0 %2368
        %2370 = vrot.lane.b32.xlu0 %v821, 80
        %v2371 = vpop.permute.xlu0 %2370
        %2372 = vrot.lane.b32.xlu0 %v822, 80
        %v2373 = vpop.permute.xlu0 %2372
        %2374 = vrot.lane.b32.xlu0 %v823, 80
        %v2375 = vpop.permute.xlu0 %2374
        %2376 = vrot.lane.b32.xlu0 %v824, 80
        %v2377 = vpop.permute.xlu0 %2376
        %2378 = vrot.lane.b32.xlu0 %v825, 80
        %v2379 = vpop.permute.xlu0 %2378
        %2396 = vmatprep.subr.bf16.mxu0 0
        %2397 = vmatpush1.bf16.msra.mxu0 %v2363
        %2398 = vmatprep.subr.bf16.mxu0 0
        %2399 = vmatpush1.bf16.msra.mxu0 %v2361
        %2400 = vmatprep.subr.bf16.mxu0 0
        %2401 = vmatpush1.bf16.msra.mxu0 %v2359
        %2402 = vmatprep.subr.bf16.mxu0 0
        %2403 = vmatpush1.bf16.msra.mxu0 %v2357
        %2404 = vmatprep.subr.bf16.mxu0 0
        %2405 = vmatpush1.bf16.msra.mxu0 %v2355
        %2406 = vmatprep.subr.bf16.mxu0 0
        %2407 = vmatpush1.bf16.msra.mxu0 %v2353
        %2408 = vmatprep.subr.bf16.mxu0 0
        %2409 = vmatpush1.bf16.msra.mxu0 %v2351
        %2410 = vmatprep.subr.bf16.mxu0 0
        %2411 = vmatpush1.bf16.msra.mxu0 %v2349
        %2412 = vmatprep.subr.bf16.mxu0 0
        %2413 = vmatpush2.bf16.msra.mxu0 %v2379
        %2414 = vmatprep.subr.bf16.mxu0 0
        %2415 = vmatpush2.bf16.msra.mxu0 %v2377
        %2416 = vmatprep.subr.bf16.mxu0 0
        %2417 = vmatpush2.bf16.msra.mxu0 %v2375
        %2418 = vmatprep.subr.bf16.mxu0 0
        %2419 = vmatpush2.bf16.msra.mxu0 %v2373
        %2420 = vmatprep.subr.bf16.mxu0 0
        %2421 = vmatpush2.bf16.msra.mxu0 %v2371
        %2422 = vmatprep.subr.bf16.mxu0 0
        %2423 = vmatpush2.bf16.msra.mxu0 %v2369
        %2424 = vmatprep.subr.bf16.mxu0 0
        %2425 = vmatpush2.bf16.msra.mxu0 %v2367
        %2426 = vmatprep.subr.bf16.mxu0 0
        %2427 = vmatpush2.bf16.msra.mxu0 %v2365
        %2428 = vmatprep.mubr.bf16.mxu0 %v2225
        %2429 = vmatmul.mubr.bf16.gmra.mxu0 %v2222
        %v2430 = vpop.f32.mrf.mxu0
        %v2431 = vadd.f32 0.0, %v2430
        %v2432 = vpop.f32.mrf.mxu0
        %v2433 = vpop.f32.mrf.mxu0
        %v2434 = vadd.f32 0.0, %v2433
        %v2435 = vpop.f32.mrf.mxu0
        %2436 = vmatprep.mubr.bf16.mxu0 %v2231
        %2437 = vmatmul.mubr.bf16.gmra.mxu0 %v2228
        %v2438 = vpop.f32.mrf.mxu0
        %v2439 = vadd.f32 0.0, %v2438
        %v2440 = vpop.f32.mrf.mxu0
        %v2441 = vpop.f32.mrf.mxu0
        %v2442 = vadd.f32 0.0, %v2441
        %v2443 = vpop.f32.mrf.mxu0
        %2444 = vmatprep.mubr.bf16.mxu0 %v2237
        %2445 = vmatmul.mubr.bf16.gmra.mxu0 %v2234
        %v2446 = vpop.f32.mrf.mxu0
        %v2447 = vadd.f32 0.0, %v2446
        %v2448 = vpop.f32.mrf.mxu0
        %v2449 = vpop.f32.mrf.mxu0
        %v2450 = vadd.f32 0.0, %v2449
        %v2451 = vpop.f32.mrf.mxu0
        %2452 = vmatprep.mubr.bf16.mxu0 %v2243
        %2453 = vmatmul.mubr.bf16.gmra.mxu0 %v2240
        %v2454 = vpop.f32.mrf.mxu0
        %v2455 = vadd.f32 0.0, %v2454
        %v2456 = vpop.f32.mrf.mxu0
        %v2457 = vpop.f32.mrf.mxu0
        %v2458 = vadd.f32 0.0, %v2457
        %v2459 = vpop.f32.mrf.mxu0
        %2460 = vmatprep.mubr.bf16.mxu0 %v2249
        %2461 = vmatmul.mubr.bf16.gmra.mxu0 %v2246
        %v2462 = vpop.f32.mrf.mxu0
        %v2463 = vadd.f32 0.0, %v2462
        %v2464 = vpop.f32.mrf.mxu0
        %v2465 = vpop.f32.mrf.mxu0
        %v2466 = vadd.f32 0.0, %v2465
        %v2467 = vpop.f32.mrf.mxu0
        %2468 = vmatprep.mubr.bf16.mxu0 %v2255
        %2469 = vmatmul.mubr.bf16.gmra.mxu0 %v2252
        %v2470 = vpop.f32.mrf.mxu0
        %v2471 = vadd.f32 0.0, %v2470
        %v2472 = vpop.f32.mrf.mxu0
        %v2473 = vpop.f32.mrf.mxu0
        %v2474 = vadd.f32 0.0, %v2473
        %v2475 = vpop.f32.mrf.mxu0
        %2476 = vmatprep.mubr.bf16.mxu0 %v2261
        %2477 = vmatmul.mubr.bf16.gmra.mxu0 %v2258
        %v2478 = vpop.f32.mrf.mxu0
        %v2479 = vadd.f32 0.0, %v2478
        %v2480 = vpop.f32.mrf.mxu0
        %v2481 = vpop.f32.mrf.mxu0
        %v2482 = vadd.f32 0.0, %v2481
        %v2483 = vpop.f32.mrf.mxu0
        %2484 = vmatprep.mubr.bf16.mxu0 %v2267
        %2485 = vmatmul.mubr.bf16.gmra.mxu0 %v2264
        %v2486 = vpop.f32.mrf.mxu0
        %v2487 = vadd.f32 0.0, %v2486
        %v2488 = vpop.f32.mrf.mxu0
        %v2489 = vpop.f32.mrf.mxu0
        %v2490 = vadd.f32 0.0, %v2489
        %v2491 = vpop.f32.mrf.mxu0
        %2492 = vdwg.mxu0
        %v2493 = vrcp.pop %v2302
        %v2494 = vrcp.pop %v2305
        %v2495 = vrcp.pop %v2308
        %v2496 = vrcp.pop %v2311
        %v2497 = vrcp.pop %v2314
        %v2498 = vrcp.pop %v2317
        %v2499 = vrcp.pop %v2320
        %v2500 = vrcp.pop %v2323
        %v2501 = vrcp.pop %v2326
        %v2502 = vrcp.pop %v2329
        %v2503 = vrcp.pop %v2332
        %v2504 = vrcp.pop %v2335
        %v2505 = vrcp.pop %v2338
        %v2506 = vrcp.pop %v2341
        %v2507 = vrcp.pop %v2344
        %v2508 = vrcp.pop %v2347
        %v2509 = vmul.f32 %v2431, %v2493
        %v2510 = vmul.f32 %v2434, %v2494
        %v2511 = vmul.f32 %v2439, %v2495
        %v2512 = vmul.f32 %v2442, %v2496
        %v2513 = vmul.f32 %v2447, %v2497
        %v2514 = vmul.f32 %v2450, %v2498
        %v2515 = vmul.f32 %v2455, %v2499
        %v2516 = vmul.f32 %v2458, %v2500
        %v2517 = vmul.f32 %v2463, %v2501
        %v2518 = vmul.f32 %v2466, %v2502
        %v2519 = vmul.f32 %v2471, %v2503
        %v2520 = vmul.f32 %v2474, %v2504
        %v2521 = vmul.f32 %v2479, %v2505
        %v2522 = vmul.f32 %v2482, %v2506
        %v2523 = vmul.f32 %v2487, %v2507
        %v2524 = vmul.f32 %v2490, %v2508
        %2525 = vrot.lane.b32.xlu0 %v810, 104
        %v2526 = vpop.permute.xlu0 %2525
        %2527 = vrot.lane.b32.xlu0 %v811, 104
        %v2528 = vpop.permute.xlu0 %2527
        %2529 = vrot.lane.b32.xlu0 %v812, 104
        %v2530 = vpop.permute.xlu0 %2529
        %2531 = vrot.lane.b32.xlu0 %v813, 104
        %v2532 = vpop.permute.xlu0 %2531
        %2533 = vrot.lane.b32.xlu0 %v814, 104
        %v2534 = vpop.permute.xlu0 %2533
        %2535 = vrot.lane.b32.xlu0 %v815, 104
        %v2536 = vpop.permute.xlu0 %2535
        %2537 = vrot.lane.b32.xlu0 %v816, 104
        %v2538 = vpop.permute.xlu0 %2537
        %2539 = vrot.lane.b32.xlu0 %v817, 104
        %v2540 = vpop.permute.xlu0 %2539
        %v2543 = vrot.slane %v588, 4
        %v2544 = vrot.slane %v589, 4
        %v2546 = vsel %vm840, %v2526, 0
        %v2549 = vsel %vm840, %v2528, 0
        %v2552 = vsel %vm840, %v2530, 0
        %v2555 = vsel %vm840, %v2532, 0
        %v2558 = vsel %vm840, %v2534, 0
        %v2561 = vsel %vm840, %v2536, 0
        %v2564 = vsel %vm840, %v2538, 0
        %v2567 = vsel %vm840, %v2540, 0
        %v2570 = vsel %vm342, %v2543, 0
        %v2573 = vsel %vm342, %v2544, 0
        %2575 = vmatprep.subr.bf16.mxu0 0
        %2576 = vmatpush1.bf16.msra.mxu0 0
        %2577 = vmatprep.subr.bf16.mxu0 0
        %2578 = vmatpush1.bf16.msra.mxu0 0
        %2579 = vmatprep.subr.bf16.mxu0 0
        %2580 = vmatpush1.bf16.msra.mxu0 0
        %2581 = vmatprep.subr.bf16.mxu0 0
        %2582 = vmatpush1.bf16.msra.mxu0 0
        %2583 = vmatprep.subr.bf16.mxu0 0
        %2584 = vmatpush1.bf16.msra.mxu0 0
        %2585 = vmatprep.subr.bf16.mxu0 0
        %2586 = vmatpush1.bf16.msra.mxu0 0
        %2587 = vmatprep.subr.bf16.mxu0 0
        %2588 = vmatpush1.bf16.msra.mxu0 0
        %2589 = vmatprep.subr.bf16.mxu0 %v2573
        %2590 = vmatpush1.bf16.msra.mxu0 %v2570
        %2591 = vmatprep.subr.bf16.mxu0 0
        %2592 = vmatpush2.bf16.msra.mxu0 0
        %2593 = vmatprep.subr.bf16.mxu0 0
        %2594 = vmatpush2.bf16.msra.mxu0 0
        %2595 = vmatprep.subr.bf16.mxu0 0
        %2596 = vmatpush2.bf16.msra.mxu0 0
        %2597 = vmatprep.subr.bf16.mxu0 0
        %2598 = vmatpush2.bf16.msra.mxu0 0
        %2599 = vmatprep.subr.bf16.mxu0 0
        %2600 = vmatpush2.bf16.msra.mxu0 0
        %2601 = vmatprep.subr.bf16.mxu0 0
        %2602 = vmatpush2.bf16.msra.mxu0 0
        %2603 = vmatprep.subr.bf16.mxu0 0
        %2604 = vmatpush2.bf16.msra.mxu0 0
        %2605 = vmatprep.subr.bf16.mxu0 0
        %2606 = vmatpush2.bf16.msra.mxu0 0
        %2607 = vmatprep.mubr.bf16.mxu0 0
        %2608 = vmatmul.mubr.bf16.gmra.mxu0 %v2546
        %v2609 = vpop.f32.mrf.mxu0
        %v2610 = vadd.f32 0.0, %v2609
        %v2611 = vpop.f32.mrf.mxu0
        %v2612 = vadd.f32 0.0, %v2611
        %v2613 = vpop.f32.mrf.mxu0
        %v2614 = vadd.f32 0.0, %v2613
        %v2615 = vpop.f32.mrf.mxu0
        %v2616 = vadd.f32 0.0, %v2615
        %2617 = vmatprep.mubr.bf16.mxu0 0
        %2618 = vmatmul.mubr.bf16.gmra.mxu0 %v2549
        %v2619 = vpop.f32.mrf.mxu0
        %v2620 = vadd.f32 0.0, %v2619
        %v2621 = vpop.f32.mrf.mxu0
        %v2622 = vadd.f32 0.0, %v2621
        %v2623 = vpop.f32.mrf.mxu0
        %v2624 = vadd.f32 0.0, %v2623
        %v2625 = vpop.f32.mrf.mxu0
        %v2626 = vadd.f32 0.0, %v2625
        %2627 = vmatprep.mubr.bf16.mxu0 0
        %2628 = vmatmul.mubr.bf16.gmra.mxu0 %v2552
        %v2629 = vpop.f32.mrf.mxu0
        %v2630 = vadd.f32 0.0, %v2629
        %v2631 = vpop.f32.mrf.mxu0
        %v2632 = vadd.f32 0.0, %v2631
        %v2633 = vpop.f32.mrf.mxu0
        %v2634 = vadd.f32 0.0, %v2633
        %v2635 = vpop.f32.mrf.mxu0
        %v2636 = vadd.f32 0.0, %v2635
        %2637 = vmatprep.mubr.bf16.mxu0 0
        %2638 = vmatmul.mubr.bf16.gmra.mxu0 %v2555
        %v2639 = vpop.f32.mrf.mxu0
        %v2640 = vadd.f32 0.0, %v2639
        %v2641 = vpop.f32.mrf.mxu0
        %v2642 = vadd.f32 0.0, %v2641
        %v2643 = vpop.f32.mrf.mxu0
        %v2644 = vadd.f32 0.0, %v2643
        %v2645 = vpop.f32.mrf.mxu0
        %v2646 = vadd.f32 0.0, %v2645
        %2647 = vmatprep.mubr.bf16.mxu0 0
        %2648 = vmatmul.mubr.bf16.gmra.mxu0 %v2558
        %v2649 = vpop.f32.mrf.mxu0
        %v2650 = vadd.f32 0.0, %v2649
        %v2651 = vpop.f32.mrf.mxu0
        %v2652 = vadd.f32 0.0, %v2651
        %v2653 = vpop.f32.mrf.mxu0
        %v2654 = vadd.f32 0.0, %v2653
        %v2655 = vpop.f32.mrf.mxu0
        %v2656 = vadd.f32 0.0, %v2655
        %2657 = vmatprep.mubr.bf16.mxu0 0
        %2658 = vmatmul.mubr.bf16.gmra.mxu0 %v2561
        %v2659 = vpop.f32.mrf.mxu0
        %v2660 = vadd.f32 0.0, %v2659
        %v2661 = vpop.f32.mrf.mxu0
        %v2662 = vadd.f32 0.0, %v2661
        %v2663 = vpop.f32.mrf.mxu0
        %v2664 = vadd.f32 0.0, %v2663
        %v2665 = vpop.f32.mrf.mxu0
        %v2666 = vadd.f32 0.0, %v2665
        %2667 = vmatprep.mubr.bf16.mxu0 0
        %2668 = vmatmul.mubr.bf16.gmra.mxu0 %v2564
        %v2669 = vpop.f32.mrf.mxu0
        %v2670 = vadd.f32 0.0, %v2669
        %v2671 = vpop.f32.mrf.mxu0
        %v2672 = vadd.f32 0.0, %v2671
        %v2673 = vpop.f32.mrf.mxu0
        %v2674 = vadd.f32 0.0, %v2673
        %v2675 = vpop.f32.mrf.mxu0
        %v2676 = vadd.f32 0.0, %v2675
        %2677 = vmatprep.mubr.bf16.mxu0 0
        %2678 = vmatmul.mubr.bf16.gmra.mxu0 %v2567
        %v2679 = vpop.f32.mrf.mxu0
        %v2680 = vadd.f32 0.0, %v2679
        %v2681 = vpop.f32.mrf.mxu0
        %v2682 = vadd.f32 0.0, %v2681
        %v2683 = vpop.f32.mrf.mxu0
        %v2684 = vadd.f32 0.0, %v2683
        %v2685 = vpop.f32.mrf.mxu0
        %v2686 = vadd.f32 0.0, %v2685
        %2687 = vdwg.mxu0
        %v2688 = vmax.f32 %v2610, %v2612
        %2689 = vmax.xlane.f32.xlu0 %v2688
        %v2690 = vpop.xlane.xlu0 %2689
        %v2691 = vmax.f32 %v2614, %v2616
        %2692 = vmax.xlane.f32.xlu0 %v2691
        %v2693 = vpop.xlane.xlu0 %2692
        %v2694 = vmax.f32 %v2620, %v2622
        %2695 = vmax.xlane.f32.xlu0 %v2694
        %v2696 = vpop.xlane.xlu0 %2695
        %v2697 = vmax.f32 %v2624, %v2626
        %2698 = vmax.xlane.f32.xlu0 %v2697
        %v2699 = vpop.xlane.xlu0 %2698
        %v2700 = vmax.f32 %v2630, %v2632
        %2701 = vmax.xlane.f32.xlu0 %v2700
        %v2702 = vpop.xlane.xlu0 %2701
        %v2703 = vmax.f32 %v2634, %v2636
        %2704 = vmax.xlane.f32.xlu0 %v2703
        %v2705 = vpop.xlane.xlu0 %2704
        %v2706 = vmax.f32 %v2640, %v2642
        %2707 = vmax.xlane.f32.xlu0 %v2706
        %v2708 = vpop.xlane.xlu0 %2707
        %v2709 = vmax.f32 %v2644, %v2646
        %2710 = vmax.xlane.f32.xlu0 %v2709
        %v2711 = vpop.xlane.xlu0 %2710
        %v2712 = vmax.f32 %v2650, %v2652
        %2713 = vmax.xlane.f32.xlu0 %v2712
        %v2714 = vpop.xlane.xlu0 %2713
        %v2715 = vmax.f32 %v2654, %v2656
        %2716 = vmax.xlane.f32.xlu0 %v2715
        %v2717 = vpop.xlane.xlu0 %2716
        %v2718 = vmax.f32 %v2660, %v2662
        %2719 = vmax.xlane.f32.xlu0 %v2718
        %v2720 = vpop.xlane.xlu0 %2719
        %v2721 = vmax.f32 %v2664, %v2666
        %2722 = vmax.xlane.f32.xlu0 %v2721
        %v2723 = vpop.xlane.xlu0 %2722
        %v2724 = vmax.f32 %v2670, %v2672
        %2725 = vmax.xlane.f32.xlu0 %v2724
        %v2726 = vpop.xlane.xlu0 %2725
        %v2727 = vmax.f32 %v2674, %v2676
        %2728 = vmax.xlane.f32.xlu0 %v2727
        %v2729 = vpop.xlane.xlu0 %2728
        %v2730 = vmax.f32 %v2680, %v2682
        %2731 = vmax.xlane.f32.xlu0 %v2730
        %v2732 = vpop.xlane.xlu0 %2731
        %v2733 = vmax.f32 %v2684, %v2686
        %2734 = vmax.xlane.f32.xlu0 %v2733
        %v2735 = vpop.xlane.xlu0 %2734
        %v2736 = vsub.f32 %v2610, %v2690
        %v2737 = vsub.f32 %v2612, %v2690
        %v2738 = vsub.f32 %v2614, %v2693
        %v2739 = vsub.f32 %v2616, %v2693
        %v2740 = vsub.f32 %v2620, %v2696
        %v2741 = vsub.f32 %v2622, %v2696
        %v2742 = vsub.f32 %v2624, %v2699
        %v2743 = vsub.f32 %v2626, %v2699
        %v2744 = vsub.f32 %v2630, %v2702
        %v2745 = vsub.f32 %v2632, %v2702
        %v2746 = vsub.f32 %v2634, %v2705
        %v2747 = vsub.f32 %v2636, %v2705
        %v2748 = vsub.f32 %v2640, %v2708
        %v2749 = vsub.f32 %v2642, %v2708
        %v2750 = vsub.f32 %v2644, %v2711
        %v2751 = vsub.f32 %v2646, %v2711
        %v2752 = vsub.f32 %v2650, %v2714
        %v2753 = vsub.f32 %v2652, %v2714
        %v2754 = vsub.f32 %v2654, %v2717
        %v2755 = vsub.f32 %v2656, %v2717
        %v2756 = vsub.f32 %v2660, %v2720
        %v2757 = vsub.f32 %v2662, %v2720
        %v2758 = vsub.f32 %v2664, %v2723
        %v2759 = vsub.f32 %v2666, %v2723
        %v2760 = vsub.f32 %v2670, %v2726
        %v2761 = vsub.f32 %v2672, %v2726
        %v2762 = vsub.f32 %v2674, %v2729
        %v2763 = vsub.f32 %v2676, %v2729
        %v2764 = vsub.f32 %v2680, %v2732
        %v2765 = vsub.f32 %v2682, %v2732
        %v2766 = vsub.f32 %v2684, %v2735
        %v2767 = vsub.f32 %v2686, %v2735
        %v2768 = vpack.c.bf16 %v2738, %v2736
        %v2769 = vpack.c.bf16 %v2739, %v2737
        %v2770 = vpack.c.bf16 %v2742, %v2740
        %v2771 = vpack.c.bf16 %v2743, %v2741
        %v2772 = vpack.c.bf16 %v2746, %v2744
        %v2773 = vpack.c.bf16 %v2747, %v2745
        %v2774 = vpack.c.bf16 %v2750, %v2748
        %v2775 = vpack.c.bf16 %v2751, %v2749
        %v2776 = vpack.c.bf16 %v2754, %v2752
        %v2777 = vpack.c.bf16 %v2755, %v2753
        %v2778 = vpack.c.bf16 %v2758, %v2756
        %v2779 = vpack.c.bf16 %v2759, %v2757
        %v2780 = vpack.c.bf16 %v2762, %v2760
        %v2781 = vpack.c.bf16 %v2763, %v2761
        %v2782 = vpack.c.bf16 %v2766, %v2764
        %v2783 = vpack.c.bf16 %v2767, %v2765
        %v2785 = vmul.bf16 %v2768, 1069105081
        %v2786 = vpow.bf16.pop %v2785
        %v2788 = vmul.bf16 %v2769, 1069105081
        %v2789 = vpow.bf16.pop %v2788
        %v2791 = vmul.bf16 %v2770, 1069105081
        %v2792 = vpow.bf16.pop %v2791
        %v2794 = vmul.bf16 %v2771, 1069105081
        %v2795 = vpow.bf16.pop %v2794
        %v2797 = vmul.bf16 %v2772, 1069105081
        %v2798 = vpow.bf16.pop %v2797
        %v2800 = vmul.bf16 %v2773, 1069105081
        %v2801 = vpow.bf16.pop %v2800
        %v2803 = vmul.bf16 %v2774, 1069105081
        %v2804 = vpow.bf16.pop %v2803
        %v2806 = vmul.bf16 %v2775, 1069105081
        %v2807 = vpow.bf16.pop %v2806
        %v2809 = vmul.bf16 %v2776, 1069105081
        %v2810 = vpow.bf16.pop %v2809
        %v2812 = vmul.bf16 %v2777, 1069105081
        %v2813 = vpow.bf16.pop %v2812
        %v2815 = vmul.bf16 %v2778, 1069105081
        %v2816 = vpow.bf16.pop %v2815
        %v2818 = vmul.bf16 %v2779, 1069105081
        %v2819 = vpow.bf16.pop %v2818
        %v2821 = vmul.bf16 %v2780, 1069105081
        %v2822 = vpow.bf16.pop %v2821
        %v2824 = vmul.bf16 %v2781, 1069105081
        %v2825 = vpow.bf16.pop %v2824
        %v2827 = vmul.bf16 %v2782, 1069105081
        %v2828 = vpow.bf16.pop %v2827
        %v2830 = vmul.bf16 %v2783, 1069105081
        %v2831 = vpow.bf16.pop %v2830
        %v2832 = vunpack.c.l.bf16 %v2786
        %v2833 = vunpack.c.l.bf16 %v2789
        %v2834 = vunpack.c.h.bf16 %v2786
        %v2835 = vunpack.c.h.bf16 %v2789
        %v2836 = vunpack.c.l.bf16 %v2792
        %v2837 = vunpack.c.l.bf16 %v2795
        %v2838 = vunpack.c.h.bf16 %v2792
        %v2839 = vunpack.c.h.bf16 %v2795
        %v2840 = vunpack.c.l.bf16 %v2798
        %v2841 = vunpack.c.l.bf16 %v2801
        %v2842 = vunpack.c.h.bf16 %v2798
        %v2843 = vunpack.c.h.bf16 %v2801
        %v2844 = vunpack.c.l.bf16 %v2804
        %v2845 = vunpack.c.l.bf16 %v2807
        %v2846 = vunpack.c.h.bf16 %v2804
        %v2847 = vunpack.c.h.bf16 %v2807
        %v2848 = vunpack.c.l.bf16 %v2810
        %v2849 = vunpack.c.l.bf16 %v2813
        %v2850 = vunpack.c.h.bf16 %v2810
        %v2851 = vunpack.c.h.bf16 %v2813
        %v2852 = vunpack.c.l.bf16 %v2816
        %v2853 = vunpack.c.l.bf16 %v2819
        %v2854 = vunpack.c.h.bf16 %v2816
        %v2855 = vunpack.c.h.bf16 %v2819
        %v2856 = vunpack.c.l.bf16 %v2822
        %v2857 = vunpack.c.l.bf16 %v2825
        %v2858 = vunpack.c.h.bf16 %v2822
        %v2859 = vunpack.c.h.bf16 %v2825
        %v2860 = vunpack.c.l.bf16 %v2828
        %v2861 = vunpack.c.l.bf16 %v2831
        %v2862 = vunpack.c.h.bf16 %v2828
        %v2863 = vunpack.c.h.bf16 %v2831
        %v2864 = vadd.f32 %v2832, %v2833
        %2865 = vadd.xlane.f32.xlu0 %v2864
        %v2866 = vpop.xlane.xlu0 %2865
        %v2867 = vadd.f32 %v2834, %v2835
        %2868 = vadd.xlane.f32.xlu0 %v2867
        %v2869 = vpop.xlane.xlu0 %2868
        %v2870 = vadd.f32 %v2836, %v2837
        %2871 = vadd.xlane.f32.xlu0 %v2870
        %v2872 = vpop.xlane.xlu0 %2871
        %v2873 = vadd.f32 %v2838, %v2839
        %2874 = vadd.xlane.f32.xlu0 %v2873
        %v2875 = vpop.xlane.xlu0 %2874
        %v2876 = vadd.f32 %v2840, %v2841
        %2877 = vadd.xlane.f32.xlu0 %v2876
        %v2878 = vpop.xlane.xlu0 %2877
        %v2879 = vadd.f32 %v2842, %v2843
        %2880 = vadd.xlane.f32.xlu0 %v2879
        %v2881 = vpop.xlane.xlu0 %2880
        %v2882 = vadd.f32 %v2844, %v2845
        %2883 = vadd.xlane.f32.xlu0 %v2882
        %v2884 = vpop.xlane.xlu0 %2883
        %v2885 = vadd.f32 %v2846, %v2847
        %2886 = vadd.xlane.f32.xlu0 %v2885
        %v2887 = vpop.xlane.xlu0 %2886
        %v2888 = vadd.f32 %v2848, %v2849
        %2889 = vadd.xlane.f32.xlu0 %v2888
        %v2890 = vpop.xlane.xlu0 %2889
        %v2891 = vadd.f32 %v2850, %v2851
        %2892 = vadd.xlane.f32.xlu0 %v2891
        %v2893 = vpop.xlane.xlu0 %2892
        %v2894 = vadd.f32 %v2852, %v2853
        %2895 = vadd.xlane.f32.xlu0 %v2894
        %v2896 = vpop.xlane.xlu0 %2895
        %v2897 = vadd.f32 %v2854, %v2855
        %2898 = vadd.xlane.f32.xlu0 %v2897
        %v2899 = vpop.xlane.xlu0 %2898
        %v2900 = vadd.f32 %v2856, %v2857
        %2901 = vadd.xlane.f32.xlu0 %v2900
        %v2902 = vpop.xlane.xlu0 %2901
        %v2903 = vadd.f32 %v2858, %v2859
        %2904 = vadd.xlane.f32.xlu0 %v2903
        %v2905 = vpop.xlane.xlu0 %2904
        %v2906 = vadd.f32 %v2860, %v2861
        %2907 = vadd.xlane.f32.xlu0 %v2906
        %v2908 = vpop.xlane.xlu0 %2907
        %v2909 = vadd.f32 %v2862, %v2863
        %2910 = vadd.xlane.f32.xlu0 %v2909
        %v2911 = vpop.xlane.xlu0 %2910
        %2912 = vrot.lane.b32.xlu0 %v810, 72
        %v2913 = vpop.permute.xlu0 %2912
        %2914 = vrot.lane.b32.xlu0 %v811, 72
        %v2915 = vpop.permute.xlu0 %2914
        %2916 = vrot.lane.b32.xlu0 %v812, 72
        %v2917 = vpop.permute.xlu0 %2916
        %2918 = vrot.lane.b32.xlu0 %v813, 72
        %v2919 = vpop.permute.xlu0 %2918
        %2920 = vrot.lane.b32.xlu0 %v814, 72
        %v2921 = vpop.permute.xlu0 %2920
        %2922 = vrot.lane.b32.xlu0 %v815, 72
        %v2923 = vpop.permute.xlu0 %2922
        %2924 = vrot.lane.b32.xlu0 %v816, 72
        %v2925 = vpop.permute.xlu0 %2924
        %2926 = vrot.lane.b32.xlu0 %v817, 72
        %v2927 = vpop.permute.xlu0 %2926
        %2928 = vrot.lane.b32.xlu0 %v818, 72
        %v2929 = vpop.permute.xlu0 %2928
        %2930 = vrot.lane.b32.xlu0 %v819, 72
        %v2931 = vpop.permute.xlu0 %2930
        %2932 = vrot.lane.b32.xlu0 %v820, 72
        %v2933 = vpop.permute.xlu0 %2932
        %2934 = vrot.lane.b32.xlu0 %v821, 72
        %v2935 = vpop.permute.xlu0 %2934
        %2936 = vrot.lane.b32.xlu0 %v822, 72
        %v2937 = vpop.permute.xlu0 %2936
        %2938 = vrot.lane.b32.xlu0 %v823, 72
        %v2939 = vpop.permute.xlu0 %2938
        %2940 = vrot.lane.b32.xlu0 %v824, 72
        %v2941 = vpop.permute.xlu0 %2940
        %2942 = vrot.lane.b32.xlu0 %v825, 72
        %v2943 = vpop.permute.xlu0 %2942
        %2960 = vmatprep.subr.bf16.mxu0 0
        %2961 = vmatpush1.bf16.msra.mxu0 %v2927
        %2962 = vmatprep.subr.bf16.mxu0 0
        %2963 = vmatpush1.bf16.msra.mxu0 %v2925
        %2964 = vmatprep.subr.bf16.mxu0 0
        %2965 = vmatpush1.bf16.msra.mxu0 %v2923
        %2966 = vmatprep.subr.bf16.mxu0 0
        %2967 = vmatpush1.bf16.msra.mxu0 %v2921
        %2968 = vmatprep.subr.bf16.mxu0 0
        %2969 = vmatpush1.bf16.msra.mxu0 %v2919
        %2970 = vmatprep.subr.bf16.mxu0 0
        %2971 = vmatpush1.bf16.msra.mxu0 %v2917
        %2972 = vmatprep.subr.bf16.mxu0 0
        %2973 = vmatpush1.bf16.msra.mxu0 %v2915
        %2974 = vmatprep.subr.bf16.mxu0 0
        %2975 = vmatpush1.bf16.msra.mxu0 %v2913
        %2976 = vmatprep.subr.bf16.mxu0 0
        %2977 = vmatpush2.bf16.msra.mxu0 %v2943
        %2978 = vmatprep.subr.bf16.mxu0 0
        %2979 = vmatpush2.bf16.msra.mxu0 %v2941
        %2980 = vmatprep.subr.bf16.mxu0 0
        %2981 = vmatpush2.bf16.msra.mxu0 %v2939
        %2982 = vmatprep.subr.bf16.mxu0 0
        %2983 = vmatpush2.bf16.msra.mxu0 %v2937
        %2984 = vmatprep.subr.bf16.mxu0 0
        %2985 = vmatpush2.bf16.msra.mxu0 %v2935
        %2986 = vmatprep.subr.bf16.mxu0 0
        %2987 = vmatpush2.bf16.msra.mxu0 %v2933
        %2988 = vmatprep.subr.bf16.mxu0 0
        %2989 = vmatpush2.bf16.msra.mxu0 %v2931
        %2990 = vmatprep.subr.bf16.mxu0 0
        %2991 = vmatpush2.bf16.msra.mxu0 %v2929
        %2992 = vmatprep.mubr.bf16.mxu0 %v2789
        %2993 = vmatmul.mubr.bf16.gmra.mxu0 %v2786
        %v2994 = vpop.f32.mrf.mxu0
        %v2995 = vadd.f32 0.0, %v2994
        %v2996 = vpop.f32.mrf.mxu0
        %v2997 = vpop.f32.mrf.mxu0
        %v2998 = vadd.f32 0.0, %v2997
        %v2999 = vpop.f32.mrf.mxu0
        %3000 = vmatprep.mubr.bf16.mxu0 %v2795
        %3001 = vmatmul.mubr.bf16.gmra.mxu0 %v2792
        %v3002 = vpop.f32.mrf.mxu0
        %v3003 = vadd.f32 0.0, %v3002
        %v3004 = vpop.f32.mrf.mxu0
        %v3005 = vpop.f32.mrf.mxu0
        %v3006 = vadd.f32 0.0, %v3005
        %v3007 = vpop.f32.mrf.mxu0
        %3008 = vmatprep.mubr.bf16.mxu0 %v2801
        %3009 = vmatmul.mubr.bf16.gmra.mxu0 %v2798
        %v3010 = vpop.f32.mrf.mxu0
        %v3011 = vadd.f32 0.0, %v3010
        %v3012 = vpop.f32.mrf.mxu0
        %v3013 = vpop.f32.mrf.mxu0
        %v3014 = vadd.f32 0.0, %v3013
        %v3015 = vpop.f32.mrf.mxu0
        %3016 = vmatprep.mubr.bf16.mxu0 %v2807
        %3017 = vmatmul.mubr.bf16.gmra.mxu0 %v2804
        %v3018 = vpop.f32.mrf.mxu0
        %v3019 = vadd.f32 0.0, %v3018
        %v3020 = vpop.f32.mrf.mxu0
        %v3021 = vpop.f32.mrf.mxu0
        %v3022 = vadd.f32 0.0, %v3021
        %v3023 = vpop.f32.mrf.mxu0
        %3024 = vmatprep.mubr.bf16.mxu0 %v2813
        %3025 = vmatmul.mubr.bf16.gmra.mxu0 %v2810
        %v3026 = vpop.f32.mrf.mxu0
        %v3027 = vadd.f32 0.0, %v3026
        %v3028 = vpop.f32.mrf.mxu0
        %v3029 = vpop.f32.mrf.mxu0
        %v3030 = vadd.f32 0.0, %v3029
        %v3031 = vpop.f32.mrf.mxu0
        %3032 = vmatprep.mubr.bf16.mxu0 %v2819
        %3033 = vmatmul.mubr.bf16.gmra.mxu0 %v2816
        %v3034 = vpop.f32.mrf.mxu0
        %v3035 = vadd.f32 0.0, %v3034
        %v3036 = vpop.f32.mrf.mxu0
        %v3037 = vpop.f32.mrf.mxu0
        %v3038 = vadd.f32 0.0, %v3037
        %v3039 = vpop.f32.mrf.mxu0
        %3040 = vmatprep.mubr.bf16.mxu0 %v2825
        %3041 = vmatmul.mubr.bf16.gmra.mxu0 %v2822
        %v3042 = vpop.f32.mrf.mxu0
        %v3043 = vadd.f32 0.0, %v3042
        %v3044 = vpop.f32.mrf.mxu0
        %v3045 = vpop.f32.mrf.mxu0
        %v3046 = vadd.f32 0.0, %v3045
        %v3047 = vpop.f32.mrf.mxu0
        %3048 = vmatprep.mubr.bf16.mxu0 %v2831
        %3049 = vmatmul.mubr.bf16.gmra.mxu0 %v2828
        %v3050 = vpop.f32.mrf.mxu0
        %v3051 = vadd.f32 0.0, %v3050
        %v3052 = vpop.f32.mrf.mxu0
        %v3053 = vpop.f32.mrf.mxu0
        %v3054 = vadd.f32 0.0, %v3053
        %v3055 = vpop.f32.mrf.mxu0
        %3056 = vdwg.mxu0
        %v3057 = vrcp.pop %v2866
        %v3058 = vrcp.pop %v2869
        %v3059 = vrcp.pop %v2872
        %v3060 = vrcp.pop %v2875
        %v3061 = vrcp.pop %v2878
        %v3062 = vrcp.pop %v2881
        %v3063 = vrcp.pop %v2884
        %v3064 = vrcp.pop %v2887
        %v3065 = vrcp.pop %v2890
        %v3066 = vrcp.pop %v2893
        %v3067 = vrcp.pop %v2896
        %v3068 = vrcp.pop %v2899
        %v3069 = vrcp.pop %v2902
        %v3070 = vrcp.pop %v2905
        %v3071 = vrcp.pop %v2908
        %v3072 = vrcp.pop %v2911
        %v3073 = vmul.f32 %v2995, %v3057
        %v3074 = vmul.f32 %v2998, %v3058
        %v3075 = vmul.f32 %v3003, %v3059
        %v3076 = vmul.f32 %v3006, %v3060
        %v3077 = vmul.f32 %v3011, %v3061
        %v3078 = vmul.f32 %v3014, %v3062
        %v3079 = vmul.f32 %v3019, %v3063
        %v3080 = vmul.f32 %v3022, %v3064
        %v3081 = vmul.f32 %v3027, %v3065
        %v3082 = vmul.f32 %v3030, %v3066
        %v3083 = vmul.f32 %v3035, %v3067
        %v3084 = vmul.f32 %v3038, %v3068
        %v3085 = vmul.f32 %v3043, %v3069
        %v3086 = vmul.f32 %v3046, %v3070
        %v3087 = vmul.f32 %v3051, %v3071
        %v3088 = vmul.f32 %v3054, %v3072
        %3105 = vrot.lane.b32.xlu0 %v1949, 8
        %v3106 = vpop.permute.xlu0 %3105
        %3107 = vrot.lane.b32.xlu0 %v1950, 8
        %v3108 = vpop.permute.xlu0 %3107
        %3109 = vrot.lane.b32.xlu0 %v1951, 8
        %v3110 = vpop.permute.xlu0 %3109
        %3111 = vrot.lane.b32.xlu0 %v1952, 8
        %v3112 = vpop.permute.xlu0 %3111
        %3113 = vrot.lane.b32.xlu0 %v1953, 8
        %v3114 = vpop.permute.xlu0 %3113
        %3115 = vrot.lane.b32.xlu0 %v1954, 8
        %v3116 = vpop.permute.xlu0 %3115
        %3117 = vrot.lane.b32.xlu0 %v1955, 8
        %v3118 = vpop.permute.xlu0 %3117
        %3119 = vrot.lane.b32.xlu0 %v1956, 8
        %v3120 = vpop.permute.xlu0 %3119
        %3121 = vrot.lane.b32.xlu0 %v1957, 8
        %v3122 = vpop.permute.xlu0 %3121
        %3123 = vrot.lane.b32.xlu0 %v1958, 8
        %v3124 = vpop.permute.xlu0 %3123
        %3125 = vrot.lane.b32.xlu0 %v1959, 8
        %v3126 = vpop.permute.xlu0 %3125
        %3127 = vrot.lane.b32.xlu0 %v1960, 8
        %v3128 = vpop.permute.xlu0 %3127
        %3129 = vrot.lane.b32.xlu0 %v1961, 8
        %v3130 = vpop.permute.xlu0 %3129
        %3131 = vrot.lane.b32.xlu0 %v1962, 8
        %v3132 = vpop.permute.xlu0 %3131
        %3133 = vrot.lane.b32.xlu0 %v1963, 8
        %v3134 = vpop.permute.xlu0 %3133
        %3135 = vrot.lane.b32.xlu0 %v1964, 8
        %v3136 = vpop.permute.xlu0 %3135
        %3169 = vrot.lane.b32.xlu0 %v2509, 16
        %v3170 = vpop.permute.xlu0 %3169
        %3171 = vrot.lane.b32.xlu0 %v2510, 16
        %v3172 = vpop.permute.xlu0 %3171
        %3173 = vrot.lane.b32.xlu0 %v2511, 16
        %v3174 = vpop.permute.xlu0 %3173
        %3175 = vrot.lane.b32.xlu0 %v2512, 16
        %v3176 = vpop.permute.xlu0 %3175
        %3177 = vrot.lane.b32.xlu0 %v2513, 16
        %v3178 = vpop.permute.xlu0 %3177
        %3179 = vrot.lane.b32.xlu0 %v2514, 16
        %v3180 = vpop.permute.xlu0 %3179
        %3181 = vrot.lane.b32.xlu0 %v2515, 16
        %v3182 = vpop.permute.xlu0 %3181
        %3183 = vrot.lane.b32.xlu0 %v2516, 16
        %v3184 = vpop.permute.xlu0 %3183
        %3185 = vrot.lane.b32.xlu0 %v2517, 16
        %v3186 = vpop.permute.xlu0 %3185
        %3187 = vrot.lane.b32.xlu0 %v2518, 16
        %v3188 = vpop.permute.xlu0 %3187
        %3189 = vrot.lane.b32.xlu0 %v2519, 16
        %v3190 = vpop.permute.xlu0 %3189
        %3191 = vrot.lane.b32.xlu0 %v2520, 16
        %v3192 = vpop.permute.xlu0 %3191
        %3193 = vrot.lane.b32.xlu0 %v2521, 16
        %v3194 = vpop.permute.xlu0 %3193
        %3195 = vrot.lane.b32.xlu0 %v2522, 16
        %v3196 = vpop.permute.xlu0 %3195
        %3197 = vrot.lane.b32.xlu0 %v2523, 16
        %v3198 = vpop.permute.xlu0 %3197
        %3199 = vrot.lane.b32.xlu0 %v2524, 16
        %v3200 = vpop.permute.xlu0 %3199
        %3233 = vrot.lane.b32.xlu0 %v3073, 24
        %v3234 = vpop.permute.xlu0 %3233
        %3235 = vrot.lane.b32.xlu0 %v3074, 24
        %v3236 = vpop.permute.xlu0 %3235
        %3237 = vrot.lane.b32.xlu0 %v3075, 24
        %v3238 = vpop.permute.xlu0 %3237
        %3239 = vrot.lane.b32.xlu0 %v3076, 24
        %v3240 = vpop.permute.xlu0 %3239
        %3241 = vrot.lane.b32.xlu0 %v3077, 24
        %v3242 = vpop.permute.xlu0 %3241
        %3243 = vrot.lane.b32.xlu0 %v3078, 24
        %v3244 = vpop.permute.xlu0 %3243
        %3245 = vrot.lane.b32.xlu0 %v3079, 24
        %v3246 = vpop.permute.xlu0 %3245
        %3247 = vrot.lane.b32.xlu0 %v3080, 24
        %v3248 = vpop.permute.xlu0 %3247
        %3249 = vrot.lane.b32.xlu0 %v3081, 24
        %v3250 = vpop.permute.xlu0 %3249
        %3251 = vrot.lane.b32.xlu0 %v3082, 24
        %v3252 = vpop.permute.xlu0 %3251
        %3253 = vrot.lane.b32.xlu0 %v3083, 24
        %v3254 = vpop.permute.xlu0 %3253
        %3255 = vrot.lane.b32.xlu0 %v3084, 24
        %v3256 = vpop.permute.xlu0 %3255
        %3257 = vrot.lane.b32.xlu0 %v3085, 24
        %v3258 = vpop.permute.xlu0 %3257
        %3259 = vrot.lane.b32.xlu0 %v3086, 24
        %v3260 = vpop.permute.xlu0 %3259
        %3261 = vrot.lane.b32.xlu0 %v3087, 24
        %v3262 = vpop.permute.xlu0 %3261
        %3263 = vrot.lane.b32.xlu0 %v3088, 24
        %v3264 = vpop.permute.xlu0 %3263
        %v3281 = vsel %vm840, %v1385, %v3106
        %v3282 = vsel %vm840, %v1386, %v3108
        %v3283 = vsel %vm840, %v1387, %v3110
        %v3284 = vsel %vm840, %v1388, %v3112
        %v3285 = vsel %vm840, %v1389, %v3114
        %v3286 = vsel %vm840, %v1390, %v3116
        %v3287 = vsel %vm840, %v1391, %v3118
        %v3288 = vsel %vm840, %v1392, %v3120
        %v3289 = vsel %vm840, %v1393, %v3122
        %v3290 = vsel %vm840, %v1394, %v3124
        %v3291 = vsel %vm840, %v1395, %v3126
        %v3292 = vsel %vm840, %v1396, %v3128
        %v3293 = vsel %vm840, %v1397, %v3130
        %v3294 = vsel %vm840, %v1398, %v3132
        %v3295 = vsel %vm840, %v1399, %v3134
        %v3296 = vsel %vm840, %v1400, %v3136
        %vm3297 = vcmask 130048
        %v3298 = vsel %vm3297, %v3281, %v3170
        %v3299 = vsel %vm3297, %v3282, %v3172
        %v3300 = vsel %vm3297, %v3283, %v3174
        %v3301 = vsel %vm3297, %v3284, %v3176
        %v3302 = vsel %vm3297, %v3285, %v3178
        %v3303 = vsel %vm3297, %v3286, %v3180
        %v3304 = vsel %vm3297, %v3287, %v3182
        %v3305 = vsel %vm3297, %v3288, %v3184
        %v3306 = vsel %vm3297, %v3289, %v3186
        %v3307 = vsel %vm3297, %v3290, %v3188
        %v3308 = vsel %vm3297, %v3291, %v3190
        %v3309 = vsel %vm3297, %v3292, %v3192
        %v3310 = vsel %vm3297, %v3293, %v3194
        %v3311 = vsel %vm3297, %v3294, %v3196
        %v3312 = vsel %vm3297, %v3295, %v3198
        %v3313 = vsel %vm3297, %v3296, %v3200
        %vm3314 = vcmask 195584
        %v3315 = vsel %vm3314, %v3298, %v3234
        %v3316 = vsel %vm3314, %v3299, %v3236
        %v3317 = vsel %vm3314, %v3300, %v3238
        %v3318 = vsel %vm3314, %v3301, %v3240
        %v3319 = vsel %vm3314, %v3302, %v3242
        %v3320 = vsel %vm3314, %v3303, %v3244
        %v3321 = vsel %vm3314, %v3304, %v3246
        %v3322 = vsel %vm3314, %v3305, %v3248
        %v3323 = vsel %vm3314, %v3306, %v3250
        %v3324 = vsel %vm3314, %v3307, %v3252
        %v3325 = vsel %vm3314, %v3308, %v3254
        %v3326 = vsel %vm3314, %v3309, %v3256
        %v3327 = vsel %vm3314, %v3310, %v3258
        %v3328 = vsel %vm3314, %v3311, %v3260
        %v3329 = vsel %vm3314, %v3312, %v3262
        %v3330 = vsel %vm3314, %v3313, %v3264
        %3331 = vxpose.xlu0.b32.start [1/16] %v3315, 128
        %3332 = vxpose.xlu0.b32.cont [2/16] %v3316, 128
        %3333 = vxpose.xlu0.b32.cont [3/16] %v3317, 128
        %3334 = vxpose.xlu0.b32.cont [4/16] %v3318, 128
        %3335 = vxpose.xlu0.b32.cont [5/16] %v3319, 128
        %3336 = vxpose.xlu0.b32.cont [6/16] %v3320, 128
        %3337 = vxpose.xlu0.b32.cont [7/16] %v3321, 128
        %3338 = vxpose.xlu0.b32.cont [8/16] %v3322, 128
        %3339 = vxpose.xlu0.b32.cont [9/16] %v3323, 128
        %3340 = vxpose.xlu0.b32.cont [10/16] %v3324, 128
        %3341 = vxpose.xlu0.b32.cont [11/16] %v3325, 128
        %3342 = vxpose.xlu0.b32.cont [12/16] %v3326, 128
        %3343 = vxpose.xlu0.b32.cont [13/16] %v3327, 128
        %3344 = vxpose.xlu0.b32.cont [14/16] %v3328, 128
        %3345 = vxpose.xlu0.b32.cont [15/16] %v3329, 128
        %3346 = vxpose.xlu0.b32.end [16/16] %v3330, 128
        %v3347 = vpop.trf.xlu0
        %v3348 = vpop.trf.xlu0
        %v3349 = vpop.trf.xlu0
        %v3350 = vpop.trf.xlu0
        %v3351 = vpop.trf.xlu0
        %v3352 = vpop.trf.xlu0
        %v3353 = vpop.trf.xlu0
        %v3354 = vpop.trf.xlu0
        %v3355 = vpop.trf.xlu0
        %v3356 = vpop.trf.xlu0
        %v3357 = vpop.trf.xlu0
        %v3358 = vpop.trf.xlu0
        %v3359 = vpop.trf.xlu0
        %v3360 = vpop.trf.xlu0
        %v3361 = vpop.trf.xlu0
        %v3362 = vpop.trf.xlu0
        %v3363 = vpack.c.bf16 %v3348, %v3347
        %v3364 = vpack.c.bf16 %v3350, %v3349
        %3365 = vset.pattern.permute.xlu0 2
        %3366 = vperm.xlu0 %3365, %v332
        %v3367 = vpop.permute.xlu0 %3366
        %3370 = vset.pattern.permute.xlu0 2
        %3371 = vperm.xlu0 %3370, %v333
        %v3372 = vpop.permute.xlu0 %3371
        %3375 = vset.pattern.permute.xlu0 2
        %3376 = vperm.xlu0 %3375, %v334
        %v3377 = vpop.permute.xlu0 %3376
        %3380 = vset.pattern.permute.xlu0 2
        %3381 = vperm.xlu0 %3380, %v335
        %v3382 = vpop.permute.xlu0 %3381
        %v3388 = vunpack.c.l.b16 %v826
        %v3389 = vunpack.c.l.b16 %v827
        %v3390 = vunpack.c.l.b16 %v828
        %v3391 = vunpack.c.l.b16 %v829
        %v3392 = vpack.c.b16 %v3389, %v3388
        %v3393 = vpack.c.b16 %v3391, %v3390
        %vm3394 = vcmask 261120
        %v3396 = vsel %vm3394, %v3392, 0
        %v3399 = vsel %vm3394, %v3393, 0
        %3401 = vmatprep.subr.bf16.mxu0 0
        %3402 = vmatpush1.bf16.msra.mxu0 0
        %3403 = vmatprep.subr.bf16.mxu0 0
        %3404 = vmatpush1.bf16.msra.mxu0 0
        %3405 = vmatprep.subr.bf16.mxu0 0
        %3406 = vmatpush1.bf16.msra.mxu0 0
        %3407 = vmatprep.subr.bf16.mxu0 0
        %3408 = vmatpush1.bf16.msra.mxu0 0
        %3409 = vmatprep.subr.bf16.mxu0 0
        %3410 = vmatpush1.bf16.msra.mxu0 0
        %3411 = vmatprep.subr.bf16.mxu0 0
        %3412 = vmatpush1.bf16.msra.mxu0 0
        %3413 = vmatprep.subr.bf16.mxu0 0
        %3414 = vmatpush1.bf16.msra.mxu0 %v3364
        %3415 = vmatprep.subr.bf16.mxu0 0
        %3416 = vmatpush1.bf16.msra.mxu0 %v3363
        %3417 = vmatprep.subr.bf16.mxu0 0
        %3418 = vmatpush2.bf16.msra.mxu0 0
        %3419 = vmatprep.subr.bf16.mxu0 0
        %3420 = vmatpush2.bf16.msra.mxu0 0
        %3421 = vmatprep.subr.bf16.mxu0 0
        %3422 = vmatpush2.bf16.msra.mxu0 0
        %3423 = vmatprep.subr.bf16.mxu0 0
        %3424 = vmatpush2.bf16.msra.mxu0 0
        %3425 = vmatprep.subr.bf16.mxu0 0
        %3426 = vmatpush2.bf16.msra.mxu0 0
        %3427 = vmatprep.subr.bf16.mxu0 0
        %3428 = vmatpush2.bf16.msra.mxu0 0
        %3429 = vmatprep.subr.bf16.mxu0 0
        %3430 = vmatpush2.bf16.msra.mxu0 0
        %3431 = vmatprep.subr.bf16.mxu0 0
        %3432 = vmatpush2.bf16.msra.mxu0 0
        %3433 = vmatprep.mubr.bf16.mxu0 0
        %3434 = vmatmul.mubr.bf16.gmra.mxu0 %v3396
        %v3435 = vpop.f32.mrf.mxu0
        %v3436 = vadd.f32 %v3367, %v3435
        %v3437 = vpop.f32.mrf.mxu0
        %v3438 = vpop.f32.mrf.mxu0
        %v3439 = vadd.f32 %v3372, %v3438
        %v3440 = vpop.f32.mrf.mxu0
        %3441 = vmatprep.mubr.bf16.mxu0 0
        %3442 = vmatmul.mubr.bf16.gmra.mxu0 %v3399
        %v3443 = vpop.f32.mrf.mxu0
        %v3444 = vadd.f32 %v3377, %v3443
        %v3445 = vpop.f32.mrf.mxu0
        %v3446 = vpop.f32.mrf.mxu0
        %v3447 = vadd.f32 %v3382, %v3446
        %v3448 = vpop.f32.mrf.mxu0
        %3449 = vdwg.mxu0
        %v3450 = vadd.f32 %v3436, %v3439
        %v3451 = vadd.f32 %v3450, %v3444
        %v3452 = vadd.f32 %v3451, %v3447
        %v3453 = vrot.slane %v3452, 4
        %v3454 = vadd.f32 %v3452, %v3453
        %v3455 = vrot.slane %v3454, 2
        %v3456 = vadd.f32 %v3454, %v3455
        %v3457 = vrot.slane %v3456, 1
        %v3458 = vadd.f32 %v3456, %v3457
        %v3459 = vrcp.pop 32.0
        %v3460 = vmul.f32 %v3458, %v3459
        %v3461 = vsub.f32 %v3436, %v3460
        %v3462 = vsub.f32 %v3439, %v3460
        %v3463 = vsub.f32 %v3444, %v3460
        %v3464 = vsub.f32 %v3447, %v3460
        %v3465 = vmul.f32 %v3461, %v3461
        %v3466 = vmul.f32 %v3462, %v3462
        %v3467 = vmul.f32 %v3463, %v3463
        %v3468 = vmul.f32 %v3464, %v3464
        %v3469 = vadd.f32 %v3465, %v3466
        %v3470 = vadd.f32 %v3469, %v3467
        %v3471 = vadd.f32 %v3470, %v3468
        %v3472 = vrot.slane %v3471, 4
        %v3473 = vadd.f32 %v3471, %v3472
        %v3474 = vrot.slane %v3473, 2
        %v3475 = vadd.f32 %v3473, %v3474
        %v3476 = vrot.slane %v3475, 1
        %v3477 = vadd.f32 %v3475, %v3476
        %v3478 = vmul.f32 %v3477, %v3459
        %v3479 = vadd.f32 %v3478, 1e-05
        %v3480 = vrsqrt.pop %v3479
        %v3481 = vmul.f32 %v3461, %v3480
        %v3482 = vmul.f32 %v3462, %v3480
        %v3483 = vmul.f32 %v3463, %v3480
        %v3484 = vmul.f32 %v3464, %v3480
        %3485 = vset.pattern.permute.xlu0 3
        %3486 = vperm.xlu0 %3485, %v332
        %v3487 = vpop.permute.xlu0 %3486
        %3489 = vset.pattern.permute.xlu0 3
        %3490 = vperm.xlu0 %3489, %v333
        %v3491 = vpop.permute.xlu0 %3490
        %3493 = vset.pattern.permute.xlu0 3
        %3494 = vperm.xlu0 %3493, %v334
        %v3495 = vpop.permute.xlu0 %3494
        %3497 = vset.pattern.permute.xlu0 3
        %3498 = vperm.xlu0 %3497, %v335
        %v3499 = vpop.permute.xlu0 %3498
        %v3501 = vmul.f32 %v3481, %v3487
        %v3502 = vmul.f32 %v3482, %v3491
        %v3503 = vmul.f32 %v3483, %v3495
        %v3504 = vmul.f32 %v3484, %v3499
        %3505 = vset.pattern.permute.xlu0 4
        %3506 = vperm.xlu0 %3505, %v332
        %v3507 = vpop.permute.xlu0 %3506
        %3509 = vset.pattern.permute.xlu0 4
        %3510 = vperm.xlu0 %3509, %v333
        %v3511 = vpop.permute.xlu0 %3510
        %3513 = vset.pattern.permute.xlu0 4
        %3514 = vperm.xlu0 %3513, %v334
        %v3515 = vpop.permute.xlu0 %3514
        %3517 = vset.pattern.permute.xlu0 4
        %3518 = vperm.xlu0 %3517, %v335
        %v3519 = vpop.permute.xlu0 %3518
        %v3521 = vadd.f32 %v3501, %v3507
        %v3522 = vadd.f32 %v3502, %v3511
        %v3523 = vadd.f32 %v3503, %v3515
        %v3524 = vadd.f32 %v3504, %v3519
        %v3525 = vmax.f32 %v3521, 0.0
        %v3526 = vmax.f32 %v3522, 0.0
        %v3527 = vmax.f32 %v3523, 0.0
        %v3528 = vmax.f32 %v3524, 0.0
        %3529 = vset.pattern.permute.xlu0 5
        %3530 = vperm.xlu0 %3529, %v332
        %v3531 = vpop.permute.xlu0 %3530
        %3533 = vset.pattern.permute.xlu0 5
        %3534 = vperm.xlu0 %3533, %v333
        %v3535 = vpop.permute.xlu0 %3534
        %3537 = vset.pattern.permute.xlu0 5
        %3538 = vperm.xlu0 %3537, %v334
        %v3539 = vpop.permute.xlu0 %3538
        %3541 = vset.pattern.permute.xlu0 5
        %3542 = vperm.xlu0 %3541, %v335
        %v3543 = vpop.permute.xlu0 %3542
        %v3549 = vunpack.c.l.b16 %v830
        %v3550 = vunpack.c.l.b16 %v831
        %v3551 = vunpack.c.l.b16 %v832
        %v3552 = vunpack.c.l.b16 %v833
        %v3553 = vpack.c.b16 %v3550, %v3549
        %v3554 = vpack.c.b16 %v3552, %v3551
        %v3556 = vsel %vm519, %v3553, 0
        %v3559 = vsel %vm519, %v3554, 0
        %v3562 = vsel %vm526, %v340, 0
        %3564 = vmatprep.subr.bf16.mxu0 0
        %3565 = vmatpush1.bf16.msra.mxu0 0
        %3566 = vmatprep.subr.bf16.mxu0 0
        %3567 = vmatpush1.bf16.msra.mxu0 0
        %3568 = vmatprep.subr.bf16.mxu0 0
        %3569 = vmatpush1.bf16.msra.mxu0 0
        %3570 = vmatprep.subr.bf16.mxu0 0
        %3571 = vmatpush1.bf16.msra.mxu0 0
        %3572 = vmatprep.subr.bf16.mxu0 0
        %3573 = vmatpush1.bf16.msra.mxu0 0
        %3574 = vmatprep.subr.bf16.mxu0 0
        %3575 = vmatpush1.bf16.msra.mxu0 0
        %3576 = vmatprep.subr.bf16.mxu0 0
        %3577 = vmatpush1.bf16.msra.mxu0 0
        %3578 = vmatprep.subr.bf16.mxu0 0
        %3579 = vmatpush1.bf16.msra.mxu0 %v3562
        %3580 = vmatprep.subr.bf16.mxu0 0
        %3581 = vmatpush2.bf16.msra.mxu0 0
        %3582 = vmatprep.subr.bf16.mxu0 0
        %3583 = vmatpush2.bf16.msra.mxu0 0
        %3584 = vmatprep.subr.bf16.mxu0 0
        %3585 = vmatpush2.bf16.msra.mxu0 0
        %3586 = vmatprep.subr.bf16.mxu0 0
        %3587 = vmatpush2.bf16.msra.mxu0 0
        %3588 = vmatprep.subr.bf16.mxu0 0
        %3589 = vmatpush2.bf16.msra.mxu0 0
        %3590 = vmatprep.subr.bf16.mxu0 0
        %3591 = vmatpush2.bf16.msra.mxu0 0
        %3592 = vmatprep.subr.bf16.mxu0 0
        %3593 = vmatpush2.bf16.msra.mxu0 0
        %3594 = vmatprep.subr.bf16.mxu0 0
        %3595 = vmatpush2.bf16.msra.mxu0 0
        %3596 = vmatprep.mubr.bf16.mxu0 0
        %3597 = vmatmul.mubr.bf16.gmra.mxu0 %v3556
        %v3598 = vpop.f32.mrf.mxu0
        %v3599 = vadd.f32 %v3531, %v3598
        %v3600 = vpop.f32.mrf.mxu0
        %v3601 = vpop.f32.mrf.mxu0
        %v3602 = vadd.f32 %v3535, %v3601
        %v3603 = vpop.f32.mrf.mxu0
        %3604 = vmatprep.mubr.bf16.mxu0 0
        %3605 = vmatmul.mubr.bf16.gmra.mxu0 %v3559
        %v3606 = vpop.f32.mrf.mxu0
        %v3607 = vadd.f32 %v3539, %v3606
        %v3608 = vpop.f32.mrf.mxu0
        %v3609 = vpop.f32.mrf.mxu0
        %v3610 = vadd.f32 %v3543, %v3609
        %v3611 = vpop.f32.mrf.mxu0
        %3612 = vdwg.mxu0
        %v3613 = vadd.f32 %v3525, %v3599
        %v3614 = vadd.f32 %v3526, %v3602
        %v3615 = vadd.f32 %v3527, %v3607
        %v3616 = vadd.f32 %v3528, %v3610
        %v3617 = vpack.c.bf16 %v3614, %v3613
        %v3618 = vpack.c.bf16 %v3616, %v3615
        %3619 = vset.pattern.permute.xlu0 6
        %3620 = vperm.xlu0 %3619, %v332
        %v3621 = vpop.permute.xlu0 %3620
        %3623 = vset.pattern.permute.xlu0 6
        %3624 = vperm.xlu0 %3623, %v333
        %v3625 = vpop.permute.xlu0 %3624
        %v3629 = vunpack.c.l.b16 %v834
        %v3630 = vunpack.c.l.b16 %v835
        %v3631 = vpack.c.b16 %v3630, %v3629
        %v3633 = vsel %vm3394, %v3631, 0
        %3635 = vmatprep.subr.bf16.mxu0 0
        %3636 = vmatpush1.bf16.msra.mxu0 0
        %3637 = vmatprep.subr.bf16.mxu0 0
        %3638 = vmatpush1.bf16.msra.mxu0 0
        %3639 = vmatprep.subr.bf16.mxu0 0
        %3640 = vmatpush1.bf16.msra.mxu0 0
        %3641 = vmatprep.subr.bf16.mxu0 0
        %3642 = vmatpush1.bf16.msra.mxu0 0
        %3643 = vmatprep.subr.bf16.mxu0 0
        %3644 = vmatpush1.bf16.msra.mxu0 0
        %3645 = vmatprep.subr.bf16.mxu0 0
        %3646 = vmatpush1.bf16.msra.mxu0 0
        %3647 = vmatprep.subr.bf16.mxu0 0
        %3648 = vmatpush1.bf16.msra.mxu0 %v3618
        %3649 = vmatprep.subr.bf16.mxu0 0
        %3650 = vmatpush1.bf16.msra.mxu0 %v3617
        %3651 = vmatprep.subr.bf16.mxu0 0
        %3652 = vmatpush2.bf16.msra.mxu0 0
        %3653 = vmatprep.subr.bf16.mxu0 0
        %3654 = vmatpush2.bf16.msra.mxu0 0
        %3655 = vmatprep.subr.bf16.mxu0 0
        %3656 = vmatpush2.bf16.msra.mxu0 0
        %3657 = vmatprep.subr.bf16.mxu0 0
        %3658 = vmatpush2.bf16.msra.mxu0 0
        %3659 = vmatprep.subr.bf16.mxu0 0
        %3660 = vmatpush2.bf16.msra.mxu0 0
        %3661 = vmatprep.subr.bf16.mxu0 0
        %3662 = vmatpush2.bf16.msra.mxu0 0
        %3663 = vmatprep.subr.bf16.mxu0 0
        %3664 = vmatpush2.bf16.msra.mxu0 0
        %3665 = vmatprep.subr.bf16.mxu0 0
        %3666 = vmatpush2.bf16.msra.mxu0 0
        %3667 = vmatprep.mubr.bf16.mxu0 0
        %3668 = vmatmul.mubr.bf16.gmra.mxu0 %v3633
        %v3669 = vpop.f32.mrf.mxu0
        %v3670 = vadd.f32 %v3621, %v3669
        %v3671 = vpop.f32.mrf.mxu0
        %v3672 = vpop.f32.mrf.mxu0
        %v3673 = vadd.f32 %v3625, %v3672
        %v3674 = vpop.f32.mrf.mxu0
        %3675 = vdwg.mxu0
        %v3676 = vadd.f32 %v3670, %v3673
        %v3677 = vrot.slane %v3676, 4
        %v3678 = vadd.f32 %v3676, %v3677
        %v3679 = vrot.slane %v3678, 2
        %v3680 = vadd.f32 %v3678, %v3679
        %v3681 = vrot.slane %v3680, 1
        %v3682 = vadd.f32 %v3680, %v3681
        %v3683 = vrcp.pop 16.0
        %v3684 = vmul.f32 %v3682, %v3683
        %v3685 = vsub.f32 %v3670, %v3684
        %v3686 = vsub.f32 %v3673, %v3684
        %v3687 = vmul.f32 %v3685, %v3685
        %v3688 = vmul.f32 %v3686, %v3686
        %v3689 = vadd.f32 %v3687, %v3688
        %v3690 = vrot.slane %v3689, 4
        %v3691 = vadd.f32 %v3689, %v3690
        %v3692 = vrot.slane %v3691, 2
        %v3693 = vadd.f32 %v3691, %v3692
        %v3694 = vrot.slane %v3693, 1
        %v3695 = vadd.f32 %v3693, %v3694
        %v3696 = vmul.f32 %v3695, %v3683
        %v3697 = vadd.f32 %v3696, 1e-05
        %v3698 = vrsqrt.pop %v3697
        %v3699 = vmul.f32 %v3685, %v3698
        %v3700 = vmul.f32 %v3686, %v3698
        %3701 = vset.pattern.permute.xlu0 7
        %3702 = vperm.xlu0 %3701, %v332
        %v3703 = vpop.permute.xlu0 %3702
        %3705 = vset.pattern.permute.xlu0 7
        %3706 = vperm.xlu0 %3705, %v333
        %v3707 = vpop.permute.xlu0 %3706
        %v3709 = vmul.f32 %v3699, %v3703
        %v3710 = vmul.f32 %v3700, %v3707
        %3711 = vset.pattern.permute.xlu0 8
        %3712 = vperm.xlu0 %3711, %v332
        %v3713 = vpop.permute.xlu0 %3712
        %3715 = vset.pattern.permute.xlu0 8
        %3716 = vperm.xlu0 %3715, %v333
        %v3717 = vpop.permute.xlu0 %3716
        %v3719 = vadd.f32 %v3709, %v3713
        %v3720 = vadd.f32 %v3710, %v3717
        %v3721 = vmax.f32 %v3719, 0.0
        %v3722 = vmax.f32 %v3720, 0.0
        %v3723 = vpack.c.bf16 %v3722, %v3721
        %3724 = vset.pattern.permute.xlu0 9
        %3725 = vperm.xlu0 %3724, %v332
        %v3726 = vpop.permute.xlu0 %3725
        %3728 = vset.pattern.permute.xlu0 9
        %3729 = vperm.xlu0 %3728, %v333
        %v3730 = vpop.permute.xlu0 %3729
        %3732 = vset.pattern.permute.xlu0 9
        %3733 = vperm.xlu0 %3732, %v334
        %v3734 = vpop.permute.xlu0 %3733
        %3736 = vset.pattern.permute.xlu0 9
        %3737 = vperm.xlu0 %3736, %v335
        %v3738 = vpop.permute.xlu0 %3737
        %v3744 = vunpack.c.l.b16 %v836
        %v3745 = vunpack.c.l.b16 %v837
        %v3746 = vunpack.c.l.b16 %v838
        %v3747 = vunpack.c.l.b16 %v839
        %v3748 = vpack.c.b16 %v3745, %v3744
        %v3749 = vpack.c.b16 %v3747, %v3746
        %v3751 = vsel %vm3297, %v3748, 0
        %v3754 = vsel %vm3297, %v3749, 0
        %3756 = vmatprep.subr.bf16.mxu0 0
        %3757 = vmatpush1.bf16.msra.mxu0 0
        %3758 = vmatprep.subr.bf16.mxu0 0
        %3759 = vmatpush1.bf16.msra.mxu0 0
        %3760 = vmatprep.subr.bf16.mxu0 0
        %3761 = vmatpush1.bf16.msra.mxu0 0
        %3762 = vmatprep.subr.bf16.mxu0 0
        %3763 = vmatpush1.bf16.msra.mxu0 0
        %3764 = vmatprep.subr.bf16.mxu0 0
        %3765 = vmatpush1.bf16.msra.mxu0 0
        %3766 = vmatprep.subr.bf16.mxu0 0
        %3767 = vmatpush1.bf16.msra.mxu0 0
        %3768 = vmatprep.subr.bf16.mxu0 0
        %3769 = vmatpush1.bf16.msra.mxu0 0
        %3770 = vmatprep.subr.bf16.mxu0 0
        %3771 = vmatpush1.bf16.msra.mxu0 %v3723
        %3772 = vmatprep.subr.bf16.mxu0 0
        %3773 = vmatpush2.bf16.msra.mxu0 0
        %3774 = vmatprep.subr.bf16.mxu0 0
        %3775 = vmatpush2.bf16.msra.mxu0 0
        %3776 = vmatprep.subr.bf16.mxu0 0
        %3777 = vmatpush2.bf16.msra.mxu0 0
        %3778 = vmatprep.subr.bf16.mxu0 0
        %3779 = vmatpush2.bf16.msra.mxu0 0
        %3780 = vmatprep.subr.bf16.mxu0 0
        %3781 = vmatpush2.bf16.msra.mxu0 0
        %3782 = vmatprep.subr.bf16.mxu0 0
        %3783 = vmatpush2.bf16.msra.mxu0 0
        %3784 = vmatprep.subr.bf16.mxu0 0
        %3785 = vmatpush2.bf16.msra.mxu0 0
        %3786 = vmatprep.subr.bf16.mxu0 0
        %3787 = vmatpush2.bf16.msra.mxu0 0
        %3788 = vmatprep.mubr.bf16.mxu0 0
        %3789 = vmatmul.mubr.bf16.gmra.mxu0 %v3751
        %v3790 = vpop.f32.mrf.mxu0
        %v3791 = vadd.f32 %v3726, %v3790
        %v3792 = vpop.f32.mrf.mxu0
        %v3793 = vpop.f32.mrf.mxu0
        %v3794 = vadd.f32 %v3730, %v3793
        %v3795 = vpop.f32.mrf.mxu0
        %3796 = vmatprep.mubr.bf16.mxu0 0
        %3797 = vmatmul.mubr.bf16.gmra.mxu0 %v3754
        %v3798 = vpop.f32.mrf.mxu0
        %v3799 = vadd.f32 %v3734, %v3798
        %v3800 = vpop.f32.mrf.mxu0
        %v3801 = vpop.f32.mrf.mxu0
        %v3802 = vadd.f32 %v3738, %v3801
        %v3803 = vpop.f32.mrf.mxu0
        %3804 = vdwg.mxu0
        %v3805 = vadd.f32 %v3791, %v3794
        %v3806 = vadd.f32 %v3805, %v3799
        %v3807 = vadd.f32 %v3806, %v3802
        %v3808 = vrot.slane %v3807, 4
        %v3809 = vadd.f32 %v3807, %v3808
        %v3810 = vrot.slane %v3809, 2
        %v3811 = vadd.f32 %v3809, %v3810
        %v3812 = vrot.slane %v3811, 1
        %v3813 = vadd.f32 %v3811, %v3812
        %v3814 = vmul.f32 %v3813, %v3459
        %v3815 = vsub.f32 %v3791, %v3814
        %v3816 = vsub.f32 %v3794, %v3814
        %v3817 = vsub.f32 %v3799, %v3814
        %v3818 = vsub.f32 %v3802, %v3814
        %v3819 = vmul.f32 %v3815, %v3815
        %v3820 = vmul.f32 %v3816, %v3816
        %v3821 = vmul.f32 %v3817, %v3817
        %v3822 = vmul.f32 %v3818, %v3818
        %v3823 = vadd.f32 %v3819, %v3820
        %v3824 = vadd.f32 %v3823, %v3821
        %v3825 = vadd.f32 %v3824, %v3822
        %v3826 = vrot.slane %v3825, 4
        %v3827 = vadd.f32 %v3825, %v3826
        %v3828 = vrot.slane %v3827, 2
        %v3829 = vadd.f32 %v3827, %v3828
        %v3830 = vrot.slane %v3829, 1
        %v3831 = vadd.f32 %v3829, %v3830
        %v3832 = vmul.f32 %v3831, %v3459
        %v3833 = vadd.f32 %v3832, 1e-05
        %v3834 = vrsqrt.pop %v3833
        %v3835 = vmul.f32 %v3815, %v3834
        %v3836 = vmul.f32 %v3816, %v3834
        %v3837 = vmul.f32 %v3817, %v3834
        %v3838 = vmul.f32 %v3818, %v3834
        %3839 = vset.pattern.permute.xlu0 10
        %3840 = vperm.xlu0 %3839, %v332
        %v3841 = vpop.permute.xlu0 %3840
        %3843 = vset.pattern.permute.xlu0 10
        %3844 = vperm.xlu0 %3843, %v333
        %v3845 = vpop.permute.xlu0 %3844
        %3847 = vset.pattern.permute.xlu0 10
        %3848 = vperm.xlu0 %3847, %v334
        %v3849 = vpop.permute.xlu0 %3848
        %3851 = vset.pattern.permute.xlu0 10
        %3852 = vperm.xlu0 %3851, %v335
        %v3853 = vpop.permute.xlu0 %3852
        %v3855 = vmul.f32 %v3835, %v3841
        %v3856 = vmul.f32 %v3836, %v3845
        %v3857 = vmul.f32 %v3837, %v3849
        %v3858 = vmul.f32 %v3838, %v3853
        %3859 = vset.pattern.permute.xlu0 11
        %3860 = vperm.xlu0 %3859, %v332
        %v3861 = vpop.permute.xlu0 %3860
        %3863 = vset.pattern.permute.xlu0 11
        %3864 = vperm.xlu0 %3863, %v333
        %v3865 = vpop.permute.xlu0 %3864
        %3867 = vset.pattern.permute.xlu0 11
        %3868 = vperm.xlu0 %3867, %v334
        %v3869 = vpop.permute.xlu0 %3868
        %3871 = vset.pattern.permute.xlu0 11
        %3872 = vperm.xlu0 %3871, %v335
        %v3873 = vpop.permute.xlu0 %3872
        %v3875 = vadd.f32 %v3855, %v3861
        %v3876 = vadd.f32 %v3856, %v3865
        %v3877 = vadd.f32 %v3857, %v3869
        %v3878 = vadd.f32 %v3858, %v3873
        %v3879 = vadd.f32 %v3875, %v3613
        %v3880 = vadd.f32 %v3876, %v3614
        %v3881 = vadd.f32 %v3877, %v3615
        %v3882 = vadd.f32 %v3878, %v3616
        %3883 = vst [vmem:[%s325] sm:$0xff] %v3879
        %3884 = vst [vmem:[%s325 + $0x10] sm:$0xff] %v3880
        %3885 = vst [vmem:[%s325 + $0x20] sm:$0xff] %v3881
        %3886 = vst [vmem:[%s325 + $0x30] sm:$0xff] %v3882
        %v3888 = vsel %vm840, %v818, 0
        %v3891 = vsel %vm840, %v819, 0
        %v3894 = vsel %vm840, %v820, 0
        %v3897 = vsel %vm840, %v821, 0
        %v3900 = vsel %vm840, %v822, 0
        %v3903 = vsel %vm840, %v823, 0
        %v3906 = vsel %vm840, %v824, 0
        %v3909 = vsel %vm840, %v825, 0
        %3911 = vmatprep.subr.bf16.mxu0 0
        %3912 = vmatpush1.bf16.msra.mxu0 0
        %3913 = vmatprep.subr.bf16.mxu0 0
        %3914 = vmatpush1.bf16.msra.mxu0 0
        %3915 = vmatprep.subr.bf16.mxu0 0
        %3916 = vmatpush1.bf16.msra.mxu0 0
        %3917 = vmatprep.subr.bf16.mxu0 0
        %3918 = vmatpush1.bf16.msra.mxu0 0
        %3919 = vmatprep.subr.bf16.mxu0 0
        %3920 = vmatpush1.bf16.msra.mxu0 0
        %3921 = vmatprep.subr.bf16.mxu0 0
        %3922 = vmatpush1.bf16.msra.mxu0 0
        %3923 = vmatprep.subr.bf16.mxu0 0
        %3924 = vmatpush1.bf16.msra.mxu0 0
        %3925 = vmatprep.subr.bf16.mxu0 %v869
        %3926 = vmatpush1.bf16.msra.mxu0 %v866
        %3927 = vmatprep.subr.bf16.mxu0 0
        %3928 = vmatpush2.bf16.msra.mxu0 0
        %3929 = vmatprep.subr.bf16.mxu0 0
        %3930 = vmatpush2.bf16.msra.mxu0 0
        %3931 = vmatprep.subr.bf16.mxu0 0
        %3932 = vmatpush2.bf16.msra.mxu0 0
        %3933 = vmatprep.subr.bf16.mxu0 0
        %3934 = vmatpush2.bf16.msra.mxu0 0
        %3935 = vmatprep.subr.bf16.mxu0 0
        %3936 = vmatpush2.bf16.msra.mxu0 0
        %3937 = vmatprep.subr.bf16.mxu0 0
        %3938 = vmatpush2.bf16.msra.mxu0 0
        %3939 = vmatprep.subr.bf16.mxu0 0
        %3940 = vmatpush2.bf16.msra.mxu0 0
        %3941 = vmatprep.subr.bf16.mxu0 0
        %3942 = vmatpush2.bf16.msra.mxu0 0
        %3943 = vmatprep.mubr.bf16.mxu0 0
        %3944 = vmatmul.mubr.bf16.gmra.mxu0 %v3888
        %v3945 = vpop.f32.mrf.mxu0
        %v3946 = vadd.f32 0.0, %v3945
        %v3947 = vpop.f32.mrf.mxu0
        %v3948 = vadd.f32 0.0, %v3947
        %v3949 = vpop.f32.mrf.mxu0
        %v3950 = vadd.f32 0.0, %v3949
        %v3951 = vpop.f32.mrf.mxu0
        %v3952 = vadd.f32 0.0, %v3951
        %3953 = vmatprep.mubr.bf16.mxu0 0
        %3954 = vmatmul.mubr.bf16.gmra.mxu0 %v3891
        %v3955 = vpop.f32.mrf.mxu0
        %v3956 = vadd.f32 0.0, %v3955
        %v3957 = vpop.f32.mrf.mxu0
        %v3958 = vadd.f32 0.0, %v3957
        %v3959 = vpop.f32.mrf.mxu0
        %v3960 = vadd.f32 0.0, %v3959
        %v3961 = vpop.f32.mrf.mxu0
        %v3962 = vadd.f32 0.0, %v3961
        %3963 = vmatprep.mubr.bf16.mxu0 0
        %3964 = vmatmul.mubr.bf16.gmra.mxu0 %v3894
        %v3965 = vpop.f32.mrf.mxu0
        %v3966 = vadd.f32 0.0, %v3965
        %v3967 = vpop.f32.mrf.mxu0
        %v3968 = vadd.f32 0.0, %v3967
        %v3969 = vpop.f32.mrf.mxu0
        %v3970 = vadd.f32 0.0, %v3969
        %v3971 = vpop.f32.mrf.mxu0
        %v3972 = vadd.f32 0.0, %v3971
        %3973 = vmatprep.mubr.bf16.mxu0 0
        %3974 = vmatmul.mubr.bf16.gmra.mxu0 %v3897
        %v3975 = vpop.f32.mrf.mxu0
        %v3976 = vadd.f32 0.0, %v3975
        %v3977 = vpop.f32.mrf.mxu0
        %v3978 = vadd.f32 0.0, %v3977
        %v3979 = vpop.f32.mrf.mxu0
        %v3980 = vadd.f32 0.0, %v3979
        %v3981 = vpop.f32.mrf.mxu0
        %v3982 = vadd.f32 0.0, %v3981
        %3983 = vmatprep.mubr.bf16.mxu0 0
        %3984 = vmatmul.mubr.bf16.gmra.mxu0 %v3900
        %v3985 = vpop.f32.mrf.mxu0
        %v3986 = vadd.f32 0.0, %v3985
        %v3987 = vpop.f32.mrf.mxu0
        %v3988 = vadd.f32 0.0, %v3987
        %v3989 = vpop.f32.mrf.mxu0
        %v3990 = vadd.f32 0.0, %v3989
        %v3991 = vpop.f32.mrf.mxu0
        %v3992 = vadd.f32 0.0, %v3991
        %3993 = vmatprep.mubr.bf16.mxu0 0
        %3994 = vmatmul.mubr.bf16.gmra.mxu0 %v3903
        %v3995 = vpop.f32.mrf.mxu0
        %v3996 = vadd.f32 0.0, %v3995
        %v3997 = vpop.f32.mrf.mxu0
        %v3998 = vadd.f32 0.0, %v3997
        %v3999 = vpop.f32.mrf.mxu0
        %v4000 = vadd.f32 0.0, %v3999
        %v4001 = vpop.f32.mrf.mxu0
        %v4002 = vadd.f32 0.0, %v4001
        %4003 = vmatprep.mubr.bf16.mxu0 0
        %4004 = vmatmul.mubr.bf16.gmra.mxu0 %v3906
        %v4005 = vpop.f32.mrf.mxu0
        %v4006 = vadd.f32 0.0, %v4005
        %v4007 = vpop.f32.mrf.mxu0
        %v4008 = vadd.f32 0.0, %v4007
        %v4009 = vpop.f32.mrf.mxu0
        %v4010 = vadd.f32 0.0, %v4009
        %v4011 = vpop.f32.mrf.mxu0
        %v4012 = vadd.f32 0.0, %v4011
        %4013 = vmatprep.mubr.bf16.mxu0 0
        %4014 = vmatmul.mubr.bf16.gmra.mxu0 %v3909
        %v4015 = vpop.f32.mrf.mxu0
        %v4016 = vadd.f32 0.0, %v4015
        %v4017 = vpop.f32.mrf.mxu0
        %v4018 = vadd.f32 0.0, %v4017
        %v4019 = vpop.f32.mrf.mxu0
        %v4020 = vadd.f32 0.0, %v4019
        %v4021 = vpop.f32.mrf.mxu0
        %v4022 = vadd.f32 0.0, %v4021
        %4023 = vdwg.mxu0
        %v4024 = vmax.f32 %v3946, %v3948
        %4025 = vmax.xlane.f32.xlu0 %v4024
        %v4026 = vpop.xlane.xlu0 %4025
        %v4027 = vmax.f32 %v3950, %v3952
        %4028 = vmax.xlane.f32.xlu0 %v4027
        %v4029 = vpop.xlane.xlu0 %4028
        %v4030 = vmax.f32 %v3956, %v3958
        %4031 = vmax.xlane.f32.xlu0 %v4030
        %v4032 = vpop.xlane.xlu0 %4031
        %v4033 = vmax.f32 %v3960, %v3962
        %4034 = vmax.xlane.f32.xlu0 %v4033
        %v4035 = vpop.xlane.xlu0 %4034
        %v4036 = vmax.f32 %v3966, %v3968
        %4037 = vmax.xlane.f32.xlu0 %v4036
        %v4038 = vpop.xlane.xlu0 %4037
        %v4039 = vmax.f32 %v3970, %v3972
        %4040 = vmax.xlane.f32.xlu0 %v4039
        %v4041 = vpop.xlane.xlu0 %4040
        %v4042 = vmax.f32 %v3976, %v3978
        %4043 = vmax.xlane.f32.xlu0 %v4042
        %v4044 = vpop.xlane.xlu0 %4043
        %v4045 = vmax.f32 %v3980, %v3982
        %4046 = vmax.xlane.f32.xlu0 %v4045
        %v4047 = vpop.xlane.xlu0 %4046
        %v4048 = vmax.f32 %v3986, %v3988
        %4049 = vmax.xlane.f32.xlu0 %v4048
        %v4050 = vpop.xlane.xlu0 %4049
        %v4051 = vmax.f32 %v3990, %v3992
        %4052 = vmax.xlane.f32.xlu0 %v4051
        %v4053 = vpop.xlane.xlu0 %4052
        %v4054 = vmax.f32 %v3996, %v3998
        %4055 = vmax.xlane.f32.xlu0 %v4054
        %v4056 = vpop.xlane.xlu0 %4055
        %v4057 = vmax.f32 %v4000, %v4002
        %4058 = vmax.xlane.f32.xlu0 %v4057
        %v4059 = vpop.xlane.xlu0 %4058
        %v4060 = vmax.f32 %v4006, %v4008
        %4061 = vmax.xlane.f32.xlu0 %v4060
        %v4062 = vpop.xlane.xlu0 %4061
        %v4063 = vmax.f32 %v4010, %v4012
        %4064 = vmax.xlane.f32.xlu0 %v4063
        %v4065 = vpop.xlane.xlu0 %4064
        %v4066 = vmax.f32 %v4016, %v4018
        %4067 = vmax.xlane.f32.xlu0 %v4066
        %v4068 = vpop.xlane.xlu0 %4067
        %v4069 = vmax.f32 %v4020, %v4022
        %4070 = vmax.xlane.f32.xlu0 %v4069
        %v4071 = vpop.xlane.xlu0 %4070
        %v4072 = vsub.f32 %v3946, %v4026
        %v4073 = vsub.f32 %v3948, %v4026
        %v4074 = vsub.f32 %v3950, %v4029
        %v4075 = vsub.f32 %v3952, %v4029
        %v4076 = vsub.f32 %v3956, %v4032
        %v4077 = vsub.f32 %v3958, %v4032
        %v4078 = vsub.f32 %v3960, %v4035
        %v4079 = vsub.f32 %v3962, %v4035
        %v4080 = vsub.f32 %v3966, %v4038
        %v4081 = vsub.f32 %v3968, %v4038
        %v4082 = vsub.f32 %v3970, %v4041
        %v4083 = vsub.f32 %v3972, %v4041
        %v4084 = vsub.f32 %v3976, %v4044
        %v4085 = vsub.f32 %v3978, %v4044
        %v4086 = vsub.f32 %v3980, %v4047
        %v4087 = vsub.f32 %v3982, %v4047
        %v4088 = vsub.f32 %v3986, %v4050
        %v4089 = vsub.f32 %v3988, %v4050
        %v4090 = vsub.f32 %v3990, %v4053
        %v4091 = vsub.f32 %v3992, %v4053
        %v4092 = vsub.f32 %v3996, %v4056
        %v4093 = vsub.f32 %v3998, %v4056
        %v4094 = vsub.f32 %v4000, %v4059
        %v4095 = vsub.f32 %v4002, %v4059
        %v4096 = vsub.f32 %v4006, %v4062
        %v4097 = vsub.f32 %v4008, %v4062
        %v4098 = vsub.f32 %v4010, %v4065
        %v4099 = vsub.f32 %v4012, %v4065
        %v4100 = vsub.f32 %v4016, %v4068
        %v4101 = vsub.f32 %v4018, %v4068
        %v4102 = vsub.f32 %v4020, %v4071
        %v4103 = vsub.f32 %v4022, %v4071
        %v4104 = vpack.c.bf16 %v4074, %v4072
        %v4105 = vpack.c.bf16 %v4075, %v4073
        %v4106 = vpack.c.bf16 %v4078, %v4076
        %v4107 = vpack.c.bf16 %v4079, %v4077
        %v4108 = vpack.c.bf16 %v4082, %v4080
        %v4109 = vpack.c.bf16 %v4083, %v4081
        %v4110 = vpack.c.bf16 %v4086, %v4084
        %v4111 = vpack.c.bf16 %v4087, %v4085
        %v4112 = vpack.c.bf16 %v4090, %v4088
        %v4113 = vpack.c.bf16 %v4091, %v4089
        %v4114 = vpack.c.bf16 %v4094, %v4092
        %v4115 = vpack.c.bf16 %v4095, %v4093
        %v4116 = vpack.c.bf16 %v4098, %v4096
        %v4117 = vpack.c.bf16 %v4099, %v4097
        %v4118 = vpack.c.bf16 %v4102, %v4100
        %v4119 = vpack.c.bf16 %v4103, %v4101
        %v4121 = vmul.bf16 %v4104, 1069105081
        %v4122 = vpow.bf16.pop %v4121
        %v4124 = vmul.bf16 %v4105, 1069105081
        %v4125 = vpow.bf16.pop %v4124
        %v4127 = vmul.bf16 %v4106, 1069105081
        %v4128 = vpow.bf16.pop %v4127
        %v4130 = vmul.bf16 %v4107, 1069105081
        %v4131 = vpow.bf16.pop %v4130
        %v4133 = vmul.bf16 %v4108, 1069105081
        %v4134 = vpow.bf16.pop %v4133
        %v4136 = vmul.bf16 %v4109, 1069105081
        %v4137 = vpow.bf16.pop %v4136
        %v4139 = vmul.bf16 %v4110, 1069105081
        %v4140 = vpow.bf16.pop %v4139
        %v4142 = vmul.bf16 %v4111, 1069105081
        %v4143 = vpow.bf16.pop %v4142
        %v4145 = vmul.bf16 %v4112, 1069105081
        %v4146 = vpow.bf16.pop %v4145
        %v4148 = vmul.bf16 %v4113, 1069105081
        %v4149 = vpow.bf16.pop %v4148
        %v4151 = vmul.bf16 %v4114, 1069105081
        %v4152 = vpow.bf16.pop %v4151
        %v4154 = vmul.bf16 %v4115, 1069105081
        %v4155 = vpow.bf16.pop %v4154
        %v4157 = vmul.bf16 %v4116, 1069105081
        %v4158 = vpow.bf16.pop %v4157
        %v4160 = vmul.bf16 %v4117, 1069105081
        %v4161 = vpow.bf16.pop %v4160
        %v4163 = vmul.bf16 %v4118, 1069105081
        %v4164 = vpow.bf16.pop %v4163
        %v4166 = vmul.bf16 %v4119, 1069105081
        %v4167 = vpow.bf16.pop %v4166
        %v4168 = vunpack.c.l.bf16 %v4122
        %v4169 = vunpack.c.l.bf16 %v4125
        %v4170 = vunpack.c.h.bf16 %v4122
        %v4171 = vunpack.c.h.bf16 %v4125
        %v4172 = vunpack.c.l.bf16 %v4128
        %v4173 = vunpack.c.l.bf16 %v4131
        %v4174 = vunpack.c.h.bf16 %v4128
        %v4175 = vunpack.c.h.bf16 %v4131
        %v4176 = vunpack.c.l.bf16 %v4134
        %v4177 = vunpack.c.l.bf16 %v4137
        %v4178 = vunpack.c.h.bf16 %v4134
        %v4179 = vunpack.c.h.bf16 %v4137
        %v4180 = vunpack.c.l.bf16 %v4140
        %v4181 = vunpack.c.l.bf16 %v4143
        %v4182 = vunpack.c.h.bf16 %v4140
        %v4183 = vunpack.c.h.bf16 %v4143
        %v4184 = vunpack.c.l.bf16 %v4146
        %v4185 = vunpack.c.l.bf16 %v4149
        %v4186 = vunpack.c.h.bf16 %v4146
        %v4187 = vunpack.c.h.bf16 %v4149
        %v4188 = vunpack.c.l.bf16 %v4152
        %v4189 = vunpack.c.l.bf16 %v4155
        %v4190 = vunpack.c.h.bf16 %v4152
        %v4191 = vunpack.c.h.bf16 %v4155
        %v4192 = vunpack.c.l.bf16 %v4158
        %v4193 = vunpack.c.l.bf16 %v4161
        %v4194 = vunpack.c.h.bf16 %v4158
        %v4195 = vunpack.c.h.bf16 %v4161
        %v4196 = vunpack.c.l.bf16 %v4164
        %v4197 = vunpack.c.l.bf16 %v4167
        %v4198 = vunpack.c.h.bf16 %v4164
        %v4199 = vunpack.c.h.bf16 %v4167
        %v4200 = vadd.f32 %v4168, %v4169
        %4201 = vadd.xlane.f32.xlu0 %v4200
        %v4202 = vpop.xlane.xlu0 %4201
        %v4203 = vadd.f32 %v4170, %v4171
        %4204 = vadd.xlane.f32.xlu0 %v4203
        %v4205 = vpop.xlane.xlu0 %4204
        %v4206 = vadd.f32 %v4172, %v4173
        %4207 = vadd.xlane.f32.xlu0 %v4206
        %v4208 = vpop.xlane.xlu0 %4207
        %v4209 = vadd.f32 %v4174, %v4175
        %4210 = vadd.xlane.f32.xlu0 %v4209
        %v4211 = vpop.xlane.xlu0 %4210
        %v4212 = vadd.f32 %v4176, %v4177
        %4213 = vadd.xlane.f32.xlu0 %v4212
        %v4214 = vpop.xlane.xlu0 %4213
        %v4215 = vadd.f32 %v4178, %v4179
        %4216 = vadd.xlane.f32.xlu0 %v4215
        %v4217 = vpop.xlane.xlu0 %4216
        %v4218 = vadd.f32 %v4180, %v4181
        %4219 = vadd.xlane.f32.xlu0 %v4218
        %v4220 = vpop.xlane.xlu0 %4219
        %v4221 = vadd.f32 %v4182, %v4183
        %4222 = vadd.xlane.f32.xlu0 %v4221
        %v4223 = vpop.xlane.xlu0 %4222
        %v4224 = vadd.f32 %v4184, %v4185
        %4225 = vadd.xlane.f32.xlu0 %v4224
        %v4226 = vpop.xlane.xlu0 %4225
        %v4227 = vadd.f32 %v4186, %v4187
        %4228 = vadd.xlane.f32.xlu0 %v4227
        %v4229 = vpop.xlane.xlu0 %4228
        %v4230 = vadd.f32 %v4188, %v4189
        %4231 = vadd.xlane.f32.xlu0 %v4230
        %v4232 = vpop.xlane.xlu0 %4231
        %v4233 = vadd.f32 %v4190, %v4191
        %4234 = vadd.xlane.f32.xlu0 %v4233
        %v4235 = vpop.xlane.xlu0 %4234
        %v4236 = vadd.f32 %v4192, %v4193
        %4237 = vadd.xlane.f32.xlu0 %v4236
        %v4238 = vpop.xlane.xlu0 %4237
        %v4239 = vadd.f32 %v4194, %v4195
        %4240 = vadd.xlane.f32.xlu0 %v4239
        %v4241 = vpop.xlane.xlu0 %4240
        %v4242 = vadd.f32 %v4196, %v4197
        %4243 = vadd.xlane.f32.xlu0 %v4242
        %v4244 = vpop.xlane.xlu0 %4243
        %v4245 = vadd.f32 %v4198, %v4199
        %4246 = vadd.xlane.f32.xlu0 %v4245
        %v4247 = vpop.xlane.xlu0 %4246
        %4248 = vmatprep.subr.bf16.mxu0 0
        %4249 = vmatpush1.bf16.msra.mxu0 %v1239
        %4250 = vmatprep.subr.bf16.mxu0 0
        %4251 = vmatpush1.bf16.msra.mxu0 %v1237
        %4252 = vmatprep.subr.bf16.mxu0 0
        %4253 = vmatpush1.bf16.msra.mxu0 %v1235
        %4254 = vmatprep.subr.bf16.mxu0 0
        %4255 = vmatpush1.bf16.msra.mxu0 %v1233
        %4256 = vmatprep.subr.bf16.mxu0 0
        %4257 = vmatpush1.bf16.msra.mxu0 %v1231
        %4258 = vmatprep.subr.bf16.mxu0 0
        %4259 = vmatpush1.bf16.msra.mxu0 %v1229
        %4260 = vmatprep.subr.bf16.mxu0 0
        %4261 = vmatpush1.bf16.msra.mxu0 %v1227
        %4262 = vmatprep.subr.bf16.mxu0 0
        %4263 = vmatpush1.bf16.msra.mxu0 %v1225
        %4264 = vmatprep.subr.bf16.mxu0 0
        %4265 = vmatpush2.bf16.msra.mxu0 %v1255
        %4266 = vmatprep.subr.bf16.mxu0 0
        %4267 = vmatpush2.bf16.msra.mxu0 %v1253
        %4268 = vmatprep.subr.bf16.mxu0 0
        %4269 = vmatpush2.bf16.msra.mxu0 %v1251
        %4270 = vmatprep.subr.bf16.mxu0 0
        %4271 = vmatpush2.bf16.msra.mxu0 %v1249
        %4272 = vmatprep.subr.bf16.mxu0 0
        %4273 = vmatpush2.bf16.msra.mxu0 %v1247
        %4274 = vmatprep.subr.bf16.mxu0 0
        %4275 = vmatpush2.bf16.msra.mxu0 %v1245
        %4276 = vmatprep.subr.bf16.mxu0 0
        %4277 = vmatpush2.bf16.msra.mxu0 %v1243
        %4278 = vmatprep.subr.bf16.mxu0 0
        %4279 = vmatpush2.bf16.msra.mxu0 %v1241
        %4280 = vmatprep.mubr.bf16.mxu0 %v4125
        %4281 = vmatmul.mubr.bf16.gmra.mxu0 %v4122
        %v4282 = vpop.f32.mrf.mxu0
        %v4283 = vadd.f32 0.0, %v4282
        %v4284 = vpop.f32.mrf.mxu0
        %v4285 = vpop.f32.mrf.mxu0
        %v4286 = vadd.f32 0.0, %v4285
        %v4287 = vpop.f32.mrf.mxu0
        %4288 = vmatprep.mubr.bf16.mxu0 %v4131
        %4289 = vmatmul.mubr.bf16.gmra.mxu0 %v4128
        %v4290 = vpop.f32.mrf.mxu0
        %v4291 = vadd.f32 0.0, %v4290
        %v4292 = vpop.f32.mrf.mxu0
        %v4293 = vpop.f32.mrf.mxu0
        %v4294 = vadd.f32 0.0, %v4293
        %v4295 = vpop.f32.mrf.mxu0
        %4296 = vmatprep.mubr.bf16.mxu0 %v4137
        %4297 = vmatmul.mubr.bf16.gmra.mxu0 %v4134
        %v4298 = vpop.f32.mrf.mxu0
        %v4299 = vadd.f32 0.0, %v4298
        %v4300 = vpop.f32.mrf.mxu0
        %v4301 = vpop.f32.mrf.mxu0
        %v4302 = vadd.f32 0.0, %v4301
        %v4303 = vpop.f32.mrf.mxu0
        %4304 = vmatprep.mubr.bf16.mxu0 %v4143
        %4305 = vmatmul.mubr.bf16.gmra.mxu0 %v4140
        %v4306 = vpop.f32.mrf.mxu0
        %v4307 = vadd.f32 0.0, %v4306
        %v4308 = vpop.f32.mrf.mxu0
        %v4309 = vpop.f32.mrf.mxu0
        %v4310 = vadd.f32 0.0, %v4309
        %v4311 = vpop.f32.mrf.mxu0
        %4312 = vmatprep.mubr.bf16.mxu0 %v4149
        %4313 = vmatmul.mubr.bf16.gmra.mxu0 %v4146
        %v4314 = vpop.f32.mrf.mxu0
        %v4315 = vadd.f32 0.0, %v4314
        %v4316 = vpop.f32.mrf.mxu0
        %v4317 = vpop.f32.mrf.mxu0
        %v4318 = vadd.f32 0.0, %v4317
        %v4319 = vpop.f32.mrf.mxu0
        %4320 = vmatprep.mubr.bf16.mxu0 %v4155
        %4321 = vmatmul.mubr.bf16.gmra.mxu0 %v4152
        %v4322 = vpop.f32.mrf.mxu0
        %v4323 = vadd.f32 0.0, %v4322
        %v4324 = vpop.f32.mrf.mxu0
        %v4325 = vpop.f32.mrf.mxu0
        %v4326 = vadd.f32 0.0, %v4325
        %v4327 = vpop.f32.mrf.mxu0
        %4328 = vmatprep.mubr.bf16.mxu0 %v4161
        %4329 = vmatmul.mubr.bf16.gmra.mxu0 %v4158
        %v4330 = vpop.f32.mrf.mxu0
        %v4331 = vadd.f32 0.0, %v4330
        %v4332 = vpop.f32.mrf.mxu0
        %v4333 = vpop.f32.mrf.mxu0
        %v4334 = vadd.f32 0.0, %v4333
        %v4335 = vpop.f32.mrf.mxu0
        %4336 = vmatprep.mubr.bf16.mxu0 %v4167
        %4337 = vmatmul.mubr.bf16.gmra.mxu0 %v4164
        %v4338 = vpop.f32.mrf.mxu0
        %v4339 = vadd.f32 0.0, %v4338
        %v4340 = vpop.f32.mrf.mxu0
        %v4341 = vpop.f32.mrf.mxu0
        %v4342 = vadd.f32 0.0, %v4341
        %v4343 = vpop.f32.mrf.mxu0
        %4344 = vdwg.mxu0
        %v4345 = vrcp.pop %v4202
        %v4346 = vrcp.pop %v4205
        %v4347 = vrcp.pop %v4208
        %v4348 = vrcp.pop %v4211
        %v4349 = vrcp.pop %v4214
        %v4350 = vrcp.pop %v4217
        %v4351 = vrcp.pop %v4220
        %v4352 = vrcp.pop %v4223
        %v4353 = vrcp.pop %v4226
        %v4354 = vrcp.pop %v4229
        %v4355 = vrcp.pop %v4232
        %v4356 = vrcp.pop %v4235
        %v4357 = vrcp.pop %v4238
        %v4358 = vrcp.pop %v4241
        %v4359 = vrcp.pop %v4244
        %v4360 = vrcp.pop %v4247
        %v4361 = vmul.f32 %v4283, %v4345
        %v4362 = vmul.f32 %v4286, %v4346
        %v4363 = vmul.f32 %v4291, %v4347
        %v4364 = vmul.f32 %v4294, %v4348
        %v4365 = vmul.f32 %v4299, %v4349
        %v4366 = vmul.f32 %v4302, %v4350
        %v4367 = vmul.f32 %v4307, %v4351
        %v4368 = vmul.f32 %v4310, %v4352
        %v4369 = vmul.f32 %v4315, %v4353
        %v4370 = vmul.f32 %v4318, %v4354
        %v4371 = vmul.f32 %v4323, %v4355
        %v4372 = vmul.f32 %v4326, %v4356
        %v4373 = vmul.f32 %v4331, %v4357
        %v4374 = vmul.f32 %v4334, %v4358
        %v4375 = vmul.f32 %v4339, %v4359
        %v4376 = vmul.f32 %v4342, %v4360
        %4377 = vrot.lane.b32.xlu0 %v818, 120
        %v4378 = vpop.permute.xlu0 %4377
        %4379 = vrot.lane.b32.xlu0 %v819, 120
        %v4380 = vpop.permute.xlu0 %4379
        %4381 = vrot.lane.b32.xlu0 %v820, 120
        %v4382 = vpop.permute.xlu0 %4381
        %4383 = vrot.lane.b32.xlu0 %v821, 120
        %v4384 = vpop.permute.xlu0 %4383
        %4385 = vrot.lane.b32.xlu0 %v822, 120
        %v4386 = vpop.permute.xlu0 %4385
        %4387 = vrot.lane.b32.xlu0 %v823, 120
        %v4388 = vpop.permute.xlu0 %4387
        %4389 = vrot.lane.b32.xlu0 %v824, 120
        %v4390 = vpop.permute.xlu0 %4389
        %4391 = vrot.lane.b32.xlu0 %v825, 120
        %v4392 = vpop.permute.xlu0 %4391
        %v4394 = vsel %vm840, %v4378, 0
        %v4397 = vsel %vm840, %v4380, 0
        %v4400 = vsel %vm840, %v4382, 0
        %v4403 = vsel %vm840, %v4384, 0
        %v4406 = vsel %vm840, %v4386, 0
        %v4409 = vsel %vm840, %v4388, 0
        %v4412 = vsel %vm840, %v4390, 0
        %v4415 = vsel %vm840, %v4392, 0
        %4417 = vmatprep.subr.bf16.mxu0 0
        %4418 = vmatpush1.bf16.msra.mxu0 0
        %4419 = vmatprep.subr.bf16.mxu0 0
        %4420 = vmatpush1.bf16.msra.mxu0 0
        %4421 = vmatprep.subr.bf16.mxu0 0
        %4422 = vmatpush1.bf16.msra.mxu0 0
        %4423 = vmatprep.subr.bf16.mxu0 0
        %4424 = vmatpush1.bf16.msra.mxu0 0
        %4425 = vmatprep.subr.bf16.mxu0 0
        %4426 = vmatpush1.bf16.msra.mxu0 0
        %4427 = vmatprep.subr.bf16.mxu0 0
        %4428 = vmatpush1.bf16.msra.mxu0 0
        %4429 = vmatprep.subr.bf16.mxu0 0
        %4430 = vmatpush1.bf16.msra.mxu0 0
        %4431 = vmatprep.subr.bf16.mxu0 %v1449
        %4432 = vmatpush1.bf16.msra.mxu0 %v1446
        %4433 = vmatprep.subr.bf16.mxu0 0
        %4434 = vmatpush2.bf16.msra.mxu0 0
        %4435 = vmatprep.subr.bf16.mxu0 0
        %4436 = vmatpush2.bf16.msra.mxu0 0
        %4437 = vmatprep.subr.bf16.mxu0 0
        %4438 = vmatpush2.bf16.msra.mxu0 0
        %4439 = vmatprep.subr.bf16.mxu0 0
        %4440 = vmatpush2.bf16.msra.mxu0 0
        %4441 = vmatprep.subr.bf16.mxu0 0
        %4442 = vmatpush2.bf16.msra.mxu0 0
        %4443 = vmatprep.subr.bf16.mxu0 0
        %4444 = vmatpush2.bf16.msra.mxu0 0
        %4445 = vmatprep.subr.bf16.mxu0 0
        %4446 = vmatpush2.bf16.msra.mxu0 0
        %4447 = vmatprep.subr.bf16.mxu0 0
        %4448 = vmatpush2.bf16.msra.mxu0 0
        %4449 = vmatprep.mubr.bf16.mxu0 0
        %4450 = vmatmul.mubr.bf16.gmra.mxu0 %v4394
        %v4451 = vpop.f32.mrf.mxu0
        %v4452 = vadd.f32 0.0, %v4451
        %v4453 = vpop.f32.mrf.mxu0
        %v4454 = vadd.f32 0.0, %v4453
        %v4455 = vpop.f32.mrf.mxu0
        %v4456 = vadd.f32 0.0, %v4455
        %v4457 = vpop.f32.mrf.mxu0
        %v4458 = vadd.f32 0.0, %v4457
        %4459 = vmatprep.mubr.bf16.mxu0 0
        %4460 = vmatmul.mubr.bf16.gmra.mxu0 %v4397
        %v4461 = vpop.f32.mrf.mxu0
        %v4462 = vadd.f32 0.0, %v4461
        %v4463 = vpop.f32.mrf.mxu0
        %v4464 = vadd.f32 0.0, %v4463
        %v4465 = vpop.f32.mrf.mxu0
        %v4466 = vadd.f32 0.0, %v4465
        %v4467 = vpop.f32.mrf.mxu0
        %v4468 = vadd.f32 0.0, %v4467
        %4469 = vmatprep.mubr.bf16.mxu0 0
        %4470 = vmatmul.mubr.bf16.gmra.mxu0 %v4400
        %v4471 = vpop.f32.mrf.mxu0
        %v4472 = vadd.f32 0.0, %v4471
        %v4473 = vpop.f32.mrf.mxu0
        %v4474 = vadd.f32 0.0, %v4473
        %v4475 = vpop.f32.mrf.mxu0
        %v4476 = vadd.f32 0.0, %v4475
        %v4477 = vpop.f32.mrf.mxu0
        %v4478 = vadd.f32 0.0, %v4477
        %4479 = vmatprep.mubr.bf16.mxu0 0
        %4480 = vmatmul.mubr.bf16.gmra.mxu0 %v4403
        %v4481 = vpop.f32.mrf.mxu0
        %v4482 = vadd.f32 0.0, %v4481
        %v4483 = vpop.f32.mrf.mxu0
        %v4484 = vadd.f32 0.0, %v4483
        %v4485 = vpop.f32.mrf.mxu0
        %v4486 = vadd.f32 0.0, %v4485
        %v4487 = vpop.f32.mrf.mxu0
        %v4488 = vadd.f32 0.0, %v4487
        %4489 = vmatprep.mubr.bf16.mxu0 0
        %4490 = vmatmul.mubr.bf16.gmra.mxu0 %v4406
        %v4491 = vpop.f32.mrf.mxu0
        %v4492 = vadd.f32 0.0, %v4491
        %v4493 = vpop.f32.mrf.mxu0
        %v4494 = vadd.f32 0.0, %v4493
        %v4495 = vpop.f32.mrf.mxu0
        %v4496 = vadd.f32 0.0, %v4495
        %v4497 = vpop.f32.mrf.mxu0
        %v4498 = vadd.f32 0.0, %v4497
        %4499 = vmatprep.mubr.bf16.mxu0 0
        %4500 = vmatmul.mubr.bf16.gmra.mxu0 %v4409
        %v4501 = vpop.f32.mrf.mxu0
        %v4502 = vadd.f32 0.0, %v4501
        %v4503 = vpop.f32.mrf.mxu0
        %v4504 = vadd.f32 0.0, %v4503
        %v4505 = vpop.f32.mrf.mxu0
        %v4506 = vadd.f32 0.0, %v4505
        %v4507 = vpop.f32.mrf.mxu0
        %v4508 = vadd.f32 0.0, %v4507
        %4509 = vmatprep.mubr.bf16.mxu0 0
        %4510 = vmatmul.mubr.bf16.gmra.mxu0 %v4412
        %v4511 = vpop.f32.mrf.mxu0
        %v4512 = vadd.f32 0.0, %v4511
        %v4513 = vpop.f32.mrf.mxu0
        %v4514 = vadd.f32 0.0, %v4513
        %v4515 = vpop.f32.mrf.mxu0
        %v4516 = vadd.f32 0.0, %v4515
        %v4517 = vpop.f32.mrf.mxu0
        %v4518 = vadd.f32 0.0, %v4517
        %4519 = vmatprep.mubr.bf16.mxu0 0
        %4520 = vmatmul.mubr.bf16.gmra.mxu0 %v4415
        %v4521 = vpop.f32.mrf.mxu0
        %v4522 = vadd.f32 0.0, %v4521
        %v4523 = vpop.f32.mrf.mxu0
        %v4524 = vadd.f32 0.0, %v4523
        %v4525 = vpop.f32.mrf.mxu0
        %v4526 = vadd.f32 0.0, %v4525
        %v4527 = vpop.f32.mrf.mxu0
        %v4528 = vadd.f32 0.0, %v4527
        %4529 = vdwg.mxu0
        %v4530 = vmax.f32 %v4452, %v4454
        %4531 = vmax.xlane.f32.xlu0 %v4530
        %v4532 = vpop.xlane.xlu0 %4531
        %v4533 = vmax.f32 %v4456, %v4458
        %4534 = vmax.xlane.f32.xlu0 %v4533
        %v4535 = vpop.xlane.xlu0 %4534
        %v4536 = vmax.f32 %v4462, %v4464
        %4537 = vmax.xlane.f32.xlu0 %v4536
        %v4538 = vpop.xlane.xlu0 %4537
        %v4539 = vmax.f32 %v4466, %v4468
        %4540 = vmax.xlane.f32.xlu0 %v4539
        %v4541 = vpop.xlane.xlu0 %4540
        %v4542 = vmax.f32 %v4472, %v4474
        %4543 = vmax.xlane.f32.xlu0 %v4542
        %v4544 = vpop.xlane.xlu0 %4543
        %v4545 = vmax.f32 %v4476, %v4478
        %4546 = vmax.xlane.f32.xlu0 %v4545
        %v4547 = vpop.xlane.xlu0 %4546
        %v4548 = vmax.f32 %v4482, %v4484
        %4549 = vmax.xlane.f32.xlu0 %v4548
        %v4550 = vpop.xlane.xlu0 %4549
        %v4551 = vmax.f32 %v4486, %v4488
        %4552 = vmax.xlane.f32.xlu0 %v4551
        %v4553 = vpop.xlane.xlu0 %4552
        %v4554 = vmax.f32 %v4492, %v4494
        %4555 = vmax.xlane.f32.xlu0 %v4554
        %v4556 = vpop.xlane.xlu0 %4555
        %v4557 = vmax.f32 %v4496, %v4498
        %4558 = vmax.xlane.f32.xlu0 %v4557
        %v4559 = vpop.xlane.xlu0 %4558
        %v4560 = vmax.f32 %v4502, %v4504
        %4561 = vmax.xlane.f32.xlu0 %v4560
        %v4562 = vpop.xlane.xlu0 %4561
        %v4563 = vmax.f32 %v4506, %v4508
        %4564 = vmax.xlane.f32.xlu0 %v4563
        %v4565 = vpop.xlane.xlu0 %4564
        %v4566 = vmax.f32 %v4512, %v4514
        %4567 = vmax.xlane.f32.xlu0 %v4566
        %v4568 = vpop.xlane.xlu0 %4567
        %v4569 = vmax.f32 %v4516, %v4518
        %4570 = vmax.xlane.f32.xlu0 %v4569
        %v4571 = vpop.xlane.xlu0 %4570
        %v4572 = vmax.f32 %v4522, %v4524
        %4573 = vmax.xlane.f32.xlu0 %v4572
        %v4574 = vpop.xlane.xlu0 %4573
        %v4575 = vmax.f32 %v4526, %v4528
        %4576 = vmax.xlane.f32.xlu0 %v4575
        %v4577 = vpop.xlane.xlu0 %4576
        %v4578 = vsub.f32 %v4452, %v4532
        %v4579 = vsub.f32 %v4454, %v4532
        %v4580 = vsub.f32 %v4456, %v4535
        %v4581 = vsub.f32 %v4458, %v4535
        %v4582 = vsub.f32 %v4462, %v4538
        %v4583 = vsub.f32 %v4464, %v4538
        %v4584 = vsub.f32 %v4466, %v4541
        %v4585 = vsub.f32 %v4468, %v4541
        %v4586 = vsub.f32 %v4472, %v4544
        %v4587 = vsub.f32 %v4474, %v4544
        %v4588 = vsub.f32 %v4476, %v4547
        %v4589 = vsub.f32 %v4478, %v4547
        %v4590 = vsub.f32 %v4482, %v4550
        %v4591 = vsub.f32 %v4484, %v4550
        %v4592 = vsub.f32 %v4486, %v4553
        %v4593 = vsub.f32 %v4488, %v4553
        %v4594 = vsub.f32 %v4492, %v4556
        %v4595 = vsub.f32 %v4494, %v4556
        %v4596 = vsub.f32 %v4496, %v4559
        %v4597 = vsub.f32 %v4498, %v4559
        %v4598 = vsub.f32 %v4502, %v4562
        %v4599 = vsub.f32 %v4504, %v4562
        %v4600 = vsub.f32 %v4506, %v4565
        %v4601 = vsub.f32 %v4508, %v4565
        %v4602 = vsub.f32 %v4512, %v4568
        %v4603 = vsub.f32 %v4514, %v4568
        %v4604 = vsub.f32 %v4516, %v4571
        %v4605 = vsub.f32 %v4518, %v4571
        %v4606 = vsub.f32 %v4522, %v4574
        %v4607 = vsub.f32 %v4524, %v4574
        %v4608 = vsub.f32 %v4526, %v4577
        %v4609 = vsub.f32 %v4528, %v4577
        %v4610 = vpack.c.bf16 %v4580, %v4578
        %v4611 = vpack.c.bf16 %v4581, %v4579
        %v4612 = vpack.c.bf16 %v4584, %v4582
        %v4613 = vpack.c.bf16 %v4585, %v4583
        %v4614 = vpack.c.bf16 %v4588, %v4586
        %v4615 = vpack.c.bf16 %v4589, %v4587
        %v4616 = vpack.c.bf16 %v4592, %v4590
        %v4617 = vpack.c.bf16 %v4593, %v4591
        %v4618 = vpack.c.bf16 %v4596, %v4594
        %v4619 = vpack.c.bf16 %v4597, %v4595
        %v4620 = vpack.c.bf16 %v4600, %v4598
        %v4621 = vpack.c.bf16 %v4601, %v4599
        %v4622 = vpack.c.bf16 %v4604, %v4602
        %v4623 = vpack.c.bf16 %v4605, %v4603
        %v4624 = vpack.c.bf16 %v4608, %v4606
        %v4625 = vpack.c.bf16 %v4609, %v4607
        %v4627 = vmul.bf16 %v4610, 1069105081
        %v4628 = vpow.bf16.pop %v4627
        %v4630 = vmul.bf16 %v4611, 1069105081
        %v4631 = vpow.bf16.pop %v4630
        %v4633 = vmul.bf16 %v4612, 1069105081
        %v4634 = vpow.bf16.pop %v4633
        %v4636 = vmul.bf16 %v4613, 1069105081
        %v4637 = vpow.bf16.pop %v4636
        %v4639 = vmul.bf16 %v4614, 1069105081
        %v4640 = vpow.bf16.pop %v4639
        %v4642 = vmul.bf16 %v4615, 1069105081
        %v4643 = vpow.bf16.pop %v4642
        %v4645 = vmul.bf16 %v4616, 1069105081
        %v4646 = vpow.bf16.pop %v4645
        %v4648 = vmul.bf16 %v4617, 1069105081
        %v4649 = vpow.bf16.pop %v4648
        %v4651 = vmul.bf16 %v4618, 1069105081
        %v4652 = vpow.bf16.pop %v4651
        %v4654 = vmul.bf16 %v4619, 1069105081
        %v4655 = vpow.bf16.pop %v4654
        %v4657 = vmul.bf16 %v4620, 1069105081
        %v4658 = vpow.bf16.pop %v4657
        %v4660 = vmul.bf16 %v4621, 1069105081
        %v4661 = vpow.bf16.pop %v4660
        %v4663 = vmul.bf16 %v4622, 1069105081
        %v4664 = vpow.bf16.pop %v4663
        %v4666 = vmul.bf16 %v4623, 1069105081
        %v4667 = vpow.bf16.pop %v4666
        %v4669 = vmul.bf16 %v4624, 1069105081
        %v4670 = vpow.bf16.pop %v4669
        %v4672 = vmul.bf16 %v4625, 1069105081
        %v4673 = vpow.bf16.pop %v4672
        %v4674 = vunpack.c.l.bf16 %v4628
        %v4675 = vunpack.c.l.bf16 %v4631
        %v4676 = vunpack.c.h.bf16 %v4628
        %v4677 = vunpack.c.h.bf16 %v4631
        %v4678 = vunpack.c.l.bf16 %v4634
        %v4679 = vunpack.c.l.bf16 %v4637
        %v4680 = vunpack.c.h.bf16 %v4634
        %v4681 = vunpack.c.h.bf16 %v4637
        %v4682 = vunpack.c.l.bf16 %v4640
        %v4683 = vunpack.c.l.bf16 %v4643
        %v4684 = vunpack.c.h.bf16 %v4640
        %v4685 = vunpack.c.h.bf16 %v4643
        %v4686 = vunpack.c.l.bf16 %v4646
        %v4687 = vunpack.c.l.bf16 %v4649
        %v4688 = vunpack.c.h.bf16 %v4646
        %v4689 = vunpack.c.h.bf16 %v4649
        %v4690 = vunpack.c.l.bf16 %v4652
        %v4691 = vunpack.c.l.bf16 %v4655
        %v4692 = vunpack.c.h.bf16 %v4652
        %v4693 = vunpack.c.h.bf16 %v4655
        %v4694 = vunpack.c.l.bf16 %v4658
        %v4695 = vunpack.c.l.bf16 %v4661
        %v4696 = vunpack.c.h.bf16 %v4658
        %v4697 = vunpack.c.h.bf16 %v4661
        %v4698 = vunpack.c.l.bf16 %v4664
        %v4699 = vunpack.c.l.bf16 %v4667
        %v4700 = vunpack.c.h.bf16 %v4664
        %v4701 = vunpack.c.h.bf16 %v4667
        %v4702 = vunpack.c.l.bf16 %v4670
        %v4703 = vunpack.c.l.bf16 %v4673
        %v4704 = vunpack.c.h.bf16 %v4670
        %v4705 = vunpack.c.h.bf16 %v4673
        %v4706 = vadd.f32 %v4674, %v4675
        %4707 = vadd.xlane.f32.xlu0 %v4706
        %v4708 = vpop.xlane.xlu0 %4707
        %v4709 = vadd.f32 %v4676, %v4677
        %4710 = vadd.xlane.f32.xlu0 %v4709
        %v4711 = vpop.xlane.xlu0 %4710
        %v4712 = vadd.f32 %v4678, %v4679
        %4713 = vadd.xlane.f32.xlu0 %v4712
        %v4714 = vpop.xlane.xlu0 %4713
        %v4715 = vadd.f32 %v4680, %v4681
        %4716 = vadd.xlane.f32.xlu0 %v4715
        %v4717 = vpop.xlane.xlu0 %4716
        %v4718 = vadd.f32 %v4682, %v4683
        %4719 = vadd.xlane.f32.xlu0 %v4718
        %v4720 = vpop.xlane.xlu0 %4719
        %v4721 = vadd.f32 %v4684, %v4685
        %4722 = vadd.xlane.f32.xlu0 %v4721
        %v4723 = vpop.xlane.xlu0 %4722
        %v4724 = vadd.f32 %v4686, %v4687
        %4725 = vadd.xlane.f32.xlu0 %v4724
        %v4726 = vpop.xlane.xlu0 %4725
        %v4727 = vadd.f32 %v4688, %v4689
        %4728 = vadd.xlane.f32.xlu0 %v4727
        %v4729 = vpop.xlane.xlu0 %4728
        %v4730 = vadd.f32 %v4690, %v4691
        %4731 = vadd.xlane.f32.xlu0 %v4730
        %v4732 = vpop.xlane.xlu0 %4731
        %v4733 = vadd.f32 %v4692, %v4693
        %4734 = vadd.xlane.f32.xlu0 %v4733
        %v4735 = vpop.xlane.xlu0 %4734
        %v4736 = vadd.f32 %v4694, %v4695
        %4737 = vadd.xlane.f32.xlu0 %v4736
        %v4738 = vpop.xlane.xlu0 %4737
        %v4739 = vadd.f32 %v4696, %v4697
        %4740 = vadd.xlane.f32.xlu0 %v4739
        %v4741 = vpop.xlane.xlu0 %4740
        %v4742 = vadd.f32 %v4698, %v4699
        %4743 = vadd.xlane.f32.xlu0 %v4742
        %v4744 = vpop.xlane.xlu0 %4743
        %v4745 = vadd.f32 %v4700, %v4701
        %4746 = vadd.xlane.f32.xlu0 %v4745
        %v4747 = vpop.xlane.xlu0 %4746
        %v4748 = vadd.f32 %v4702, %v4703
        %4749 = vadd.xlane.f32.xlu0 %v4748
        %v4750 = vpop.xlane.xlu0 %4749
        %v4751 = vadd.f32 %v4704, %v4705
        %4752 = vadd.xlane.f32.xlu0 %v4751
        %v4753 = vpop.xlane.xlu0 %4752
        %4754 = vmatprep.subr.bf16.mxu0 0
        %4755 = vmatpush1.bf16.msra.mxu0 %v1803
        %4756 = vmatprep.subr.bf16.mxu0 0
        %4757 = vmatpush1.bf16.msra.mxu0 %v1801
        %4758 = vmatprep.subr.bf16.mxu0 0
        %4759 = vmatpush1.bf16.msra.mxu0 %v1799
        %4760 = vmatprep.subr.bf16.mxu0 0
        %4761 = vmatpush1.bf16.msra.mxu0 %v1797
        %4762 = vmatprep.subr.bf16.mxu0 0
        %4763 = vmatpush1.bf16.msra.mxu0 %v1795
        %4764 = vmatprep.subr.bf16.mxu0 0
        %4765 = vmatpush1.bf16.msra.mxu0 %v1793
        %4766 = vmatprep.subr.bf16.mxu0 0
        %4767 = vmatpush1.bf16.msra.mxu0 %v1791
        %4768 = vmatprep.subr.bf16.mxu0 0
        %4769 = vmatpush1.bf16.msra.mxu0 %v1789
        %4770 = vmatprep.subr.bf16.mxu0 0
        %4771 = vmatpush2.bf16.msra.mxu0 %v1819
        %4772 = vmatprep.subr.bf16.mxu0 0
        %4773 = vmatpush2.bf16.msra.mxu0 %v1817
        %4774 = vmatprep.subr.bf16.mxu0 0
        %4775 = vmatpush2.bf16.msra.mxu0 %v1815
        %4776 = vmatprep.subr.bf16.mxu0 0
        %4777 = vmatpush2.bf16.msra.mxu0 %v1813
        %4778 = vmatprep.subr.bf16.mxu0 0
        %4779 = vmatpush2.bf16.msra.mxu0 %v1811
        %4780 = vmatprep.subr.bf16.mxu0 0
        %4781 = vmatpush2.bf16.msra.mxu0 %v1809
        %4782 = vmatprep.subr.bf16.mxu0 0
        %4783 = vmatpush2.bf16.msra.mxu0 %v1807
        %4784 = vmatprep.subr.bf16.mxu0 0
        %4785 = vmatpush2.bf16.msra.mxu0 %v1805
        %4786 = vmatprep.mubr.bf16.mxu0 %v4631
        %4787 = vmatmul.mubr.bf16.gmra.mxu0 %v4628
        %v4788 = vpop.f32.mrf.mxu0
        %v4789 = vadd.f32 0.0, %v4788
        %v4790 = vpop.f32.mrf.mxu0
        %v4791 = vpop.f32.mrf.mxu0
        %v4792 = vadd.f32 0.0, %v4791
        %v4793 = vpop.f32.mrf.mxu0
        %4794 = vmatprep.mubr.bf16.mxu0 %v4637
        %4795 = vmatmul.mubr.bf16.gmra.mxu0 %v4634
        %v4796 = vpop.f32.mrf.mxu0
        %v4797 = vadd.f32 0.0, %v4796
        %v4798 = vpop.f32.mrf.mxu0
        %v4799 = vpop.f32.mrf.mxu0
        %v4800 = vadd.f32 0.0, %v4799
        %v4801 = vpop.f32.mrf.mxu0
        %4802 = vmatprep.mubr.bf16.mxu0 %v4643
        %4803 = vmatmul.mubr.bf16.gmra.mxu0 %v4640
        %v4804 = vpop.f32.mrf.mxu0
        %v4805 = vadd.f32 0.0, %v4804
        %v4806 = vpop.f32.mrf.mxu0
        %v4807 = vpop.f32.mrf.mxu0
        %v4808 = vadd.f32 0.0, %v4807
        %v4809 = vpop.f32.mrf.mxu0
        %4810 = vmatprep.mubr.bf16.mxu0 %v4649
        %4811 = vmatmul.mubr.bf16.gmra.mxu0 %v4646
        %v4812 = vpop.f32.mrf.mxu0
        %v4813 = vadd.f32 0.0, %v4812
        %v4814 = vpop.f32.mrf.mxu0
        %v4815 = vpop.f32.mrf.mxu0
        %v4816 = vadd.f32 0.0, %v4815
        %v4817 = vpop.f32.mrf.mxu0
        %4818 = vmatprep.mubr.bf16.mxu0 %v4655
        %4819 = vmatmul.mubr.bf16.gmra.mxu0 %v4652
        %v4820 = vpop.f32.mrf.mxu0
        %v4821 = vadd.f32 0.0, %v4820
        %v4822 = vpop.f32.mrf.mxu0
        %v4823 = vpop.f32.mrf.mxu0
        %v4824 = vadd.f32 0.0, %v4823
        %v4825 = vpop.f32.mrf.mxu0
        %4826 = vmatprep.mubr.bf16.mxu0 %v4661
        %4827 = vmatmul.mubr.bf16.gmra.mxu0 %v4658
        %v4828 = vpop.f32.mrf.mxu0
        %v4829 = vadd.f32 0.0, %v4828
        %v4830 = vpop.f32.mrf.mxu0
        %v4831 = vpop.f32.mrf.mxu0
        %v4832 = vadd.f32 0.0, %v4831
        %v4833 = vpop.f32.mrf.mxu0
        %4834 = vmatprep.mubr.bf16.mxu0 %v4667
        %4835 = vmatmul.mubr.bf16.gmra.mxu0 %v4664
        %v4836 = vpop.f32.mrf.mxu0
        %v4837 = vadd.f32 0.0, %v4836
        %v4838 = vpop.f32.mrf.mxu0
        %v4839 = vpop.f32.mrf.mxu0
        %v4840 = vadd.f32 0.0, %v4839
        %v4841 = vpop.f32.mrf.mxu0
        %4842 = vmatprep.mubr.bf16.mxu0 %v4673
        %4843 = vmatmul.mubr.bf16.gmra.mxu0 %v4670
        %v4844 = vpop.f32.mrf.mxu0
        %v4845 = vadd.f32 0.0, %v4844
        %v4846 = vpop.f32.mrf.mxu0
        %v4847 = vpop.f32.mrf.mxu0
        %v4848 = vadd.f32 0.0, %v4847
        %v4849 = vpop.f32.mrf.mxu0
        %4850 = vdwg.mxu0
        %v4851 = vrcp.pop %v4708
        %v4852 = vrcp.pop %v4711
        %v4853 = vrcp.pop %v4714
        %v4854 = vrcp.pop %v4717
        %v4855 = vrcp.pop %v4720
        %v4856 = vrcp.pop %v4723
        %v4857 = vrcp.pop %v4726
        %v4858 = vrcp.pop %v4729
        %v4859 = vrcp.pop %v4732
        %v4860 = vrcp.pop %v4735
        %v4861 = vrcp.pop %v4738
        %v4862 = vrcp.pop %v4741
        %v4863 = vrcp.pop %v4744
        %v4864 = vrcp.pop %v4747
        %v4865 = vrcp.pop %v4750
        %v4866 = vrcp.pop %v4753
        %v4867 = vmul.f32 %v4789, %v4851
        %v4868 = vmul.f32 %v4792, %v4852
        %v4869 = vmul.f32 %v4797, %v4853
        %v4870 = vmul.f32 %v4800, %v4854
        %v4871 = vmul.f32 %v4805, %v4855
        %v4872 = vmul.f32 %v4808, %v4856
        %v4873 = vmul.f32 %v4813, %v4857
        %v4874 = vmul.f32 %v4816, %v4858
        %v4875 = vmul.f32 %v4821, %v4859
        %v4876 = vmul.f32 %v4824, %v4860
        %v4877 = vmul.f32 %v4829, %v4861
        %v4878 = vmul.f32 %v4832, %v4862
        %v4879 = vmul.f32 %v4837, %v4863
        %v4880 = vmul.f32 %v4840, %v4864
        %v4881 = vmul.f32 %v4845, %v4865
        %v4882 = vmul.f32 %v4848, %v4866
        %4883 = vrot.lane.b32.xlu0 %v818, 112
        %v4884 = vpop.permute.xlu0 %4883
        %4885 = vrot.lane.b32.xlu0 %v819, 112
        %v4886 = vpop.permute.xlu0 %4885
        %4887 = vrot.lane.b32.xlu0 %v820, 112
        %v4888 = vpop.permute.xlu0 %4887
        %4889 = vrot.lane.b32.xlu0 %v821, 112
        %v4890 = vpop.permute.xlu0 %4889
        %4891 = vrot.lane.b32.xlu0 %v822, 112
        %v4892 = vpop.permute.xlu0 %4891
        %4893 = vrot.lane.b32.xlu0 %v823, 112
        %v4894 = vpop.permute.xlu0 %4893
        %4895 = vrot.lane.b32.xlu0 %v824, 112
        %v4896 = vpop.permute.xlu0 %4895
        %4897 = vrot.lane.b32.xlu0 %v825, 112
        %v4898 = vpop.permute.xlu0 %4897
        %v4900 = vsel %vm840, %v4884, 0
        %v4903 = vsel %vm840, %v4886, 0
        %v4906 = vsel %vm840, %v4888, 0
        %v4909 = vsel %vm840, %v4890, 0
        %v4912 = vsel %vm840, %v4892, 0
        %v4915 = vsel %vm840, %v4894, 0
        %v4918 = vsel %vm840, %v4896, 0
        %v4921 = vsel %vm840, %v4898, 0
        %4923 = vmatprep.subr.bf16.mxu0 0
        %4924 = vmatpush1.bf16.msra.mxu0 0
        %4925 = vmatprep.subr.bf16.mxu0 0
        %4926 = vmatpush1.bf16.msra.mxu0 0
        %4927 = vmatprep.subr.bf16.mxu0 0
        %4928 = vmatpush1.bf16.msra.mxu0 0
        %4929 = vmatprep.subr.bf16.mxu0 0
        %4930 = vmatpush1.bf16.msra.mxu0 0
        %4931 = vmatprep.subr.bf16.mxu0 0
        %4932 = vmatpush1.bf16.msra.mxu0 0
        %4933 = vmatprep.subr.bf16.mxu0 0
        %4934 = vmatpush1.bf16.msra.mxu0 0
        %4935 = vmatprep.subr.bf16.mxu0 0
        %4936 = vmatpush1.bf16.msra.mxu0 0
        %4937 = vmatprep.subr.bf16.mxu0 %v2009
        %4938 = vmatpush1.bf16.msra.mxu0 %v2006
        %4939 = vmatprep.subr.bf16.mxu0 0
        %4940 = vmatpush2.bf16.msra.mxu0 0
        %4941 = vmatprep.subr.bf16.mxu0 0
        %4942 = vmatpush2.bf16.msra.mxu0 0
        %4943 = vmatprep.subr.bf16.mxu0 0
        %4944 = vmatpush2.bf16.msra.mxu0 0
        %4945 = vmatprep.subr.bf16.mxu0 0
        %4946 = vmatpush2.bf16.msra.mxu0 0
        %4947 = vmatprep.subr.bf16.mxu0 0
        %4948 = vmatpush2.bf16.msra.mxu0 0
        %4949 = vmatprep.subr.bf16.mxu0 0
        %4950 = vmatpush2.bf16.msra.mxu0 0
        %4951 = vmatprep.subr.bf16.mxu0 0
        %4952 = vmatpush2.bf16.msra.mxu0 0
        %4953 = vmatprep.subr.bf16.mxu0 0
        %4954 = vmatpush2.bf16.msra.mxu0 0
        %4955 = vmatprep.mubr.bf16.mxu0 0
        %4956 = vmatmul.mubr.bf16.gmra.mxu0 %v4900
        %v4957 = vpop.f32.mrf.mxu0
        %v4958 = vadd.f32 0.0, %v4957
        %v4959 = vpop.f32.mrf.mxu0
        %v4960 = vadd.f32 0.0, %v4959
        %v4961 = vpop.f32.mrf.mxu0
        %v4962 = vadd.f32 0.0, %v4961
        %v4963 = vpop.f32.mrf.mxu0
        %v4964 = vadd.f32 0.0, %v4963
        %4965 = vmatprep.mubr.bf16.mxu0 0
        %4966 = vmatmul.mubr.bf16.gmra.mxu0 %v4903
        %v4967 = vpop.f32.mrf.mxu0
        %v4968 = vadd.f32 0.0, %v4967
        %v4969 = vpop.f32.mrf.mxu0
        %v4970 = vadd.f32 0.0, %v4969
        %v4971 = vpop.f32.mrf.mxu0
        %v4972 = vadd.f32 0.0, %v4971
        %v4973 = vpop.f32.mrf.mxu0
        %v4974 = vadd.f32 0.0, %v4973
        %4975 = vmatprep.mubr.bf16.mxu0 0
        %4976 = vmatmul.mubr.bf16.gmra.mxu0 %v4906
        %v4977 = vpop.f32.mrf.mxu0
        %v4978 = vadd.f32 0.0, %v4977
        %v4979 = vpop.f32.mrf.mxu0
        %v4980 = vadd.f32 0.0, %v4979
        %v4981 = vpop.f32.mrf.mxu0
        %v4982 = vadd.f32 0.0, %v4981
        %v4983 = vpop.f32.mrf.mxu0
        %v4984 = vadd.f32 0.0, %v4983
        %4985 = vmatprep.mubr.bf16.mxu0 0
        %4986 = vmatmul.mubr.bf16.gmra.mxu0 %v4909
        %v4987 = vpop.f32.mrf.mxu0
        %v4988 = vadd.f32 0.0, %v4987
        %v4989 = vpop.f32.mrf.mxu0
        %v4990 = vadd.f32 0.0, %v4989
        %v4991 = vpop.f32.mrf.mxu0
        %v4992 = vadd.f32 0.0, %v4991
        %v4993 = vpop.f32.mrf.mxu0
        %v4994 = vadd.f32 0.0, %v4993
        %4995 = vmatprep.mubr.bf16.mxu0 0
        %4996 = vmatmul.mubr.bf16.gmra.mxu0 %v4912
        %v4997 = vpop.f32.mrf.mxu0
        %v4998 = vadd.f32 0.0, %v4997
        %v4999 = vpop.f32.mrf.mxu0
        %v5000 = vadd.f32 0.0, %v4999
        %v5001 = vpop.f32.mrf.mxu0
        %v5002 = vadd.f32 0.0, %v5001
        %v5003 = vpop.f32.mrf.mxu0
        %v5004 = vadd.f32 0.0, %v5003
        %5005 = vmatprep.mubr.bf16.mxu0 0
        %5006 = vmatmul.mubr.bf16.gmra.mxu0 %v4915
        %v5007 = vpop.f32.mrf.mxu0
        %v5008 = vadd.f32 0.0, %v5007
        %v5009 = vpop.f32.mrf.mxu0
        %v5010 = vadd.f32 0.0, %v5009
        %v5011 = vpop.f32.mrf.mxu0
        %v5012 = vadd.f32 0.0, %v5011
        %v5013 = vpop.f32.mrf.mxu0
        %v5014 = vadd.f32 0.0, %v5013
        %5015 = vmatprep.mubr.bf16.mxu0 0
        %5016 = vmatmul.mubr.bf16.gmra.mxu0 %v4918
        %v5017 = vpop.f32.mrf.mxu0
        %v5018 = vadd.f32 0.0, %v5017
        %v5019 = vpop.f32.mrf.mxu0
        %v5020 = vadd.f32 0.0, %v5019
        %v5021 = vpop.f32.mrf.mxu0
        %v5022 = vadd.f32 0.0, %v5021
        %v5023 = vpop.f32.mrf.mxu0
        %v5024 = vadd.f32 0.0, %v5023
        %5025 = vmatprep.mubr.bf16.mxu0 0
        %5026 = vmatmul.mubr.bf16.gmra.mxu0 %v4921
        %v5027 = vpop.f32.mrf.mxu0
        %v5028 = vadd.f32 0.0, %v5027
        %v5029 = vpop.f32.mrf.mxu0
        %v5030 = vadd.f32 0.0, %v5029
        %v5031 = vpop.f32.mrf.mxu0
        %v5032 = vadd.f32 0.0, %v5031
        %v5033 = vpop.f32.mrf.mxu0
        %v5034 = vadd.f32 0.0, %v5033
        %5035 = vdwg.mxu0
        %v5036 = vmax.f32 %v4958, %v4960
        %5037 = vmax.xlane.f32.xlu0 %v5036
        %v5038 = vpop.xlane.xlu0 %5037
        %v5039 = vmax.f32 %v4962, %v4964
        %5040 = vmax.xlane.f32.xlu0 %v5039
        %v5041 = vpop.xlane.xlu0 %5040
        %v5042 = vmax.f32 %v4968, %v4970
        %5043 = vmax.xlane.f32.xlu0 %v5042
        %v5044 = vpop.xlane.xlu0 %5043
        %v5045 = vmax.f32 %v4972, %v4974
        %5046 = vmax.xlane.f32.xlu0 %v5045
        %v5047 = vpop.xlane.xlu0 %5046
        %v5048 = vmax.f32 %v4978, %v4980
        %5049 = vmax.xlane.f32.xlu0 %v5048
        %v5050 = vpop.xlane.xlu0 %5049
        %v5051 = vmax.f32 %v4982, %v4984
        %5052 = vmax.xlane.f32.xlu0 %v5051
        %v5053 = vpop.xlane.xlu0 %5052
        %v5054 = vmax.f32 %v4988, %v4990
        %5055 = vmax.xlane.f32.xlu0 %v5054
        %v5056 = vpop.xlane.xlu0 %5055
        %v5057 = vmax.f32 %v4992, %v4994
        %5058 = vmax.xlane.f32.xlu0 %v5057
        %v5059 = vpop.xlane.xlu0 %5058
        %v5060 = vmax.f32 %v4998, %v5000
        %5061 = vmax.xlane.f32.xlu0 %v5060
        %v5062 = vpop.xlane.xlu0 %5061
        %v5063 = vmax.f32 %v5002, %v5004
        %5064 = vmax.xlane.f32.xlu0 %v5063
        %v5065 = vpop.xlane.xlu0 %5064
        %v5066 = vmax.f32 %v5008, %v5010
        %5067 = vmax.xlane.f32.xlu0 %v5066
        %v5068 = vpop.xlane.xlu0 %5067
        %v5069 = vmax.f32 %v5012, %v5014
        %5070 = vmax.xlane.f32.xlu0 %v5069
        %v5071 = vpop.xlane.xlu0 %5070
        %v5072 = vmax.f32 %v5018, %v5020
        %5073 = vmax.xlane.f32.xlu0 %v5072
        %v5074 = vpop.xlane.xlu0 %5073
        %v5075 = vmax.f32 %v5022, %v5024
        %5076 = vmax.xlane.f32.xlu0 %v5075
        %v5077 = vpop.xlane.xlu0 %5076
        %v5078 = vmax.f32 %v5028, %v5030
        %5079 = vmax.xlane.f32.xlu0 %v5078
        %v5080 = vpop.xlane.xlu0 %5079
        %v5081 = vmax.f32 %v5032, %v5034
        %5082 = vmax.xlane.f32.xlu0 %v5081
        %v5083 = vpop.xlane.xlu0 %5082
        %v5084 = vsub.f32 %v4958, %v5038
        %v5085 = vsub.f32 %v4960, %v5038
        %v5086 = vsub.f32 %v4962, %v5041
        %v5087 = vsub.f32 %v4964, %v5041
        %v5088 = vsub.f32 %v4968, %v5044
        %v5089 = vsub.f32 %v4970, %v5044
        %v5090 = vsub.f32 %v4972, %v5047
        %v5091 = vsub.f32 %v4974, %v5047
        %v5092 = vsub.f32 %v4978, %v5050
        %v5093 = vsub.f32 %v4980, %v5050
        %v5094 = vsub.f32 %v4982, %v5053
        %v5095 = vsub.f32 %v4984, %v5053
        %v5096 = vsub.f32 %v4988, %v5056
        %v5097 = vsub.f32 %v4990, %v5056
        %v5098 = vsub.f32 %v4992, %v5059
        %v5099 = vsub.f32 %v4994, %v5059
        %v5100 = vsub.f32 %v4998, %v5062
        %v5101 = vsub.f32 %v5000, %v5062
        %v5102 = vsub.f32 %v5002, %v5065
        %v5103 = vsub.f32 %v5004, %v5065
        %v5104 = vsub.f32 %v5008, %v5068
        %v5105 = vsub.f32 %v5010, %v5068
        %v5106 = vsub.f32 %v5012, %v5071
        %v5107 = vsub.f32 %v5014, %v5071
        %v5108 = vsub.f32 %v5018, %v5074
        %v5109 = vsub.f32 %v5020, %v5074
        %v5110 = vsub.f32 %v5022, %v5077
        %v5111 = vsub.f32 %v5024, %v5077
        %v5112 = vsub.f32 %v5028, %v5080
        %v5113 = vsub.f32 %v5030, %v5080
        %v5114 = vsub.f32 %v5032, %v5083
        %v5115 = vsub.f32 %v5034, %v5083
        %v5116 = vpack.c.bf16 %v5086, %v5084
        %v5117 = vpack.c.bf16 %v5087, %v5085
        %v5118 = vpack.c.bf16 %v5090, %v5088
        %v5119 = vpack.c.bf16 %v5091, %v5089
        %v5120 = vpack.c.bf16 %v5094, %v5092
        %v5121 = vpack.c.bf16 %v5095, %v5093
        %v5122 = vpack.c.bf16 %v5098, %v5096
        %v5123 = vpack.c.bf16 %v5099, %v5097
        %v5124 = vpack.c.bf16 %v5102, %v5100
        %v5125 = vpack.c.bf16 %v5103, %v5101
        %v5126 = vpack.c.bf16 %v5106, %v5104
        %v5127 = vpack.c.bf16 %v5107, %v5105
        %v5128 = vpack.c.bf16 %v5110, %v5108
        %v5129 = vpack.c.bf16 %v5111, %v5109
        %v5130 = vpack.c.bf16 %v5114, %v5112
        %v5131 = vpack.c.bf16 %v5115, %v5113
        %v5133 = vmul.bf16 %v5116, 1069105081
        %v5134 = vpow.bf16.pop %v5133
        %v5136 = vmul.bf16 %v5117, 1069105081
        %v5137 = vpow.bf16.pop %v5136
        %v5139 = vmul.bf16 %v5118, 1069105081
        %v5140 = vpow.bf16.pop %v5139
        %v5142 = vmul.bf16 %v5119, 1069105081
        %v5143 = vpow.bf16.pop %v5142
        %v5145 = vmul.bf16 %v5120, 1069105081
        %v5146 = vpow.bf16.pop %v5145
        %v5148 = vmul.bf16 %v5121, 1069105081
        %v5149 = vpow.bf16.pop %v5148
        %v5151 = vmul.bf16 %v5122, 1069105081
        %v5152 = vpow.bf16.pop %v5151
        %v5154 = vmul.bf16 %v5123, 1069105081
        %v5155 = vpow.bf16.pop %v5154
        %v5157 = vmul.bf16 %v5124, 1069105081
        %v5158 = vpow.bf16.pop %v5157
        %v5160 = vmul.bf16 %v5125, 1069105081
        %v5161 = vpow.bf16.pop %v5160
        %v5163 = vmul.bf16 %v5126, 1069105081
        %v5164 = vpow.bf16.pop %v5163
        %v5166 = vmul.bf16 %v5127, 1069105081
        %v5167 = vpow.bf16.pop %v5166
        %v5169 = vmul.bf16 %v5128, 1069105081
        %v5170 = vpow.bf16.pop %v5169
        %v5172 = vmul.bf16 %v5129, 1069105081
        %v5173 = vpow.bf16.pop %v5172
        %v5175 = vmul.bf16 %v5130, 1069105081
        %v5176 = vpow.bf16.pop %v5175
        %v5178 = vmul.bf16 %v5131, 1069105081
        %v5179 = vpow.bf16.pop %v5178
        %v5180 = vunpack.c.l.bf16 %v5134
        %v5181 = vunpack.c.l.bf16 %v5137
        %v5182 = vunpack.c.h.bf16 %v5134
        %v5183 = vunpack.c.h.bf16 %v5137
        %v5184 = vunpack.c.l.bf16 %v5140
        %v5185 = vunpack.c.l.bf16 %v5143
        %v5186 = vunpack.c.h.bf16 %v5140
        %v5187 = vunpack.c.h.bf16 %v5143
        %v5188 = vunpack.c.l.bf16 %v5146
        %v5189 = vunpack.c.l.bf16 %v5149
        %v5190 = vunpack.c.h.bf16 %v5146
        %v5191 = vunpack.c.h.bf16 %v5149
        %v5192 = vunpack.c.l.bf16 %v5152
        %v5193 = vunpack.c.l.bf16 %v5155
        %v5194 = vunpack.c.h.bf16 %v5152
        %v5195 = vunpack.c.h.bf16 %v5155
        %v5196 = vunpack.c.l.bf16 %v5158
        %v5197 = vunpack.c.l.bf16 %v5161
        %v5198 = vunpack.c.h.bf16 %v5158
        %v5199 = vunpack.c.h.bf16 %v5161
        %v5200 = vunpack.c.l.bf16 %v5164
        %v5201 = vunpack.c.l.bf16 %v5167
        %v5202 = vunpack.c.h.bf16 %v5164
        %v5203 = vunpack.c.h.bf16 %v5167
        %v5204 = vunpack.c.l.bf16 %v5170
        %v5205 = vunpack.c.l.bf16 %v5173
        %v5206 = vunpack.c.h.bf16 %v5170
        %v5207 = vunpack.c.h.bf16 %v5173
        %v5208 = vunpack.c.l.bf16 %v5176
        %v5209 = vunpack.c.l.bf16 %v5179
        %v5210 = vunpack.c.h.bf16 %v5176
        %v5211 = vunpack.c.h.bf16 %v5179
        %v5212 = vadd.f32 %v5180, %v5181
        %5213 = vadd.xlane.f32.xlu0 %v5212
        %v5214 = vpop.xlane.xlu0 %5213
        %v5215 = vadd.f32 %v5182, %v5183
        %5216 = vadd.xlane.f32.xlu0 %v5215
        %v5217 = vpop.xlane.xlu0 %5216
        %v5218 = vadd.f32 %v5184, %v5185
        %5219 = vadd.xlane.f32.xlu0 %v5218
        %v5220 = vpop.xlane.xlu0 %5219
        %v5221 = vadd.f32 %v5186, %v5187
        %5222 = vadd.xlane.f32.xlu0 %v5221
        %v5223 = vpop.xlane.xlu0 %5222
        %v5224 = vadd.f32 %v5188, %v5189
        %5225 = vadd.xlane.f32.xlu0 %v5224
        %v5226 = vpop.xlane.xlu0 %5225
        %v5227 = vadd.f32 %v5190, %v5191
        %5228 = vadd.xlane.f32.xlu0 %v5227
        %v5229 = vpop.xlane.xlu0 %5228
        %v5230 = vadd.f32 %v5192, %v5193
        %5231 = vadd.xlane.f32.xlu0 %v5230
        %v5232 = vpop.xlane.xlu0 %5231
        %v5233 = vadd.f32 %v5194, %v5195
        %5234 = vadd.xlane.f32.xlu0 %v5233
        %v5235 = vpop.xlane.xlu0 %5234
        %v5236 = vadd.f32 %v5196, %v5197
        %5237 = vadd.xlane.f32.xlu0 %v5236
        %v5238 = vpop.xlane.xlu0 %5237
        %v5239 = vadd.f32 %v5198, %v5199
        %5240 = vadd.xlane.f32.xlu0 %v5239
        %v5241 = vpop.xlane.xlu0 %5240
        %v5242 = vadd.f32 %v5200, %v5201
        %5243 = vadd.xlane.f32.xlu0 %v5242
        %v5244 = vpop.xlane.xlu0 %5243
        %v5245 = vadd.f32 %v5202, %v5203
        %5246 = vadd.xlane.f32.xlu0 %v5245
        %v5247 = vpop.xlane.xlu0 %5246
        %v5248 = vadd.f32 %v5204, %v5205
        %5249 = vadd.xlane.f32.xlu0 %v5248
        %v5250 = vpop.xlane.xlu0 %5249
        %v5251 = vadd.f32 %v5206, %v5207
        %5252 = vadd.xlane.f32.xlu0 %v5251
        %v5253 = vpop.xlane.xlu0 %5252
        %v5254 = vadd.f32 %v5208, %v5209
        %5255 = vadd.xlane.f32.xlu0 %v5254
        %v5256 = vpop.xlane.xlu0 %5255
        %v5257 = vadd.f32 %v5210, %v5211
        %5258 = vadd.xlane.f32.xlu0 %v5257
        %v5259 = vpop.xlane.xlu0 %5258
        %5260 = vmatprep.subr.bf16.mxu0 0
        %5261 = vmatpush1.bf16.msra.mxu0 %v2363
        %5262 = vmatprep.subr.bf16.mxu0 0
        %5263 = vmatpush1.bf16.msra.mxu0 %v2361
        %5264 = vmatprep.subr.bf16.mxu0 0
        %5265 = vmatpush1.bf16.msra.mxu0 %v2359
        %5266 = vmatprep.subr.bf16.mxu0 0
        %5267 = vmatpush1.bf16.msra.mxu0 %v2357
        %5268 = vmatprep.subr.bf16.mxu0 0
        %5269 = vmatpush1.bf16.msra.mxu0 %v2355
        %5270 = vmatprep.subr.bf16.mxu0 0
        %5271 = vmatpush1.bf16.msra.mxu0 %v2353
        %5272 = vmatprep.subr.bf16.mxu0 0
        %5273 = vmatpush1.bf16.msra.mxu0 %v2351
        %5274 = vmatprep.subr.bf16.mxu0 0
        %5275 = vmatpush1.bf16.msra.mxu0 %v2349
        %5276 = vmatprep.subr.bf16.mxu0 0
        %5277 = vmatpush2.bf16.msra.mxu0 %v2379
        %5278 = vmatprep.subr.bf16.mxu0 0
        %5279 = vmatpush2.bf16.msra.mxu0 %v2377
        %5280 = vmatprep.subr.bf16.mxu0 0
        %5281 = vmatpush2.bf16.msra.mxu0 %v2375
        %5282 = vmatprep.subr.bf16.mxu0 0
        %5283 = vmatpush2.bf16.msra.mxu0 %v2373
        %5284 = vmatprep.subr.bf16.mxu0 0
        %5285 = vmatpush2.bf16.msra.mxu0 %v2371
        %5286 = vmatprep.subr.bf16.mxu0 0
        %5287 = vmatpush2.bf16.msra.mxu0 %v2369
        %5288 = vmatprep.subr.bf16.mxu0 0
        %5289 = vmatpush2.bf16.msra.mxu0 %v2367
        %5290 = vmatprep.subr.bf16.mxu0 0
        %5291 = vmatpush2.bf16.msra.mxu0 %v2365
        %5292 = vmatprep.mubr.bf16.mxu0 %v5137
        %5293 = vmatmul.mubr.bf16.gmra.mxu0 %v5134
        %v5294 = vpop.f32.mrf.mxu0
        %v5295 = vadd.f32 0.0, %v5294
        %v5296 = vpop.f32.mrf.mxu0
        %v5297 = vpop.f32.mrf.mxu0
        %v5298 = vadd.f32 0.0, %v5297
        %v5299 = vpop.f32.mrf.mxu0
        %5300 = vmatprep.mubr.bf16.mxu0 %v5143
        %5301 = vmatmul.mubr.bf16.gmra.mxu0 %v5140
        %v5302 = vpop.f32.mrf.mxu0
        %v5303 = vadd.f32 0.0, %v5302
        %v5304 = vpop.f32.mrf.mxu0
        %v5305 = vpop.f32.mrf.mxu0
        %v5306 = vadd.f32 0.0, %v5305
        %v5307 = vpop.f32.mrf.mxu0
        %5308 = vmatprep.mubr.bf16.mxu0 %v5149
        %5309 = vmatmul.mubr.bf16.gmra.mxu0 %v5146
        %v5310 = vpop.f32.mrf.mxu0
        %v5311 = vadd.f32 0.0, %v5310
        %v5312 = vpop.f32.mrf.mxu0
        %v5313 = vpop.f32.mrf.mxu0
        %v5314 = vadd.f32 0.0, %v5313
        %v5315 = vpop.f32.mrf.mxu0
        %5316 = vmatprep.mubr.bf16.mxu0 %v5155
        %5317 = vmatmul.mubr.bf16.gmra.mxu0 %v5152
        %v5318 = vpop.f32.mrf.mxu0
        %v5319 = vadd.f32 0.0, %v5318
        %v5320 = vpop.f32.mrf.mxu0
        %v5321 = vpop.f32.mrf.mxu0
        %v5322 = vadd.f32 0.0, %v5321
        %v5323 = vpop.f32.mrf.mxu0
        %5324 = vmatprep.mubr.bf16.mxu0 %v5161
        %5325 = vmatmul.mubr.bf16.gmra.mxu0 %v5158
        %v5326 = vpop.f32.mrf.mxu0
        %v5327 = vadd.f32 0.0, %v5326
        %v5328 = vpop.f32.mrf.mxu0
        %v5329 = vpop.f32.mrf.mxu0
        %v5330 = vadd.f32 0.0, %v5329
        %v5331 = vpop.f32.mrf.mxu0
        %5332 = vmatprep.mubr.bf16.mxu0 %v5167
        %5333 = vmatmul.mubr.bf16.gmra.mxu0 %v5164
        %v5334 = vpop.f32.mrf.mxu0
        %v5335 = vadd.f32 0.0, %v5334
        %v5336 = vpop.f32.mrf.mxu0
        %v5337 = vpop.f32.mrf.mxu0
        %v5338 = vadd.f32 0.0, %v5337
        %v5339 = vpop.f32.mrf.mxu0
        %5340 = vmatprep.mubr.bf16.mxu0 %v5173
        %5341 = vmatmul.mubr.bf16.gmra.mxu0 %v5170
        %v5342 = vpop.f32.mrf.mxu0
        %v5343 = vadd.f32 0.0, %v5342
        %v5344 = vpop.f32.mrf.mxu0
        %v5345 = vpop.f32.mrf.mxu0
        %v5346 = vadd.f32 0.0, %v5345
        %v5347 = vpop.f32.mrf.mxu0
        %5348 = vmatprep.mubr.bf16.mxu0 %v5179
        %5349 = vmatmul.mubr.bf16.gmra.mxu0 %v5176
        %v5350 = vpop.f32.mrf.mxu0
        %v5351 = vadd.f32 0.0, %v5350
        %v5352 = vpop.f32.mrf.mxu0
        %v5353 = vpop.f32.mrf.mxu0
        %v5354 = vadd.f32 0.0, %v5353
        %v5355 = vpop.f32.mrf.mxu0
        %5356 = vdwg.mxu0
        %v5357 = vrcp.pop %v5214
        %v5358 = vrcp.pop %v5217
        %v5359 = vrcp.pop %v5220
        %v5360 = vrcp.pop %v5223
        %v5361 = vrcp.pop %v5226
        %v5362 = vrcp.pop %v5229
        %v5363 = vrcp.pop %v5232
        %v5364 = vrcp.pop %v5235
        %v5365 = vrcp.pop %v5238
        %v5366 = vrcp.pop %v5241
        %v5367 = vrcp.pop %v5244
        %v5368 = vrcp.pop %v5247
        %v5369 = vrcp.pop %v5250
        %v5370 = vrcp.pop %v5253
        %v5371 = vrcp.pop %v5256
        %v5372 = vrcp.pop %v5259
        %v5373 = vmul.f32 %v5295, %v5357
        %v5374 = vmul.f32 %v5298, %v5358
        %v5375 = vmul.f32 %v5303, %v5359
        %v5376 = vmul.f32 %v5306, %v5360
        %v5377 = vmul.f32 %v5311, %v5361
        %v5378 = vmul.f32 %v5314, %v5362
        %v5379 = vmul.f32 %v5319, %v5363
        %v5380 = vmul.f32 %v5322, %v5364
        %v5381 = vmul.f32 %v5327, %v5365
        %v5382 = vmul.f32 %v5330, %v5366
        %v5383 = vmul.f32 %v5335, %v5367
        %v5384 = vmul.f32 %v5338, %v5368
        %v5385 = vmul.f32 %v5343, %v5369
        %v5386 = vmul.f32 %v5346, %v5370
        %v5387 = vmul.f32 %v5351, %v5371
        %v5388 = vmul.f32 %v5354, %v5372
        %5389 = vrot.lane.b32.xlu0 %v818, 104
        %v5390 = vpop.permute.xlu0 %5389
        %5391 = vrot.lane.b32.xlu0 %v819, 104
        %v5392 = vpop.permute.xlu0 %5391
        %5393 = vrot.lane.b32.xlu0 %v820, 104
        %v5394 = vpop.permute.xlu0 %5393
        %5395 = vrot.lane.b32.xlu0 %v821, 104
        %v5396 = vpop.permute.xlu0 %5395
        %5397 = vrot.lane.b32.xlu0 %v822, 104
        %v5398 = vpop.permute.xlu0 %5397
        %5399 = vrot.lane.b32.xlu0 %v823, 104
        %v5400 = vpop.permute.xlu0 %5399
        %5401 = vrot.lane.b32.xlu0 %v824, 104
        %v5402 = vpop.permute.xlu0 %5401
        %5403 = vrot.lane.b32.xlu0 %v825, 104
        %v5404 = vpop.permute.xlu0 %5403
        %v5406 = vsel %vm840, %v5390, 0
        %v5409 = vsel %vm840, %v5392, 0
        %v5412 = vsel %vm840, %v5394, 0
        %v5415 = vsel %vm840, %v5396, 0
        %v5418 = vsel %vm840, %v5398, 0
        %v5421 = vsel %vm840, %v5400, 0
        %v5424 = vsel %vm840, %v5402, 0
        %v5427 = vsel %vm840, %v5404, 0
        %5429 = vmatprep.subr.bf16.mxu0 0
        %5430 = vmatpush1.bf16.msra.mxu0 0
        %5431 = vmatprep.subr.bf16.mxu0 0
        %5432 = vmatpush1.bf16.msra.mxu0 0
        %5433 = vmatprep.subr.bf16.mxu0 0
        %5434 = vmatpush1.bf16.msra.mxu0 0
        %5435 = vmatprep.subr.bf16.mxu0 0
        %5436 = vmatpush1.bf16.msra.mxu0 0
        %5437 = vmatprep.subr.bf16.mxu0 0
        %5438 = vmatpush1.bf16.msra.mxu0 0
        %5439 = vmatprep.subr.bf16.mxu0 0
        %5440 = vmatpush1.bf16.msra.mxu0 0
        %5441 = vmatprep.subr.bf16.mxu0 0
        %5442 = vmatpush1.bf16.msra.mxu0 0
        %5443 = vmatprep.subr.bf16.mxu0 %v2573
        %5444 = vmatpush1.bf16.msra.mxu0 %v2570
        %5445 = vmatprep.subr.bf16.mxu0 0
        %5446 = vmatpush2.bf16.msra.mxu0 0
        %5447 = vmatprep.subr.bf16.mxu0 0
        %5448 = vmatpush2.bf16.msra.mxu0 0
        %5449 = vmatprep.subr.bf16.mxu0 0
        %5450 = vmatpush2.bf16.msra.mxu0 0
        %5451 = vmatprep.subr.bf16.mxu0 0
        %5452 = vmatpush2.bf16.msra.mxu0 0
        %5453 = vmatprep.subr.bf16.mxu0 0
        %5454 = vmatpush2.bf16.msra.mxu0 0
        %5455 = vmatprep.subr.bf16.mxu0 0
        %5456 = vmatpush2.bf16.msra.mxu0 0
        %5457 = vmatprep.subr.bf16.mxu0 0
        %5458 = vmatpush2.bf16.msra.mxu0 0
        %5459 = vmatprep.subr.bf16.mxu0 0
        %5460 = vmatpush2.bf16.msra.mxu0 0
        %5461 = vmatprep.mubr.bf16.mxu0 0
        %5462 = vmatmul.mubr.bf16.gmra.mxu0 %v5406
        %v5463 = vpop.f32.mrf.mxu0
        %v5464 = vadd.f32 0.0, %v5463
        %v5465 = vpop.f32.mrf.mxu0
        %v5466 = vadd.f32 0.0, %v5465
        %v5467 = vpop.f32.mrf.mxu0
        %v5468 = vadd.f32 0.0, %v5467
        %v5469 = vpop.f32.mrf.mxu0
        %v5470 = vadd.f32 0.0, %v5469
        %5471 = vmatprep.mubr.bf16.mxu0 0
        %5472 = vmatmul.mubr.bf16.gmra.mxu0 %v5409
        %v5473 = vpop.f32.mrf.mxu0
        %v5474 = vadd.f32 0.0, %v5473
        %v5475 = vpop.f32.mrf.mxu0
        %v5476 = vadd.f32 0.0, %v5475
        %v5477 = vpop.f32.mrf.mxu0
        %v5478 = vadd.f32 0.0, %v5477
        %v5479 = vpop.f32.mrf.mxu0
        %v5480 = vadd.f32 0.0, %v5479
        %5481 = vmatprep.mubr.bf16.mxu0 0
        %5482 = vmatmul.mubr.bf16.gmra.mxu0 %v5412
        %v5483 = vpop.f32.mrf.mxu0
        %v5484 = vadd.f32 0.0, %v5483
        %v5485 = vpop.f32.mrf.mxu0
        %v5486 = vadd.f32 0.0, %v5485
        %v5487 = vpop.f32.mrf.mxu0
        %v5488 = vadd.f32 0.0, %v5487
        %v5489 = vpop.f32.mrf.mxu0
        %v5490 = vadd.f32 0.0, %v5489
        %5491 = vmatprep.mubr.bf16.mxu0 0
        %5492 = vmatmul.mubr.bf16.gmra.mxu0 %v5415
        %v5493 = vpop.f32.mrf.mxu0
        %v5494 = vadd.f32 0.0, %v5493
        %v5495 = vpop.f32.mrf.mxu0
        %v5496 = vadd.f32 0.0, %v5495
        %v5497 = vpop.f32.mrf.mxu0
        %v5498 = vadd.f32 0.0, %v5497
        %v5499 = vpop.f32.mrf.mxu0
        %v5500 = vadd.f32 0.0, %v5499
        %5501 = vmatprep.mubr.bf16.mxu0 0
        %5502 = vmatmul.mubr.bf16.gmra.mxu0 %v5418
        %v5503 = vpop.f32.mrf.mxu0
        %v5504 = vadd.f32 0.0, %v5503
        %v5505 = vpop.f32.mrf.mxu0
        %v5506 = vadd.f32 0.0, %v5505
        %v5507 = vpop.f32.mrf.mxu0
        %v5508 = vadd.f32 0.0, %v5507
        %v5509 = vpop.f32.mrf.mxu0
        %v5510 = vadd.f32 0.0, %v5509
        %5511 = vmatprep.mubr.bf16.mxu0 0
        %5512 = vmatmul.mubr.bf16.gmra.mxu0 %v5421
        %v5513 = vpop.f32.mrf.mxu0
        %v5514 = vadd.f32 0.0, %v5513
        %v5515 = vpop.f32.mrf.mxu0
        %v5516 = vadd.f32 0.0, %v5515
        %v5517 = vpop.f32.mrf.mxu0
        %v5518 = vadd.f32 0.0, %v5517
        %v5519 = vpop.f32.mrf.mxu0
        %v5520 = vadd.f32 0.0, %v5519
        %5521 = vmatprep.mubr.bf16.mxu0 0
        %5522 = vmatmul.mubr.bf16.gmra.mxu0 %v5424
        %v5523 = vpop.f32.mrf.mxu0
        %v5524 = vadd.f32 0.0, %v5523
        %v5525 = vpop.f32.mrf.mxu0
        %v5526 = vadd.f32 0.0, %v5525
        %v5527 = vpop.f32.mrf.mxu0
        %v5528 = vadd.f32 0.0, %v5527
        %v5529 = vpop.f32.mrf.mxu0
        %v5530 = vadd.f32 0.0, %v5529
        %5531 = vmatprep.mubr.bf16.mxu0 0
        %5532 = vmatmul.mubr.bf16.gmra.mxu0 %v5427
        %v5533 = vpop.f32.mrf.mxu0
        %v5534 = vadd.f32 0.0, %v5533
        %v5535 = vpop.f32.mrf.mxu0
        %v5536 = vadd.f32 0.0, %v5535
        %v5537 = vpop.f32.mrf.mxu0
        %v5538 = vadd.f32 0.0, %v5537
        %v5539 = vpop.f32.mrf.mxu0
        %v5540 = vadd.f32 0.0, %v5539
        %5541 = vdwg.mxu0
        %v5542 = vmax.f32 %v5464, %v5466
        %5543 = vmax.xlane.f32.xlu0 %v5542
        %v5544 = vpop.xlane.xlu0 %5543
        %v5545 = vmax.f32 %v5468, %v5470
        %5546 = vmax.xlane.f32.xlu0 %v5545
        %v5547 = vpop.xlane.xlu0 %5546
        %v5548 = vmax.f32 %v5474, %v5476
        %5549 = vmax.xlane.f32.xlu0 %v5548
        %v5550 = vpop.xlane.xlu0 %5549
        %v5551 = vmax.f32 %v5478, %v5480
        %5552 = vmax.xlane.f32.xlu0 %v5551
        %v5553 = vpop.xlane.xlu0 %5552
        %v5554 = vmax.f32 %v5484, %v5486
        %5555 = vmax.xlane.f32.xlu0 %v5554
        %v5556 = vpop.xlane.xlu0 %5555
        %v5557 = vmax.f32 %v5488, %v5490
        %5558 = vmax.xlane.f32.xlu0 %v5557
        %v5559 = vpop.xlane.xlu0 %5558
        %v5560 = vmax.f32 %v5494, %v5496
        %5561 = vmax.xlane.f32.xlu0 %v5560
        %v5562 = vpop.xlane.xlu0 %5561
        %v5563 = vmax.f32 %v5498, %v5500
        %5564 = vmax.xlane.f32.xlu0 %v5563
        %v5565 = vpop.xlane.xlu0 %5564
        %v5566 = vmax.f32 %v5504, %v5506
        %5567 = vmax.xlane.f32.xlu0 %v5566
        %v5568 = vpop.xlane.xlu0 %5567
        %v5569 = vmax.f32 %v5508, %v5510
        %5570 = vmax.xlane.f32.xlu0 %v5569
        %v5571 = vpop.xlane.xlu0 %5570
        %v5572 = vmax.f32 %v5514, %v5516
        %5573 = vmax.xlane.f32.xlu0 %v5572
        %v5574 = vpop.xlane.xlu0 %5573
        %v5575 = vmax.f32 %v5518, %v5520
        %5576 = vmax.xlane.f32.xlu0 %v5575
        %v5577 = vpop.xlane.xlu0 %5576
        %v5578 = vmax.f32 %v5524, %v5526
        %5579 = vmax.xlane.f32.xlu0 %v5578
        %v5580 = vpop.xlane.xlu0 %5579
        %v5581 = vmax.f32 %v5528, %v5530
        %5582 = vmax.xlane.f32.xlu0 %v5581
        %v5583 = vpop.xlane.xlu0 %5582
        %v5584 = vmax.f32 %v5534, %v5536
        %5585 = vmax.xlane.f32.xlu0 %v5584
        %v5586 = vpop.xlane.xlu0 %5585
        %v5587 = vmax.f32 %v5538, %v5540
        %5588 = vmax.xlane.f32.xlu0 %v5587
        %v5589 = vpop.xlane.xlu0 %5588
        %v5590 = vsub.f32 %v5464, %v5544
        %v5591 = vsub.f32 %v5466, %v5544
        %v5592 = vsub.f32 %v5468, %v5547
        %v5593 = vsub.f32 %v5470, %v5547
        %v5594 = vsub.f32 %v5474, %v5550
        %v5595 = vsub.f32 %v5476, %v5550
        %v5596 = vsub.f32 %v5478, %v5553
        %v5597 = vsub.f32 %v5480, %v5553
        %v5598 = vsub.f32 %v5484, %v5556
        %v5599 = vsub.f32 %v5486, %v5556
        %v5600 = vsub.f32 %v5488, %v5559
        %v5601 = vsub.f32 %v5490, %v5559
        %v5602 = vsub.f32 %v5494, %v5562
        %v5603 = vsub.f32 %v5496, %v5562
        %v5604 = vsub.f32 %v5498, %v5565
        %v5605 = vsub.f32 %v5500, %v5565
        %v5606 = vsub.f32 %v5504, %v5568
        %v5607 = vsub.f32 %v5506, %v5568
        %v5608 = vsub.f32 %v5508, %v5571
        %v5609 = vsub.f32 %v5510, %v5571
        %v5610 = vsub.f32 %v5514, %v5574
        %v5611 = vsub.f32 %v5516, %v5574
        %v5612 = vsub.f32 %v5518, %v5577
        %v5613 = vsub.f32 %v5520, %v5577
        %v5614 = vsub.f32 %v5524, %v5580
        %v5615 = vsub.f32 %v5526, %v5580
        %v5616 = vsub.f32 %v5528, %v5583
        %v5617 = vsub.f32 %v5530, %v5583
        %v5618 = vsub.f32 %v5534, %v5586
        %v5619 = vsub.f32 %v5536, %v5586
        %v5620 = vsub.f32 %v5538, %v5589
        %v5621 = vsub.f32 %v5540, %v5589
        %v5622 = vpack.c.bf16 %v5592, %v5590
        %v5623 = vpack.c.bf16 %v5593, %v5591
        %v5624 = vpack.c.bf16 %v5596, %v5594
        %v5625 = vpack.c.bf16 %v5597, %v5595
        %v5626 = vpack.c.bf16 %v5600, %v5598
        %v5627 = vpack.c.bf16 %v5601, %v5599
        %v5628 = vpack.c.bf16 %v5604, %v5602
        %v5629 = vpack.c.bf16 %v5605, %v5603
        %v5630 = vpack.c.bf16 %v5608, %v5606
        %v5631 = vpack.c.bf16 %v5609, %v5607
        %v5632 = vpack.c.bf16 %v5612, %v5610
        %v5633 = vpack.c.bf16 %v5613, %v5611
        %v5634 = vpack.c.bf16 %v5616, %v5614
        %v5635 = vpack.c.bf16 %v5617, %v5615
        %v5636 = vpack.c.bf16 %v5620, %v5618
        %v5637 = vpack.c.bf16 %v5621, %v5619
        %v5639 = vmul.bf16 %v5622, 1069105081
        %v5640 = vpow.bf16.pop %v5639
        %v5642 = vmul.bf16 %v5623, 1069105081
        %v5643 = vpow.bf16.pop %v5642
        %v5645 = vmul.bf16 %v5624, 1069105081
        %v5646 = vpow.bf16.pop %v5645
        %v5648 = vmul.bf16 %v5625, 1069105081
        %v5649 = vpow.bf16.pop %v5648
        %v5651 = vmul.bf16 %v5626, 1069105081
        %v5652 = vpow.bf16.pop %v5651
        %v5654 = vmul.bf16 %v5627, 1069105081
        %v5655 = vpow.bf16.pop %v5654
        %v5657 = vmul.bf16 %v5628, 1069105081
        %v5658 = vpow.bf16.pop %v5657
        %v5660 = vmul.bf16 %v5629, 1069105081
        %v5661 = vpow.bf16.pop %v5660
        %v5663 = vmul.bf16 %v5630, 1069105081
        %v5664 = vpow.bf16.pop %v5663
        %v5666 = vmul.bf16 %v5631, 1069105081
        %v5667 = vpow.bf16.pop %v5666
        %v5669 = vmul.bf16 %v5632, 1069105081
        %v5670 = vpow.bf16.pop %v5669
        %v5672 = vmul.bf16 %v5633, 1069105081
        %v5673 = vpow.bf16.pop %v5672
        %v5675 = vmul.bf16 %v5634, 1069105081
        %v5676 = vpow.bf16.pop %v5675
        %v5678 = vmul.bf16 %v5635, 1069105081
        %v5679 = vpow.bf16.pop %v5678
        %v5681 = vmul.bf16 %v5636, 1069105081
        %v5682 = vpow.bf16.pop %v5681
        %v5684 = vmul.bf16 %v5637, 1069105081
        %v5685 = vpow.bf16.pop %v5684
        %v5686 = vunpack.c.l.bf16 %v5640
        %v5687 = vunpack.c.l.bf16 %v5643
        %v5688 = vunpack.c.h.bf16 %v5640
        %v5689 = vunpack.c.h.bf16 %v5643
        %v5690 = vunpack.c.l.bf16 %v5646
        %v5691 = vunpack.c.l.bf16 %v5649
        %v5692 = vunpack.c.h.bf16 %v5646
        %v5693 = vunpack.c.h.bf16 %v5649
        %v5694 = vunpack.c.l.bf16 %v5652
        %v5695 = vunpack.c.l.bf16 %v5655
        %v5696 = vunpack.c.h.bf16 %v5652
        %v5697 = vunpack.c.h.bf16 %v5655
        %v5698 = vunpack.c.l.bf16 %v5658
        %v5699 = vunpack.c.l.bf16 %v5661
        %v5700 = vunpack.c.h.bf16 %v5658
        %v5701 = vunpack.c.h.bf16 %v5661
        %v5702 = vunpack.c.l.bf16 %v5664
        %v5703 = vunpack.c.l.bf16 %v5667
        %v5704 = vunpack.c.h.bf16 %v5664
        %v5705 = vunpack.c.h.bf16 %v5667
        %v5706 = vunpack.c.l.bf16 %v5670
        %v5707 = vunpack.c.l.bf16 %v5673
        %v5708 = vunpack.c.h.bf16 %v5670
        %v5709 = vunpack.c.h.bf16 %v5673
        %v5710 = vunpack.c.l.bf16 %v5676
        %v5711 = vunpack.c.l.bf16 %v5679
        %v5712 = vunpack.c.h.bf16 %v5676
        %v5713 = vunpack.c.h.bf16 %v5679
        %v5714 = vunpack.c.l.bf16 %v5682
        %v5715 = vunpack.c.l.bf16 %v5685
        %v5716 = vunpack.c.h.bf16 %v5682
        %v5717 = vunpack.c.h.bf16 %v5685
        %v5718 = vadd.f32 %v5686, %v5687
        %5719 = vadd.xlane.f32.xlu0 %v5718
        %v5720 = vpop.xlane.xlu0 %5719
        %v5721 = vadd.f32 %v5688, %v5689
        %5722 = vadd.xlane.f32.xlu0 %v5721
        %v5723 = vpop.xlane.xlu0 %5722
        %v5724 = vadd.f32 %v5690, %v5691
        %5725 = vadd.xlane.f32.xlu0 %v5724
        %v5726 = vpop.xlane.xlu0 %5725
        %v5727 = vadd.f32 %v5692, %v5693
        %5728 = vadd.xlane.f32.xlu0 %v5727
        %v5729 = vpop.xlane.xlu0 %5728
        %v5730 = vadd.f32 %v5694, %v5695
        %5731 = vadd.xlane.f32.xlu0 %v5730
        %v5732 = vpop.xlane.xlu0 %5731
        %v5733 = vadd.f32 %v5696, %v5697
        %5734 = vadd.xlane.f32.xlu0 %v5733
        %v5735 = vpop.xlane.xlu0 %5734
        %v5736 = vadd.f32 %v5698, %v5699
        %5737 = vadd.xlane.f32.xlu0 %v5736
        %v5738 = vpop.xlane.xlu0 %5737
        %v5739 = vadd.f32 %v5700, %v5701
        %5740 = vadd.xlane.f32.xlu0 %v5739
        %v5741 = vpop.xlane.xlu0 %5740
        %v5742 = vadd.f32 %v5702, %v5703
        %5743 = vadd.xlane.f32.xlu0 %v5742
        %v5744 = vpop.xlane.xlu0 %5743
        %v5745 = vadd.f32 %v5704, %v5705
        %5746 = vadd.xlane.f32.xlu0 %v5745
        %v5747 = vpop.xlane.xlu0 %5746
        %v5748 = vadd.f32 %v5706, %v5707
        %5749 = vadd.xlane.f32.xlu0 %v5748
        %v5750 = vpop.xlane.xlu0 %5749
        %v5751 = vadd.f32 %v5708, %v5709
        %5752 = vadd.xlane.f32.xlu0 %v5751
        %v5753 = vpop.xlane.xlu0 %5752
        %v5754 = vadd.f32 %v5710, %v5711
        %5755 = vadd.xlane.f32.xlu0 %v5754
        %v5756 = vpop.xlane.xlu0 %5755
        %v5757 = vadd.f32 %v5712, %v5713
        %5758 = vadd.xlane.f32.xlu0 %v5757
        %v5759 = vpop.xlane.xlu0 %5758
        %v5760 = vadd.f32 %v5714, %v5715
        %5761 = vadd.xlane.f32.xlu0 %v5760
        %v5762 = vpop.xlane.xlu0 %5761
        %v5763 = vadd.f32 %v5716, %v5717
        %5764 = vadd.xlane.f32.xlu0 %v5763
        %v5765 = vpop.xlane.xlu0 %5764
        %5766 = vmatprep.subr.bf16.mxu0 0
        %5767 = vmatpush1.bf16.msra.mxu0 %v2927
        %5768 = vmatprep.subr.bf16.mxu0 0
        %5769 = vmatpush1.bf16.msra.mxu0 %v2925
        %5770 = vmatprep.subr.bf16.mxu0 0
        %5771 = vmatpush1.bf16.msra.mxu0 %v2923
        %5772 = vmatprep.subr.bf16.mxu0 0
        %5773 = vmatpush1.bf16.msra.mxu0 %v2921
        %5774 = vmatprep.subr.bf16.mxu0 0
        %5775 = vmatpush1.bf16.msra.mxu0 %v2919
        %5776 = vmatprep.subr.bf16.mxu0 0
        %5777 = vmatpush1.bf16.msra.mxu0 %v2917
        %5778 = vmatprep.subr.bf16.mxu0 0
        %5779 = vmatpush1.bf16.msra.mxu0 %v2915
        %5780 = vmatprep.subr.bf16.mxu0 0
        %5781 = vmatpush1.bf16.msra.mxu0 %v2913
        %5782 = vmatprep.subr.bf16.mxu0 0
        %5783 = vmatpush2.bf16.msra.mxu0 %v2943
        %5784 = vmatprep.subr.bf16.mxu0 0
        %5785 = vmatpush2.bf16.msra.mxu0 %v2941
        %5786 = vmatprep.subr.bf16.mxu0 0
        %5787 = vmatpush2.bf16.msra.mxu0 %v2939
        %5788 = vmatprep.subr.bf16.mxu0 0
        %5789 = vmatpush2.bf16.msra.mxu0 %v2937
        %5790 = vmatprep.subr.bf16.mxu0 0
        %5791 = vmatpush2.bf16.msra.mxu0 %v2935
        %5792 = vmatprep.subr.bf16.mxu0 0
        %5793 = vmatpush2.bf16.msra.mxu0 %v2933
        %5794 = vmatprep.subr.bf16.mxu0 0
        %5795 = vmatpush2.bf16.msra.mxu0 %v2931
        %5796 = vmatprep.subr.bf16.mxu0 0
        %5797 = vmatpush2.bf16.msra.mxu0 %v2929
        %5798 = vmatprep.mubr.bf16.mxu0 %v5643
        %5799 = vmatmul.mubr.bf16.gmra.mxu0 %v5640
        %v5800 = vpop.f32.mrf.mxu0
        %v5801 = vadd.f32 0.0, %v5800
        %v5802 = vpop.f32.mrf.mxu0
        %v5803 = vpop.f32.mrf.mxu0
        %v5804 = vadd.f32 0.0, %v5803
        %v5805 = vpop.f32.mrf.mxu0
        %5806 = vmatprep.mubr.bf16.mxu0 %v5649
        %5807 = vmatmul.mubr.bf16.gmra.mxu0 %v5646
        %v5808 = vpop.f32.mrf.mxu0
        %v5809 = vadd.f32 0.0, %v5808
        %v5810 = vpop.f32.mrf.mxu0
        %v5811 = vpop.f32.mrf.mxu0
        %v5812 = vadd.f32 0.0, %v5811
        %v5813 = vpop.f32.mrf.mxu0
        %5814 = vmatprep.mubr.bf16.mxu0 %v5655
        %5815 = vmatmul.mubr.bf16.gmra.mxu0 %v5652
        %v5816 = vpop.f32.mrf.mxu0
        %v5817 = vadd.f32 0.0, %v5816
        %v5818 = vpop.f32.mrf.mxu0
        %v5819 = vpop.f32.mrf.mxu0
        %v5820 = vadd.f32 0.0, %v5819
        %v5821 = vpop.f32.mrf.mxu0
        %5822 = vmatprep.mubr.bf16.mxu0 %v5661
        %5823 = vmatmul.mubr.bf16.gmra.mxu0 %v5658
        %v5824 = vpop.f32.mrf.mxu0
        %v5825 = vadd.f32 0.0, %v5824
        %v5826 = vpop.f32.mrf.mxu0
        %v5827 = vpop.f32.mrf.mxu0
        %v5828 = vadd.f32 0.0, %v5827
        %v5829 = vpop.f32.mrf.mxu0
        %5830 = vmatprep.mubr.bf16.mxu0 %v5667
        %5831 = vmatmul.mubr.bf16.gmra.mxu0 %v5664
        %v5832 = vpop.f32.mrf.mxu0
        %v5833 = vadd.f32 0.0, %v5832
        %v5834 = vpop.f32.mrf.mxu0
        %v5835 = vpop.f32.mrf.mxu0
        %v5836 = vadd.f32 0.0, %v5835
        %v5837 = vpop.f32.mrf.mxu0
        %5838 = vmatprep.mubr.bf16.mxu0 %v5673
        %5839 = vmatmul.mubr.bf16.gmra.mxu0 %v5670
        %v5840 = vpop.f32.mrf.mxu0
        %v5841 = vadd.f32 0.0, %v5840
        %v5842 = vpop.f32.mrf.mxu0
        %v5843 = vpop.f32.mrf.mxu0
        %v5844 = vadd.f32 0.0, %v5843
        %v5845 = vpop.f32.mrf.mxu0
        %5846 = vmatprep.mubr.bf16.mxu0 %v5679
        %5847 = vmatmul.mubr.bf16.gmra.mxu0 %v5676
        %v5848 = vpop.f32.mrf.mxu0
        %v5849 = vadd.f32 0.0, %v5848
        %v5850 = vpop.f32.mrf.mxu0
        %v5851 = vpop.f32.mrf.mxu0
        %v5852 = vadd.f32 0.0, %v5851
        %v5853 = vpop.f32.mrf.mxu0
        %5854 = vmatprep.mubr.bf16.mxu0 %v5685
        %5855 = vmatmul.mubr.bf16.gmra.mxu0 %v5682
        %v5856 = vpop.f32.mrf.mxu0
        %v5857 = vadd.f32 0.0, %v5856
        %v5858 = vpop.f32.mrf.mxu0
        %v5859 = vpop.f32.mrf.mxu0
        %v5860 = vadd.f32 0.0, %v5859
        %v5861 = vpop.f32.mrf.mxu0
        %5862 = vdwg.mxu0
        %v5863 = vrcp.pop %v5720
        %v5864 = vrcp.pop %v5723
        %v5865 = vrcp.pop %v5726
        %v5866 = vrcp.pop %v5729
        %v5867 = vrcp.pop %v5732
        %v5868 = vrcp.pop %v5735
        %v5869 = vrcp.pop %v5738
        %v5870 = vrcp.pop %v5741
        %v5871 = vrcp.pop %v5744
        %v5872 = vrcp.pop %v5747
        %v5873 = vrcp.pop %v5750
        %v5874 = vrcp.pop %v5753
        %v5875 = vrcp.pop %v5756
        %v5876 = vrcp.pop %v5759
        %v5877 = vrcp.pop %v5762
        %v5878 = vrcp.pop %v5765
        %v5879 = vmul.f32 %v5801, %v5863
        %v5880 = vmul.f32 %v5804, %v5864
        %v5881 = vmul.f32 %v5809, %v5865
        %v5882 = vmul.f32 %v5812, %v5866
        %v5883 = vmul.f32 %v5817, %v5867
        %v5884 = vmul.f32 %v5820, %v5868
        %v5885 = vmul.f32 %v5825, %v5869
        %v5886 = vmul.f32 %v5828, %v5870
        %v5887 = vmul.f32 %v5833, %v5871
        %v5888 = vmul.f32 %v5836, %v5872
        %v5889 = vmul.f32 %v5841, %v5873
        %v5890 = vmul.f32 %v5844, %v5874
        %v5891 = vmul.f32 %v5849, %v5875
        %v5892 = vmul.f32 %v5852, %v5876
        %v5893 = vmul.f32 %v5857, %v5877
        %v5894 = vmul.f32 %v5860, %v5878
        %5911 = vrot.lane.b32.xlu0 %v4867, 8
        %v5912 = vpop.permute.xlu0 %5911
        %5913 = vrot.lane.b32.xlu0 %v4868, 8
        %v5914 = vpop.permute.xlu0 %5913
        %5915 = vrot.lane.b32.xlu0 %v4869, 8
        %v5916 = vpop.permute.xlu0 %5915
        %5917 = vrot.lane.b32.xlu0 %v4870, 8
        %v5918 = vpop.permute.xlu0 %5917
        %5919 = vrot.lane.b32.xlu0 %v4871, 8
        %v5920 = vpop.permute.xlu0 %5919
        %5921 = vrot.lane.b32.xlu0 %v4872, 8
        %v5922 = vpop.permute.xlu0 %5921
        %5923 = vrot.lane.b32.xlu0 %v4873, 8
        %v5924 = vpop.permute.xlu0 %5923
        %5925 = vrot.lane.b32.xlu0 %v4874, 8
        %v5926 = vpop.permute.xlu0 %5925
        %5927 = vrot.lane.b32.xlu0 %v4875, 8
        %v5928 = vpop.permute.xlu0 %5927
        %5929 = vrot.lane.b32.xlu0 %v4876, 8
        %v5930 = vpop.permute.xlu0 %5929
        %5931 = vrot.lane.b32.xlu0 %v4877, 8
        %v5932 = vpop.permute.xlu0 %5931
        %5933 = vrot.lane.b32.xlu0 %v4878, 8
        %v5934 = vpop.permute.xlu0 %5933
        %5935 = vrot.lane.b32.xlu0 %v4879, 8
        %v5936 = vpop.permute.xlu0 %5935
        %5937 = vrot.lane.b32.xlu0 %v4880, 8
        %v5938 = vpop.permute.xlu0 %5937
        %5939 = vrot.lane.b32.xlu0 %v4881, 8
        %v5940 = vpop.permute.xlu0 %5939
        %5941 = vrot.lane.b32.xlu0 %v4882, 8
        %v5942 = vpop.permute.xlu0 %5941
        %5975 = vrot.lane.b32.xlu0 %v5373, 16
        %v5976 = vpop.permute.xlu0 %5975
        %5977 = vrot.lane.b32.xlu0 %v5374, 16
        %v5978 = vpop.permute.xlu0 %5977
        %5979 = vrot.lane.b32.xlu0 %v5375, 16
        %v5980 = vpop.permute.xlu0 %5979
        %5981 = vrot.lane.b32.xlu0 %v5376, 16
        %v5982 = vpop.permute.xlu0 %5981
        %5983 = vrot.lane.b32.xlu0 %v5377, 16
        %v5984 = vpop.permute.xlu0 %5983
        %5985 = vrot.lane.b32.xlu0 %v5378, 16
        %v5986 = vpop.permute.xlu0 %5985
        %5987 = vrot.lane.b32.xlu0 %v5379, 16
        %v5988 = vpop.permute.xlu0 %5987
        %5989 = vrot.lane.b32.xlu0 %v5380, 16
        %v5990 = vpop.permute.xlu0 %5989
        %5991 = vrot.lane.b32.xlu0 %v5381, 16
        %v5992 = vpop.permute.xlu0 %5991
        %5993 = vrot.lane.b32.xlu0 %v5382, 16
        %v5994 = vpop.permute.xlu0 %5993
        %5995 = vrot.lane.b32.xlu0 %v5383, 16
        %v5996 = vpop.permute.xlu0 %5995
        %5997 = vrot.lane.b32.xlu0 %v5384, 16
        %v5998 = vpop.permute.xlu0 %5997
        %5999 = vrot.lane.b32.xlu0 %v5385, 16
        %v6000 = vpop.permute.xlu0 %5999
        %6001 = vrot.lane.b32.xlu0 %v5386, 16
        %v6002 = vpop.permute.xlu0 %6001
        %6003 = vrot.lane.b32.xlu0 %v5387, 16
        %v6004 = vpop.permute.xlu0 %6003
        %6005 = vrot.lane.b32.xlu0 %v5388, 16
        %v6006 = vpop.permute.xlu0 %6005
        %6039 = vrot.lane.b32.xlu0 %v5879, 24
        %v6040 = vpop.permute.xlu0 %6039
        %6041 = vrot.lane.b32.xlu0 %v5880, 24
        %v6042 = vpop.permute.xlu0 %6041
        %6043 = vrot.lane.b32.xlu0 %v5881, 24
        %v6044 = vpop.permute.xlu0 %6043
        %6045 = vrot.lane.b32.xlu0 %v5882, 24
        %v6046 = vpop.permute.xlu0 %6045
        %6047 = vrot.lane.b32.xlu0 %v5883, 24
        %v6048 = vpop.permute.xlu0 %6047
        %6049 = vrot.lane.b32.xlu0 %v5884, 24
        %v6050 = vpop.permute.xlu0 %6049
        %6051 = vrot.lane.b32.xlu0 %v5885, 24
        %v6052 = vpop.permute.xlu0 %6051
        %6053 = vrot.lane.b32.xlu0 %v5886, 24
        %v6054 = vpop.permute.xlu0 %6053
        %6055 = vrot.lane.b32.xlu0 %v5887, 24
        %v6056 = vpop.permute.xlu0 %6055
        %6057 = vrot.lane.b32.xlu0 %v5888, 24
        %v6058 = vpop.permute.xlu0 %6057
        %6059 = vrot.lane.b32.xlu0 %v5889, 24
        %v6060 = vpop.permute.xlu0 %6059
        %6061 = vrot.lane.b32.xlu0 %v5890, 24
        %v6062 = vpop.permute.xlu0 %6061
        %6063 = vrot.lane.b32.xlu0 %v5891, 24
        %v6064 = vpop.permute.xlu0 %6063
        %6065 = vrot.lane.b32.xlu0 %v5892, 24
        %v6066 = vpop.permute.xlu0 %6065
        %6067 = vrot.lane.b32.xlu0 %v5893, 24
        %v6068 = vpop.permute.xlu0 %6067
        %6069 = vrot.lane.b32.xlu0 %v5894, 24
        %v6070 = vpop.permute.xlu0 %6069
        %v6087 = vsel %vm840, %v4361, %v5912
        %v6088 = vsel %vm840, %v4362, %v5914
        %v6089 = vsel %vm840, %v4363, %v5916
        %v6090 = vsel %vm840, %v4364, %v5918
        %v6091 = vsel %vm840, %v4365, %v5920
        %v6092 = vsel %vm840, %v4366, %v5922
        %v6093 = vsel %vm840, %v4367, %v5924
        %v6094 = vsel %vm840, %v4368, %v5926
        %v6095 = vsel %vm840, %v4369, %v5928
        %v6096 = vsel %vm840, %v4370, %v5930
        %v6097 = vsel %vm840, %v4371, %v5932
        %v6098 = vsel %vm840, %v4372, %v5934
        %v6099 = vsel %vm840, %v4373, %v5936
        %v6100 = vsel %vm840, %v4374, %v5938
        %v6101 = vsel %vm840, %v4375, %v5940
        %v6102 = vsel %vm840, %v4376, %v5942
        %v6103 = vsel %vm3297, %v6087, %v5976
        %v6104 = vsel %vm3297, %v6088, %v5978
        %v6105 = vsel %vm3297, %v6089, %v5980
        %v6106 = vsel %vm3297, %v6090, %v5982
        %v6107 = vsel %vm3297, %v6091, %v5984
        %v6108 = vsel %vm3297, %v6092, %v5986
        %v6109 = vsel %vm3297, %v6093, %v5988
        %v6110 = vsel %vm3297, %v6094, %v5990
        %v6111 = vsel %vm3297, %v6095, %v5992
        %v6112 = vsel %vm3297, %v6096, %v5994
        %v6113 = vsel %vm3297, %v6097, %v5996
        %v6114 = vsel %vm3297, %v6098, %v5998
        %v6115 = vsel %vm3297, %v6099, %v6000
        %v6116 = vsel %vm3297, %v6100, %v6002
        %v6117 = vsel %vm3297, %v6101, %v6004
        %v6118 = vsel %vm3297, %v6102, %v6006
        %v6119 = vsel %vm3314, %v6103, %v6040
        %v6120 = vsel %vm3314, %v6104, %v6042
        %v6121 = vsel %vm3314, %v6105, %v6044
        %v6122 = vsel %vm3314, %v6106, %v6046
        %v6123 = vsel %vm3314, %v6107, %v6048
        %v6124 = vsel %vm3314, %v6108, %v6050
        %v6125 = vsel %vm3314, %v6109, %v6052
        %v6126 = vsel %vm3314, %v6110, %v6054
        %v6127 = vsel %vm3314, %v6111, %v6056
        %v6128 = vsel %vm3314, %v6112, %v6058
        %v6129 = vsel %vm3314, %v6113, %v6060
        %v6130 = vsel %vm3314, %v6114, %v6062
        %v6131 = vsel %vm3314, %v6115, %v6064
        %v6132 = vsel %vm3314, %v6116, %v6066
        %v6133 = vsel %vm3314, %v6117, %v6068
        %v6134 = vsel %vm3314, %v6118, %v6070
        %6135 = vxpose.xlu0.b32.start [1/16] %v6119, 128
        %6136 = vxpose.xlu0.b32.cont [2/16] %v6120, 128
        %6137 = vxpose.xlu0.b32.cont [3/16] %v6121, 128
        %6138 = vxpose.xlu0.b32.cont [4/16] %v6122, 128
        %6139 = vxpose.xlu0.b32.cont [5/16] %v6123, 128
        %6140 = vxpose.xlu0.b32.cont [6/16] %v6124, 128
        %6141 = vxpose.xlu0.b32.cont [7/16] %v6125, 128
        %6142 = vxpose.xlu0.b32.cont [8/16] %v6126, 128
        %6143 = vxpose.xlu0.b32.cont [9/16] %v6127, 128
        %6144 = vxpose.xlu0.b32.cont [10/16] %v6128, 128
        %6145 = vxpose.xlu0.b32.cont [11/16] %v6129, 128
        %6146 = vxpose.xlu0.b32.cont [12/16] %v6130, 128
        %6147 = vxpose.xlu0.b32.cont [13/16] %v6131, 128
        %6148 = vxpose.xlu0.b32.cont [14/16] %v6132, 128
        %6149 = vxpose.xlu0.b32.cont [15/16] %v6133, 128
        %6150 = vxpose.xlu0.b32.end [16/16] %v6134, 128
        %v6151 = vpop.trf.xlu0
        %v6152 = vpop.trf.xlu0
        %v6153 = vpop.trf.xlu0
        %v6154 = vpop.trf.xlu0
        %v6155 = vpop.trf.xlu0
        %v6156 = vpop.trf.xlu0
        %v6157 = vpop.trf.xlu0
        %v6158 = vpop.trf.xlu0
        %v6159 = vpop.trf.xlu0
        %v6160 = vpop.trf.xlu0
        %v6161 = vpop.trf.xlu0
        %v6162 = vpop.trf.xlu0
        %v6163 = vpop.trf.xlu0
        %v6164 = vpop.trf.xlu0
        %v6165 = vpop.trf.xlu0
        %v6166 = vpop.trf.xlu0
        %v6167 = vpack.c.bf16 %v6152, %v6151
        %v6168 = vpack.c.bf16 %v6154, %v6153
        %6169 = vmatprep.subr.bf16.mxu0 0
        %6170 = vmatpush1.bf16.msra.mxu0 0
        %6171 = vmatprep.subr.bf16.mxu0 0
        %6172 = vmatpush1.bf16.msra.mxu0 0
        %6173 = vmatprep.subr.bf16.mxu0 0
        %6174 = vmatpush1.bf16.msra.mxu0 0
        %6175 = vmatprep.subr.bf16.mxu0 0
        %6176 = vmatpush1.bf16.msra.mxu0 0
        %6177 = vmatprep.subr.bf16.mxu0 0
        %6178 = vmatpush1.bf16.msra.mxu0 0
        %6179 = vmatprep.subr.bf16.mxu0 0
        %6180 = vmatpush1.bf16.msra.mxu0 0
        %6181 = vmatprep.subr.bf16.mxu0 0
        %6182 = vmatpush1.bf16.msra.mxu0 %v6168
        %6183 = vmatprep.subr.bf16.mxu0 0
        %6184 = vmatpush1.bf16.msra.mxu0 %v6167
        %6185 = vmatprep.subr.bf16.mxu0 0
        %6186 = vmatpush2.bf16.msra.mxu0 0
        %6187 = vmatprep.subr.bf16.mxu0 0
        %6188 = vmatpush2.bf16.msra.mxu0 0
        %6189 = vmatprep.subr.bf16.mxu0 0
        %6190 = vmatpush2.bf16.msra.mxu0 0
        %6191 = vmatprep.subr.bf16.mxu0 0
        %6192 = vmatpush2.bf16.msra.mxu0 0
        %6193 = vmatprep.subr.bf16.mxu0 0
        %6194 = vmatpush2.bf16.msra.mxu0 0
        %6195 = vmatprep.subr.bf16.mxu0 0
        %6196 = vmatpush2.bf16.msra.mxu0 0
        %6197 = vmatprep.subr.bf16.mxu0 0
        %6198 = vmatpush2.bf16.msra.mxu0 0
        %6199 = vmatprep.subr.bf16.mxu0 0
        %6200 = vmatpush2.bf16.msra.mxu0 0
        %6201 = vmatprep.mubr.bf16.mxu0 0
        %6202 = vmatmul.mubr.bf16.gmra.mxu0 %v3396
        %v6203 = vpop.f32.mrf.mxu0
        %v6204 = vadd.f32 %v3367, %v6203
        %v6205 = vpop.f32.mrf.mxu0
        %v6206 = vpop.f32.mrf.mxu0
        %v6207 = vadd.f32 %v3372, %v6206
        %v6208 = vpop.f32.mrf.mxu0
        %6209 = vmatprep.mubr.bf16.mxu0 0
        %6210 = vmatmul.mubr.bf16.gmra.mxu0 %v3399
        %v6211 = vpop.f32.mrf.mxu0
        %v6212 = vadd.f32 %v3377, %v6211
        %v6213 = vpop.f32.mrf.mxu0
        %v6214 = vpop.f32.mrf.mxu0
        %v6215 = vadd.f32 %v3382, %v6214
        %v6216 = vpop.f32.mrf.mxu0
        %6217 = vdwg.mxu0
        %v6218 = vadd.f32 %v6204, %v6207
        %v6219 = vadd.f32 %v6218, %v6212
        %v6220 = vadd.f32 %v6219, %v6215
        %v6221 = vrot.slane %v6220, 4
        %v6222 = vadd.f32 %v6220, %v6221
        %v6223 = vrot.slane %v6222, 2
        %v6224 = vadd.f32 %v6222, %v6223
        %v6225 = vrot.slane %v6224, 1
        %v6226 = vadd.f32 %v6224, %v6225
        %v6227 = vmul.f32 %v6226, %v3459
        %v6228 = vsub.f32 %v6204, %v6227
        %v6229 = vsub.f32 %v6207, %v6227
        %v6230 = vsub.f32 %v6212, %v6227
        %v6231 = vsub.f32 %v6215, %v6227
        %v6232 = vmul.f32 %v6228, %v6228
        %v6233 = vmul.f32 %v6229, %v6229
        %v6234 = vmul.f32 %v6230, %v6230
        %v6235 = vmul.f32 %v6231, %v6231
        %v6236 = vadd.f32 %v6232, %v6233
        %v6237 = vadd.f32 %v6236, %v6234
        %v6238 = vadd.f32 %v6237, %v6235
        %v6239 = vrot.slane %v6238, 4
        %v6240 = vadd.f32 %v6238, %v6239
        %v6241 = vrot.slane %v6240, 2
        %v6242 = vadd.f32 %v6240, %v6241
        %v6243 = vrot.slane %v6242, 1
        %v6244 = vadd.f32 %v6242, %v6243
        %v6245 = vmul.f32 %v6244, %v3459
        %v6246 = vadd.f32 %v6245, 1e-05
        %v6247 = vrsqrt.pop %v6246
        %v6248 = vmul.f32 %v6228, %v6247
        %v6249 = vmul.f32 %v6229, %v6247
        %v6250 = vmul.f32 %v6230, %v6247
        %v6251 = vmul.f32 %v6231, %v6247
        %v6252 = vmul.f32 %v6248, %v3487
        %v6253 = vmul.f32 %v6249, %v3491
        %v6254 = vmul.f32 %v6250, %v3495
        %v6255 = vmul.f32 %v6251, %v3499
        %v6256 = vadd.f32 %v6252, %v3507
        %v6257 = vadd.f32 %v6253, %v3511
        %v6258 = vadd.f32 %v6254, %v3515
        %v6259 = vadd.f32 %v6255, %v3519
        %v6260 = vmax.f32 %v6256, 0.0
        %v6261 = vmax.f32 %v6257, 0.0
        %v6262 = vmax.f32 %v6258, 0.0
        %v6263 = vmax.f32 %v6259, 0.0
        %v6265 = vsel %vm526, %v341, 0
        %6267 = vmatprep.subr.bf16.mxu0 0
        %6268 = vmatpush1.bf16.msra.mxu0 0
        %6269 = vmatprep.subr.bf16.mxu0 0
        %6270 = vmatpush1.bf16.msra.mxu0 0
        %6271 = vmatprep.subr.bf16.mxu0 0
        %6272 = vmatpush1.bf16.msra.mxu0 0
        %6273 = vmatprep.subr.bf16.mxu0 0
        %6274 = vmatpush1.bf16.msra.mxu0 0
        %6275 = vmatprep.subr.bf16.mxu0 0
        %6276 = vmatpush1.bf16.msra.mxu0 0
        %6277 = vmatprep.subr.bf16.mxu0 0
        %6278 = vmatpush1.bf16.msra.mxu0 0
        %6279 = vmatprep.subr.bf16.mxu0 0
        %6280 = vmatpush1.bf16.msra.mxu0 0
        %6281 = vmatprep.subr.bf16.mxu0 0
        %6282 = vmatpush1.bf16.msra.mxu0 %v6265
        %6283 = vmatprep.subr.bf16.mxu0 0
        %6284 = vmatpush2.bf16.msra.mxu0 0
        %6285 = vmatprep.subr.bf16.mxu0 0
        %6286 = vmatpush2.bf16.msra.mxu0 0
        %6287 = vmatprep.subr.bf16.mxu0 0
        %6288 = vmatpush2.bf16.msra.mxu0 0
        %6289 = vmatprep.subr.bf16.mxu0 0
        %6290 = vmatpush2.bf16.msra.mxu0 0
        %6291 = vmatprep.subr.bf16.mxu0 0
        %6292 = vmatpush2.bf16.msra.mxu0 0
        %6293 = vmatprep.subr.bf16.mxu0 0
        %6294 = vmatpush2.bf16.msra.mxu0 0
        %6295 = vmatprep.subr.bf16.mxu0 0
        %6296 = vmatpush2.bf16.msra.mxu0 0
        %6297 = vmatprep.subr.bf16.mxu0 0
        %6298 = vmatpush2.bf16.msra.mxu0 0
        %6299 = vmatprep.mubr.bf16.mxu0 0
        %6300 = vmatmul.mubr.bf16.gmra.mxu0 %v3556
        %v6301 = vpop.f32.mrf.mxu0
        %v6302 = vadd.f32 %v3531, %v6301
        %v6303 = vpop.f32.mrf.mxu0
        %v6304 = vpop.f32.mrf.mxu0
        %v6305 = vadd.f32 %v3535, %v6304
        %v6306 = vpop.f32.mrf.mxu0
        %6307 = vmatprep.mubr.bf16.mxu0 0
        %6308 = vmatmul.mubr.bf16.gmra.mxu0 %v3559
        %v6309 = vpop.f32.mrf.mxu0
        %v6310 = vadd.f32 %v3539, %v6309
        %v6311 = vpop.f32.mrf.mxu0
        %v6312 = vpop.f32.mrf.mxu0
        %v6313 = vadd.f32 %v3543, %v6312
        %v6314 = vpop.f32.mrf.mxu0
        %6315 = vdwg.mxu0
        %v6316 = vadd.f32 %v6260, %v6302
        %v6317 = vadd.f32 %v6261, %v6305
        %v6318 = vadd.f32 %v6262, %v6310
        %v6319 = vadd.f32 %v6263, %v6313
        %v6320 = vpack.c.bf16 %v6317, %v6316
        %v6321 = vpack.c.bf16 %v6319, %v6318
        %6322 = vmatprep.subr.bf16.mxu0 0
        %6323 = vmatpush1.bf16.msra.mxu0 0
        %6324 = vmatprep.subr.bf16.mxu0 0
        %6325 = vmatpush1.bf16.msra.mxu0 0
        %6326 = vmatprep.subr.bf16.mxu0 0
        %6327 = vmatpush1.bf16.msra.mxu0 0
        %6328 = vmatprep.subr.bf16.mxu0 0
        %6329 = vmatpush1.bf16.msra.mxu0 0
        %6330 = vmatprep.subr.bf16.mxu0 0
        %6331 = vmatpush1.bf16.msra.mxu0 0
        %6332 = vmatprep.subr.bf16.mxu0 0
        %6333 = vmatpush1.bf16.msra.mxu0 0
        %6334 = vmatprep.subr.bf16.mxu0 0
        %6335 = vmatpush1.bf16.msra.mxu0 %v6321
        %6336 = vmatprep.subr.bf16.mxu0 0
        %6337 = vmatpush1.bf16.msra.mxu0 %v6320
        %6338 = vmatprep.subr.bf16.mxu0 0
        %6339 = vmatpush2.bf16.msra.mxu0 0
        %6340 = vmatprep.subr.bf16.mxu0 0
        %6341 = vmatpush2.bf16.msra.mxu0 0
        %6342 = vmatprep.subr.bf16.mxu0 0
        %6343 = vmatpush2.bf16.msra.mxu0 0
        %6344 = vmatprep.subr.bf16.mxu0 0
        %6345 = vmatpush2.bf16.msra.mxu0 0
        %6346 = vmatprep.subr.bf16.mxu0 0
        %6347 = vmatpush2.bf16.msra.mxu0 0
        %6348 = vmatprep.subr.bf16.mxu0 0
        %6349 = vmatpush2.bf16.msra.mxu0 0
        %6350 = vmatprep.subr.bf16.mxu0 0
        %6351 = vmatpush2.bf16.msra.mxu0 0
        %6352 = vmatprep.subr.bf16.mxu0 0
        %6353 = vmatpush2.bf16.msra.mxu0 0
        %6354 = vmatprep.mubr.bf16.mxu0 0
        %6355 = vmatmul.mubr.bf16.gmra.mxu0 %v3633
        %v6356 = vpop.f32.mrf.mxu0
        %v6357 = vadd.f32 %v3621, %v6356
        %v6358 = vpop.f32.mrf.mxu0
        %v6359 = vpop.f32.mrf.mxu0
        %v6360 = vadd.f32 %v3625, %v6359
        %v6361 = vpop.f32.mrf.mxu0
        %6362 = vdwg.mxu0
        %v6363 = vadd.f32 %v6357, %v6360
        %v6364 = vrot.slane %v6363, 4
        %v6365 = vadd.f32 %v6363, %v6364
        %v6366 = vrot.slane %v6365, 2
        %v6367 = vadd.f32 %v6365, %v6366
        %v6368 = vrot.slane %v6367, 1
        %v6369 = vadd.f32 %v6367, %v6368
        %v6370 = vmul.f32 %v6369, %v3683
        %v6371 = vsub.f32 %v6357, %v6370
        %v6372 = vsub.f32 %v6360, %v6370
        %v6373 = vmul.f32 %v6371, %v6371
        %v6374 = vmul.f32 %v6372, %v6372
        %v6375 = vadd.f32 %v6373, %v6374
        %v6376 = vrot.slane %v6375, 4
        %v6377 = vadd.f32 %v6375, %v6376
        %v6378 = vrot.slane %v6377, 2
        %v6379 = vadd.f32 %v6377, %v6378
        %v6380 = vrot.slane %v6379, 1
        %v6381 = vadd.f32 %v6379, %v6380
        %v6382 = vmul.f32 %v6381, %v3683
        %v6383 = vadd.f32 %v6382, 1e-05
        %v6384 = vrsqrt.pop %v6383
        %v6385 = vmul.f32 %v6371, %v6384
        %v6386 = vmul.f32 %v6372, %v6384
        %v6387 = vmul.f32 %v6385, %v3703
        %v6388 = vmul.f32 %v6386, %v3707
        %v6389 = vadd.f32 %v6387, %v3713
        %v6390 = vadd.f32 %v6388, %v3717
        %v6391 = vmax.f32 %v6389, 0.0
        %v6392 = vmax.f32 %v6390, 0.0
        %v6393 = vpack.c.bf16 %v6392, %v6391
        %6394 = vmatprep.subr.bf16.mxu0 0
        %6395 = vmatpush1.bf16.msra.mxu0 0
        %6396 = vmatprep.subr.bf16.mxu0 0
        %6397 = vmatpush1.bf16.msra.mxu0 0
        %6398 = vmatprep.subr.bf16.mxu0 0
        %6399 = vmatpush1.bf16.msra.mxu0 0
        %6400 = vmatprep.subr.bf16.mxu0 0
        %6401 = vmatpush1.bf16.msra.mxu0 0
        %6402 = vmatprep.subr.bf16.mxu0 0
        %6403 = vmatpush1.bf16.msra.mxu0 0
        %6404 = vmatprep.subr.bf16.mxu0 0
        %6405 = vmatpush1.bf16.msra.mxu0 0
        %6406 = vmatprep.subr.bf16.mxu0 0
        %6407 = vmatpush1.bf16.msra.mxu0 0
        %6408 = vmatprep.subr.bf16.mxu0 0
        %6409 = vmatpush1.bf16.msra.mxu0 %v6393
        %6410 = vmatprep.subr.bf16.mxu0 0
        %6411 = vmatpush2.bf16.msra.mxu0 0
        %6412 = vmatprep.subr.bf16.mxu0 0
        %6413 = vmatpush2.bf16.msra.mxu0 0
        %6414 = vmatprep.subr.bf16.mxu0 0
        %6415 = vmatpush2.bf16.msra.mxu0 0
        %6416 = vmatprep.subr.bf16.mxu0 0
        %6417 = vmatpush2.bf16.msra.mxu0 0
        %6418 = vmatprep.subr.bf16.mxu0 0
        %6419 = vmatpush2.bf16.msra.mxu0 0
        %6420 = vmatprep.subr.bf16.mxu0 0
        %6421 = vmatpush2.bf16.msra.mxu0 0
        %6422 = vmatprep.subr.bf16.mxu0 0
        %6423 = vmatpush2.bf16.msra.mxu0 0
        %6424 = vmatprep.subr.bf16.mxu0 0
        %6425 = vmatpush2.bf16.msra.mxu0 0
        %6426 = vmatprep.mubr.bf16.mxu0 0
        %6427 = vmatmul.mubr.bf16.gmra.mxu0 %v3751
        %v6428 = vpop.f32.mrf.mxu0
        %v6429 = vadd.f32 %v3726, %v6428
        %v6430 = vpop.f32.mrf.mxu0
        %v6431 = vpop.f32.mrf.mxu0
        %v6432 = vadd.f32 %v3730, %v6431
        %v6433 = vpop.f32.mrf.mxu0
        %6434 = vmatprep.mubr.bf16.mxu0 0
        %6435 = vmatmul.mubr.bf16.gmra.mxu0 %v3754
        %v6436 = vpop.f32.mrf.mxu0
        %v6437 = vadd.f32 %v3734, %v6436
        %v6438 = vpop.f32.mrf.mxu0
        %v6439 = vpop.f32.mrf.mxu0
        %v6440 = vadd.f32 %v3738, %v6439
        %v6441 = vpop.f32.mrf.mxu0
        %6442 = vdwg.mxu0
        %v6443 = vadd.f32 %v6429, %v6432
        %v6444 = vadd.f32 %v6443, %v6437
        %v6445 = vadd.f32 %v6444, %v6440
        %v6446 = vrot.slane %v6445, 4
        %v6447 = vadd.f32 %v6445, %v6446
        %v6448 = vrot.slane %v6447, 2
        %v6449 = vadd.f32 %v6447, %v6448
        %v6450 = vrot.slane %v6449, 1
        %v6451 = vadd.f32 %v6449, %v6450
        %v6452 = vmul.f32 %v6451, %v3459
        %v6453 = vsub.f32 %v6429, %v6452
        %v6454 = vsub.f32 %v6432, %v6452
        %v6455 = vsub.f32 %v6437, %v6452
        %v6456 = vsub.f32 %v6440, %v6452
        %v6457 = vmul.f32 %v6453, %v6453
        %v6458 = vmul.f32 %v6454, %v6454
        %v6459 = vmul.f32 %v6455, %v6455
        %v6460 = vmul.f32 %v6456, %v6456
        %v6461 = vadd.f32 %v6457, %v6458
        %v6462 = vadd.f32 %v6461, %v6459
        %v6463 = vadd.f32 %v6462, %v6460
        %v6464 = vrot.slane %v6463, 4
        %v6465 = vadd.f32 %v6463, %v6464
        %v6466 = vrot.slane %v6465, 2
        %v6467 = vadd.f32 %v6465, %v6466
        %v6468 = vrot.slane %v6467, 1
        %v6469 = vadd.f32 %v6467, %v6468
        %v6470 = vmul.f32 %v6469, %v3459
        %v6471 = vadd.f32 %v6470, 1e-05
        %v6472 = vrsqrt.pop %v6471
        %v6473 = vmul.f32 %v6453, %v6472
        %v6474 = vmul.f32 %v6454, %v6472
        %v6475 = vmul.f32 %v6455, %v6472
        %v6476 = vmul.f32 %v6456, %v6472
        %v6477 = vmul.f32 %v6473, %v3841
        %v6478 = vmul.f32 %v6474, %v3845
        %v6479 = vmul.f32 %v6475, %v3849
        %v6480 = vmul.f32 %v6476, %v3853
        %v6481 = vadd.f32 %v6477, %v3861
        %v6482 = vadd.f32 %v6478, %v3865
        %v6483 = vadd.f32 %v6479, %v3869
        %v6484 = vadd.f32 %v6480, %v3873
        %v6485 = vadd.f32 %v6481, %v6316
        %v6486 = vadd.f32 %v6482, %v6317
        %v6487 = vadd.f32 %v6483, %v6318
        %v6488 = vadd.f32 %v6484, %v6319
        %6489 = vst [vmem:[%s325 + $0x8] sm:$0xff] %v6485
        %6490 = vst [vmem:[%s325 + $0x18] sm:$0xff] %v6486
        %6491 = vst [vmem:[%s325 + $0x28] sm:$0xff] %v6487
        %6492 = vst [vmem:[%s325 + $0x38] sm:$0xff] %v6488
        %s6493 = sand.u32 %s225, 1
        %s6494 = scalar_lea.sflag [#allocation3], %s6493
        %s6495 = sand.u32 %s225, 1
        %s6496 = smul.addr %s6495, 64
        %s6497 = scalar_lea.vmem [#allocation2], %s6496
        // Predicated region
        $region57: #{tpu_custom_call.1} parent=55 // pred_check
          %p6498 = pneg %p235
        $region58: #{tpu_custom_call.1} parent=55 // pred_check_branch
          %6500 = sbr.rel (%p6498) target = $region60
        $region59: #{tpu_custom_call.1} parent=55 // pred_region
          %s6502 = ssub.s32 1024, 1024
          %6503 = vsyncadd %s6494, %s6502
          %s6504 = smul.addr %s23, 8
          %s6505 = smul.addr %s6504, 128
          %s6506 = scalar_lea.hbm %s9, %s6505
          %s6507 = sshll.u32 %s6497, 4
          %s6508 = int_to_ptr.vmem [resolvable:$true] %s6507
          %6513 = dma.vmem_to_hbm [thread:$0]  %s6508, 1024, %s6506, %s6494, 256, 256, 16
        $region60: #{tpu_custom_call.1} parent=55 // pred_fallthru
          _
      $region56: #{tpu_custom_call.1} parent=5 // pred_fallthru
        _
      %p6514 = scmp.le.s32.totalorder 2, %s18
      // Predicated region
      $region61: #{tpu_custom_call.1} parent=5 // pred_check
        %p6515 = pneg %p6514
      $region62: #{tpu_custom_call.1} parent=5 // pred_check_branch
        %6517 = sbr.rel (%p6515) target = $region64
      $region63: #{tpu_custom_call.1} parent=5 // pred_region
        %s6518 = ssub.s32 %s18, 2
        // Predicated region
        $region65: #{tpu_custom_call.1} parent=63 // pred_check
          %p6519 = pneg %p241
        $region66: #{tpu_custom_call.1} parent=63 // pred_check_branch
          %6521 = sbr.rel (%p6519) target = $region68
        $region67: #{tpu_custom_call.1} parent=63 // pred_region
          %s6522 = sand.u32 %s226, 1
          %s6523 = scalar_lea.sflag [#allocation3], %s6522
          %s6524 = sand.u32 %s226, 1
          %s6525 = smul.addr %s6524, 64
          %s6526 = scalar_lea.vmem [#allocation2], %s6525
          %6527 = dma.done %s6523, 1024
        $region68: #{tpu_custom_call.1} parent=63 // pred_fallthru
          _
      $region64: #{tpu_custom_call.1} parent=5 // pred_fallthru
        _
    $region6: #{tpu_custom_call.1} parent=1 // loop_footer
      %s22 = sadd.s32 1, %s18
    $region7: #{tpu_custom_call.1} parent=1 // loop_footer_branch
      %17 = sbr.rel target = $region3
    $region8: #{tpu_custom_call.1} parent=1 // loop_exit
      _
    %6528 = vsyncpa [#allocation3], 1
    %s6529 = scalar_lea.sflag [#allocation3], 1
    %6530 = vsyncpa %s6529, 1

</llo_original>
